<compile_context>
chip_gen: v7x
topology: tpu7x:2x2x1
jax: 0.10.0
libtpu: 0.0.40
codegen_flags: <defaults>
</compile_context>

<pallas_src>
import jax
import jax.numpy as jnp
from jax.experimental import pallas as pl
from jax.experimental.pallas import tpu as pltpu

H_UNIT = 50                                  # ADMIT hidden width
HP = 128                                     # lane-padded hidden width inside the kernel
DEGREE = 2
KNOTS = (0.33, 0.66)
N_POWER_BASIS = DEGREE + 1 + len(KNOTS)      # 5   (out head, dynamic_type='power')
N_MLP_BASIS = 10                             # 10  (rwt head, dynamic_type='mlp')
MLP_TREAT_HIDDEN = 64
PI = 3.14159                                 # constant used by ADMIT's MLP_treatnet

SLAB_W = 128                                 # merged output: [hidden(50) | out | exp(w) | junk]
R_COL0 = N_POWER_BASIS * HP                  # rwt-head column offset in the fused wide weight

# packed small-weight slab: one 128x128 zero-padded column block per tensor (128-aligned)
_SEGS = ("fw_w", "fw_b", "h2_w", "h2_b", "o1_b", "r1_b",
         "o2_w", "o2_b", "r2_w", "r2_b", "m_w1", "m_b1", "m_w2", "m_b2")
SEG = {name: i for i, name in enumerate(_SEGS)}


# ----------------------------------------------------------------------------- kernel
def admit_kernel(xt_ref, w_ref, wide_ref, slab_ref):
    xt = xt_ref[...]                           # (tile, d_in+1), f32; last column is t
    din1 = xt.shape[1]
    t = xt[:, din1 - 1:din1]                   # (tile, 1)
    wdt = w_ref.dtype                          # f32 or bf16 (MXU operand dtype)

    def seg(name, rows, cols):                 # static slice of the packed weight slab
        c0 = SEG[name] * HP
        return w_ref[0:rows, c0:c0 + cols]

    def mm(a, b):                              # MXU dot, f32 accumulate
        return jnp.dot(a.astype(wdt), b, preferred_element_type=jnp.float32)

    # ---- hidden feature extractor: (Linear + ReLU) x 2; lanes 50:128 stay exactly 0 ----
    h = jnp.maximum(mm(xt, seg("fw_w", din1, HP)) + seg("fw_b", 1, HP), 0.0)
    h = jnp.maximum(mm(h, seg("h2_w", HP, HP)) + seg("h2_b", 1, HP), 0.0)

    # ---- truncated-power treatment basis, (tile, 5) ----
    basis_pow = jnp.concatenate(
        [jnp.ones_like(t), t, t * t,
         jnp.maximum(t - KNOTS[0], 0.0) ** 2,
         jnp.maximum(t - KNOTS[1], 0.0) ** 2], axis=1)

    # ---- fused treatment-MLP basis for the two rwt Dynamic_FC layers, (tile, 20) ----
    ts = jnp.sin(t * PI)
    tc = jnp.cos(t * PI)
    w1 = seg("m_w1", 3, 2 * MLP_TREAT_HIDDEN)                      # (3, 128)
    pre = jnp.maximum(t * w1[0:1, :] + ts * w1[1:2, :] + tc * w1[2:3, :]
                      + seg("m_b1", 1, 2 * MLP_TREAT_HIDDEN), 0.0)  # (tile, 128)
    bm = mm(pre, seg("m_w2", 2 * MLP_TREAT_HIDDEN, 2 * N_MLP_BASIS)) \
        + seg("m_b2", 1, 2 * N_MLP_BASIS)                           # (tile, 20)
    bm1 = bm[:, :N_MLP_BASIS]                                       # layer-1 basis
    bm2 = bm[:, N_MLP_BASIS:]                                       # layer-2 basis

    # ---- ONE fused wide varying-coefficient matmul for both heads' first layer ----
    z = mm(h, wide_ref[...])                                        # (tile, 15*128)

    def vc_wide(col0, basis, bias_name, d):
        # out[:, o] = sum_b basis[:, b] * (feat @ W[b, :, o] + bias[b, o])
        terms = [mm(basis, seg(bias_name, d, HP))]                  # bias term (tile, 128)
        for b in range(d):
            c = col0 + b * HP                                       # 128-aligned vreg slice
            terms.append(z[:, c:c + HP] * basis[:, b:b + 1])
        while len(terms) > 1:                                       # pairwise tree-sum
            nxt = [terms[i] + terms[i + 1] for i in range(0, len(terms) - 1, 2)]
            if len(terms) % 2:
                nxt.append(terms[-1])
            terms = nxt
        return terms[0]

    o1 = jnp.maximum(vc_wide(0, basis_pow, "o1_b", N_POWER_BASIS), 0.0)
    r1 = jnp.maximum(vc_wide(R_COL0, bm1, "r1_b", N_MLP_BASIS), 0.0)

    def vc_narrow(feat, basis, w_name, b_name, d):
        zz = mm(feat, seg(w_name, HP, d))                           # (tile, d)
        return jnp.sum(basis * (zz + seg(b_name, 1, d)), axis=-1, keepdims=True)

    out = vc_narrow(o1, basis_pow, "o2_w", "o2_b", N_POWER_BASIS)   # (tile, 1)
    r2 = vc_narrow(r1, bm2, "r2_w", "r2_b", N_MLP_BASIS)            # (tile, 1)
    ew = jnp.exp(2.0 / (1.0 + jnp.exp(-r2)))                        # un-normalized exp(2*sigmoid)

    # ---- lane-dense 128-wide output slab; only columns [0, 52) are meaningful ----
    slab_ref[:, 0:H_UNIT] = h[:, 0:H_UNIT]
    slab_ref[:, H_UNIT:H_UNIT + 1] = out
    slab_ref[:, H_UNIT + 1:H_UNIT + 2] = ew


# ----------------------------------------------------------------------------- wrapper
def _round_up(a, b):
    return (a + b - 1) // b * b


def _prepare_params(params, matmul_dtype):
    """Pre-fuse / lane-pad all weights outside the kernel (one-time XLA reshapes)."""
    (fw_w, fw_b, h2_w, h2_b, o1_w, o1_b, o2_w, o2_b,
     r1_w, r1_b, r1m_w1, r1m_b1, r1m_w2, r1m_b2,
     r2_w, r2_b, r2m_w1, r2m_b1, r2m_w2, r2m_b2) = params
    h = fw_w.shape[1]
    if h != H_UNIT:
        raise ValueError("h_unit mismatch")

    pad_c = lambda a: jnp.pad(a, ((0, 0), (0, HP - a.shape[1])))     # cols -> 128

    def cat_wide(W, b):            # W (d, h, h), b (d, h) -> (128, d*128), (d, 128)
        d = W.shape[0]
        Wp = jnp.pad(W, ((0, 0), (0, HP - h), (0, HP - h)))
        Wc = jnp.transpose(Wp, (1, 0, 2)).reshape(HP, d * HP)
        return Wc, pad_c(b)

    def cat_narrow(W, b):          # W (d, h, 1), b (d, 1) -> (128, d), (1, d)
        d = W.shape[0]
        Ws = jnp.pad(W[:, :, 0].T, ((0, HP - h), (0, 0)))
        return Ws, b.reshape(1, d)

    o1_wc, o1_bp = cat_wide(o1_w, o1_b)
    r1_wc, r1_bp = cat_wide(r1_w, r1_b)
    wide_w = jnp.concatenate([o1_wc, r1_wc], axis=1)                 # (128, 1920)
    o2_ws, o2_bt = cat_narrow(o2_w, o2_b)
    r2_ws, r2_bt = cat_narrow(r2_w, r2_b)

    # fused treatment-MLP: lane-concat w1/b1, block-diagonal w2, lane-concat b2
    m_w1 = jnp.concatenate([r1m_w1, r2m_w1], axis=1)                 # (3, 128)
    m_b1 = jnp.concatenate([r1m_b1, r2m_b1], axis=1)                 # (1, 128)
    m_w2 = jnp.zeros((2 * MLP_TREAT_HIDDEN, 2 * N_MLP_BASIS), jnp.float32)
    m_w2 = m_w2.at[:MLP_TREAT_HIDDEN, :N_MLP_BASIS].set(r1m_w2)
    m_w2 = m_w2.at[MLP_TREAT_HIDDEN:, N_MLP_BASIS:].set(r2m_w2)
    m_b2 = jnp.concatenate([r1m_b2, r2m_b2], axis=1)                 # (1, 20)

    # fw_w gets its t-column row from the pack's zero row padding (t appended last in xt)
    pieces = dict(fw_w=pad_c(fw_w), fw_b=pad_c(fw_b),
                  h2_w=jnp.pad(h2_w, ((0, HP - h), (0, HP - h))), h2_b=pad_c(h2_b),
                  o1_b=o1_bp, r1_b=r1_bp, o2_w=o2_ws, o2_b=o2_bt,
                  r2_w=r2_ws, r2_b=r2_bt, m_w1=m_w1, m_b1=m_b1, m_w2=m_w2, m_b2=m_b2)
    blocks = []
    for name in _SEGS:
        a = pieces[name]
        blocks.append(jnp.pad(a, ((0, HP - a.shape[0]), (0, HP - a.shape[1]))))
    wsmall = jnp.concatenate(blocks, axis=1)                         # (128, 14*128)
    return wsmall.astype(matmul_dtype), wide_w.astype(matmul_dtype)


def admit_forward(x, t, params, tile_rows=512, matmul_dtype=jnp.float32):
    n, d_in = x.shape
    if d_in + 1 > HP:
        raise ValueError("input_dim must be <= 127 for the packed-weight layout")
    x = x.astype(jnp.float32)
    t2 = t.reshape(n, 1).astype(jnp.float32)
    xt = jnp.concatenate([x, t2], axis=1)                            # t folded into x stream

    # tile: multiple of 8, and capped so the batch grid has >= 2 parallel steps (v7x dual-TC)
    tile = max(8, min(_round_up(tile_rows, 8), _round_up(-(-n // 2), 8)))
    n_pad = _round_up(n, tile)
    if n_pad != n:
        xt = jnp.pad(xt, ((0, n_pad - n), (0, 0)))

    wsmall, wide_w = _prepare_params(params, matmul_dtype)

    nb = N_POWER_BASIS + N_MLP_BASIS
    flops_row = 2 * ((d_in + 1) * HP + HP * HP + HP * nb * HP + nb * HP + HP * nb
                     + 2 * MLP_TREAT_HIDDEN * 2 * N_MLP_BASIS)
    cost = pl.CostEstimate(
        flops=int(n_pad * flops_row),
        transcendentals=int(4 * n_pad),
        bytes_accessed=int(4 * n_pad * (d_in + 1 + SLAB_W)
                           + jnp.dtype(matmul_dtype).itemsize * (wsmall.size + wide_w.size)))

    slab = pl.pallas_call(
        admit_kernel,
        out_shape=jax.ShapeDtypeStruct((n_pad, SLAB_W), jnp.float32),
        grid=(n_pad // tile,),
        in_specs=[pl.BlockSpec((tile, d_in + 1), lambda i: (i, 0)),
                  pl.BlockSpec(wsmall.shape, lambda i: (0, 0)),     # VMEM-resident weights
                  pl.BlockSpec(wide_w.shape, lambda i: (0, 0))],
        out_specs=pl.BlockSpec((tile, SLAB_W), lambda i: (i, 0)),
        compiler_params=pltpu.CompilerParams(
            dimension_semantics=("parallel",),
            vmem_limit_bytes=32 * 1024 * 1024),
        cost_estimate=cost,
    )(xt, wsmall, wide_w)

    hidden = slab[:n, :H_UNIT]
    out = slab[:n, H_UNIT:H_UNIT + 1]
    ew = slab[:n, H_UNIT + 1:H_UNIT + 2]
    w = ew / jnp.sum(ew) * float(n)              # global normalization (hoisted out of kernel)
    return out, w, hidden


# ----------------------------------------------------------------------------- params
def init_params(key, input_dim, h=H_UNIT, init_std=0.01, bias_std=0.0):
    """Synthetic parameters matching ADMIT._initialize_weights (Linear ~ N(0,0.01),
    Dynamic_FC ~ N(0,init)); bias_std=0 reproduces the zero-bias init."""
    ks = jax.random.split(key, 20)
    nrm = lambda k, shape, std: (jax.random.normal(k, shape) * std).astype(jnp.float32)
    b = lambda k, shape: nrm(k, shape, bias_std)
    return [
        nrm(ks[0], (input_dim, h), 0.01), b(ks[10], (1, h)),
        nrm(ks[1], (h, h), 0.01), b(ks[11], (1, h)),
        nrm(ks[2], (N_POWER_BASIS, h, h), init_std), b(ks[12], (N_POWER_BASIS, h)),
        nrm(ks[3], (N_POWER_BASIS, h, 1), init_std), b(ks[13], (N_POWER_BASIS, 1)),
        nrm(ks[4], (N_MLP_BASIS, h, h), init_std), b(ks[14], (N_MLP_BASIS, h)),
        nrm(ks[5], (3, MLP_TREAT_HIDDEN), 0.01), b(ks[15], (1, MLP_TREAT_HIDDEN)),
        nrm(ks[6], (MLP_TREAT_HIDDEN, N_MLP_BASIS), 0.01), b(ks[16], (1, N_MLP_BASIS)),
        nrm(ks[7], (N_MLP_BASIS, h, 1), init_std), b(ks[17], (N_MLP_BASIS, 1)),
        nrm(ks[8], (3, MLP_TREAT_HIDDEN), 0.01), b(ks[18], (1, MLP_TREAT_HIDDEN)),
        nrm(ks[9], (MLP_TREAT_HIDDEN, N_MLP_BASIS), 0.01), b(ks[19], (1, N_MLP_BASIS)),
    ]


# ----------------------------------------------------------------------------- reference
def admit_reference(x, t, params):
    """Pure-JAX reference mirroring the PyTorch forward, for correctness check."""
    (fw_w, fw_b, h2_w, h2_b, o1_w, o1_b, o2_w, o2_b,
     r1_w, r1_b, r1m_w1, r1m_b1, r1m_w2, r1m_b2,
     r2_w, r2_b, r2m_w1, r2m_b1, r2m_w2, r2m_b2) = params
    n = x.shape[0]
    t1 = t.reshape(n, 1)
    h = jnp.maximum(x @ fw_w + fw_b, 0.0)
    h = jnp.maximum(h @ h2_w + h2_b, 0.0)
    basis_p = jnp.concatenate([jnp.ones_like(t1), t1, t1 * t1,
                               jnp.maximum(t1 - KNOTS[0], 0.0) ** 2,
                               jnp.maximum(t1 - KNOTS[1], 0.0) ** 2], axis=1)

    def dfc(feat, basis, W, b):
        return jnp.einsum('ni,dio,nd->no', feat, W, basis) + basis @ b

    def mlp_basis(w1, b1, w2, b2):
        tf = jnp.concatenate([t1, jnp.sin(t1 * PI), jnp.cos(t1 * PI)], axis=1)
        return jnp.maximum(tf @ w1 + b1, 0.0) @ w2 + b2

    o1 = jnp.maximum(dfc(h, basis_p, o1_w, o1_b), 0.0)
    out = dfc(o1, basis_p, o2_w, o2_b)
    bm1 = mlp_basis(r1m_w1, r1m_b1, r1m_w2, r1m_b2)
    bm2 = mlp_basis(r2m_w1, r2m_b1, r2m_w2, r2m_b2)
    r1 = jnp.maximum(dfc(h, bm1, r1_w, r1_b), 0.0)
    r2 = dfc(r1, bm2, r2_w, r2_b)
    w = (1.0 / (1.0 + jnp.exp(-r2))) * 2.0
    w = jnp.exp(w) / jnp.sum(jnp.exp(w)) * n
    return out, w, h


if __name__ == "__main__":
    key = jax.random.PRNGKey(0)
    kx, kt, kp = jax.random.split(key, 3)
    N, D = 200, 32                   # small synthetic shapes; N not a tile multiple on purpose
    x = jax.random.normal(kx, (N, D), jnp.float32)
    t = jax.random.uniform(kt, (N,), jnp.float32)
    # bias_std=0.01 deviates from ADMIT's zero-bias init so the bias paths are exercised.
    params = init_params(kp, D, bias_std=0.01)

    out_r, w_r, h_r = admit_reference(x, t, params)

    # f32 path (parity target); tile_rows=128 -> tile=104, 2 grid steps + row-padding path.
    out, w, hidden = admit_forward(x, t, params, tile_rows=128)
    jax.block_until_ready((out, w, hidden))
    assert out.shape == (N, 1) and w.shape == (N, 1) and hidden.shape == (N, H_UNIT)
    # tolerance allows for f32-MXU pass-ordering differences vs XLA's default matmul path
    assert jnp.allclose(out, out_r, atol=2e-4, rtol=2e-4)
    assert jnp.allclose(w, w_r, atol=2e-4, rtol=2e-4)
    assert jnp.allclose(hidden, h_r, atol=2e-4, rtol=2e-4)

    # bf16-operand MXU path (recommended on v6e/v7x); looser tolerance.
    out_b, w_b, hid_b = admit_forward(x, t, params, tile_rows=128, matmul_dtype=jnp.bfloat16)
    jax.block_until_ready((out_b, w_b, hid_b))
    assert jnp.allclose(out_b, out_r, atol=1e-2, rtol=1e-2)
    assert jnp.allclose(w_b, w_r, atol=1e-2, rtol=1e-2)
    assert jnp.allclose(hid_b, h_r, atol=1e-2, rtol=1e-2)

    print("KERNEL_OK")
</pallas_src>

<mosaic_0001>
module attributes {stable_mosaic.version = 11 : i64} {
  func.func @admit_kernel(%arg0: i32, %arg1: memref<104x33xf32, #tpu.memory_space<vmem>>, %arg2: memref<128x1792xf32, #tpu.memory_space<vmem>>, %arg3: memref<128x1920xf32, #tpu.memory_space<vmem>>, %arg4: memref<104x128xf32, #tpu.memory_space<vmem>>) attributes {dimension_semantics = [#tpu.dimension_semantics<parallel>], iteration_bounds = array<i64: 2>, scalar_prefetch = 0 : i64, scratch_operands = 0 : i64, tpu.core_type = #tpu.core_type<tc>, window_params = [{transform_indices = @transform_0, window_bounds = array<i64: 104, 33>}, {pipeline_mode = #tpu.pipeline_mode<synchronous>, transform_indices = @transform_1, window_bounds = array<i64: 128, 1792>}, {pipeline_mode = #tpu.pipeline_mode<synchronous>, transform_indices = @transform_2, window_bounds = array<i64: 128, 1920>}, {transform_indices = @transform_3, window_bounds = array<i64: 104, 128>}]} {
    %c0 = arith.constant 0 : index
    %c0_0 = arith.constant 0 : index
    %0 = vector.load %arg1[%c0, %c0_0] : memref<104x33xf32, #tpu.memory_space<vmem>>, vector<104x33xf32>
    %1 = vector.extract_strided_slice %0 {offsets = [0, 32], sizes = [104, 1], strides = [1, 1]} : vector<104x33xf32> to vector<104x1xf32>
    %c0_1 = arith.constant 0 : index
    %c0_2 = arith.constant 0 : index
    %2 = vector.load %arg2[%c0_1, %c0_2] : memref<128x1792xf32, #tpu.memory_space<vmem>>, vector<33x128xf32>
    %cst = arith.constant dense<0.000000e+00> : vector<104x128xf32>
    %3 = tpu.matmul %0, %2, %cst {dimension_numbers = #tpu.dot_dimension_numbers<[1], [0], [0], [1], [0, 0, 1, 1], [], []>} : vector<104x33xf32>, vector<33x128xf32>, vector<104x128xf32> -> vector<104x128xf32>
    %c0_3 = arith.constant 0 : index
    %c128 = arith.constant 128 : index
    %4 = vector.load %arg2[%c0_3, %c128] : memref<128x1792xf32, #tpu.memory_space<vmem>>, vector<1x128xf32>
    %5 = vector.broadcast %4 : vector<1x128xf32> to vector<104x128xf32>
    %6 = arith.addf %3, %5 : vector<104x128xf32>
    %cst_4 = arith.constant 0.000000e+00 : f32
    %7 = vector.broadcast %cst_4 : f32 to vector<104x128xf32>
    %8 = arith.maximumf %6, %7 : vector<104x128xf32>
    %c0_5 = arith.constant 0 : index
    %c256 = arith.constant 256 : index
    %9 = vector.load %arg2[%c0_5, %c256] : memref<128x1792xf32, #tpu.memory_space<vmem>>, vector<128x128xf32>
    %cst_6 = arith.constant dense<0.000000e+00> : vector<104x128xf32>
    %10 = tpu.matmul %8, %9, %cst_6 {dimension_numbers = #tpu.dot_dimension_numbers<[1], [0], [0], [1], [0, 0, 1, 1], [], []>} : vector<104x128xf32>, vector<128x128xf32>, vector<104x128xf32> -> vector<104x128xf32>
    %c0_7 = arith.constant 0 : index
    %c384 = arith.constant 384 : index
    %11 = vector.load %arg2[%c0_7, %c384] : memref<128x1792xf32, #tpu.memory_space<vmem>>, vector<1x128xf32>
    %12 = vector.broadcast %11 : vector<1x128xf32> to vector<104x128xf32>
    %13 = arith.addf %10, %12 : vector<104x128xf32>
    %cst_8 = arith.constant 0.000000e+00 : f32
    %14 = vector.broadcast %cst_8 : f32 to vector<104x128xf32>
    %15 = arith.maximumf %13, %14 : vector<104x128xf32>
    %cst_9 = arith.constant 1.000000e+00 : f32
    %16 = vector.broadcast %cst_9 : f32 to vector<104x1xf32>
    %17 = arith.mulf %1, %1 : vector<104x1xf32>
    %cst_10 = arith.constant 3.300000e-01 : f32
    %18 = vector.broadcast %cst_10 : f32 to vector<104x1xf32>
    %19 = arith.subf %1, %18 : vector<104x1xf32>
    %cst_11 = arith.constant 0.000000e+00 : f32
    %20 = vector.broadcast %cst_11 : f32 to vector<104x1xf32>
    %21 = arith.maximumf %19, %20 : vector<104x1xf32>
    %22 = arith.mulf %21, %21 : vector<104x1xf32>
    %cst_12 = arith.constant 6.600000e-01 : f32
    %23 = vector.broadcast %cst_12 : f32 to vector<104x1xf32>
    %24 = arith.subf %1, %23 : vector<104x1xf32>
    %cst_13 = arith.constant 0.000000e+00 : f32
    %25 = vector.broadcast %cst_13 : f32 to vector<104x1xf32>
    %26 = arith.maximumf %24, %25 : vector<104x1xf32>
    %27 = arith.mulf %26, %26 : vector<104x1xf32>
    %28 = tpu.concatenate %16, %1, %17, %22, %27 in 1 : vector<104x1xf32>, vector<104x1xf32>, vector<104x1xf32>, vector<104x1xf32>, vector<104x1xf32> -> vector<104x5xf32>
    %cst_14 = arith.constant 3.141590e+00 : f32
    %29 = vector.broadcast %cst_14 : f32 to vector<104x1xf32>
    %30 = arith.mulf %1, %29 : vector<104x1xf32>
    %31 = math.sin %30 : vector<104x1xf32>
    %cst_15 = arith.constant 3.141590e+00 : f32
    %32 = vector.broadcast %cst_15 : f32 to vector<104x1xf32>
    %33 = arith.mulf %1, %32 : vector<104x1xf32>
    %34 = math.cos %33 : vector<104x1xf32>
    %c0_16 = arith.constant 0 : index
    %c1280 = arith.constant 1280 : index
    %35 = vector.load %arg2[%c0_16, %c1280] : memref<128x1792xf32, #tpu.memory_space<vmem>>, vector<3x128xf32>
    %36 = vector.extract_strided_slice %35 {offsets = [0, 0], sizes = [1, 128], strides = [1, 1]} : vector<3x128xf32> to vector<1x128xf32>
    %37 = vector.broadcast %1 : vector<104x1xf32> to vector<104x128xf32>
    %38 = vector.broadcast %36 : vector<1x128xf32> to vector<104x128xf32>
    %39 = arith.mulf %37, %38 : vector<104x128xf32>
    %40 = vector.extract_strided_slice %35 {offsets = [1, 0], sizes = [1, 128], strides = [1, 1]} : vector<3x128xf32> to vector<1x128xf32>
    %41 = vector.broadcast %31 : vector<104x1xf32> to vector<104x128xf32>
    %42 = vector.broadcast %40 : vector<1x128xf32> to vector<104x128xf32>
    %43 = arith.mulf %41, %42 : vector<104x128xf32>
    %44 = arith.addf %39, %43 : vector<104x128xf32>
    %45 = vector.extract_strided_slice %35 {offsets = [2, 0], sizes = [1, 128], strides = [1, 1]} : vector<3x128xf32> to vector<1x128xf32>
    %46 = vector.broadcast %34 : vector<104x1xf32> to vector<104x128xf32>
    %47 = vector.broadcast %45 : vector<1x128xf32> to vector<104x128xf32>
    %48 = arith.mulf %46, %47 : vector<104x128xf32>
    %49 = arith.addf %44, %48 : vector<104x128xf32>
    %c0_17 = arith.constant 0 : index
    %c1408 = arith.constant 1408 : index
    %50 = vector.load %arg2[%c0_17, %c1408] : memref<128x1792xf32, #tpu.memory_space<vmem>>, vector<1x128xf32>
    %51 = vector.broadcast %50 : vector<1x128xf32> to vector<104x128xf32>
    %52 = arith.addf %49, %51 : vector<104x128xf32>
    %cst_18 = arith.constant 0.000000e+00 : f32
    %53 = vector.broadcast %cst_18 : f32 to vector<104x128xf32>
    %54 = arith.maximumf %52, %53 : vector<104x128xf32>
    %c0_19 = arith.constant 0 : index
    %c1536 = arith.constant 1536 : index
    %55 = vector.load %arg2[%c0_19, %c1536] : memref<128x1792xf32, #tpu.memory_space<vmem>>, vector<128x20xf32>
    %cst_20 = arith.constant dense<0.000000e+00> : vector<104x20xf32>
    %56 = tpu.matmul %54, %55, %cst_20 {dimension_numbers = #tpu.dot_dimension_numbers<[1], [0], [0], [1], [0, 0, 1, 1], [], []>} : vector<104x128xf32>, vector<128x20xf32>, vector<104x20xf32> -> vector<104x20xf32>
    %c0_21 = arith.constant 0 : index
    %c1664 = arith.constant 1664 : index
    %57 = vector.load %arg2[%c0_21, %c1664] : memref<128x1792xf32, #tpu.memory_space<vmem>>, vector<1x20xf32>
    %58 = vector.broadcast %57 : vector<1x20xf32> to vector<104x20xf32>
    %59 = arith.addf %56, %58 : vector<104x20xf32>
    %60 = vector.extract_strided_slice %59 {offsets = [0, 0], sizes = [104, 10], strides = [1, 1]} : vector<104x20xf32> to vector<104x10xf32>
    %61 = vector.extract_strided_slice %59 {offsets = [0, 10], sizes = [104, 10], strides = [1, 1]} : vector<104x20xf32> to vector<104x10xf32>
    %c0_22 = arith.constant 0 : index
    %c0_23 = arith.constant 0 : index
    %62 = vector.load %arg3[%c0_22, %c0_23] : memref<128x1920xf32, #tpu.memory_space<vmem>>, vector<128x1920xf32>
    %cst_24 = arith.constant dense<0.000000e+00> : vector<104x1920xf32>
    %63 = tpu.matmul %15, %62, %cst_24 {dimension_numbers = #tpu.dot_dimension_numbers<[1], [0], [0], [1], [0, 0, 1, 1], [], []>} : vector<104x128xf32>, vector<128x1920xf32>, vector<104x1920xf32> -> vector<104x1920xf32>
    %c0_25 = arith.constant 0 : index
    %c512 = arith.constant 512 : index
    %64 = vector.load %arg2[%c0_25, %c512] : memref<128x1792xf32, #tpu.memory_space<vmem>>, vector<5x128xf32>
    %cst_26 = arith.constant dense<0.000000e+00> : vector<104x128xf32>
    %65 = tpu.matmul %28, %64, %cst_26 {dimension_numbers = #tpu.dot_dimension_numbers<[1], [0], [0], [1], [0, 0, 1, 1], [], []>} : vector<104x5xf32>, vector<5x128xf32>, vector<104x128xf32> -> vector<104x128xf32>
    %66 = vector.extract_strided_slice %63 {offsets = [0, 0], sizes = [104, 128], strides = [1, 1]} : vector<104x1920xf32> to vector<104x128xf32>
    %67 = vector.extract_strided_slice %28 {offsets = [0, 0], sizes = [104, 1], strides = [1, 1]} : vector<104x5xf32> to vector<104x1xf32>
    %68 = vector.broadcast %67 : vector<104x1xf32> to vector<104x128xf32>
    %69 = arith.mulf %66, %68 : vector<104x128xf32>
    %70 = vector.extract_strided_slice %63 {offsets = [0, 128], sizes = [104, 128], strides = [1, 1]} : vector<104x1920xf32> to vector<104x128xf32>
    %71 = vector.extract_strided_slice %28 {offsets = [0, 1], sizes = [104, 1], strides = [1, 1]} : vector<104x5xf32> to vector<104x1xf32>
    %72 = vector.broadcast %71 : vector<104x1xf32> to vector<104x128xf32>
    %73 = arith.mulf %70, %72 : vector<104x128xf32>
    %74 = vector.extract_strided_slice %63 {offsets = [0, 256], sizes = [104, 128], strides = [1, 1]} : vector<104x1920xf32> to vector<104x128xf32>
    %75 = vector.extract_strided_slice %28 {offsets = [0, 2], sizes = [104, 1], strides = [1, 1]} : vector<104x5xf32> to vector<104x1xf32>
    %76 = vector.broadcast %75 : vector<104x1xf32> to vector<104x128xf32>
    %77 = arith.mulf %74, %76 : vector<104x128xf32>
    %78 = vector.extract_strided_slice %63 {offsets = [0, 384], sizes = [104, 128], strides = [1, 1]} : vector<104x1920xf32> to vector<104x128xf32>
    %79 = vector.extract_strided_slice %28 {offsets = [0, 3], sizes = [104, 1], strides = [1, 1]} : vector<104x5xf32> to vector<104x1xf32>
    %80 = vector.broadcast %79 : vector<104x1xf32> to vector<104x128xf32>
    %81 = arith.mulf %78, %80 : vector<104x128xf32>
    %82 = vector.extract_strided_slice %63 {offsets = [0, 512], sizes = [104, 128], strides = [1, 1]} : vector<104x1920xf32> to vector<104x128xf32>
    %83 = vector.extract_strided_slice %28 {offsets = [0, 4], sizes = [104, 1], strides = [1, 1]} : vector<104x5xf32> to vector<104x1xf32>
    %84 = vector.broadcast %83 : vector<104x1xf32> to vector<104x128xf32>
    %85 = arith.mulf %82, %84 : vector<104x128xf32>
    %86 = arith.addf %65, %69 : vector<104x128xf32>
    %87 = arith.addf %73, %77 : vector<104x128xf32>
    %88 = arith.addf %81, %85 : vector<104x128xf32>
    %89 = arith.addf %86, %87 : vector<104x128xf32>
    %90 = arith.addf %89, %88 : vector<104x128xf32>
    %cst_27 = arith.constant 0.000000e+00 : f32
    %91 = vector.broadcast %cst_27 : f32 to vector<104x128xf32>
    %92 = arith.maximumf %90, %91 : vector<104x128xf32>
    %c0_28 = arith.constant 0 : index
    %c640 = arith.constant 640 : index
    %93 = vector.load %arg2[%c0_28, %c640] : memref<128x1792xf32, #tpu.memory_space<vmem>>, vector<10x128xf32>
    %cst_29 = arith.constant dense<0.000000e+00> : vector<104x128xf32>
    %94 = tpu.matmul %60, %93, %cst_29 {dimension_numbers = #tpu.dot_dimension_numbers<[1], [0], [0], [1], [0, 0, 1, 1], [], []>} : vector<104x10xf32>, vector<10x128xf32>, vector<104x128xf32> -> vector<104x128xf32>
    %95 = vector.extract_strided_slice %63 {offsets = [0, 640], sizes = [104, 128], strides = [1, 1]} : vector<104x1920xf32> to vector<104x128xf32>
    %96 = vector.extract_strided_slice %60 {offsets = [0, 0], sizes = [104, 1], strides = [1, 1]} : vector<104x10xf32> to vector<104x1xf32>
    %97 = vector.broadcast %96 : vector<104x1xf32> to vector<104x128xf32>
    %98 = arith.mulf %95, %97 : vector<104x128xf32>
    %99 = vector.extract_strided_slice %63 {offsets = [0, 768], sizes = [104, 128], strides = [1, 1]} : vector<104x1920xf32> to vector<104x128xf32>
    %100 = vector.extract_strided_slice %60 {offsets = [0, 1], sizes = [104, 1], strides = [1, 1]} : vector<104x10xf32> to vector<104x1xf32>
    %101 = vector.broadcast %100 : vector<104x1xf32> to vector<104x128xf32>
    %102 = arith.mulf %99, %101 : vector<104x128xf32>
    %103 = vector.extract_strided_slice %63 {offsets = [0, 896], sizes = [104, 128], strides = [1, 1]} : vector<104x1920xf32> to vector<104x128xf32>
    %104 = vector.extract_strided_slice %60 {offsets = [0, 2], sizes = [104, 1], strides = [1, 1]} : vector<104x10xf32> to vector<104x1xf32>
    %105 = vector.broadcast %104 : vector<104x1xf32> to vector<104x128xf32>
    %106 = arith.mulf %103, %105 : vector<104x128xf32>
    %107 = vector.extract_strided_slice %63 {offsets = [0, 1024], sizes = [104, 128], strides = [1, 1]} : vector<104x1920xf32> to vector<104x128xf32>
    %108 = vector.extract_strided_slice %60 {offsets = [0, 3], sizes = [104, 1], strides = [1, 1]} : vector<104x10xf32> to vector<104x1xf32>
    %109 = vector.broadcast %108 : vector<104x1xf32> to vector<104x128xf32>
    %110 = arith.mulf %107, %109 : vector<104x128xf32>
    %111 = vector.extract_strided_slice %63 {offsets = [0, 1152], sizes = [104, 128], strides = [1, 1]} : vector<104x1920xf32> to vector<104x128xf32>
    %112 = vector.extract_strided_slice %60 {offsets = [0, 4], sizes = [104, 1], strides = [1, 1]} : vector<104x10xf32> to vector<104x1xf32>
    %113 = vector.broadcast %112 : vector<104x1xf32> to vector<104x128xf32>
    %114 = arith.mulf %111, %113 : vector<104x128xf32>
    %115 = vector.extract_strided_slice %63 {offsets = [0, 1280], sizes = [104, 128], strides = [1, 1]} : vector<104x1920xf32> to vector<104x128xf32>
    %116 = vector.extract_strided_slice %60 {offsets = [0, 5], sizes = [104, 1], strides = [1, 1]} : vector<104x10xf32> to vector<104x1xf32>
    %117 = vector.broadcast %116 : vector<104x1xf32> to vector<104x128xf32>
    %118 = arith.mulf %115, %117 : vector<104x128xf32>
    %119 = vector.extract_strided_slice %63 {offsets = [0, 1408], sizes = [104, 128], strides = [1, 1]} : vector<104x1920xf32> to vector<104x128xf32>
    %120 = vector.extract_strided_slice %60 {offsets = [0, 6], sizes = [104, 1], strides = [1, 1]} : vector<104x10xf32> to vector<104x1xf32>
    %121 = vector.broadcast %120 : vector<104x1xf32> to vector<104x128xf32>
    %122 = arith.mulf %119, %121 : vector<104x128xf32>
    %123 = vector.extract_strided_slice %63 {offsets = [0, 1536], sizes = [104, 128], strides = [1, 1]} : vector<104x1920xf32> to vector<104x128xf32>
    %124 = vector.extract_strided_slice %60 {offsets = [0, 7], sizes = [104, 1], strides = [1, 1]} : vector<104x10xf32> to vector<104x1xf32>
    %125 = vector.broadcast %124 : vector<104x1xf32> to vector<104x128xf32>
    %126 = arith.mulf %123, %125 : vector<104x128xf32>
    %127 = vector.extract_strided_slice %63 {offsets = [0, 1664], sizes = [104, 128], strides = [1, 1]} : vector<104x1920xf32> to vector<104x128xf32>
    %128 = vector.extract_strided_slice %60 {offsets = [0, 8], sizes = [104, 1], strides = [1, 1]} : vector<104x10xf32> to vector<104x1xf32>
    %129 = vector.broadcast %128 : vector<104x1xf32> to vector<104x128xf32>
    %130 = arith.mulf %127, %129 : vector<104x128xf32>
    %131 = vector.extract_strided_slice %63 {offsets = [0, 1792], sizes = [104, 128], strides = [1, 1]} : vector<104x1920xf32> to vector<104x128xf32>
    %132 = vector.extract_strided_slice %60 {offsets = [0, 9], sizes = [104, 1], strides = [1, 1]} : vector<104x10xf32> to vector<104x1xf32>
    %133 = vector.broadcast %132 : vector<104x1xf32> to vector<104x128xf32>
    %134 = arith.mulf %131, %133 : vector<104x128xf32>
    %135 = arith.addf %94, %98 : vector<104x128xf32>
    %136 = arith.addf %102, %106 : vector<104x128xf32>
    %137 = arith.addf %110, %114 : vector<104x128xf32>
    %138 = arith.addf %118, %122 : vector<104x128xf32>
    %139 = arith.addf %126, %130 : vector<104x128xf32>
    %140 = arith.addf %135, %136 : vector<104x128xf32>
    %141 = arith.addf %137, %138 : vector<104x128xf32>
    %142 = arith.addf %139, %134 : vector<104x128xf32>
    %143 = arith.addf %140, %141 : vector<104x128xf32>
    %144 = arith.addf %143, %142 : vector<104x128xf32>
    %cst_30 = arith.constant 0.000000e+00 : f32
    %145 = vector.broadcast %cst_30 : f32 to vector<104x128xf32>
    %146 = arith.maximumf %144, %145 : vector<104x128xf32>
    %c0_31 = arith.constant 0 : index
    %c768 = arith.constant 768 : index
    %147 = vector.load %arg2[%c0_31, %c768] : memref<128x1792xf32, #tpu.memory_space<vmem>>, vector<128x5xf32>
    %cst_32 = arith.constant dense<0.000000e+00> : vector<104x5xf32>
    %148 = tpu.matmul %92, %147, %cst_32 {dimension_numbers = #tpu.dot_dimension_numbers<[1], [0], [0], [1], [0, 0, 1, 1], [], []>} : vector<104x128xf32>, vector<128x5xf32>, vector<104x5xf32> -> vector<104x5xf32>
    %c0_33 = arith.constant 0 : index
    %c896 = arith.constant 896 : index
    %149 = vector.load %arg2[%c0_33, %c896] : memref<128x1792xf32, #tpu.memory_space<vmem>>, vector<1x5xf32>
    %150 = vector.broadcast %149 : vector<1x5xf32> to vector<104x5xf32>
    %151 = arith.addf %148, %150 : vector<104x5xf32>
    %152 = arith.mulf %28, %151 : vector<104x5xf32>
    %cst_34 = arith.constant dense<0.000000e+00> : vector<104xf32>
    %153 = vector.multi_reduction <add>, %152, %cst_34 [1] : vector<104x5xf32> to vector<104xf32>
    %154 = vector.shape_cast %153 : vector<104xf32> to vector<104x1xf32>
    %c0_35 = arith.constant 0 : index
    %c1024 = arith.constant 1024 : index
    %155 = vector.load %arg2[%c0_35, %c1024] : memref<128x1792xf32, #tpu.memory_space<vmem>>, vector<128x10xf32>
    %cst_36 = arith.constant dense<0.000000e+00> : vector<104x10xf32>
    %156 = tpu.matmul %146, %155, %cst_36 {dimension_numbers = #tpu.dot_dimension_numbers<[1], [0], [0], [1], [0, 0, 1, 1], [], []>} : vector<104x128xf32>, vector<128x10xf32>, vector<104x10xf32> -> vector<104x10xf32>
    %c0_37 = arith.constant 0 : index
    %c1152 = arith.constant 1152 : index
    %157 = vector.load %arg2[%c0_37, %c1152] : memref<128x1792xf32, #tpu.memory_space<vmem>>, vector<1x10xf32>
    %158 = vector.broadcast %157 : vector<1x10xf32> to vector<104x10xf32>
    %159 = arith.addf %156, %158 : vector<104x10xf32>
    %160 = arith.mulf %61, %159 : vector<104x10xf32>
    %cst_38 = arith.constant dense<0.000000e+00> : vector<104xf32>
    %161 = vector.multi_reduction <add>, %160, %cst_38 [1] : vector<104x10xf32> to vector<104xf32>
    %162 = vector.shape_cast %161 : vector<104xf32> to vector<104x1xf32>
    %cst_39 = arith.constant 0.000000e+00 : f32
    %163 = vector.broadcast %cst_39 : f32 to vector<104x1xf32>
    %164 = arith.subf %163, %162 : vector<104x1xf32>
    %165 = math.exp %164 : vector<104x1xf32>
    %cst_40 = arith.constant 1.000000e+00 : f32
    %166 = vector.broadcast %cst_40 : f32 to vector<104x1xf32>
    %167 = arith.addf %166, %165 : vector<104x1xf32>
    %cst_41 = arith.constant 2.000000e+00 : f32
    %168 = vector.broadcast %cst_41 : f32 to vector<104x1xf32>
    %169 = arith.divf %168, %167 : vector<104x1xf32>
    %170 = math.exp %169 : vector<104x1xf32>
    %171 = vector.extract_strided_slice %15 {offsets = [0, 0], sizes = [104, 50], strides = [1, 1]} : vector<104x128xf32> to vector<104x50xf32>
    %c0_42 = arith.constant 0 : index
    %c0_43 = arith.constant 0 : index
    %172 = vector.load %arg4[%c0_42, %c0_43] : memref<104x128xf32, #tpu.memory_space<vmem>>, vector<104x50xf32>
    tpu.vector_store %arg4[%c0_42, %c0_43], %171 {strides = array<i32>} : memref<104x128xf32, #tpu.memory_space<vmem>>, vector<104x50xf32>,
    %c0_44 = arith.constant 0 : index
    %c50 = arith.constant 50 : index
    %173 = vector.load %arg4[%c0_44, %c50] : memref<104x128xf32, #tpu.memory_space<vmem>>, vector<104x1xf32>
    tpu.vector_store %arg4[%c0_44, %c50], %154 {strides = array<i32>} : memref<104x128xf32, #tpu.memory_space<vmem>>, vector<104x1xf32>,
    %c0_45 = arith.constant 0 : index
    %c51 = arith.constant 51 : index
    %174 = vector.load %arg4[%c0_45, %c51] : memref<104x128xf32, #tpu.memory_space<vmem>>, vector<104x1xf32>
    tpu.vector_store %arg4[%c0_45, %c51], %170 {strides = array<i32>} : memref<104x128xf32, #tpu.memory_space<vmem>>, vector<104x1xf32>,
    return
  }
  func.func @transform_0(%arg0: i32) -> (i32, i32) {
    %c0_i32 = arith.constant 0 : i32
    %c0_i32_0 = arith.constant 0 : i32
    return %arg0, %c0_i32 : i32, i32
  }
  func.func @transform_1(%arg0: i32) -> (i32, i32) {
    %c0_i32 = arith.constant 0 : i32
    %c0_i32_0 = arith.constant 0 : i32
    %c0_i32_1 = arith.constant 0 : i32
    return %c0_i32, %c0_i32_0 : i32, i32
  }
  func.func @transform_2(%arg0: i32) -> (i32, i32) {
    %c0_i32 = arith.constant 0 : i32
    %c0_i32_0 = arith.constant 0 : i32
    %c0_i32_1 = arith.constant 0 : i32
    return %c0_i32, %c0_i32_0 : i32, i32
  }
  func.func @transform_3(%arg0: i32) -> (i32, i32) {
    %c0_i32 = arith.constant 0 : i32
    %c0_i32_0 = arith.constant 0 : i32
    return %arg0, %c0_i32 : i32, i32
  }
}

</mosaic_0001>

<llo_original>
// kernel: tpu_custom_call.1
$region0: #{tpu_custom_call.1}
  #allocation0 [shape = 'u32[]', space=smem, size = 0x4, offset = 0x4, fixed_abs, tag = 'smem constant byte address 0x4 - core index']
  #allocation1 [shape = 'u32[144,128]{1,0:T(1,128)}', space=vmem, size = 0x12000, scoped, tag = 'internal scratch']
  %s0 = inlined_call_operand.vmem [shape: f32[208,33], index: 0, kind: input, shape index: {}]
  %s1 = inlined_call_operand.hbm [shape: f32[128,1792], index: 1, kind: input, shape index: {}]
  %s2 = inlined_call_operand.hbm [shape: f32[128,1920], index: 2, kind: input, shape index: {}]
  %s3 = inlined_call_operand.hbm [shape: f32[208,128], index: 3, kind: output, shape index: {}]
  %s4 = sld [smem:[#allocation0]]
  $region53: #{tpu_custom_call.1} parent=0
    _
  %s6 = ssub.s32 1, %s4
  %s7 = scalar_select 0, %s6, %s4
  $region1: #{tpu_custom_call.1} parent=0
    #allocation2 [shape = 'u8[917504]{0}', space=vmem, size = 0xe0000, scoped, tag = 'input window, operand 1, single buffered']
    #allocation3 [shape = 's32[2]{0}', space=sflag, size = 0x8, scoped, tag = 'scoped memory for tpu_custom_call.1']
    #allocation4 [shape = 's32[2]{0}', space=sflag, size = 0x8, scoped, tag = 'scoped memory for tpu_custom_call.1']
    #allocation5 [shape = 'u8[983040]{0}', space=vmem, size = 0xf0000, scoped, tag = 'input window, operand 2, single buffered']
    #allocation6 [shape = 's32[1]{0}', space=sflag, size = 0x4, scoped, tag = 'scoped memory for tpu_custom_call.1']
    #allocation7 [shape = 'u8[106496]{0}', space=vmem, size = 0x1a000, scoped, tag = 'output window, operand 0']
    %8 = vsyncpa [#allocation3], 0
    %9 = vsyncpa [#allocation6], 0
    %10 = vsyncpa [#allocation4], 0
    %s11 = scalar_lea.sflag [#allocation4], 1
    %12 = vsyncpa %s11, 0
    loop: start=0, step=1, limit=4
    $region2: #{tpu_custom_call.1} parent=1 // loop_pre_header
      _
    $region3: #{tpu_custom_call.1} parent=1 // loop_header
      %s14 = sphi 0, %s18
      %p15 = scmp.ge.s32.totalorder %s14, 4
      %s24 = sphi 0, %s26
      %s27 = sphi 0, %s24
      %s28 = sphi 0, %s27
      %s44 = sphi 0, %s28
      %s48 = sphi 0, %s48
      %s50 = sphi 0, %s48
      %s51 = sphi 0, %s50
      %s65 = sphi 0, %s51
      %s69 = sphi 0, %s69
      %s71 = sphi 0, %s69
      %s72 = sphi 0, %s71
      %s86 = sphi 0, %s72
      %s92 = sphi 0, %s94
      %s95 = sphi 0, %s92
      %s96 = sphi 0, %s95
      %s112 = sphi 0, %s96
    $region4: #{tpu_custom_call.1} parent=1 // loop_header_branch
      %17 = sbr.rel (%p15) target = $region8
    $region5: #{tpu_custom_call.1} parent=1 // loop_body
      %s19 = ssub.s32 %s14, 1
      %s20 = ssub.s32 %s14, 2
      %s21 = sadd.s32 %s14, 1
      %s22 = ssub.s32 %s14, %s21
      %p23 = scmp.eq.s32.totalorder %s22, 0
      %s25 = sadd.s32 %s24, 1
      %s26 = scalar_select %p23, %s24, %s25
      %p29 = pneg %p23
      %p30 = scmp.eq.s32.totalorder %s14, 1
      %p31 = por %p29, %p30
      %p32 = scmp.ne.s32.totalorder %s24, %s27
      %p33 = scmp.eq.s32.totalorder %s14, 0
      %p34 = por %p32, %p33
      %p35 = scmp.ne.s32.totalorder %s24, %s27
      %p36 = scmp.eq.s32.totalorder %s19, 1
      %p37 = por %p35, %p36
      %p38 = scmp.ne.s32.totalorder %s27, %s28
      %p39 = scmp.eq.s32.totalorder %s19, 0
      %p40 = por %p38, %p39
      %p41 = scmp.ne.s32.totalorder %s27, %s28
      %p42 = scmp.eq.s32.totalorder %s20, 1
      %p43 = por %p41, %p42
      %p45 = scmp.ne.s32.totalorder %s28, %s44
      %p46 = scmp.eq.s32.totalorder %s20, 0
      %p47 = por %p45, %p46
      %s49 = sadd.s32 %s48, 1
      %p52 = scmp.eq.s32.totalorder %s14, 1
      %p53 = scmp.ne.s32.totalorder %s48, %s50
      %p54 = scmp.eq.s32.totalorder %s14, 0
      %p55 = por %p53, %p54
      %p56 = scmp.ne.s32.totalorder %s48, %s50
      %p57 = scmp.eq.s32.totalorder %s19, 1
      %p58 = por %p56, %p57
      %p59 = scmp.ne.s32.totalorder %s50, %s51
      %p60 = scmp.eq.s32.totalorder %s19, 0
      %p61 = por %p59, %p60
      %p62 = scmp.ne.s32.totalorder %s50, %s51
      %p63 = scmp.eq.s32.totalorder %s20, 1
      %p64 = por %p62, %p63
      %p66 = scmp.ne.s32.totalorder %s51, %s65
      %p67 = scmp.eq.s32.totalorder %s20, 0
      %p68 = por %p66, %p67
      %s70 = sadd.s32 %s69, 1
      %p73 = scmp.eq.s32.totalorder %s14, 1
      %p74 = scmp.ne.s32.totalorder %s69, %s71
      %p75 = scmp.eq.s32.totalorder %s14, 0
      %p76 = por %p74, %p75
      %p77 = scmp.ne.s32.totalorder %s69, %s71
      %p78 = scmp.eq.s32.totalorder %s19, 1
      %p79 = por %p77, %p78
      %p80 = scmp.ne.s32.totalorder %s71, %s72
      %p81 = scmp.eq.s32.totalorder %s19, 0
      %p82 = por %p80, %p81
      %p83 = scmp.ne.s32.totalorder %s71, %s72
      %p84 = scmp.eq.s32.totalorder %s20, 1
      %p85 = por %p83, %p84
      %p87 = scmp.ne.s32.totalorder %s72, %s86
      %p88 = scmp.eq.s32.totalorder %s20, 0
      %p89 = por %p87, %p88
      %s90 = ssub.s32 %s14, %s21
      %p91 = scmp.eq.s32.totalorder %s90, 0
      %s93 = sadd.s32 %s92, 1
      %s94 = scalar_select %p91, %s92, %s93
      %p97 = pneg %p91
      %p98 = scmp.eq.s32.totalorder %s14, 1
      %p99 = por %p97, %p98
      %p100 = scmp.ne.s32.totalorder %s92, %s95
      %p101 = scmp.eq.s32.totalorder %s14, 0
      %p102 = por %p100, %p101
      %p103 = scmp.ne.s32.totalorder %s92, %s95
      %p104 = scmp.eq.s32.totalorder %s19, 1
      %p105 = por %p103, %p104
      %p106 = scmp.ne.s32.totalorder %s95, %s96
      %p107 = scmp.eq.s32.totalorder %s19, 0
      %p108 = por %p106, %p107
      %p109 = scmp.ne.s32.totalorder %s95, %s96
      %p110 = scmp.eq.s32.totalorder %s20, 1
      %p111 = por %p109, %p110
      %p113 = scmp.ne.s32.totalorder %s96, %s112
      %p114 = scmp.eq.s32.totalorder %s20, 0
      %p115 = por %p113, %p114
      %p116 = scmp.le.s32.totalorder 1, %s14
      %p117 = scmp.lt.s32.totalorder %s14, 3
      %p118 = pnand %p116, %p117
      %p119 = pneg %p118
      // Predicated region
      $region9: #{tpu_custom_call.1} parent=5 // pred_check
        _
      $region10: #{tpu_custom_call.1} parent=5 // pred_check_branch
        %121 = sbr.rel (%p118) target = $region12
      $region11: #{tpu_custom_call.1} parent=5 // pred_region
        %s122 = ssub.s32 %s14, 1
        // Predicated region
        $region13: #{tpu_custom_call.1} parent=11 // pred_check
          %p123 = pneg %p61
        $region14: #{tpu_custom_call.1} parent=11 // pred_check_branch
          %125 = sbr.rel (%p123) target = $region16
        $region15: #{tpu_custom_call.1} parent=11 // pred_region
          %s127 = ssub.s32 28672, 28672
          %128 = vsyncadd [#allocation3], %s127
          %s129 = sshll.u32 [#allocation2], 4
          %s130 = int_to_ptr.vmem [resolvable:$true] %s129
          %135 = dma.hbm_to_vmem [thread:$0]  %s1, 28672, %s130, [#allocation3], 1792, 1792, 112
        $region16: #{tpu_custom_call.1} parent=11 // pred_fallthru
          _
        // Predicated region
        $region17: #{tpu_custom_call.1} parent=11 // pred_check
          %p136 = pneg %p82
        $region18: #{tpu_custom_call.1} parent=11 // pred_check_branch
          %138 = sbr.rel (%p136) target = $region20
        $region19: #{tpu_custom_call.1} parent=11 // pred_region
          %s140 = ssub.s32 30720, 30720
          %141 = vsyncadd [#allocation6], %s140
          %s142 = sshll.u32 [#allocation5], 4
          %s143 = int_to_ptr.vmem [resolvable:$true] %s142
          %148 = dma.hbm_to_vmem [thread:$0]  %s2, 30720, %s143, [#allocation6], 1920, 1920, 120
        $region20: #{tpu_custom_call.1} parent=11 // pred_fallthru
          _
      $region12: #{tpu_custom_call.1} parent=5 // pred_fallthru
        _
      %p149 = scmp.lt.s32.totalorder %s14, 2
      // Predicated region
      $region21: #{tpu_custom_call.1} parent=5 // pred_check
        %p150 = pneg %p149
      $region22: #{tpu_custom_call.1} parent=5 // pred_check_branch
        %152 = sbr.rel (%p150) target = $region24
      $region23: #{tpu_custom_call.1} parent=5 // pred_region
        // Predicated region
        $region25: #{tpu_custom_call.1} parent=23 // pred_check
          %p153 = pneg %p34
        $region26: #{tpu_custom_call.1} parent=23 // pred_check_branch
          %155 = sbr.rel (%p153) target = $region28
        $region27: #{tpu_custom_call.1} parent=23 // pred_region
          %s156 = smul.u32 13, %s14
          %p157 = scmp.lt.s32.totalorder %s156, 25
          %s158 = scalar_select %p157, %s156, 25
          %s159 = smul.addr %s158, 8
          %s160 = scalar_lea.vmem %s0, %s159
          %s161 = smul.u32 13, %s14
        $region28: #{tpu_custom_call.1} parent=23 // pred_fallthru
          _
      $region24: #{tpu_custom_call.1} parent=5 // pred_fallthru
        _
      %p162 = scmp.le.s32.totalorder 1, %s14
      %p163 = scmp.lt.s32.totalorder %s14, 3
      %p164 = pnand %p162, %p163
      %p165 = pneg %p164
      // Predicated region
      $region29: #{tpu_custom_call.1} parent=5 // pred_check
        _
      $region30: #{tpu_custom_call.1} parent=5 // pred_check_branch
        %167 = sbr.rel (%p164) target = $region32
      $region31: #{tpu_custom_call.1} parent=5 // pred_region
        %s168 = ssub.s32 %s14, 1
        // Predicated region
        $region33: #{tpu_custom_call.1} parent=31 // pred_check
          %p169 = pneg %p61
        $region34: #{tpu_custom_call.1} parent=31 // pred_check_branch
          %171 = sbr.rel (%p169) target = $region36
        $region35: #{tpu_custom_call.1} parent=31 // pred_region
          %172 = dma.done [#allocation3], 28672
        $region36: #{tpu_custom_call.1} parent=31 // pred_fallthru
          _
        // Predicated region
        $region37: #{tpu_custom_call.1} parent=31 // pred_check
          %p173 = pneg %p82
        $region38: #{tpu_custom_call.1} parent=31 // pred_check_branch
          %175 = sbr.rel (%p173) target = $region40
        $region39: #{tpu_custom_call.1} parent=31 // pred_region
          %176 = dma.done [#allocation6], 30720
        $region40: #{tpu_custom_call.1} parent=31 // pred_fallthru
          _
        %s177 = smul.u32 13, %s19
        %p178 = scmp.lt.s32.totalorder %s177, 25
        %s179 = scalar_select %p178, %s177, 25
        %s180 = smul.addr %s179, 8
        %s181 = scalar_lea.vmem %s0, %s180
        %p182 = pneg %p40
        %p183 = pneg %p37
        %p184 = pneg %p61
        %p185 = pneg %p58
        %p186 = pneg %p82
        %p187 = pneg %p79
        %p188 = pneg %p108
        %p189 = pneg %p105
        %s190 = sand.u32 %s95, 1
        %s191 = scalar_lea.sflag [#allocation4], %s190
        %s192 = sand.u32 %s95, 1
        %s193 = smul.addr %s192, 104
        %s194 = scalar_lea.vmem [#allocation7], %s193
        %s195 = smul.u32 13, %s19
        %p196 = scmp.lt.s32.totalorder %s195, 25
        %s197 = scalar_select %p196, %s195, 25
        %s198 = smul.addr %s197, 8
        %s199 = scalar_lea.vmem %s0, %s198
        %s200 = smul.u32 13, %s19
        %s201 = smul.u32 13, %s19
        %v202 = vld [vmem:[%s199] sm:$0xff]
        %v203 = vld [vmem:[%s199 + $0x8] sm:$0xff]
        %v204 = vld [vmem:[%s199 + $0x10] sm:$0xff]
        %v205 = vld [vmem:[%s199 + $0x18] sm:$0xff]
        %v206 = vld [vmem:[%s199 + $0x20] sm:$0xff]
        %v207 = vld [vmem:[%s199 + $0x28] sm:$0xff]
        %v208 = vld [vmem:[%s199 + $0x30] sm:$0xff]
        %v209 = vld [vmem:[%s199 + $0x38] sm:$0xff]
        %v210 = vld [vmem:[%s199 + $0x40] sm:$0xff]
        %v211 = vld [vmem:[%s199 + $0x48] sm:$0xff]
        %v212 = vld [vmem:[%s199 + $0x50] sm:$0xff]
        %v213 = vld [vmem:[%s199 + $0x58] sm:$0xff]
        %v214 = vld [vmem:[%s199 + $0x60] sm:$0xff]
        %v215 = vld [vmem:[#allocation2] sm:$0xff]
        %v216 = vld [vmem:[#allocation2 + $0x70] sm:$0xff]
        %v217 = vld [vmem:[#allocation2 + $0xe0] sm:$0xff]
        %v218 = vld [vmem:[#allocation2 + $0x150] sm:$0xff]
        %v219 = vld [vmem:[#allocation2 + $0x1c0] sm:$0x1]
        %v220 = vld [vmem:[#allocation2 + $0x8] ss:$0 sm:$0xff]
        %vm221 = vcmask 269312
        %v223 = vsel %vm221, %v202, 0
        %v226 = vsel %vm221, %v203, 0
        %v229 = vsel %vm221, %v204, 0
        %v232 = vsel %vm221, %v205, 0
        %v235 = vsel %vm221, %v206, 0
        %v238 = vsel %vm221, %v207, 0
        %v241 = vsel %vm221, %v208, 0
        %v244 = vsel %vm221, %v209, 0
        %v247 = vsel %vm221, %v210, 0
        %v250 = vsel %vm221, %v211, 0
        %v253 = vsel %vm221, %v212, 0
        %v256 = vsel %vm221, %v213, 0
        %v259 = vsel %vm221, %v214, 0
        %vm261 = vcmask 1040384
        %v263 = vsel %vm261, %v219, 0
        %265 = vmatprep.subr.mxu0 0.0
        %266 = vmatpush1.msra.mxu0 %v215
        %267 = vmatprep.subr.mxu0 0.0
        %268 = vmatpush1.msra.mxu0 %v216
        %269 = vmatprep.subr.mxu0 0.0
        %270 = vmatpush1.msra.mxu0 %v217
        %271 = vmatprep.subr.mxu0 0.0
        %272 = vmatpush1.msra.mxu0 %v218
        %273 = vmatprep.subr.mxu0 0.0
        %274 = vmatpush1.msra.mxu0 %v263
        %275 = vmatprep.subr.mxu0 0.0
        %276 = vmatpush1.msra.mxu0 0.0
        %277 = vmatprep.subr.mxu0 0.0
        %278 = vmatpush1.msra.mxu0 0.0
        %279 = vmatprep.subr.mxu0 0.0
        %280 = vmatpush1.msra.mxu0 0.0
        %281 = vmatprep.subr.mxu0 0.0
        %282 = vmatpush1.msra.mxu0 0.0
        %283 = vmatprep.subr.mxu0 0.0
        %284 = vmatpush1.msra.mxu0 0.0
        %285 = vmatprep.subr.mxu0 0.0
        %286 = vmatpush1.msra.mxu0 0.0
        %287 = vmatprep.subr.mxu0 0.0
        %288 = vmatpush1.msra.mxu0 0.0
        %289 = vmatprep.subr.mxu0 0.0
        %290 = vmatpush1.msra.mxu0 0.0
        %291 = vmatprep.subr.mxu0 0.0
        %292 = vmatpush1.msra.mxu0 0.0
        %293 = vmatprep.subr.mxu0 0.0
        %294 = vmatpush1.msra.mxu0 0.0
        %295 = vmatprep.subr.mxu0 0.0
        %296 = vmatpush1.msra.mxu0 0.0
        %297 = vmatprep.subr.mxu0 0.0
        %298 = vmatpush1.msra.mxu0 0.0
        %299 = vmatprep.subr.mxu0 0.0
        %300 = vmatpush1.msra.mxu0 0.0
        %301 = vmatprep.subr.mxu0 0.0
        %302 = vmatpush1.msra.mxu0 0.0
        %303 = vmatprep.subr.mxu0 0.0
        %304 = vmatpush1.msra.mxu0 0.0
        %305 = vmatprep.subr.mxu0 0.0
        %306 = vmatpush1.msra.mxu0 0.0
        %307 = vmatprep.subr.mxu0 0.0
        %308 = vmatpush1.msra.mxu0 0.0
        %309 = vmatprep.subr.mxu0 0.0
        %310 = vmatpush1.msra.mxu0 0.0
        %311 = vmatprep.subr.mxu0 0.0
        %312 = vmatpush1.msra.mxu0 0.0
        %313 = vmatprep.subr.mxu0 0.0
        %314 = vmatpush1.msra.mxu0 0.0
        %315 = vmatprep.subr.mxu0 0.0
        %316 = vmatpush1.msra.mxu0 0.0
        %317 = vmatprep.subr.mxu0 0.0
        %318 = vmatpush1.msra.mxu0 0.0
        %319 = vmatprep.subr.mxu0 0.0
        %320 = vmatpush1.msra.mxu0 0.0
        %321 = vmatprep.subr.mxu0 0.0
        %322 = vmatpush1.msra.mxu0 0.0
        %323 = vmatprep.subr.mxu0 0.0
        %324 = vmatpush1.msra.mxu0 0.0
        %325 = vmatprep.subr.mxu0 0.0
        %326 = vmatpush1.msra.mxu0 0.0
        %327 = vmatprep.subr.mxu0 0.0
        %328 = vmatpush1.msra.mxu0 0.0
        %329 = vmatprep.mubr.f32.mxu0 0.0
        %330 = vmatmul.mubr.f32.gmra.mrb[0].mxu0 %v223
        %v331 = vpop.f32.mrb[0].mxu0
        %v332 = vadd.f32 %v220, %v331
        %v333 = vpop.f32.mrb[0].mxu0
        %334 = vmatprep.mubr.f32.mxu0 0.0
        %335 = vmatmul.mubr.f32.gmra.mrb[0].mxu0 %v226
        %v336 = vpop.f32.mrb[0].mxu0
        %v337 = vadd.f32 %v220, %v336
        %v338 = vpop.f32.mrb[0].mxu0
        %339 = vmatprep.mubr.f32.mxu0 0.0
        %340 = vmatmul.mubr.f32.gmra.mrb[0].mxu0 %v229
        %v341 = vpop.f32.mrb[0].mxu0
        %v342 = vadd.f32 %v220, %v341
        %v343 = vpop.f32.mrb[0].mxu0
        %344 = vmatprep.mubr.f32.mxu0 0.0
        %345 = vmatmul.mubr.f32.gmra.mrb[0].mxu0 %v232
        %v346 = vpop.f32.mrb[0].mxu0
        %v347 = vadd.f32 %v220, %v346
        %v348 = vpop.f32.mrb[0].mxu0
        %349 = vmatprep.mubr.f32.mxu0 0.0
        %350 = vmatmul.mubr.f32.gmra.mrb[0].mxu0 %v235
        %v351 = vpop.f32.mrb[0].mxu0
        %v352 = vadd.f32 %v220, %v351
        %v353 = vpop.f32.mrb[0].mxu0
        %354 = vmatprep.mubr.f32.mxu0 0.0
        %355 = vmatmul.mubr.f32.gmra.mrb[0].mxu0 %v238
        %v356 = vpop.f32.mrb[0].mxu0
        %v357 = vadd.f32 %v220, %v356
        %v358 = vpop.f32.mrb[0].mxu0
        %359 = vmatprep.mubr.f32.mxu0 0.0
        %360 = vmatmul.mubr.f32.gmra.mrb[0].mxu0 %v241
        %v361 = vpop.f32.mrb[0].mxu0
        %v362 = vadd.f32 %v220, %v361
        %v363 = vpop.f32.mrb[0].mxu0
        %364 = vmatprep.mubr.f32.mxu0 0.0
        %365 = vmatmul.mubr.f32.gmra.mrb[0].mxu0 %v244
        %v366 = vpop.f32.mrb[0].mxu0
        %v367 = vadd.f32 %v220, %v366
        %v368 = vpop.f32.mrb[0].mxu0
        %369 = vmatprep.mubr.f32.mxu0 0.0
        %370 = vmatmul.mubr.f32.gmra.mrb[0].mxu0 %v247
        %v371 = vpop.f32.mrb[0].mxu0
        %v372 = vadd.f32 %v220, %v371
        %v373 = vpop.f32.mrb[0].mxu0
        %374 = vmatprep.mubr.f32.mxu0 0.0
        %375 = vmatmul.mubr.f32.gmra.mrb[0].mxu0 %v250
        %v376 = vpop.f32.mrb[0].mxu0
        %v377 = vadd.f32 %v220, %v376
        %v378 = vpop.f32.mrb[0].mxu0
        %379 = vmatprep.mubr.f32.mxu0 0.0
        %380 = vmatmul.mubr.f32.gmra.mrb[0].mxu0 %v253
        %v381 = vpop.f32.mrb[0].mxu0
        %v382 = vadd.f32 %v220, %v381
        %v383 = vpop.f32.mrb[0].mxu0
        %384 = vmatprep.mubr.f32.mxu0 0.0
        %385 = vmatmul.mubr.f32.gmra.mrb[0].mxu0 %v256
        %v386 = vpop.f32.mrb[0].mxu0
        %v387 = vadd.f32 %v220, %v386
        %v388 = vpop.f32.mrb[0].mxu0
        %389 = vmatprep.mubr.f32.mxu0 0.0
        %390 = vmatmul.mubr.f32.gmra.mrb[0].mxu0 %v259
        %v391 = vpop.f32.mrb[0].mxu0
        %v392 = vadd.f32 %v220, %v391
        %v393 = vpop.f32.mrb[0].mxu0
        %394 = vdwg.mxu0
        %v395 = vmax.f32 %v332, 0.0
        %v396 = vmax.f32 %v337, 0.0
        %v397 = vmax.f32 %v342, 0.0
        %v398 = vmax.f32 %v347, 0.0
        %v399 = vmax.f32 %v352, 0.0
        %v400 = vmax.f32 %v357, 0.0
        %v401 = vmax.f32 %v362, 0.0
        %v402 = vmax.f32 %v367, 0.0
        %v403 = vmax.f32 %v372, 0.0
        %v404 = vmax.f32 %v377, 0.0
        %v405 = vmax.f32 %v382, 0.0
        %v406 = vmax.f32 %v387, 0.0
        %v407 = vmax.f32 %v392, 0.0
        %v408 = vld [vmem:[#allocation2 + $0x10] sm:$0xff]
        %v409 = vld [vmem:[#allocation2 + $0x80] sm:$0xff]
        %v410 = vld [vmem:[#allocation2 + $0xf0] sm:$0xff]
        %v411 = vld [vmem:[#allocation2 + $0x160] sm:$0xff]
        %v412 = vld [vmem:[#allocation2 + $0x1d0] sm:$0xff]
        %v413 = vld [vmem:[#allocation2 + $0x240] sm:$0xff]
        %v414 = vld [vmem:[#allocation2 + $0x2b0] sm:$0xff]
        %v415 = vld [vmem:[#allocation2 + $0x320] sm:$0xff]
        %v416 = vld [vmem:[#allocation2 + $0x390] sm:$0xff]
        %v417 = vld [vmem:[#allocation2 + $0x400] sm:$0xff]
        %v418 = vld [vmem:[#allocation2 + $0x470] sm:$0xff]
        %v419 = vld [vmem:[#allocation2 + $0x4e0] sm:$0xff]
        %v420 = vld [vmem:[#allocation2 + $0x550] sm:$0xff]
        %v421 = vld [vmem:[#allocation2 + $0x5c0] sm:$0xff]
        %v422 = vld [vmem:[#allocation2 + $0x630] sm:$0xff]
        %v423 = vld [vmem:[#allocation2 + $0x6a0] sm:$0xff]
        %v424 = vld [vmem:[#allocation2 + $0x18] ss:$0 sm:$0xff]
        %425 = vmatprep.subr.mxu0 0.0
        %426 = vmatpush1.msra.mxu0 %v408
        %427 = vmatprep.subr.mxu0 0.0
        %428 = vmatpush1.msra.mxu0 %v409
        %429 = vmatprep.subr.mxu0 0.0
        %430 = vmatpush1.msra.mxu0 %v410
        %431 = vmatprep.subr.mxu0 0.0
        %432 = vmatpush1.msra.mxu0 %v411
        %433 = vmatprep.subr.mxu0 0.0
        %434 = vmatpush1.msra.mxu0 %v412
        %435 = vmatprep.subr.mxu0 0.0
        %436 = vmatpush1.msra.mxu0 %v413
        %437 = vmatprep.subr.mxu0 0.0
        %438 = vmatpush1.msra.mxu0 %v414
        %439 = vmatprep.subr.mxu0 0.0
        %440 = vmatpush1.msra.mxu0 %v415
        %441 = vmatprep.subr.mxu0 0.0
        %442 = vmatpush1.msra.mxu0 %v416
        %443 = vmatprep.subr.mxu0 0.0
        %444 = vmatpush1.msra.mxu0 %v417
        %445 = vmatprep.subr.mxu0 0.0
        %446 = vmatpush1.msra.mxu0 %v418
        %447 = vmatprep.subr.mxu0 0.0
        %448 = vmatpush1.msra.mxu0 %v419
        %449 = vmatprep.subr.mxu0 0.0
        %450 = vmatpush1.msra.mxu0 %v420
        %451 = vmatprep.subr.mxu0 0.0
        %452 = vmatpush1.msra.mxu0 %v421
        %453 = vmatprep.subr.mxu0 0.0
        %454 = vmatpush1.msra.mxu0 %v422
        %455 = vmatprep.subr.mxu0 0.0
        %456 = vmatpush1.msra.mxu0 %v423
        %457 = vmatprep.subr.mxu0 0.0
        %458 = vmatpush1.msra.mxu0 0.0
        %459 = vmatprep.subr.mxu0 0.0
        %460 = vmatpush1.msra.mxu0 0.0
        %461 = vmatprep.subr.mxu0 0.0
        %462 = vmatpush1.msra.mxu0 0.0
        %463 = vmatprep.subr.mxu0 0.0
        %464 = vmatpush1.msra.mxu0 0.0
        %465 = vmatprep.subr.mxu0 0.0
        %466 = vmatpush1.msra.mxu0 0.0
        %467 = vmatprep.subr.mxu0 0.0
        %468 = vmatpush1.msra.mxu0 0.0
        %469 = vmatprep.subr.mxu0 0.0
        %470 = vmatpush1.msra.mxu0 0.0
        %471 = vmatprep.subr.mxu0 0.0
        %472 = vmatpush1.msra.mxu0 0.0
        %473 = vmatprep.subr.mxu0 0.0
        %474 = vmatpush1.msra.mxu0 0.0
        %475 = vmatprep.subr.mxu0 0.0
        %476 = vmatpush1.msra.mxu0 0.0
        %477 = vmatprep.subr.mxu0 0.0
        %478 = vmatpush1.msra.mxu0 0.0
        %479 = vmatprep.subr.mxu0 0.0
        %480 = vmatpush1.msra.mxu0 0.0
        %481 = vmatprep.subr.mxu0 0.0
        %482 = vmatpush1.msra.mxu0 0.0
        %483 = vmatprep.subr.mxu0 0.0
        %484 = vmatpush1.msra.mxu0 0.0
        %485 = vmatprep.subr.mxu0 0.0
        %486 = vmatpush1.msra.mxu0 0.0
        %487 = vmatprep.subr.mxu0 0.0
        %488 = vmatpush1.msra.mxu0 0.0
        %489 = vmatprep.mubr.f32.mxu0 0.0
        %490 = vmatmul.mubr.f32.gmra.mrb[0].mxu0 %v395
        %v491 = vpop.f32.mrb[0].mxu0
        %v492 = vadd.f32 %v424, %v491
        %v493 = vpop.f32.mrb[0].mxu0
        %494 = vmatprep.mubr.f32.mxu0 0.0
        %495 = vmatmul.mubr.f32.gmra.mrb[0].mxu0 %v396
        %v496 = vpop.f32.mrb[0].mxu0
        %v497 = vadd.f32 %v424, %v496
        %v498 = vpop.f32.mrb[0].mxu0
        %499 = vmatprep.mubr.f32.mxu0 0.0
        %500 = vmatmul.mubr.f32.gmra.mrb[0].mxu0 %v397
        %v501 = vpop.f32.mrb[0].mxu0
        %v502 = vadd.f32 %v424, %v501
        %v503 = vpop.f32.mrb[0].mxu0
        %504 = vmatprep.mubr.f32.mxu0 0.0
        %505 = vmatmul.mubr.f32.gmra.mrb[0].mxu0 %v398
        %v506 = vpop.f32.mrb[0].mxu0
        %v507 = vadd.f32 %v424, %v506
        %v508 = vpop.f32.mrb[0].mxu0
        %509 = vmatprep.mubr.f32.mxu0 0.0
        %510 = vmatmul.mubr.f32.gmra.mrb[0].mxu0 %v399
        %v511 = vpop.f32.mrb[0].mxu0
        %v512 = vadd.f32 %v424, %v511
        %v513 = vpop.f32.mrb[0].mxu0
        %514 = vmatprep.mubr.f32.mxu0 0.0
        %515 = vmatmul.mubr.f32.gmra.mrb[0].mxu0 %v400
        %v516 = vpop.f32.mrb[0].mxu0
        %v517 = vadd.f32 %v424, %v516
        %v518 = vpop.f32.mrb[0].mxu0
        %519 = vmatprep.mubr.f32.mxu0 0.0
        %520 = vmatmul.mubr.f32.gmra.mrb[0].mxu0 %v401
        %v521 = vpop.f32.mrb[0].mxu0
        %v522 = vadd.f32 %v424, %v521
        %v523 = vpop.f32.mrb[0].mxu0
        %524 = vmatprep.mubr.f32.mxu0 0.0
        %525 = vmatmul.mubr.f32.gmra.mrb[0].mxu0 %v402
        %v526 = vpop.f32.mrb[0].mxu0
        %v527 = vadd.f32 %v424, %v526
        %v528 = vpop.f32.mrb[0].mxu0
        %529 = vmatprep.mubr.f32.mxu0 0.0
        %530 = vmatmul.mubr.f32.gmra.mrb[0].mxu0 %v403
        %v531 = vpop.f32.mrb[0].mxu0
        %v532 = vadd.f32 %v424, %v531
        %v533 = vpop.f32.mrb[0].mxu0
        %534 = vmatprep.mubr.f32.mxu0 0.0
        %535 = vmatmul.mubr.f32.gmra.mrb[0].mxu0 %v404
        %v536 = vpop.f32.mrb[0].mxu0
        %v537 = vadd.f32 %v424, %v536
        %v538 = vpop.f32.mrb[0].mxu0
        %539 = vmatprep.mubr.f32.mxu0 0.0
        %540 = vmatmul.mubr.f32.gmra.mrb[0].mxu0 %v405
        %v541 = vpop.f32.mrb[0].mxu0
        %v542 = vadd.f32 %v424, %v541
        %v543 = vpop.f32.mrb[0].mxu0
        %544 = vmatprep.mubr.f32.mxu0 0.0
        %545 = vmatmul.mubr.f32.gmra.mrb[0].mxu0 %v406
        %v546 = vpop.f32.mrb[0].mxu0
        %v547 = vadd.f32 %v424, %v546
        %v548 = vpop.f32.mrb[0].mxu0
        %549 = vmatprep.mubr.f32.mxu0 0.0
        %550 = vmatmul.mubr.f32.gmra.mrb[0].mxu0 %v407
        %v551 = vpop.f32.mrb[0].mxu0
        %v552 = vadd.f32 %v424, %v551
        %v553 = vpop.f32.mrb[0].mxu0
        %554 = vdwg.mxu0
        %v555 = vmax.f32 %v492, 0.0
        %v556 = vmax.f32 %v497, 0.0
        %v557 = vmax.f32 %v502, 0.0
        %v558 = vmax.f32 %v507, 0.0
        %v559 = vmax.f32 %v512, 0.0
        %v560 = vmax.f32 %v517, 0.0
        %v561 = vmax.f32 %v522, 0.0
        %v562 = vmax.f32 %v527, 0.0
        %v563 = vmax.f32 %v532, 0.0
        %v564 = vmax.f32 %v537, 0.0
        %v565 = vmax.f32 %v542, 0.0
        %v566 = vmax.f32 %v547, 0.0
        %v567 = vmax.f32 %v552, 0.0
        %v568 = vmul.f32 %v202, %v202
        %v569 = vmul.f32 %v203, %v203
        %v570 = vmul.f32 %v204, %v204
        %v571 = vmul.f32 %v205, %v205
        %v572 = vmul.f32 %v206, %v206
        %v573 = vmul.f32 %v207, %v207
        %v574 = vmul.f32 %v208, %v208
        %v575 = vmul.f32 %v209, %v209
        %v576 = vmul.f32 %v210, %v210
        %v577 = vmul.f32 %v211, %v211
        %v578 = vmul.f32 %v212, %v212
        %v579 = vmul.f32 %v213, %v213
        %v580 = vmul.f32 %v214, %v214
        %v581 = vsub.f32 %v202, 0.33
        %v582 = vsub.f32 %v203, 0.33
        %v583 = vsub.f32 %v204, 0.33
        %v584 = vsub.f32 %v205, 0.33
        %v585 = vsub.f32 %v206, 0.33
        %v586 = vsub.f32 %v207, 0.33
        %v587 = vsub.f32 %v208, 0.33
        %v588 = vsub.f32 %v209, 0.33
        %v589 = vsub.f32 %v210, 0.33
        %v590 = vsub.f32 %v211, 0.33
        %v591 = vsub.f32 %v212, 0.33
        %v592 = vsub.f32 %v213, 0.33
        %v593 = vsub.f32 %v214, 0.33
        %v594 = vmax.f32 %v581, 0.0
        %v595 = vmax.f32 %v582, 0.0
        %v596 = vmax.f32 %v583, 0.0
        %v597 = vmax.f32 %v584, 0.0
        %v598 = vmax.f32 %v585, 0.0
        %v599 = vmax.f32 %v586, 0.0
        %v600 = vmax.f32 %v587, 0.0
        %v601 = vmax.f32 %v588, 0.0
        %v602 = vmax.f32 %v589, 0.0
        %v603 = vmax.f32 %v590, 0.0
        %v604 = vmax.f32 %v591, 0.0
        %v605 = vmax.f32 %v592, 0.0
        %v606 = vmax.f32 %v593, 0.0
        %v607 = vmul.f32 %v594, %v594
        %v608 = vmul.f32 %v595, %v595
        %v609 = vmul.f32 %v596, %v596
        %v610 = vmul.f32 %v597, %v597
        %v611 = vmul.f32 %v598, %v598
        %v612 = vmul.f32 %v599, %v599
        %v613 = vmul.f32 %v600, %v600
        %v614 = vmul.f32 %v601, %v601
        %v615 = vmul.f32 %v602, %v602
        %v616 = vmul.f32 %v603, %v603
        %v617 = vmul.f32 %v604, %v604
        %v618 = vmul.f32 %v605, %v605
        %v619 = vmul.f32 %v606, %v606
        %v620 = vsub.f32 %v202, 0.66
        %v621 = vsub.f32 %v203, 0.66
        %v622 = vsub.f32 %v204, 0.66
        %v623 = vsub.f32 %v205, 0.66
        %v624 = vsub.f32 %v206, 0.66
        %v625 = vsub.f32 %v207, 0.66
        %v626 = vsub.f32 %v208, 0.66
        %v627 = vsub.f32 %v209, 0.66
        %v628 = vsub.f32 %v210, 0.66
        %v629 = vsub.f32 %v211, 0.66
        %v630 = vsub.f32 %v212, 0.66
        %v631 = vsub.f32 %v213, 0.66
        %v632 = vsub.f32 %v214, 0.66
        %v633 = vmax.f32 %v620, 0.0
        %v634 = vmax.f32 %v621, 0.0
        %v635 = vmax.f32 %v622, 0.0
        %v636 = vmax.f32 %v623, 0.0
        %v637 = vmax.f32 %v624, 0.0
        %v638 = vmax.f32 %v625, 0.0
        %v639 = vmax.f32 %v626, 0.0
        %v640 = vmax.f32 %v627, 0.0
        %v641 = vmax.f32 %v628, 0.0
        %v642 = vmax.f32 %v629, 0.0
        %v643 = vmax.f32 %v630, 0.0
        %v644 = vmax.f32 %v631, 0.0
        %v645 = vmax.f32 %v632, 0.0
        %v646 = vmul.f32 %v633, %v633
        %v647 = vmul.f32 %v634, %v634
        %v648 = vmul.f32 %v635, %v635
        %v649 = vmul.f32 %v636, %v636
        %v650 = vmul.f32 %v637, %v637
        %v651 = vmul.f32 %v638, %v638
        %v652 = vmul.f32 %v639, %v639
        %v653 = vmul.f32 %v640, %v640
        %v654 = vmul.f32 %v641, %v641
        %v655 = vmul.f32 %v642, %v642
        %v656 = vmul.f32 %v643, %v643
        %v657 = vmul.f32 %v644, %v644
        %v658 = vmul.f32 %v645, %v645
        %659 = vrot.lane.b32.xlu0 %v202, 97
        %v660 = vpop.permute.xlu0 %659
        %661 = vrot.lane.b32.xlu0 %v203, 97
        %v662 = vpop.permute.xlu0 %661
        %663 = vrot.lane.b32.xlu0 %v204, 97
        %v664 = vpop.permute.xlu0 %663
        %665 = vrot.lane.b32.xlu0 %v205, 97
        %v666 = vpop.permute.xlu0 %665
        %667 = vrot.lane.b32.xlu0 %v206, 97
        %v668 = vpop.permute.xlu0 %667
        %669 = vrot.lane.b32.xlu0 %v207, 97
        %v670 = vpop.permute.xlu0 %669
        %671 = vrot.lane.b32.xlu0 %v208, 97
        %v672 = vpop.permute.xlu0 %671
        %673 = vrot.lane.b32.xlu0 %v209, 97
        %v674 = vpop.permute.xlu0 %673
        %675 = vrot.lane.b32.xlu0 %v210, 97
        %v676 = vpop.permute.xlu0 %675
        %677 = vrot.lane.b32.xlu0 %v211, 97
        %v678 = vpop.permute.xlu0 %677
        %679 = vrot.lane.b32.xlu0 %v212, 97
        %v680 = vpop.permute.xlu0 %679
        %681 = vrot.lane.b32.xlu0 %v213, 97
        %v682 = vpop.permute.xlu0 %681
        %683 = vrot.lane.b32.xlu0 %v214, 97
        %v684 = vpop.permute.xlu0 %683
        %711 = vrot.lane.b32.xlu0 %v568, 98
        %v712 = vpop.permute.xlu0 %711
        %713 = vrot.lane.b32.xlu0 %v569, 98
        %v714 = vpop.permute.xlu0 %713
        %715 = vrot.lane.b32.xlu0 %v570, 98
        %v716 = vpop.permute.xlu0 %715
        %717 = vrot.lane.b32.xlu0 %v571, 98
        %v718 = vpop.permute.xlu0 %717
        %719 = vrot.lane.b32.xlu0 %v572, 98
        %v720 = vpop.permute.xlu0 %719
        %721 = vrot.lane.b32.xlu0 %v573, 98
        %v722 = vpop.permute.xlu0 %721
        %723 = vrot.lane.b32.xlu0 %v574, 98
        %v724 = vpop.permute.xlu0 %723
        %725 = vrot.lane.b32.xlu0 %v575, 98
        %v726 = vpop.permute.xlu0 %725
        %727 = vrot.lane.b32.xlu0 %v576, 98
        %v728 = vpop.permute.xlu0 %727
        %729 = vrot.lane.b32.xlu0 %v577, 98
        %v730 = vpop.permute.xlu0 %729
        %731 = vrot.lane.b32.xlu0 %v578, 98
        %v732 = vpop.permute.xlu0 %731
        %733 = vrot.lane.b32.xlu0 %v579, 98
        %v734 = vpop.permute.xlu0 %733
        %735 = vrot.lane.b32.xlu0 %v580, 98
        %v736 = vpop.permute.xlu0 %735
        %763 = vrot.lane.b32.xlu0 %v607, 99
        %v764 = vpop.permute.xlu0 %763
        %765 = vrot.lane.b32.xlu0 %v608, 99
        %v766 = vpop.permute.xlu0 %765
        %767 = vrot.lane.b32.xlu0 %v609, 99
        %v768 = vpop.permute.xlu0 %767
        %769 = vrot.lane.b32.xlu0 %v610, 99
        %v770 = vpop.permute.xlu0 %769
        %771 = vrot.lane.b32.xlu0 %v611, 99
        %v772 = vpop.permute.xlu0 %771
        %773 = vrot.lane.b32.xlu0 %v612, 99
        %v774 = vpop.permute.xlu0 %773
        %775 = vrot.lane.b32.xlu0 %v613, 99
        %v776 = vpop.permute.xlu0 %775
        %777 = vrot.lane.b32.xlu0 %v614, 99
        %v778 = vpop.permute.xlu0 %777
        %779 = vrot.lane.b32.xlu0 %v615, 99
        %v780 = vpop.permute.xlu0 %779
        %781 = vrot.lane.b32.xlu0 %v616, 99
        %v782 = vpop.permute.xlu0 %781
        %783 = vrot.lane.b32.xlu0 %v617, 99
        %v784 = vpop.permute.xlu0 %783
        %785 = vrot.lane.b32.xlu0 %v618, 99
        %v786 = vpop.permute.xlu0 %785
        %787 = vrot.lane.b32.xlu0 %v619, 99
        %v788 = vpop.permute.xlu0 %787
        %815 = vrot.lane.b32.xlu0 %v646, 100
        %v816 = vpop.permute.xlu0 %815
        %817 = vrot.lane.b32.xlu0 %v647, 100
        %v818 = vpop.permute.xlu0 %817
        %819 = vrot.lane.b32.xlu0 %v648, 100
        %v820 = vpop.permute.xlu0 %819
        %821 = vrot.lane.b32.xlu0 %v649, 100
        %v822 = vpop.permute.xlu0 %821
        %823 = vrot.lane.b32.xlu0 %v650, 100
        %v824 = vpop.permute.xlu0 %823
        %825 = vrot.lane.b32.xlu0 %v651, 100
        %v826 = vpop.permute.xlu0 %825
        %827 = vrot.lane.b32.xlu0 %v652, 100
        %v828 = vpop.permute.xlu0 %827
        %829 = vrot.lane.b32.xlu0 %v653, 100
        %v830 = vpop.permute.xlu0 %829
        %831 = vrot.lane.b32.xlu0 %v654, 100
        %v832 = vpop.permute.xlu0 %831
        %833 = vrot.lane.b32.xlu0 %v655, 100
        %v834 = vpop.permute.xlu0 %833
        %835 = vrot.lane.b32.xlu0 %v656, 100
        %v836 = vpop.permute.xlu0 %835
        %837 = vrot.lane.b32.xlu0 %v657, 100
        %v838 = vpop.permute.xlu0 %837
        %839 = vrot.lane.b32.xlu0 %v658, 100
        %v840 = vpop.permute.xlu0 %839
        %vm854 = vcmask 7168
        %v855 = vsel %vm854, 1.0, %v660
        %v856 = vsel %vm854, 1.0, %v662
        %v857 = vsel %vm854, 1.0, %v664
        %v858 = vsel %vm854, 1.0, %v666
        %v859 = vsel %vm854, 1.0, %v668
        %v860 = vsel %vm854, 1.0, %v670
        %v861 = vsel %vm854, 1.0, %v672
        %v862 = vsel %vm854, 1.0, %v674
        %v863 = vsel %vm854, 1.0, %v676
        %v864 = vsel %vm854, 1.0, %v678
        %v865 = vsel %vm854, 1.0, %v680
        %v866 = vsel %vm854, 1.0, %v682
        %v867 = vsel %vm854, 1.0, %v684
        %vm868 = vcmask 15360
        %v869 = vsel %vm868, %v855, %v712
        %v870 = vsel %vm868, %v856, %v714
        %v871 = vsel %vm868, %v857, %v716
        %v872 = vsel %vm868, %v858, %v718
        %v873 = vsel %vm868, %v859, %v720
        %v874 = vsel %vm868, %v860, %v722
        %v875 = vsel %vm868, %v861, %v724
        %v876 = vsel %vm868, %v862, %v726
        %v877 = vsel %vm868, %v863, %v728
        %v878 = vsel %vm868, %v864, %v730
        %v879 = vsel %vm868, %v865, %v732
        %v880 = vsel %vm868, %v866, %v734
        %v881 = vsel %vm868, %v867, %v736
        %vm882 = vcmask 23552
        %v883 = vsel %vm882, %v869, %v764
        %v884 = vsel %vm882, %v870, %v766
        %v885 = vsel %vm882, %v871, %v768
        %v886 = vsel %vm882, %v872, %v770
        %v887 = vsel %vm882, %v873, %v772
        %v888 = vsel %vm882, %v874, %v774
        %v889 = vsel %vm882, %v875, %v776
        %v890 = vsel %vm882, %v876, %v778
        %v891 = vsel %vm882, %v877, %v780
        %v892 = vsel %vm882, %v878, %v782
        %v893 = vsel %vm882, %v879, %v784
        %v894 = vsel %vm882, %v880, %v786
        %v895 = vsel %vm882, %v881, %v788
        %vm896 = vcmask 31744
        %v897 = vsel %vm896, %v883, %v816
        %v898 = vsel %vm896, %v884, %v818
        %v899 = vsel %vm896, %v885, %v820
        %v900 = vsel %vm896, %v886, %v822
        %v901 = vsel %vm896, %v887, %v824
        %v902 = vsel %vm896, %v888, %v826
        %v903 = vsel %vm896, %v889, %v828
        %v904 = vsel %vm896, %v890, %v830
        %v905 = vsel %vm896, %v891, %v832
        %v906 = vsel %vm896, %v892, %v834
        %v907 = vsel %vm896, %v893, %v836
        %v908 = vsel %vm896, %v894, %v838
        %v909 = vsel %vm896, %v895, %v840
        %v910 = vmul.f32 %v202, 3.14159
        %v911 = vmul.f32 %v203, 3.14159
        %v912 = vmul.f32 %v204, 3.14159
        %v913 = vmul.f32 %v205, 3.14159
        %v914 = vmul.f32 %v206, 3.14159
        %v915 = vmul.f32 %v207, 3.14159
        %v916 = vmul.f32 %v208, 3.14159
        %v917 = vmul.f32 %v209, 3.14159
        %v918 = vmul.f32 %v210, 3.14159
        %v919 = vmul.f32 %v211, 3.14159
        %v920 = vmul.f32 %v212, 3.14159
        %v921 = vmul.f32 %v213, 3.14159
        %v922 = vmul.f32 %v214, 3.14159
        %v923 = vand.u32 2147483647, %v910
        %vm924 = vcmp.le.f32.partialorder %v923, 0.7853982
        %vm925 = vcmp.lt.s32.totalorder %v910, 0
        %v926 = vand.u32 %v910, 2139095040
        %v927 = vshrl.u32 %v926, 23
        %v928 = vsub.s32 %v927, 127
        %v929 = vand.u32 2147483647, %v910
        %v930 = vand.u32 %v929, 8388607
        %v931 = vor.u32 %v930, 8388608
        %v932 = vsub.s32 0, %v931
        %v933 = vadd.s32 %v928, 1
        %vm934 = vcmp.gt.s32.totalorder %v933, 0
        %v935 = vsel %vm934, %v933, 0
        %v936 = vshrl.u32 %v935, 5
        %v937 = vand.u32 %v935, 31
        %v938 = vsub.s32 32, %v937
        %v939 = vshrl.u32 683565275, %v938
        %v940 = vshll.u32 683565275, %v937
        %v941 = vshrl.u32 2475754826, %v938
        %v942 = vor.u32 %v940, %v941
        %v943 = vshll.u32 2475754826, %v937
        %v944 = vshrl.u32 2131351028, %v938
        %v945 = vor.u32 %v943, %v944
        %v946 = vshll.u32 2131351028, %v937
        %v947 = vshrl.u32 2102212464, %v938
        %v948 = vor.u32 %v946, %v947
        %v949 = vshll.u32 2102212464, %v937
        %v950 = vshrl.u32 920167782, %v938
        %v951 = vor.u32 %v949, %v950
        %v952 = vshll.u32 920167782, %v937
        %v953 = vshrl.u32 1326507024, %v938
        %v954 = vor.u32 %v952, %v953
        %vm955 = vcmp.lt.s32.totalorder %v936, 1
        %vm956 = vcmp.lt.s32.totalorder %v936, 2
        %vm957 = vcmp.lt.s32.totalorder %v936, 3
        %vm958 = vcmp.lt.s32.totalorder %v936, 4
        %v959 = vsel %vm955, %v939, %v942
        %v960 = vsel %vm958, %v948, 2102212464
        %v961 = vsel %vm957, %v945, %v960
        %v962 = vsel %vm956, %v959, %v961
        %v963 = vsel %vm955, %v942, %v945
        %v964 = vsel %vm958, %v951, 920167782
        %v965 = vsel %vm957, %v948, %v964
        %v966 = vsel %vm956, %v963, %v965
        %v967 = vsel %vm955, %v945, %v948
        %v968 = vsel %vm958, %v954, 1326507024
        %v969 = vsel %vm957, %v951, %v968
        %v970 = vsel %vm956, %v967, %v969
        %v971 = vshll.u32 %v931, 8
        %v972 = vmul.u32.u64.compose %v971, %v970
        %v973 = vextract.low.u32 %v972
        %v974 = vextract.high.u32 %v972
        %v975 = vmul.u32.u64.compose %v971, %v966
        %v976 = vextract.low.u32 %v975
        %v977 = vextract.high.u32 %v975
        %v978 = vmul.u32 %v971, %v962
        %v979 = vadd.s32 %v974, %v976
        %vm980 = vc.u32 %v974, %v976
        %v981 = vadd.s32 %v977, 1
        %v982 = vsel %vm980, %v981, %v977
        %v983 = vadd.s32 %v978, %v982
        %v984 = vadd.s32 %v983, 536870912
        %v985 = vshrl.u32 %v984, 30
        %v986 = vshll.u32 %v985, 30
        %v987 = vsub.s32 %v983, %v986
        %vm988 = vcmp.lt.s32.totalorder %v987, 0
        %v989 = vsub.s32 0, %v987
        %v990 = vsel %vm988, %v989, %v987
        %v991 = vclz %v990
        %v992 = vsub.s32 %v991, 2
        %vm993 = vcmp.gt.s32.totalorder 0, %v992
        %v994 = vsel %vm993, 0, %v992
        %v995 = vsub.s32 32, %v994
        %v996 = vshll.u32 %v987, %v994
        %v997 = vshrl.u32 %v979, %v995
        %v998 = vor.u32 %v996, %v997
        %v999 = vsub.s32 4294967266, %v994
        %v1000 = vadd.s32 %v999, 127
        %v1001 = vshll.u32 %v1000, 23
        %v1002 = vor.u32 4788187, %v1001
        %v1003 = vand.u32 2147483647, %v1002
        %v1005 = vcvt.s32.f32 %v998
        %v1006 = vmul.f32 %v1005, %v1003
        %v1007 = vxor.u32 %v1006, 2147483648
        %v1008 = vsel %vm925, %v1007, %v1006
        %v1009 = vsub.s32 4, %v985
        %v1010 = vsel %vm925, %v1009, %v985
        %v1011 = vsel %vm924, %v910, %v1008
        %v1012 = vsel %vm924, 0, %v1010
        %v1013 = vcosq.f32.pop %v1011
        %v1014 = vsinq.f32.pop %v1011
        %vm1015 = vweird.f32 %v910
        %v1016 = vadd.s32 %v1012, 3
        %v1017 = vand.u32 %v1016, 3
        %vm1018 = vcmp.lt.s32.totalorder %v1017, 2
        %vm1019 = vcmp.eq.s32.totalorder %v1017, 0
        %v1020 = vxor.u32 %v1014, 2147483648
        %v1021 = vsel %vm1019, %v1013, %v1020
        %vm1022 = vcmp.eq.s32.totalorder %v1017, 2
        %v1023 = vxor.u32 %v1013, 2147483648
        %v1024 = vsel %vm1022, %v1023, %v1014
        %v1025 = vsel %vm1018, %v1021, %v1024
        %v1026 = vsel %vm1015, nan, %v1025
        %v1027 = vand.u32 2147483647, %v911
        %vm1028 = vcmp.le.f32.partialorder %v1027, 0.7853982
        %vm1029 = vcmp.lt.s32.totalorder %v911, 0
        %v1030 = vand.u32 %v911, 2139095040
        %v1031 = vshrl.u32 %v1030, 23
        %v1032 = vsub.s32 %v1031, 127
        %v1033 = vand.u32 2147483647, %v911
        %v1034 = vand.u32 %v1033, 8388607
        %v1035 = vor.u32 %v1034, 8388608
        %v1036 = vsub.s32 0, %v1035
        %v1037 = vadd.s32 %v1032, 1
        %vm1038 = vcmp.gt.s32.totalorder %v1037, 0
        %v1039 = vsel %vm1038, %v1037, 0
        %v1040 = vshrl.u32 %v1039, 5
        %v1041 = vand.u32 %v1039, 31
        %v1042 = vsub.s32 32, %v1041
        %v1043 = vshrl.u32 683565275, %v1042
        %v1044 = vshll.u32 683565275, %v1041
        %v1045 = vshrl.u32 2475754826, %v1042
        %v1046 = vor.u32 %v1044, %v1045
        %v1047 = vshll.u32 2475754826, %v1041
        %v1048 = vshrl.u32 2131351028, %v1042
        %v1049 = vor.u32 %v1047, %v1048
        %v1050 = vshll.u32 2131351028, %v1041
        %v1051 = vshrl.u32 2102212464, %v1042
        %v1052 = vor.u32 %v1050, %v1051
        %v1053 = vshll.u32 2102212464, %v1041
        %v1054 = vshrl.u32 920167782, %v1042
        %v1055 = vor.u32 %v1053, %v1054
        %v1056 = vshll.u32 920167782, %v1041
        %v1057 = vshrl.u32 1326507024, %v1042
        %v1058 = vor.u32 %v1056, %v1057
        %vm1059 = vcmp.lt.s32.totalorder %v1040, 1
        %vm1060 = vcmp.lt.s32.totalorder %v1040, 2
        %vm1061 = vcmp.lt.s32.totalorder %v1040, 3
        %vm1062 = vcmp.lt.s32.totalorder %v1040, 4
        %v1063 = vsel %vm1059, %v1043, %v1046
        %v1064 = vsel %vm1062, %v1052, 2102212464
        %v1065 = vsel %vm1061, %v1049, %v1064
        %v1066 = vsel %vm1060, %v1063, %v1065
        %v1067 = vsel %vm1059, %v1046, %v1049
        %v1068 = vsel %vm1062, %v1055, 920167782
        %v1069 = vsel %vm1061, %v1052, %v1068
        %v1070 = vsel %vm1060, %v1067, %v1069
        %v1071 = vsel %vm1059, %v1049, %v1052
        %v1072 = vsel %vm1062, %v1058, 1326507024
        %v1073 = vsel %vm1061, %v1055, %v1072
        %v1074 = vsel %vm1060, %v1071, %v1073
        %v1075 = vshll.u32 %v1035, 8
        %v1076 = vmul.u32.u64.compose %v1075, %v1074
        %v1077 = vextract.low.u32 %v1076
        %v1078 = vextract.high.u32 %v1076
        %v1079 = vmul.u32.u64.compose %v1075, %v1070
        %v1080 = vextract.low.u32 %v1079
        %v1081 = vextract.high.u32 %v1079
        %v1082 = vmul.u32 %v1075, %v1066
        %v1083 = vadd.s32 %v1078, %v1080
        %vm1084 = vc.u32 %v1078, %v1080
        %v1085 = vadd.s32 %v1081, 1
        %v1086 = vsel %vm1084, %v1085, %v1081
        %v1087 = vadd.s32 %v1082, %v1086
        %v1088 = vadd.s32 %v1087, 536870912
        %v1089 = vshrl.u32 %v1088, 30
        %v1090 = vshll.u32 %v1089, 30
        %v1091 = vsub.s32 %v1087, %v1090
        %vm1092 = vcmp.lt.s32.totalorder %v1091, 0
        %v1093 = vsub.s32 0, %v1091
        %v1094 = vsel %vm1092, %v1093, %v1091
        %v1095 = vclz %v1094
        %v1096 = vsub.s32 %v1095, 2
        %vm1097 = vcmp.gt.s32.totalorder 0, %v1096
        %v1098 = vsel %vm1097, 0, %v1096
        %v1099 = vsub.s32 32, %v1098
        %v1100 = vshll.u32 %v1091, %v1098
        %v1101 = vshrl.u32 %v1083, %v1099
        %v1102 = vor.u32 %v1100, %v1101
        %v1103 = vsub.s32 4294967266, %v1098
        %v1104 = vadd.s32 %v1103, 127
        %v1105 = vshll.u32 %v1104, 23
        %v1106 = vor.u32 4788187, %v1105
        %v1107 = vand.u32 2147483647, %v1106
        %v1109 = vcvt.s32.f32 %v1102
        %v1110 = vmul.f32 %v1109, %v1107
        %v1111 = vxor.u32 %v1110, 2147483648
        %v1112 = vsel %vm1029, %v1111, %v1110
        %v1113 = vsub.s32 4, %v1089
        %v1114 = vsel %vm1029, %v1113, %v1089
        %v1115 = vsel %vm1028, %v911, %v1112
        %v1116 = vsel %vm1028, 0, %v1114
        %v1117 = vcosq.f32.pop %v1115
        %v1118 = vsinq.f32.pop %v1115
        %vm1119 = vweird.f32 %v911
        %v1120 = vadd.s32 %v1116, 3
        %v1121 = vand.u32 %v1120, 3
        %vm1122 = vcmp.lt.s32.totalorder %v1121, 2
        %vm1123 = vcmp.eq.s32.totalorder %v1121, 0
        %v1124 = vxor.u32 %v1118, 2147483648
        %v1125 = vsel %vm1123, %v1117, %v1124
        %vm1126 = vcmp.eq.s32.totalorder %v1121, 2
        %v1127 = vxor.u32 %v1117, 2147483648
        %v1128 = vsel %vm1126, %v1127, %v1118
        %v1129 = vsel %vm1122, %v1125, %v1128
        %v1130 = vsel %vm1119, nan, %v1129
        %v1131 = vand.u32 2147483647, %v912
        %vm1132 = vcmp.le.f32.partialorder %v1131, 0.7853982
        %vm1133 = vcmp.lt.s32.totalorder %v912, 0
        %v1134 = vand.u32 %v912, 2139095040
        %v1135 = vshrl.u32 %v1134, 23
        %v1136 = vsub.s32 %v1135, 127
        %v1137 = vand.u32 2147483647, %v912
        %v1138 = vand.u32 %v1137, 8388607
        %v1139 = vor.u32 %v1138, 8388608
        %v1140 = vsub.s32 0, %v1139
        %v1141 = vadd.s32 %v1136, 1
        %vm1142 = vcmp.gt.s32.totalorder %v1141, 0
        %v1143 = vsel %vm1142, %v1141, 0
        %v1144 = vshrl.u32 %v1143, 5
        %v1145 = vand.u32 %v1143, 31
        %v1146 = vsub.s32 32, %v1145
        %v1147 = vshrl.u32 683565275, %v1146
        %v1148 = vshll.u32 683565275, %v1145
        %v1149 = vshrl.u32 2475754826, %v1146
        %v1150 = vor.u32 %v1148, %v1149
        %v1151 = vshll.u32 2475754826, %v1145
        %v1152 = vshrl.u32 2131351028, %v1146
        %v1153 = vor.u32 %v1151, %v1152
        %v1154 = vshll.u32 2131351028, %v1145
        %v1155 = vshrl.u32 2102212464, %v1146
        %v1156 = vor.u32 %v1154, %v1155
        %v1157 = vshll.u32 2102212464, %v1145
        %v1158 = vshrl.u32 920167782, %v1146
        %v1159 = vor.u32 %v1157, %v1158
        %v1160 = vshll.u32 920167782, %v1145
        %v1161 = vshrl.u32 1326507024, %v1146
        %v1162 = vor.u32 %v1160, %v1161
        %vm1163 = vcmp.lt.s32.totalorder %v1144, 1
        %vm1164 = vcmp.lt.s32.totalorder %v1144, 2
        %vm1165 = vcmp.lt.s32.totalorder %v1144, 3
        %vm1166 = vcmp.lt.s32.totalorder %v1144, 4
        %v1167 = vsel %vm1163, %v1147, %v1150
        %v1168 = vsel %vm1166, %v1156, 2102212464
        %v1169 = vsel %vm1165, %v1153, %v1168
        %v1170 = vsel %vm1164, %v1167, %v1169
        %v1171 = vsel %vm1163, %v1150, %v1153
        %v1172 = vsel %vm1166, %v1159, 920167782
        %v1173 = vsel %vm1165, %v1156, %v1172
        %v1174 = vsel %vm1164, %v1171, %v1173
        %v1175 = vsel %vm1163, %v1153, %v1156
        %v1176 = vsel %vm1166, %v1162, 1326507024
        %v1177 = vsel %vm1165, %v1159, %v1176
        %v1178 = vsel %vm1164, %v1175, %v1177
        %v1179 = vshll.u32 %v1139, 8
        %v1180 = vmul.u32.u64.compose %v1179, %v1178
        %v1181 = vextract.low.u32 %v1180
        %v1182 = vextract.high.u32 %v1180
        %v1183 = vmul.u32.u64.compose %v1179, %v1174
        %v1184 = vextract.low.u32 %v1183
        %v1185 = vextract.high.u32 %v1183
        %v1186 = vmul.u32 %v1179, %v1170
        %v1187 = vadd.s32 %v1182, %v1184
        %vm1188 = vc.u32 %v1182, %v1184
        %v1189 = vadd.s32 %v1185, 1
        %v1190 = vsel %vm1188, %v1189, %v1185
        %v1191 = vadd.s32 %v1186, %v1190
        %v1192 = vadd.s32 %v1191, 536870912
        %v1193 = vshrl.u32 %v1192, 30
        %v1194 = vshll.u32 %v1193, 30
        %v1195 = vsub.s32 %v1191, %v1194
        %vm1196 = vcmp.lt.s32.totalorder %v1195, 0
        %v1197 = vsub.s32 0, %v1195
        %v1198 = vsel %vm1196, %v1197, %v1195
        %v1199 = vclz %v1198
        %v1200 = vsub.s32 %v1199, 2
        %vm1201 = vcmp.gt.s32.totalorder 0, %v1200
        %v1202 = vsel %vm1201, 0, %v1200
        %v1203 = vsub.s32 32, %v1202
        %v1204 = vshll.u32 %v1195, %v1202
        %v1205 = vshrl.u32 %v1187, %v1203
        %v1206 = vor.u32 %v1204, %v1205
        %v1207 = vsub.s32 4294967266, %v1202
        %v1208 = vadd.s32 %v1207, 127
        %v1209 = vshll.u32 %v1208, 23
        %v1210 = vor.u32 4788187, %v1209
        %v1211 = vand.u32 2147483647, %v1210
        %v1213 = vcvt.s32.f32 %v1206
        %v1214 = vmul.f32 %v1213, %v1211
        %v1215 = vxor.u32 %v1214, 2147483648
        %v1216 = vsel %vm1133, %v1215, %v1214
        %v1217 = vsub.s32 4, %v1193
        %v1218 = vsel %vm1133, %v1217, %v1193
        %v1219 = vsel %vm1132, %v912, %v1216
        %v1220 = vsel %vm1132, 0, %v1218
        %v1221 = vcosq.f32.pop %v1219
        %v1222 = vsinq.f32.pop %v1219
        %vm1223 = vweird.f32 %v912
        %v1224 = vadd.s32 %v1220, 3
        %v1225 = vand.u32 %v1224, 3
        %vm1226 = vcmp.lt.s32.totalorder %v1225, 2
        %vm1227 = vcmp.eq.s32.totalorder %v1225, 0
        %v1228 = vxor.u32 %v1222, 2147483648
        %v1229 = vsel %vm1227, %v1221, %v1228
        %vm1230 = vcmp.eq.s32.totalorder %v1225, 2
        %v1231 = vxor.u32 %v1221, 2147483648
        %v1232 = vsel %vm1230, %v1231, %v1222
        %v1233 = vsel %vm1226, %v1229, %v1232
        %v1234 = vsel %vm1223, nan, %v1233
        %v1235 = vand.u32 2147483647, %v913
        %vm1236 = vcmp.le.f32.partialorder %v1235, 0.7853982
        %vm1237 = vcmp.lt.s32.totalorder %v913, 0
        %v1238 = vand.u32 %v913, 2139095040
        %v1239 = vshrl.u32 %v1238, 23
        %v1240 = vsub.s32 %v1239, 127
        %v1241 = vand.u32 2147483647, %v913
        %v1242 = vand.u32 %v1241, 8388607
        %v1243 = vor.u32 %v1242, 8388608
        %v1244 = vsub.s32 0, %v1243
        %v1245 = vadd.s32 %v1240, 1
        %vm1246 = vcmp.gt.s32.totalorder %v1245, 0
        %v1247 = vsel %vm1246, %v1245, 0
        %v1248 = vshrl.u32 %v1247, 5
        %v1249 = vand.u32 %v1247, 31
        %v1250 = vsub.s32 32, %v1249
        %v1251 = vshrl.u32 683565275, %v1250
        %v1252 = vshll.u32 683565275, %v1249
        %v1253 = vshrl.u32 2475754826, %v1250
        %v1254 = vor.u32 %v1252, %v1253
        %v1255 = vshll.u32 2475754826, %v1249
        %v1256 = vshrl.u32 2131351028, %v1250
        %v1257 = vor.u32 %v1255, %v1256
        %v1258 = vshll.u32 2131351028, %v1249
        %v1259 = vshrl.u32 2102212464, %v1250
        %v1260 = vor.u32 %v1258, %v1259
        %v1261 = vshll.u32 2102212464, %v1249
        %v1262 = vshrl.u32 920167782, %v1250
        %v1263 = vor.u32 %v1261, %v1262
        %v1264 = vshll.u32 920167782, %v1249
        %v1265 = vshrl.u32 1326507024, %v1250
        %v1266 = vor.u32 %v1264, %v1265
        %vm1267 = vcmp.lt.s32.totalorder %v1248, 1
        %vm1268 = vcmp.lt.s32.totalorder %v1248, 2
        %vm1269 = vcmp.lt.s32.totalorder %v1248, 3
        %vm1270 = vcmp.lt.s32.totalorder %v1248, 4
        %v1271 = vsel %vm1267, %v1251, %v1254
        %v1272 = vsel %vm1270, %v1260, 2102212464
        %v1273 = vsel %vm1269, %v1257, %v1272
        %v1274 = vsel %vm1268, %v1271, %v1273
        %v1275 = vsel %vm1267, %v1254, %v1257
        %v1276 = vsel %vm1270, %v1263, 920167782
        %v1277 = vsel %vm1269, %v1260, %v1276
        %v1278 = vsel %vm1268, %v1275, %v1277
        %v1279 = vsel %vm1267, %v1257, %v1260
        %v1280 = vsel %vm1270, %v1266, 1326507024
        %v1281 = vsel %vm1269, %v1263, %v1280
        %v1282 = vsel %vm1268, %v1279, %v1281
        %v1283 = vshll.u32 %v1243, 8
        %v1284 = vmul.u32.u64.compose %v1283, %v1282
        %v1285 = vextract.low.u32 %v1284
        %v1286 = vextract.high.u32 %v1284
        %v1287 = vmul.u32.u64.compose %v1283, %v1278
        %v1288 = vextract.low.u32 %v1287
        %v1289 = vextract.high.u32 %v1287
        %v1290 = vmul.u32 %v1283, %v1274
        %v1291 = vadd.s32 %v1286, %v1288
        %vm1292 = vc.u32 %v1286, %v1288
        %v1293 = vadd.s32 %v1289, 1
        %v1294 = vsel %vm1292, %v1293, %v1289
        %v1295 = vadd.s32 %v1290, %v1294
        %v1296 = vadd.s32 %v1295, 536870912
        %v1297 = vshrl.u32 %v1296, 30
        %v1298 = vshll.u32 %v1297, 30
        %v1299 = vsub.s32 %v1295, %v1298
        %vm1300 = vcmp.lt.s32.totalorder %v1299, 0
        %v1301 = vsub.s32 0, %v1299
        %v1302 = vsel %vm1300, %v1301, %v1299
        %v1303 = vclz %v1302
        %v1304 = vsub.s32 %v1303, 2
        %vm1305 = vcmp.gt.s32.totalorder 0, %v1304
        %v1306 = vsel %vm1305, 0, %v1304
        %v1307 = vsub.s32 32, %v1306
        %v1308 = vshll.u32 %v1299, %v1306
        %v1309 = vshrl.u32 %v1291, %v1307
        %v1310 = vor.u32 %v1308, %v1309
        %v1311 = vsub.s32 4294967266, %v1306
        %v1312 = vadd.s32 %v1311, 127
        %v1313 = vshll.u32 %v1312, 23
        %v1314 = vor.u32 4788187, %v1313
        %v1315 = vand.u32 2147483647, %v1314
        %v1317 = vcvt.s32.f32 %v1310
        %v1318 = vmul.f32 %v1317, %v1315
        %v1319 = vxor.u32 %v1318, 2147483648
        %v1320 = vsel %vm1237, %v1319, %v1318
        %v1321 = vsub.s32 4, %v1297
        %v1322 = vsel %vm1237, %v1321, %v1297
        %v1323 = vsel %vm1236, %v913, %v1320
        %v1324 = vsel %vm1236, 0, %v1322
        %v1325 = vcosq.f32.pop %v1323
        %v1326 = vsinq.f32.pop %v1323
        %vm1327 = vweird.f32 %v913
        %v1328 = vadd.s32 %v1324, 3
        %v1329 = vand.u32 %v1328, 3
        %vm1330 = vcmp.lt.s32.totalorder %v1329, 2
        %vm1331 = vcmp.eq.s32.totalorder %v1329, 0
        %v1332 = vxor.u32 %v1326, 2147483648
        %v1333 = vsel %vm1331, %v1325, %v1332
        %vm1334 = vcmp.eq.s32.totalorder %v1329, 2
        %v1335 = vxor.u32 %v1325, 2147483648
        %v1336 = vsel %vm1334, %v1335, %v1326
        %v1337 = vsel %vm1330, %v1333, %v1336
        %v1338 = vsel %vm1327, nan, %v1337
        %v1339 = vand.u32 2147483647, %v914
        %vm1340 = vcmp.le.f32.partialorder %v1339, 0.7853982
        %vm1341 = vcmp.lt.s32.totalorder %v914, 0
        %v1342 = vand.u32 %v914, 2139095040
        %v1343 = vshrl.u32 %v1342, 23
        %v1344 = vsub.s32 %v1343, 127
        %v1345 = vand.u32 2147483647, %v914
        %v1346 = vand.u32 %v1345, 8388607
        %v1347 = vor.u32 %v1346, 8388608
        %v1348 = vsub.s32 0, %v1347
        %v1349 = vadd.s32 %v1344, 1
        %vm1350 = vcmp.gt.s32.totalorder %v1349, 0
        %v1351 = vsel %vm1350, %v1349, 0
        %v1352 = vshrl.u32 %v1351, 5
        %v1353 = vand.u32 %v1351, 31
        %v1354 = vsub.s32 32, %v1353
        %v1355 = vshrl.u32 683565275, %v1354
        %v1356 = vshll.u32 683565275, %v1353
        %v1357 = vshrl.u32 2475754826, %v1354
        %v1358 = vor.u32 %v1356, %v1357
        %v1359 = vshll.u32 2475754826, %v1353
        %v1360 = vshrl.u32 2131351028, %v1354
        %v1361 = vor.u32 %v1359, %v1360
        %v1362 = vshll.u32 2131351028, %v1353
        %v1363 = vshrl.u32 2102212464, %v1354
        %v1364 = vor.u32 %v1362, %v1363
        %v1365 = vshll.u32 2102212464, %v1353
        %v1366 = vshrl.u32 920167782, %v1354
        %v1367 = vor.u32 %v1365, %v1366
        %v1368 = vshll.u32 920167782, %v1353
        %v1369 = vshrl.u32 1326507024, %v1354
        %v1370 = vor.u32 %v1368, %v1369
        %vm1371 = vcmp.lt.s32.totalorder %v1352, 1
        %vm1372 = vcmp.lt.s32.totalorder %v1352, 2
        %vm1373 = vcmp.lt.s32.totalorder %v1352, 3
        %vm1374 = vcmp.lt.s32.totalorder %v1352, 4
        %v1375 = vsel %vm1371, %v1355, %v1358
        %v1376 = vsel %vm1374, %v1364, 2102212464
        %v1377 = vsel %vm1373, %v1361, %v1376
        %v1378 = vsel %vm1372, %v1375, %v1377
        %v1379 = vsel %vm1371, %v1358, %v1361
        %v1380 = vsel %vm1374, %v1367, 920167782
        %v1381 = vsel %vm1373, %v1364, %v1380
        %v1382 = vsel %vm1372, %v1379, %v1381
        %v1383 = vsel %vm1371, %v1361, %v1364
        %v1384 = vsel %vm1374, %v1370, 1326507024
        %v1385 = vsel %vm1373, %v1367, %v1384
        %v1386 = vsel %vm1372, %v1383, %v1385
        %v1387 = vshll.u32 %v1347, 8
        %v1388 = vmul.u32.u64.compose %v1387, %v1386
        %v1389 = vextract.low.u32 %v1388
        %v1390 = vextract.high.u32 %v1388
        %v1391 = vmul.u32.u64.compose %v1387, %v1382
        %v1392 = vextract.low.u32 %v1391
        %v1393 = vextract.high.u32 %v1391
        %v1394 = vmul.u32 %v1387, %v1378
        %v1395 = vadd.s32 %v1390, %v1392
        %vm1396 = vc.u32 %v1390, %v1392
        %v1397 = vadd.s32 %v1393, 1
        %v1398 = vsel %vm1396, %v1397, %v1393
        %v1399 = vadd.s32 %v1394, %v1398
        %v1400 = vadd.s32 %v1399, 536870912
        %v1401 = vshrl.u32 %v1400, 30
        %v1402 = vshll.u32 %v1401, 30
        %v1403 = vsub.s32 %v1399, %v1402
        %vm1404 = vcmp.lt.s32.totalorder %v1403, 0
        %v1405 = vsub.s32 0, %v1403
        %v1406 = vsel %vm1404, %v1405, %v1403
        %v1407 = vclz %v1406
        %v1408 = vsub.s32 %v1407, 2
        %vm1409 = vcmp.gt.s32.totalorder 0, %v1408
        %v1410 = vsel %vm1409, 0, %v1408
        %v1411 = vsub.s32 32, %v1410
        %v1412 = vshll.u32 %v1403, %v1410
        %v1413 = vshrl.u32 %v1395, %v1411
        %v1414 = vor.u32 %v1412, %v1413
        %v1415 = vsub.s32 4294967266, %v1410
        %v1416 = vadd.s32 %v1415, 127
        %v1417 = vshll.u32 %v1416, 23
        %v1418 = vor.u32 4788187, %v1417
        %v1419 = vand.u32 2147483647, %v1418
        %v1421 = vcvt.s32.f32 %v1414
        %v1422 = vmul.f32 %v1421, %v1419
        %v1423 = vxor.u32 %v1422, 2147483648
        %v1424 = vsel %vm1341, %v1423, %v1422
        %v1425 = vsub.s32 4, %v1401
        %v1426 = vsel %vm1341, %v1425, %v1401
        %v1427 = vsel %vm1340, %v914, %v1424
        %v1428 = vsel %vm1340, 0, %v1426
        %v1429 = vcosq.f32.pop %v1427
        %v1430 = vsinq.f32.pop %v1427
        %vm1431 = vweird.f32 %v914
        %v1432 = vadd.s32 %v1428, 3
        %v1433 = vand.u32 %v1432, 3
        %vm1434 = vcmp.lt.s32.totalorder %v1433, 2
        %vm1435 = vcmp.eq.s32.totalorder %v1433, 0
        %v1436 = vxor.u32 %v1430, 2147483648
        %v1437 = vsel %vm1435, %v1429, %v1436
        %vm1438 = vcmp.eq.s32.totalorder %v1433, 2
        %v1439 = vxor.u32 %v1429, 2147483648
        %v1440 = vsel %vm1438, %v1439, %v1430
        %v1441 = vsel %vm1434, %v1437, %v1440
        %v1442 = vsel %vm1431, nan, %v1441
        %v1443 = vand.u32 2147483647, %v915
        %vm1444 = vcmp.le.f32.partialorder %v1443, 0.7853982
        %vm1445 = vcmp.lt.s32.totalorder %v915, 0
        %v1446 = vand.u32 %v915, 2139095040
        %v1447 = vshrl.u32 %v1446, 23
        %v1448 = vsub.s32 %v1447, 127
        %v1449 = vand.u32 2147483647, %v915
        %v1450 = vand.u32 %v1449, 8388607
        %v1451 = vor.u32 %v1450, 8388608
        %v1452 = vsub.s32 0, %v1451
        %v1453 = vadd.s32 %v1448, 1
        %vm1454 = vcmp.gt.s32.totalorder %v1453, 0
        %v1455 = vsel %vm1454, %v1453, 0
        %v1456 = vshrl.u32 %v1455, 5
        %v1457 = vand.u32 %v1455, 31
        %v1458 = vsub.s32 32, %v1457
        %v1459 = vshrl.u32 683565275, %v1458
        %v1460 = vshll.u32 683565275, %v1457
        %v1461 = vshrl.u32 2475754826, %v1458
        %v1462 = vor.u32 %v1460, %v1461
        %v1463 = vshll.u32 2475754826, %v1457
        %v1464 = vshrl.u32 2131351028, %v1458
        %v1465 = vor.u32 %v1463, %v1464
        %v1466 = vshll.u32 2131351028, %v1457
        %v1467 = vshrl.u32 2102212464, %v1458
        %v1468 = vor.u32 %v1466, %v1467
        %v1469 = vshll.u32 2102212464, %v1457
        %v1470 = vshrl.u32 920167782, %v1458
        %v1471 = vor.u32 %v1469, %v1470
        %v1472 = vshll.u32 920167782, %v1457
        %v1473 = vshrl.u32 1326507024, %v1458
        %v1474 = vor.u32 %v1472, %v1473
        %vm1475 = vcmp.lt.s32.totalorder %v1456, 1
        %vm1476 = vcmp.lt.s32.totalorder %v1456, 2
        %vm1477 = vcmp.lt.s32.totalorder %v1456, 3
        %vm1478 = vcmp.lt.s32.totalorder %v1456, 4
        %v1479 = vsel %vm1475, %v1459, %v1462
        %v1480 = vsel %vm1478, %v1468, 2102212464
        %v1481 = vsel %vm1477, %v1465, %v1480
        %v1482 = vsel %vm1476, %v1479, %v1481
        %v1483 = vsel %vm1475, %v1462, %v1465
        %v1484 = vsel %vm1478, %v1471, 920167782
        %v1485 = vsel %vm1477, %v1468, %v1484
        %v1486 = vsel %vm1476, %v1483, %v1485
        %v1487 = vsel %vm1475, %v1465, %v1468
        %v1488 = vsel %vm1478, %v1474, 1326507024
        %v1489 = vsel %vm1477, %v1471, %v1488
        %v1490 = vsel %vm1476, %v1487, %v1489
        %v1491 = vshll.u32 %v1451, 8
        %v1492 = vmul.u32.u64.compose %v1491, %v1490
        %v1493 = vextract.low.u32 %v1492
        %v1494 = vextract.high.u32 %v1492
        %v1495 = vmul.u32.u64.compose %v1491, %v1486
        %v1496 = vextract.low.u32 %v1495
        %v1497 = vextract.high.u32 %v1495
        %v1498 = vmul.u32 %v1491, %v1482
        %v1499 = vadd.s32 %v1494, %v1496
        %vm1500 = vc.u32 %v1494, %v1496
        %v1501 = vadd.s32 %v1497, 1
        %v1502 = vsel %vm1500, %v1501, %v1497
        %v1503 = vadd.s32 %v1498, %v1502
        %v1504 = vadd.s32 %v1503, 536870912
        %v1505 = vshrl.u32 %v1504, 30
        %v1506 = vshll.u32 %v1505, 30
        %v1507 = vsub.s32 %v1503, %v1506
        %vm1508 = vcmp.lt.s32.totalorder %v1507, 0
        %v1509 = vsub.s32 0, %v1507
        %v1510 = vsel %vm1508, %v1509, %v1507
        %v1511 = vclz %v1510
        %v1512 = vsub.s32 %v1511, 2
        %vm1513 = vcmp.gt.s32.totalorder 0, %v1512
        %v1514 = vsel %vm1513, 0, %v1512
        %v1515 = vsub.s32 32, %v1514
        %v1516 = vshll.u32 %v1507, %v1514
        %v1517 = vshrl.u32 %v1499, %v1515
        %v1518 = vor.u32 %v1516, %v1517
        %v1519 = vsub.s32 4294967266, %v1514
        %v1520 = vadd.s32 %v1519, 127
        %v1521 = vshll.u32 %v1520, 23
        %v1522 = vor.u32 4788187, %v1521
        %v1523 = vand.u32 2147483647, %v1522
        %v1525 = vcvt.s32.f32 %v1518
        %v1526 = vmul.f32 %v1525, %v1523
        %v1527 = vxor.u32 %v1526, 2147483648
        %v1528 = vsel %vm1445, %v1527, %v1526
        %v1529 = vsub.s32 4, %v1505
        %v1530 = vsel %vm1445, %v1529, %v1505
        %v1531 = vsel %vm1444, %v915, %v1528
        %v1532 = vsel %vm1444, 0, %v1530
        %v1533 = vcosq.f32.pop %v1531
        %v1534 = vsinq.f32.pop %v1531
        %vm1535 = vweird.f32 %v915
        %v1536 = vadd.s32 %v1532, 3
        %v1537 = vand.u32 %v1536, 3
        %vm1538 = vcmp.lt.s32.totalorder %v1537, 2
        %vm1539 = vcmp.eq.s32.totalorder %v1537, 0
        %v1540 = vxor.u32 %v1534, 2147483648
        %v1541 = vsel %vm1539, %v1533, %v1540
        %vm1542 = vcmp.eq.s32.totalorder %v1537, 2
        %v1543 = vxor.u32 %v1533, 2147483648
        %v1544 = vsel %vm1542, %v1543, %v1534
        %v1545 = vsel %vm1538, %v1541, %v1544
        %v1546 = vsel %vm1535, nan, %v1545
        %v1547 = vand.u32 2147483647, %v916
        %vm1548 = vcmp.le.f32.partialorder %v1547, 0.7853982
        %vm1549 = vcmp.lt.s32.totalorder %v916, 0
        %v1550 = vand.u32 %v916, 2139095040
        %v1551 = vshrl.u32 %v1550, 23
        %v1552 = vsub.s32 %v1551, 127
        %v1553 = vand.u32 2147483647, %v916
        %v1554 = vand.u32 %v1553, 8388607
        %v1555 = vor.u32 %v1554, 8388608
        %v1556 = vsub.s32 0, %v1555
        %v1557 = vadd.s32 %v1552, 1
        %vm1558 = vcmp.gt.s32.totalorder %v1557, 0
        %v1559 = vsel %vm1558, %v1557, 0
        %v1560 = vshrl.u32 %v1559, 5
        %v1561 = vand.u32 %v1559, 31
        %v1562 = vsub.s32 32, %v1561
        %v1563 = vshrl.u32 683565275, %v1562
        %v1564 = vshll.u32 683565275, %v1561
        %v1565 = vshrl.u32 2475754826, %v1562
        %v1566 = vor.u32 %v1564, %v1565
        %v1567 = vshll.u32 2475754826, %v1561
        %v1568 = vshrl.u32 2131351028, %v1562
        %v1569 = vor.u32 %v1567, %v1568
        %v1570 = vshll.u32 2131351028, %v1561
        %v1571 = vshrl.u32 2102212464, %v1562
        %v1572 = vor.u32 %v1570, %v1571
        %v1573 = vshll.u32 2102212464, %v1561
        %v1574 = vshrl.u32 920167782, %v1562
        %v1575 = vor.u32 %v1573, %v1574
        %v1576 = vshll.u32 920167782, %v1561
        %v1577 = vshrl.u32 1326507024, %v1562
        %v1578 = vor.u32 %v1576, %v1577
        %vm1579 = vcmp.lt.s32.totalorder %v1560, 1
        %vm1580 = vcmp.lt.s32.totalorder %v1560, 2
        %vm1581 = vcmp.lt.s32.totalorder %v1560, 3
        %vm1582 = vcmp.lt.s32.totalorder %v1560, 4
        %v1583 = vsel %vm1579, %v1563, %v1566
        %v1584 = vsel %vm1582, %v1572, 2102212464
        %v1585 = vsel %vm1581, %v1569, %v1584
        %v1586 = vsel %vm1580, %v1583, %v1585
        %v1587 = vsel %vm1579, %v1566, %v1569
        %v1588 = vsel %vm1582, %v1575, 920167782
        %v1589 = vsel %vm1581, %v1572, %v1588
        %v1590 = vsel %vm1580, %v1587, %v1589
        %v1591 = vsel %vm1579, %v1569, %v1572
        %v1592 = vsel %vm1582, %v1578, 1326507024
        %v1593 = vsel %vm1581, %v1575, %v1592
        %v1594 = vsel %vm1580, %v1591, %v1593
        %v1595 = vshll.u32 %v1555, 8
        %v1596 = vmul.u32.u64.compose %v1595, %v1594
        %v1597 = vextract.low.u32 %v1596
        %v1598 = vextract.high.u32 %v1596
        %v1599 = vmul.u32.u64.compose %v1595, %v1590
        %v1600 = vextract.low.u32 %v1599
        %v1601 = vextract.high.u32 %v1599
        %v1602 = vmul.u32 %v1595, %v1586
        %v1603 = vadd.s32 %v1598, %v1600
        %vm1604 = vc.u32 %v1598, %v1600
        %v1605 = vadd.s32 %v1601, 1
        %v1606 = vsel %vm1604, %v1605, %v1601
        %v1607 = vadd.s32 %v1602, %v1606
        %v1608 = vadd.s32 %v1607, 536870912
        %v1609 = vshrl.u32 %v1608, 30
        %v1610 = vshll.u32 %v1609, 30
        %v1611 = vsub.s32 %v1607, %v1610
        %vm1612 = vcmp.lt.s32.totalorder %v1611, 0
        %v1613 = vsub.s32 0, %v1611
        %v1614 = vsel %vm1612, %v1613, %v1611
        %v1615 = vclz %v1614
        %v1616 = vsub.s32 %v1615, 2
        %vm1617 = vcmp.gt.s32.totalorder 0, %v1616
        %v1618 = vsel %vm1617, 0, %v1616
        %v1619 = vsub.s32 32, %v1618
        %v1620 = vshll.u32 %v1611, %v1618
        %v1621 = vshrl.u32 %v1603, %v1619
        %v1622 = vor.u32 %v1620, %v1621
        %v1623 = vsub.s32 4294967266, %v1618
        %v1624 = vadd.s32 %v1623, 127
        %v1625 = vshll.u32 %v1624, 23
        %v1626 = vor.u32 4788187, %v1625
        %v1627 = vand.u32 2147483647, %v1626
        %v1629 = vcvt.s32.f32 %v1622
        %v1630 = vmul.f32 %v1629, %v1627
        %v1631 = vxor.u32 %v1630, 2147483648
        %v1632 = vsel %vm1549, %v1631, %v1630
        %v1633 = vsub.s32 4, %v1609
        %v1634 = vsel %vm1549, %v1633, %v1609
        %v1635 = vsel %vm1548, %v916, %v1632
        %v1636 = vsel %vm1548, 0, %v1634
        %v1637 = vcosq.f32.pop %v1635
        %v1638 = vsinq.f32.pop %v1635
        %vm1639 = vweird.f32 %v916
        %v1640 = vadd.s32 %v1636, 3
        %v1641 = vand.u32 %v1640, 3
        %vm1642 = vcmp.lt.s32.totalorder %v1641, 2
        %vm1643 = vcmp.eq.s32.totalorder %v1641, 0
        %v1644 = vxor.u32 %v1638, 2147483648
        %v1645 = vsel %vm1643, %v1637, %v1644
        %vm1646 = vcmp.eq.s32.totalorder %v1641, 2
        %v1647 = vxor.u32 %v1637, 2147483648
        %v1648 = vsel %vm1646, %v1647, %v1638
        %v1649 = vsel %vm1642, %v1645, %v1648
        %v1650 = vsel %vm1639, nan, %v1649
        %v1651 = vand.u32 2147483647, %v917
        %vm1652 = vcmp.le.f32.partialorder %v1651, 0.7853982
        %vm1653 = vcmp.lt.s32.totalorder %v917, 0
        %v1654 = vand.u32 %v917, 2139095040
        %v1655 = vshrl.u32 %v1654, 23
        %v1656 = vsub.s32 %v1655, 127
        %v1657 = vand.u32 2147483647, %v917
        %v1658 = vand.u32 %v1657, 8388607
        %v1659 = vor.u32 %v1658, 8388608
        %v1660 = vsub.s32 0, %v1659
        %v1661 = vadd.s32 %v1656, 1
        %vm1662 = vcmp.gt.s32.totalorder %v1661, 0
        %v1663 = vsel %vm1662, %v1661, 0
        %v1664 = vshrl.u32 %v1663, 5
        %v1665 = vand.u32 %v1663, 31
        %v1666 = vsub.s32 32, %v1665
        %v1667 = vshrl.u32 683565275, %v1666
        %v1668 = vshll.u32 683565275, %v1665
        %v1669 = vshrl.u32 2475754826, %v1666
        %v1670 = vor.u32 %v1668, %v1669
        %v1671 = vshll.u32 2475754826, %v1665
        %v1672 = vshrl.u32 2131351028, %v1666
        %v1673 = vor.u32 %v1671, %v1672
        %v1674 = vshll.u32 2131351028, %v1665
        %v1675 = vshrl.u32 2102212464, %v1666
        %v1676 = vor.u32 %v1674, %v1675
        %v1677 = vshll.u32 2102212464, %v1665
        %v1678 = vshrl.u32 920167782, %v1666
        %v1679 = vor.u32 %v1677, %v1678
        %v1680 = vshll.u32 920167782, %v1665
        %v1681 = vshrl.u32 1326507024, %v1666
        %v1682 = vor.u32 %v1680, %v1681
        %vm1683 = vcmp.lt.s32.totalorder %v1664, 1
        %vm1684 = vcmp.lt.s32.totalorder %v1664, 2
        %vm1685 = vcmp.lt.s32.totalorder %v1664, 3
        %vm1686 = vcmp.lt.s32.totalorder %v1664, 4
        %v1687 = vsel %vm1683, %v1667, %v1670
        %v1688 = vsel %vm1686, %v1676, 2102212464
        %v1689 = vsel %vm1685, %v1673, %v1688
        %v1690 = vsel %vm1684, %v1687, %v1689
        %v1691 = vsel %vm1683, %v1670, %v1673
        %v1692 = vsel %vm1686, %v1679, 920167782
        %v1693 = vsel %vm1685, %v1676, %v1692
        %v1694 = vsel %vm1684, %v1691, %v1693
        %v1695 = vsel %vm1683, %v1673, %v1676
        %v1696 = vsel %vm1686, %v1682, 1326507024
        %v1697 = vsel %vm1685, %v1679, %v1696
        %v1698 = vsel %vm1684, %v1695, %v1697
        %v1699 = vshll.u32 %v1659, 8
        %v1700 = vmul.u32.u64.compose %v1699, %v1698
        %v1701 = vextract.low.u32 %v1700
        %v1702 = vextract.high.u32 %v1700
        %v1703 = vmul.u32.u64.compose %v1699, %v1694
        %v1704 = vextract.low.u32 %v1703
        %v1705 = vextract.high.u32 %v1703
        %v1706 = vmul.u32 %v1699, %v1690
        %v1707 = vadd.s32 %v1702, %v1704
        %vm1708 = vc.u32 %v1702, %v1704
        %v1709 = vadd.s32 %v1705, 1
        %v1710 = vsel %vm1708, %v1709, %v1705
        %v1711 = vadd.s32 %v1706, %v1710
        %v1712 = vadd.s32 %v1711, 536870912
        %v1713 = vshrl.u32 %v1712, 30
        %v1714 = vshll.u32 %v1713, 30
        %v1715 = vsub.s32 %v1711, %v1714
        %vm1716 = vcmp.lt.s32.totalorder %v1715, 0
        %v1717 = vsub.s32 0, %v1715
        %v1718 = vsel %vm1716, %v1717, %v1715
        %v1719 = vclz %v1718
        %v1720 = vsub.s32 %v1719, 2
        %vm1721 = vcmp.gt.s32.totalorder 0, %v1720
        %v1722 = vsel %vm1721, 0, %v1720
        %v1723 = vsub.s32 32, %v1722
        %v1724 = vshll.u32 %v1715, %v1722
        %v1725 = vshrl.u32 %v1707, %v1723
        %v1726 = vor.u32 %v1724, %v1725
        %v1727 = vsub.s32 4294967266, %v1722
        %v1728 = vadd.s32 %v1727, 127
        %v1729 = vshll.u32 %v1728, 23
        %v1730 = vor.u32 4788187, %v1729
        %v1731 = vand.u32 2147483647, %v1730
        %v1733 = vcvt.s32.f32 %v1726
        %v1734 = vmul.f32 %v1733, %v1731
        %v1735 = vxor.u32 %v1734, 2147483648
        %v1736 = vsel %vm1653, %v1735, %v1734
        %v1737 = vsub.s32 4, %v1713
        %v1738 = vsel %vm1653, %v1737, %v1713
        %v1739 = vsel %vm1652, %v917, %v1736
        %v1740 = vsel %vm1652, 0, %v1738
        %v1741 = vcosq.f32.pop %v1739
        %v1742 = vsinq.f32.pop %v1739
        %vm1743 = vweird.f32 %v917
        %v1744 = vadd.s32 %v1740, 3
        %v1745 = vand.u32 %v1744, 3
        %vm1746 = vcmp.lt.s32.totalorder %v1745, 2
        %vm1747 = vcmp.eq.s32.totalorder %v1745, 0
        %v1748 = vxor.u32 %v1742, 2147483648
        %v1749 = vsel %vm1747, %v1741, %v1748
        %vm1750 = vcmp.eq.s32.totalorder %v1745, 2
        %v1751 = vxor.u32 %v1741, 2147483648
        %v1752 = vsel %vm1750, %v1751, %v1742
        %v1753 = vsel %vm1746, %v1749, %v1752
        %v1754 = vsel %vm1743, nan, %v1753
        %v1755 = vand.u32 2147483647, %v918
        %vm1756 = vcmp.le.f32.partialorder %v1755, 0.7853982
        %vm1757 = vcmp.lt.s32.totalorder %v918, 0
        %v1758 = vand.u32 %v918, 2139095040
        %v1759 = vshrl.u32 %v1758, 23
        %v1760 = vsub.s32 %v1759, 127
        %v1761 = vand.u32 2147483647, %v918
        %v1762 = vand.u32 %v1761, 8388607
        %v1763 = vor.u32 %v1762, 8388608
        %v1764 = vsub.s32 0, %v1763
        %v1765 = vadd.s32 %v1760, 1
        %vm1766 = vcmp.gt.s32.totalorder %v1765, 0
        %v1767 = vsel %vm1766, %v1765, 0
        %v1768 = vshrl.u32 %v1767, 5
        %v1769 = vand.u32 %v1767, 31
        %v1770 = vsub.s32 32, %v1769
        %v1771 = vshrl.u32 683565275, %v1770
        %v1772 = vshll.u32 683565275, %v1769
        %v1773 = vshrl.u32 2475754826, %v1770
        %v1774 = vor.u32 %v1772, %v1773
        %v1775 = vshll.u32 2475754826, %v1769
        %v1776 = vshrl.u32 2131351028, %v1770
        %v1777 = vor.u32 %v1775, %v1776
        %v1778 = vshll.u32 2131351028, %v1769
        %v1779 = vshrl.u32 2102212464, %v1770
        %v1780 = vor.u32 %v1778, %v1779
        %v1781 = vshll.u32 2102212464, %v1769
        %v1782 = vshrl.u32 920167782, %v1770
        %v1783 = vor.u32 %v1781, %v1782
        %v1784 = vshll.u32 920167782, %v1769
        %v1785 = vshrl.u32 1326507024, %v1770
        %v1786 = vor.u32 %v1784, %v1785
        %vm1787 = vcmp.lt.s32.totalorder %v1768, 1
        %vm1788 = vcmp.lt.s32.totalorder %v1768, 2
        %vm1789 = vcmp.lt.s32.totalorder %v1768, 3
        %vm1790 = vcmp.lt.s32.totalorder %v1768, 4
        %v1791 = vsel %vm1787, %v1771, %v1774
        %v1792 = vsel %vm1790, %v1780, 2102212464
        %v1793 = vsel %vm1789, %v1777, %v1792
        %v1794 = vsel %vm1788, %v1791, %v1793
        %v1795 = vsel %vm1787, %v1774, %v1777
        %v1796 = vsel %vm1790, %v1783, 920167782
        %v1797 = vsel %vm1789, %v1780, %v1796
        %v1798 = vsel %vm1788, %v1795, %v1797
        %v1799 = vsel %vm1787, %v1777, %v1780
        %v1800 = vsel %vm1790, %v1786, 1326507024
        %v1801 = vsel %vm1789, %v1783, %v1800
        %v1802 = vsel %vm1788, %v1799, %v1801
        %v1803 = vshll.u32 %v1763, 8
        %v1804 = vmul.u32.u64.compose %v1803, %v1802
        %v1805 = vextract.low.u32 %v1804
        %v1806 = vextract.high.u32 %v1804
        %v1807 = vmul.u32.u64.compose %v1803, %v1798
        %v1808 = vextract.low.u32 %v1807
        %v1809 = vextract.high.u32 %v1807
        %v1810 = vmul.u32 %v1803, %v1794
        %v1811 = vadd.s32 %v1806, %v1808
        %vm1812 = vc.u32 %v1806, %v1808
        %v1813 = vadd.s32 %v1809, 1
        %v1814 = vsel %vm1812, %v1813, %v1809
        %v1815 = vadd.s32 %v1810, %v1814
        %v1816 = vadd.s32 %v1815, 536870912
        %v1817 = vshrl.u32 %v1816, 30
        %v1818 = vshll.u32 %v1817, 30
        %v1819 = vsub.s32 %v1815, %v1818
        %vm1820 = vcmp.lt.s32.totalorder %v1819, 0
        %v1821 = vsub.s32 0, %v1819
        %v1822 = vsel %vm1820, %v1821, %v1819
        %v1823 = vclz %v1822
        %v1824 = vsub.s32 %v1823, 2
        %vm1825 = vcmp.gt.s32.totalorder 0, %v1824
        %v1826 = vsel %vm1825, 0, %v1824
        %v1827 = vsub.s32 32, %v1826
        %v1828 = vshll.u32 %v1819, %v1826
        %v1829 = vshrl.u32 %v1811, %v1827
        %v1830 = vor.u32 %v1828, %v1829
        %v1831 = vsub.s32 4294967266, %v1826
        %v1832 = vadd.s32 %v1831, 127
        %v1833 = vshll.u32 %v1832, 23
        %v1834 = vor.u32 4788187, %v1833
        %v1835 = vand.u32 2147483647, %v1834
        %v1837 = vcvt.s32.f32 %v1830
        %v1838 = vmul.f32 %v1837, %v1835
        %v1839 = vxor.u32 %v1838, 2147483648
        %v1840 = vsel %vm1757, %v1839, %v1838
        %v1841 = vsub.s32 4, %v1817
        %v1842 = vsel %vm1757, %v1841, %v1817
        %v1843 = vsel %vm1756, %v918, %v1840
        %v1844 = vsel %vm1756, 0, %v1842
        %v1845 = vcosq.f32.pop %v1843
        %v1846 = vsinq.f32.pop %v1843
        %vm1847 = vweird.f32 %v918
        %v1848 = vadd.s32 %v1844, 3
        %v1849 = vand.u32 %v1848, 3
        %vm1850 = vcmp.lt.s32.totalorder %v1849, 2
        %vm1851 = vcmp.eq.s32.totalorder %v1849, 0
        %v1852 = vxor.u32 %v1846, 2147483648
        %v1853 = vsel %vm1851, %v1845, %v1852
        %vm1854 = vcmp.eq.s32.totalorder %v1849, 2
        %v1855 = vxor.u32 %v1845, 2147483648
        %v1856 = vsel %vm1854, %v1855, %v1846
        %v1857 = vsel %vm1850, %v1853, %v1856
        %v1858 = vsel %vm1847, nan, %v1857
        %v1859 = vand.u32 2147483647, %v919
        %vm1860 = vcmp.le.f32.partialorder %v1859, 0.7853982
        %vm1861 = vcmp.lt.s32.totalorder %v919, 0
        %v1862 = vand.u32 %v919, 2139095040
        %v1863 = vshrl.u32 %v1862, 23
        %v1864 = vsub.s32 %v1863, 127
        %v1865 = vand.u32 2147483647, %v919
        %v1866 = vand.u32 %v1865, 8388607
        %v1867 = vor.u32 %v1866, 8388608
        %v1868 = vsub.s32 0, %v1867
        %v1869 = vadd.s32 %v1864, 1
        %vm1870 = vcmp.gt.s32.totalorder %v1869, 0
        %v1871 = vsel %vm1870, %v1869, 0
        %v1872 = vshrl.u32 %v1871, 5
        %v1873 = vand.u32 %v1871, 31
        %v1874 = vsub.s32 32, %v1873
        %v1875 = vshrl.u32 683565275, %v1874
        %v1876 = vshll.u32 683565275, %v1873
        %v1877 = vshrl.u32 2475754826, %v1874
        %v1878 = vor.u32 %v1876, %v1877
        %v1879 = vshll.u32 2475754826, %v1873
        %v1880 = vshrl.u32 2131351028, %v1874
        %v1881 = vor.u32 %v1879, %v1880
        %v1882 = vshll.u32 2131351028, %v1873
        %v1883 = vshrl.u32 2102212464, %v1874
        %v1884 = vor.u32 %v1882, %v1883
        %v1885 = vshll.u32 2102212464, %v1873
        %v1886 = vshrl.u32 920167782, %v1874
        %v1887 = vor.u32 %v1885, %v1886
        %v1888 = vshll.u32 920167782, %v1873
        %v1889 = vshrl.u32 1326507024, %v1874
        %v1890 = vor.u32 %v1888, %v1889
        %vm1891 = vcmp.lt.s32.totalorder %v1872, 1
        %vm1892 = vcmp.lt.s32.totalorder %v1872, 2
        %vm1893 = vcmp.lt.s32.totalorder %v1872, 3
        %vm1894 = vcmp.lt.s32.totalorder %v1872, 4
        %v1895 = vsel %vm1891, %v1875, %v1878
        %v1896 = vsel %vm1894, %v1884, 2102212464
        %v1897 = vsel %vm1893, %v1881, %v1896
        %v1898 = vsel %vm1892, %v1895, %v1897
        %v1899 = vsel %vm1891, %v1878, %v1881
        %v1900 = vsel %vm1894, %v1887, 920167782
        %v1901 = vsel %vm1893, %v1884, %v1900
        %v1902 = vsel %vm1892, %v1899, %v1901
        %v1903 = vsel %vm1891, %v1881, %v1884
        %v1904 = vsel %vm1894, %v1890, 1326507024
        %v1905 = vsel %vm1893, %v1887, %v1904
        %v1906 = vsel %vm1892, %v1903, %v1905
        %v1907 = vshll.u32 %v1867, 8
        %v1908 = vmul.u32.u64.compose %v1907, %v1906
        %v1909 = vextract.low.u32 %v1908
        %v1910 = vextract.high.u32 %v1908
        %v1911 = vmul.u32.u64.compose %v1907, %v1902
        %v1912 = vextract.low.u32 %v1911
        %v1913 = vextract.high.u32 %v1911
        %v1914 = vmul.u32 %v1907, %v1898
        %v1915 = vadd.s32 %v1910, %v1912
        %vm1916 = vc.u32 %v1910, %v1912
        %v1917 = vadd.s32 %v1913, 1
        %v1918 = vsel %vm1916, %v1917, %v1913
        %v1919 = vadd.s32 %v1914, %v1918
        %v1920 = vadd.s32 %v1919, 536870912
        %v1921 = vshrl.u32 %v1920, 30
        %v1922 = vshll.u32 %v1921, 30
        %v1923 = vsub.s32 %v1919, %v1922
        %vm1924 = vcmp.lt.s32.totalorder %v1923, 0
        %v1925 = vsub.s32 0, %v1923
        %v1926 = vsel %vm1924, %v1925, %v1923
        %v1927 = vclz %v1926
        %v1928 = vsub.s32 %v1927, 2
        %vm1929 = vcmp.gt.s32.totalorder 0, %v1928
        %v1930 = vsel %vm1929, 0, %v1928
        %v1931 = vsub.s32 32, %v1930
        %v1932 = vshll.u32 %v1923, %v1930
        %v1933 = vshrl.u32 %v1915, %v1931
        %v1934 = vor.u32 %v1932, %v1933
        %v1935 = vsub.s32 4294967266, %v1930
        %v1936 = vadd.s32 %v1935, 127
        %v1937 = vshll.u32 %v1936, 23
        %v1938 = vor.u32 4788187, %v1937
        %v1939 = vand.u32 2147483647, %v1938
        %v1941 = vcvt.s32.f32 %v1934
        %v1942 = vmul.f32 %v1941, %v1939
        %v1943 = vxor.u32 %v1942, 2147483648
        %v1944 = vsel %vm1861, %v1943, %v1942
        %v1945 = vsub.s32 4, %v1921
        %v1946 = vsel %vm1861, %v1945, %v1921
        %v1947 = vsel %vm1860, %v919, %v1944
        %v1948 = vsel %vm1860, 0, %v1946
        %v1949 = vcosq.f32.pop %v1947
        %v1950 = vsinq.f32.pop %v1947
        %vm1951 = vweird.f32 %v919
        %v1952 = vadd.s32 %v1948, 3
        %v1953 = vand.u32 %v1952, 3
        %vm1954 = vcmp.lt.s32.totalorder %v1953, 2
        %vm1955 = vcmp.eq.s32.totalorder %v1953, 0
        %v1956 = vxor.u32 %v1950, 2147483648
        %v1957 = vsel %vm1955, %v1949, %v1956
        %vm1958 = vcmp.eq.s32.totalorder %v1953, 2
        %v1959 = vxor.u32 %v1949, 2147483648
        %v1960 = vsel %vm1958, %v1959, %v1950
        %v1961 = vsel %vm1954, %v1957, %v1960
        %v1962 = vsel %vm1951, nan, %v1961
        %v1963 = vand.u32 2147483647, %v920
        %vm1964 = vcmp.le.f32.partialorder %v1963, 0.7853982
        %vm1965 = vcmp.lt.s32.totalorder %v920, 0
        %v1966 = vand.u32 %v920, 2139095040
        %v1967 = vshrl.u32 %v1966, 23
        %v1968 = vsub.s32 %v1967, 127
        %v1969 = vand.u32 2147483647, %v920
        %v1970 = vand.u32 %v1969, 8388607
        %v1971 = vor.u32 %v1970, 8388608
        %v1972 = vsub.s32 0, %v1971
        %v1973 = vadd.s32 %v1968, 1
        %vm1974 = vcmp.gt.s32.totalorder %v1973, 0
        %v1975 = vsel %vm1974, %v1973, 0
        %v1976 = vshrl.u32 %v1975, 5
        %v1977 = vand.u32 %v1975, 31
        %v1978 = vsub.s32 32, %v1977
        %v1979 = vshrl.u32 683565275, %v1978
        %v1980 = vshll.u32 683565275, %v1977
        %v1981 = vshrl.u32 2475754826, %v1978
        %v1982 = vor.u32 %v1980, %v1981
        %v1983 = vshll.u32 2475754826, %v1977
        %v1984 = vshrl.u32 2131351028, %v1978
        %v1985 = vor.u32 %v1983, %v1984
        %v1986 = vshll.u32 2131351028, %v1977
        %v1987 = vshrl.u32 2102212464, %v1978
        %v1988 = vor.u32 %v1986, %v1987
        %v1989 = vshll.u32 2102212464, %v1977
        %v1990 = vshrl.u32 920167782, %v1978
        %v1991 = vor.u32 %v1989, %v1990
        %v1992 = vshll.u32 920167782, %v1977
        %v1993 = vshrl.u32 1326507024, %v1978
        %v1994 = vor.u32 %v1992, %v1993
        %vm1995 = vcmp.lt.s32.totalorder %v1976, 1
        %vm1996 = vcmp.lt.s32.totalorder %v1976, 2
        %vm1997 = vcmp.lt.s32.totalorder %v1976, 3
        %vm1998 = vcmp.lt.s32.totalorder %v1976, 4
        %v1999 = vsel %vm1995, %v1979, %v1982
        %v2000 = vsel %vm1998, %v1988, 2102212464
        %v2001 = vsel %vm1997, %v1985, %v2000
        %v2002 = vsel %vm1996, %v1999, %v2001
        %v2003 = vsel %vm1995, %v1982, %v1985
        %v2004 = vsel %vm1998, %v1991, 920167782
        %v2005 = vsel %vm1997, %v1988, %v2004
        %v2006 = vsel %vm1996, %v2003, %v2005
        %v2007 = vsel %vm1995, %v1985, %v1988
        %v2008 = vsel %vm1998, %v1994, 1326507024
        %v2009 = vsel %vm1997, %v1991, %v2008
        %v2010 = vsel %vm1996, %v2007, %v2009
        %v2011 = vshll.u32 %v1971, 8
        %v2012 = vmul.u32.u64.compose %v2011, %v2010
        %v2013 = vextract.low.u32 %v2012
        %v2014 = vextract.high.u32 %v2012
        %v2015 = vmul.u32.u64.compose %v2011, %v2006
        %v2016 = vextract.low.u32 %v2015
        %v2017 = vextract.high.u32 %v2015
        %v2018 = vmul.u32 %v2011, %v2002
        %v2019 = vadd.s32 %v2014, %v2016
        %vm2020 = vc.u32 %v2014, %v2016
        %v2021 = vadd.s32 %v2017, 1
        %v2022 = vsel %vm2020, %v2021, %v2017
        %v2023 = vadd.s32 %v2018, %v2022
        %v2024 = vadd.s32 %v2023, 536870912
        %v2025 = vshrl.u32 %v2024, 30
        %v2026 = vshll.u32 %v2025, 30
        %v2027 = vsub.s32 %v2023, %v2026
        %vm2028 = vcmp.lt.s32.totalorder %v2027, 0
        %v2029 = vsub.s32 0, %v2027
        %v2030 = vsel %vm2028, %v2029, %v2027
        %v2031 = vclz %v2030
        %v2032 = vsub.s32 %v2031, 2
        %vm2033 = vcmp.gt.s32.totalorder 0, %v2032
        %v2034 = vsel %vm2033, 0, %v2032
        %v2035 = vsub.s32 32, %v2034
        %v2036 = vshll.u32 %v2027, %v2034
        %v2037 = vshrl.u32 %v2019, %v2035
        %v2038 = vor.u32 %v2036, %v2037
        %v2039 = vsub.s32 4294967266, %v2034
        %v2040 = vadd.s32 %v2039, 127
        %v2041 = vshll.u32 %v2040, 23
        %v2042 = vor.u32 4788187, %v2041
        %v2043 = vand.u32 2147483647, %v2042
        %v2045 = vcvt.s32.f32 %v2038
        %v2046 = vmul.f32 %v2045, %v2043
        %v2047 = vxor.u32 %v2046, 2147483648
        %v2048 = vsel %vm1965, %v2047, %v2046
        %v2049 = vsub.s32 4, %v2025
        %v2050 = vsel %vm1965, %v2049, %v2025
        %v2051 = vsel %vm1964, %v920, %v2048
        %v2052 = vsel %vm1964, 0, %v2050
        %v2053 = vcosq.f32.pop %v2051
        %v2054 = vsinq.f32.pop %v2051
        %vm2055 = vweird.f32 %v920
        %v2056 = vadd.s32 %v2052, 3
        %v2057 = vand.u32 %v2056, 3
        %vm2058 = vcmp.lt.s32.totalorder %v2057, 2
        %vm2059 = vcmp.eq.s32.totalorder %v2057, 0
        %v2060 = vxor.u32 %v2054, 2147483648
        %v2061 = vsel %vm2059, %v2053, %v2060
        %vm2062 = vcmp.eq.s32.totalorder %v2057, 2
        %v2063 = vxor.u32 %v2053, 2147483648
        %v2064 = vsel %vm2062, %v2063, %v2054
        %v2065 = vsel %vm2058, %v2061, %v2064
        %v2066 = vsel %vm2055, nan, %v2065
        %v2067 = vand.u32 2147483647, %v921
        %vm2068 = vcmp.le.f32.partialorder %v2067, 0.7853982
        %vm2069 = vcmp.lt.s32.totalorder %v921, 0
        %v2070 = vand.u32 %v921, 2139095040
        %v2071 = vshrl.u32 %v2070, 23
        %v2072 = vsub.s32 %v2071, 127
        %v2073 = vand.u32 2147483647, %v921
        %v2074 = vand.u32 %v2073, 8388607
        %v2075 = vor.u32 %v2074, 8388608
        %v2076 = vsub.s32 0, %v2075
        %v2077 = vadd.s32 %v2072, 1
        %vm2078 = vcmp.gt.s32.totalorder %v2077, 0
        %v2079 = vsel %vm2078, %v2077, 0
        %v2080 = vshrl.u32 %v2079, 5
        %v2081 = vand.u32 %v2079, 31
        %v2082 = vsub.s32 32, %v2081
        %v2083 = vshrl.u32 683565275, %v2082
        %v2084 = vshll.u32 683565275, %v2081
        %v2085 = vshrl.u32 2475754826, %v2082
        %v2086 = vor.u32 %v2084, %v2085
        %v2087 = vshll.u32 2475754826, %v2081
        %v2088 = vshrl.u32 2131351028, %v2082
        %v2089 = vor.u32 %v2087, %v2088
        %v2090 = vshll.u32 2131351028, %v2081
        %v2091 = vshrl.u32 2102212464, %v2082
        %v2092 = vor.u32 %v2090, %v2091
        %v2093 = vshll.u32 2102212464, %v2081
        %v2094 = vshrl.u32 920167782, %v2082
        %v2095 = vor.u32 %v2093, %v2094
        %v2096 = vshll.u32 920167782, %v2081
        %v2097 = vshrl.u32 1326507024, %v2082
        %v2098 = vor.u32 %v2096, %v2097
        %vm2099 = vcmp.lt.s32.totalorder %v2080, 1
        %vm2100 = vcmp.lt.s32.totalorder %v2080, 2
        %vm2101 = vcmp.lt.s32.totalorder %v2080, 3
        %vm2102 = vcmp.lt.s32.totalorder %v2080, 4
        %v2103 = vsel %vm2099, %v2083, %v2086
        %v2104 = vsel %vm2102, %v2092, 2102212464
        %v2105 = vsel %vm2101, %v2089, %v2104
        %v2106 = vsel %vm2100, %v2103, %v2105
        %v2107 = vsel %vm2099, %v2086, %v2089
        %v2108 = vsel %vm2102, %v2095, 920167782
        %v2109 = vsel %vm2101, %v2092, %v2108
        %v2110 = vsel %vm2100, %v2107, %v2109
        %v2111 = vsel %vm2099, %v2089, %v2092
        %v2112 = vsel %vm2102, %v2098, 1326507024
        %v2113 = vsel %vm2101, %v2095, %v2112
        %v2114 = vsel %vm2100, %v2111, %v2113
        %v2115 = vshll.u32 %v2075, 8
        %v2116 = vmul.u32.u64.compose %v2115, %v2114
        %v2117 = vextract.low.u32 %v2116
        %v2118 = vextract.high.u32 %v2116
        %v2119 = vmul.u32.u64.compose %v2115, %v2110
        %v2120 = vextract.low.u32 %v2119
        %v2121 = vextract.high.u32 %v2119
        %v2122 = vmul.u32 %v2115, %v2106
        %v2123 = vadd.s32 %v2118, %v2120
        %vm2124 = vc.u32 %v2118, %v2120
        %v2125 = vadd.s32 %v2121, 1
        %v2126 = vsel %vm2124, %v2125, %v2121
        %v2127 = vadd.s32 %v2122, %v2126
        %v2128 = vadd.s32 %v2127, 536870912
        %v2129 = vshrl.u32 %v2128, 30
        %v2130 = vshll.u32 %v2129, 30
        %v2131 = vsub.s32 %v2127, %v2130
        %vm2132 = vcmp.lt.s32.totalorder %v2131, 0
        %v2133 = vsub.s32 0, %v2131
        %v2134 = vsel %vm2132, %v2133, %v2131
        %v2135 = vclz %v2134
        %v2136 = vsub.s32 %v2135, 2
        %vm2137 = vcmp.gt.s32.totalorder 0, %v2136
        %v2138 = vsel %vm2137, 0, %v2136
        %v2139 = vsub.s32 32, %v2138
        %v2140 = vshll.u32 %v2131, %v2138
        %v2141 = vshrl.u32 %v2123, %v2139
        %v2142 = vor.u32 %v2140, %v2141
        %v2143 = vsub.s32 4294967266, %v2138
        %v2144 = vadd.s32 %v2143, 127
        %v2145 = vshll.u32 %v2144, 23
        %v2146 = vor.u32 4788187, %v2145
        %v2147 = vand.u32 2147483647, %v2146
        %v2149 = vcvt.s32.f32 %v2142
        %v2150 = vmul.f32 %v2149, %v2147
        %v2151 = vxor.u32 %v2150, 2147483648
        %v2152 = vsel %vm2069, %v2151, %v2150
        %v2153 = vsub.s32 4, %v2129
        %v2154 = vsel %vm2069, %v2153, %v2129
        %v2155 = vsel %vm2068, %v921, %v2152
        %v2156 = vsel %vm2068, 0, %v2154
        %v2157 = vcosq.f32.pop %v2155
        %v2158 = vsinq.f32.pop %v2155
        %vm2159 = vweird.f32 %v921
        %v2160 = vadd.s32 %v2156, 3
        %v2161 = vand.u32 %v2160, 3
        %vm2162 = vcmp.lt.s32.totalorder %v2161, 2
        %vm2163 = vcmp.eq.s32.totalorder %v2161, 0
        %v2164 = vxor.u32 %v2158, 2147483648
        %v2165 = vsel %vm2163, %v2157, %v2164
        %vm2166 = vcmp.eq.s32.totalorder %v2161, 2
        %v2167 = vxor.u32 %v2157, 2147483648
        %v2168 = vsel %vm2166, %v2167, %v2158
        %v2169 = vsel %vm2162, %v2165, %v2168
        %v2170 = vsel %vm2159, nan, %v2169
        %v2171 = vand.u32 2147483647, %v922
        %vm2172 = vcmp.le.f32.partialorder %v2171, 0.7853982
        %vm2173 = vcmp.lt.s32.totalorder %v922, 0
        %v2174 = vand.u32 %v922, 2139095040
        %v2175 = vshrl.u32 %v2174, 23
        %v2176 = vsub.s32 %v2175, 127
        %v2177 = vand.u32 2147483647, %v922
        %v2178 = vand.u32 %v2177, 8388607
        %v2179 = vor.u32 %v2178, 8388608
        %v2180 = vsub.s32 0, %v2179
        %v2181 = vadd.s32 %v2176, 1
        %vm2182 = vcmp.gt.s32.totalorder %v2181, 0
        %v2183 = vsel %vm2182, %v2181, 0
        %v2184 = vshrl.u32 %v2183, 5
        %v2185 = vand.u32 %v2183, 31
        %v2186 = vsub.s32 32, %v2185
        %v2187 = vshrl.u32 683565275, %v2186
        %v2188 = vshll.u32 683565275, %v2185
        %v2189 = vshrl.u32 2475754826, %v2186
        %v2190 = vor.u32 %v2188, %v2189
        %v2191 = vshll.u32 2475754826, %v2185
        %v2192 = vshrl.u32 2131351028, %v2186
        %v2193 = vor.u32 %v2191, %v2192
        %v2194 = vshll.u32 2131351028, %v2185
        %v2195 = vshrl.u32 2102212464, %v2186
        %v2196 = vor.u32 %v2194, %v2195
        %v2197 = vshll.u32 2102212464, %v2185
        %v2198 = vshrl.u32 920167782, %v2186
        %v2199 = vor.u32 %v2197, %v2198
        %v2200 = vshll.u32 920167782, %v2185
        %v2201 = vshrl.u32 1326507024, %v2186
        %v2202 = vor.u32 %v2200, %v2201
        %vm2203 = vcmp.lt.s32.totalorder %v2184, 1
        %vm2204 = vcmp.lt.s32.totalorder %v2184, 2
        %vm2205 = vcmp.lt.s32.totalorder %v2184, 3
        %vm2206 = vcmp.lt.s32.totalorder %v2184, 4
        %v2207 = vsel %vm2203, %v2187, %v2190
        %v2208 = vsel %vm2206, %v2196, 2102212464
        %v2209 = vsel %vm2205, %v2193, %v2208
        %v2210 = vsel %vm2204, %v2207, %v2209
        %v2211 = vsel %vm2203, %v2190, %v2193
        %v2212 = vsel %vm2206, %v2199, 920167782
        %v2213 = vsel %vm2205, %v2196, %v2212
        %v2214 = vsel %vm2204, %v2211, %v2213
        %v2215 = vsel %vm2203, %v2193, %v2196
        %v2216 = vsel %vm2206, %v2202, 1326507024
        %v2217 = vsel %vm2205, %v2199, %v2216
        %v2218 = vsel %vm2204, %v2215, %v2217
        %v2219 = vshll.u32 %v2179, 8
        %v2220 = vmul.u32.u64.compose %v2219, %v2218
        %v2221 = vextract.low.u32 %v2220
        %v2222 = vextract.high.u32 %v2220
        %v2223 = vmul.u32.u64.compose %v2219, %v2214
        %v2224 = vextract.low.u32 %v2223
        %v2225 = vextract.high.u32 %v2223
        %v2226 = vmul.u32 %v2219, %v2210
        %v2227 = vadd.s32 %v2222, %v2224
        %vm2228 = vc.u32 %v2222, %v2224
        %v2229 = vadd.s32 %v2225, 1
        %v2230 = vsel %vm2228, %v2229, %v2225
        %v2231 = vadd.s32 %v2226, %v2230
        %v2232 = vadd.s32 %v2231, 536870912
        %v2233 = vshrl.u32 %v2232, 30
        %v2234 = vshll.u32 %v2233, 30
        %v2235 = vsub.s32 %v2231, %v2234
        %vm2236 = vcmp.lt.s32.totalorder %v2235, 0
        %v2237 = vsub.s32 0, %v2235
        %v2238 = vsel %vm2236, %v2237, %v2235
        %v2239 = vclz %v2238
        %v2240 = vsub.s32 %v2239, 2
        %vm2241 = vcmp.gt.s32.totalorder 0, %v2240
        %v2242 = vsel %vm2241, 0, %v2240
        %v2243 = vsub.s32 32, %v2242
        %v2244 = vshll.u32 %v2235, %v2242
        %v2245 = vshrl.u32 %v2227, %v2243
        %v2246 = vor.u32 %v2244, %v2245
        %v2247 = vsub.s32 4294967266, %v2242
        %v2248 = vadd.s32 %v2247, 127
        %v2249 = vshll.u32 %v2248, 23
        %v2250 = vor.u32 4788187, %v2249
        %v2251 = vand.u32 2147483647, %v2250
        %v2253 = vcvt.s32.f32 %v2246
        %v2254 = vmul.f32 %v2253, %v2251
        %v2255 = vxor.u32 %v2254, 2147483648
        %v2256 = vsel %vm2173, %v2255, %v2254
        %v2257 = vsub.s32 4, %v2233
        %v2258 = vsel %vm2173, %v2257, %v2233
        %v2259 = vsel %vm2172, %v922, %v2256
        %v2260 = vsel %vm2172, 0, %v2258
        %v2261 = vcosq.f32.pop %v2259
        %v2262 = vsinq.f32.pop %v2259
        %vm2263 = vweird.f32 %v922
        %v2264 = vadd.s32 %v2260, 3
        %v2265 = vand.u32 %v2264, 3
        %vm2266 = vcmp.lt.s32.totalorder %v2265, 2
        %vm2267 = vcmp.eq.s32.totalorder %v2265, 0
        %v2268 = vxor.u32 %v2262, 2147483648
        %v2269 = vsel %vm2267, %v2261, %v2268
        %vm2270 = vcmp.eq.s32.totalorder %v2265, 2
        %v2271 = vxor.u32 %v2261, 2147483648
        %v2272 = vsel %vm2270, %v2271, %v2262
        %v2273 = vsel %vm2266, %v2269, %v2272
        %v2274 = vsel %vm2263, nan, %v2273
        %v2275 = vand.u32 2147483647, %v910
        %vm2276 = vcmp.le.f32.partialorder %v2275, 0.7853982
        %vm2277 = vcmp.lt.s32.totalorder %v910, 0
        %v2278 = vand.u32 %v910, 2139095040
        %v2279 = vshrl.u32 %v2278, 23
        %v2280 = vsub.s32 %v2279, 127
        %v2281 = vand.u32 2147483647, %v910
        %v2282 = vand.u32 %v2281, 8388607
        %v2283 = vor.u32 %v2282, 8388608
        %v2284 = vsub.s32 0, %v2283
        %v2285 = vadd.s32 %v2280, 1
        %vm2286 = vcmp.gt.s32.totalorder %v2285, 0
        %v2287 = vsel %vm2286, %v2285, 0
        %v2288 = vshrl.u32 %v2287, 5
        %v2289 = vand.u32 %v2287, 31
        %v2290 = vsub.s32 32, %v2289
        %v2291 = vshrl.u32 683565275, %v2290
        %v2292 = vshll.u32 683565275, %v2289
        %v2293 = vshrl.u32 2475754826, %v2290
        %v2294 = vor.u32 %v2292, %v2293
        %v2295 = vshll.u32 2475754826, %v2289
        %v2296 = vshrl.u32 2131351028, %v2290
        %v2297 = vor.u32 %v2295, %v2296
        %v2298 = vshll.u32 2131351028, %v2289
        %v2299 = vshrl.u32 2102212464, %v2290
        %v2300 = vor.u32 %v2298, %v2299
        %v2301 = vshll.u32 2102212464, %v2289
        %v2302 = vshrl.u32 920167782, %v2290
        %v2303 = vor.u32 %v2301, %v2302
        %v2304 = vshll.u32 920167782, %v2289
        %v2305 = vshrl.u32 1326507024, %v2290
        %v2306 = vor.u32 %v2304, %v2305
        %vm2307 = vcmp.lt.s32.totalorder %v2288, 1
        %vm2308 = vcmp.lt.s32.totalorder %v2288, 2
        %vm2309 = vcmp.lt.s32.totalorder %v2288, 3
        %vm2310 = vcmp.lt.s32.totalorder %v2288, 4
        %v2311 = vsel %vm2307, %v2291, %v2294
        %v2312 = vsel %vm2310, %v2300, 2102212464
        %v2313 = vsel %vm2309, %v2297, %v2312
        %v2314 = vsel %vm2308, %v2311, %v2313
        %v2315 = vsel %vm2307, %v2294, %v2297
        %v2316 = vsel %vm2310, %v2303, 920167782
        %v2317 = vsel %vm2309, %v2300, %v2316
        %v2318 = vsel %vm2308, %v2315, %v2317
        %v2319 = vsel %vm2307, %v2297, %v2300
        %v2320 = vsel %vm2310, %v2306, 1326507024
        %v2321 = vsel %vm2309, %v2303, %v2320
        %v2322 = vsel %vm2308, %v2319, %v2321
        %v2323 = vshll.u32 %v2283, 8
        %v2324 = vmul.u32.u64.compose %v2323, %v2322
        %v2325 = vextract.low.u32 %v2324
        %v2326 = vextract.high.u32 %v2324
        %v2327 = vmul.u32.u64.compose %v2323, %v2318
        %v2328 = vextract.low.u32 %v2327
        %v2329 = vextract.high.u32 %v2327
        %v2330 = vmul.u32 %v2323, %v2314
        %v2331 = vadd.s32 %v2326, %v2328
        %vm2332 = vc.u32 %v2326, %v2328
        %v2333 = vadd.s32 %v2329, 1
        %v2334 = vsel %vm2332, %v2333, %v2329
        %v2335 = vadd.s32 %v2330, %v2334
        %v2336 = vadd.s32 %v2335, 536870912
        %v2337 = vshrl.u32 %v2336, 30
        %v2338 = vshll.u32 %v2337, 30
        %v2339 = vsub.s32 %v2335, %v2338
        %vm2340 = vcmp.lt.s32.totalorder %v2339, 0
        %v2341 = vsub.s32 0, %v2339
        %v2342 = vsel %vm2340, %v2341, %v2339
        %v2343 = vclz %v2342
        %v2344 = vsub.s32 %v2343, 2
        %vm2345 = vcmp.gt.s32.totalorder 0, %v2344
        %v2346 = vsel %vm2345, 0, %v2344
        %v2347 = vsub.s32 32, %v2346
        %v2348 = vshll.u32 %v2339, %v2346
        %v2349 = vshrl.u32 %v2331, %v2347
        %v2350 = vor.u32 %v2348, %v2349
        %v2351 = vsub.s32 4294967266, %v2346
        %v2352 = vadd.s32 %v2351, 127
        %v2353 = vshll.u32 %v2352, 23
        %v2354 = vor.u32 4788187, %v2353
        %v2355 = vand.u32 2147483647, %v2354
        %v2357 = vcvt.s32.f32 %v2350
        %v2358 = vmul.f32 %v2357, %v2355
        %v2359 = vxor.u32 %v2358, 2147483648
        %v2360 = vsel %vm2277, %v2359, %v2358
        %v2361 = vsub.s32 4, %v2337
        %v2362 = vsel %vm2277, %v2361, %v2337
        %v2363 = vsel %vm2276, %v910, %v2360
        %v2364 = vsel %vm2276, 0, %v2362
        %v2365 = vcosq.f32.pop %v2363
        %v2366 = vsinq.f32.pop %v2363
        %vm2367 = vweird.f32 %v910
        %v2368 = vand.u32 %v2364, 3
        %vm2369 = vcmp.lt.s32.totalorder %v2368, 2
        %vm2370 = vcmp.eq.s32.totalorder %v2368, 0
        %v2371 = vxor.u32 %v2366, 2147483648
        %v2372 = vsel %vm2370, %v2365, %v2371
        %vm2373 = vcmp.eq.s32.totalorder %v2368, 2
        %v2374 = vxor.u32 %v2365, 2147483648
        %v2375 = vsel %vm2373, %v2374, %v2366
        %v2376 = vsel %vm2369, %v2372, %v2375
        %v2377 = vsel %vm2367, nan, %v2376
        %v2378 = vand.u32 2147483647, %v911
        %vm2379 = vcmp.le.f32.partialorder %v2378, 0.7853982
        %vm2380 = vcmp.lt.s32.totalorder %v911, 0
        %v2381 = vand.u32 %v911, 2139095040
        %v2382 = vshrl.u32 %v2381, 23
        %v2383 = vsub.s32 %v2382, 127
        %v2384 = vand.u32 2147483647, %v911
        %v2385 = vand.u32 %v2384, 8388607
        %v2386 = vor.u32 %v2385, 8388608
        %v2387 = vsub.s32 0, %v2386
        %v2388 = vadd.s32 %v2383, 1
        %vm2389 = vcmp.gt.s32.totalorder %v2388, 0
        %v2390 = vsel %vm2389, %v2388, 0
        %v2391 = vshrl.u32 %v2390, 5
        %v2392 = vand.u32 %v2390, 31
        %v2393 = vsub.s32 32, %v2392
        %v2394 = vshrl.u32 683565275, %v2393
        %v2395 = vshll.u32 683565275, %v2392
        %v2396 = vshrl.u32 2475754826, %v2393
        %v2397 = vor.u32 %v2395, %v2396
        %v2398 = vshll.u32 2475754826, %v2392
        %v2399 = vshrl.u32 2131351028, %v2393
        %v2400 = vor.u32 %v2398, %v2399
        %v2401 = vshll.u32 2131351028, %v2392
        %v2402 = vshrl.u32 2102212464, %v2393
        %v2403 = vor.u32 %v2401, %v2402
        %v2404 = vshll.u32 2102212464, %v2392
        %v2405 = vshrl.u32 920167782, %v2393
        %v2406 = vor.u32 %v2404, %v2405
        %v2407 = vshll.u32 920167782, %v2392
        %v2408 = vshrl.u32 1326507024, %v2393
        %v2409 = vor.u32 %v2407, %v2408
        %vm2410 = vcmp.lt.s32.totalorder %v2391, 1
        %vm2411 = vcmp.lt.s32.totalorder %v2391, 2
        %vm2412 = vcmp.lt.s32.totalorder %v2391, 3
        %vm2413 = vcmp.lt.s32.totalorder %v2391, 4
        %v2414 = vsel %vm2410, %v2394, %v2397
        %v2415 = vsel %vm2413, %v2403, 2102212464
        %v2416 = vsel %vm2412, %v2400, %v2415
        %v2417 = vsel %vm2411, %v2414, %v2416
        %v2418 = vsel %vm2410, %v2397, %v2400
        %v2419 = vsel %vm2413, %v2406, 920167782
        %v2420 = vsel %vm2412, %v2403, %v2419
        %v2421 = vsel %vm2411, %v2418, %v2420
        %v2422 = vsel %vm2410, %v2400, %v2403
        %v2423 = vsel %vm2413, %v2409, 1326507024
        %v2424 = vsel %vm2412, %v2406, %v2423
        %v2425 = vsel %vm2411, %v2422, %v2424
        %v2426 = vshll.u32 %v2386, 8
        %v2427 = vmul.u32.u64.compose %v2426, %v2425
        %v2428 = vextract.low.u32 %v2427
        %v2429 = vextract.high.u32 %v2427
        %v2430 = vmul.u32.u64.compose %v2426, %v2421
        %v2431 = vextract.low.u32 %v2430
        %v2432 = vextract.high.u32 %v2430
        %v2433 = vmul.u32 %v2426, %v2417
        %v2434 = vadd.s32 %v2429, %v2431
        %vm2435 = vc.u32 %v2429, %v2431
        %v2436 = vadd.s32 %v2432, 1
        %v2437 = vsel %vm2435, %v2436, %v2432
        %v2438 = vadd.s32 %v2433, %v2437
        %v2439 = vadd.s32 %v2438, 536870912
        %v2440 = vshrl.u32 %v2439, 30
        %v2441 = vshll.u32 %v2440, 30
        %v2442 = vsub.s32 %v2438, %v2441
        %vm2443 = vcmp.lt.s32.totalorder %v2442, 0
        %v2444 = vsub.s32 0, %v2442
        %v2445 = vsel %vm2443, %v2444, %v2442
        %v2446 = vclz %v2445
        %v2447 = vsub.s32 %v2446, 2
        %vm2448 = vcmp.gt.s32.totalorder 0, %v2447
        %v2449 = vsel %vm2448, 0, %v2447
        %v2450 = vsub.s32 32, %v2449
        %v2451 = vshll.u32 %v2442, %v2449
        %v2452 = vshrl.u32 %v2434, %v2450
        %v2453 = vor.u32 %v2451, %v2452
        %v2454 = vsub.s32 4294967266, %v2449
        %v2455 = vadd.s32 %v2454, 127
        %v2456 = vshll.u32 %v2455, 23
        %v2457 = vor.u32 4788187, %v2456
        %v2458 = vand.u32 2147483647, %v2457
        %v2460 = vcvt.s32.f32 %v2453
        %v2461 = vmul.f32 %v2460, %v2458
        %v2462 = vxor.u32 %v2461, 2147483648
        %v2463 = vsel %vm2380, %v2462, %v2461
        %v2464 = vsub.s32 4, %v2440
        %v2465 = vsel %vm2380, %v2464, %v2440
        %v2466 = vsel %vm2379, %v911, %v2463
        %v2467 = vsel %vm2379, 0, %v2465
        %v2468 = vcosq.f32.pop %v2466
        %v2469 = vsinq.f32.pop %v2466
        %vm2470 = vweird.f32 %v911
        %v2471 = vand.u32 %v2467, 3
        %vm2472 = vcmp.lt.s32.totalorder %v2471, 2
        %vm2473 = vcmp.eq.s32.totalorder %v2471, 0
        %v2474 = vxor.u32 %v2469, 2147483648
        %v2475 = vsel %vm2473, %v2468, %v2474
        %vm2476 = vcmp.eq.s32.totalorder %v2471, 2
        %v2477 = vxor.u32 %v2468, 2147483648
        %v2478 = vsel %vm2476, %v2477, %v2469
        %v2479 = vsel %vm2472, %v2475, %v2478
        %v2480 = vsel %vm2470, nan, %v2479
        %v2481 = vand.u32 2147483647, %v912
        %vm2482 = vcmp.le.f32.partialorder %v2481, 0.7853982
        %vm2483 = vcmp.lt.s32.totalorder %v912, 0
        %v2484 = vand.u32 %v912, 2139095040
        %v2485 = vshrl.u32 %v2484, 23
        %v2486 = vsub.s32 %v2485, 127
        %v2487 = vand.u32 2147483647, %v912
        %v2488 = vand.u32 %v2487, 8388607
        %v2489 = vor.u32 %v2488, 8388608
        %v2490 = vsub.s32 0, %v2489
        %v2491 = vadd.s32 %v2486, 1
        %vm2492 = vcmp.gt.s32.totalorder %v2491, 0
        %v2493 = vsel %vm2492, %v2491, 0
        %v2494 = vshrl.u32 %v2493, 5
        %v2495 = vand.u32 %v2493, 31
        %v2496 = vsub.s32 32, %v2495
        %v2497 = vshrl.u32 683565275, %v2496
        %v2498 = vshll.u32 683565275, %v2495
        %v2499 = vshrl.u32 2475754826, %v2496
        %v2500 = vor.u32 %v2498, %v2499
        %v2501 = vshll.u32 2475754826, %v2495
        %v2502 = vshrl.u32 2131351028, %v2496
        %v2503 = vor.u32 %v2501, %v2502
        %v2504 = vshll.u32 2131351028, %v2495
        %v2505 = vshrl.u32 2102212464, %v2496
        %v2506 = vor.u32 %v2504, %v2505
        %v2507 = vshll.u32 2102212464, %v2495
        %v2508 = vshrl.u32 920167782, %v2496
        %v2509 = vor.u32 %v2507, %v2508
        %v2510 = vshll.u32 920167782, %v2495
        %v2511 = vshrl.u32 1326507024, %v2496
        %v2512 = vor.u32 %v2510, %v2511
        %vm2513 = vcmp.lt.s32.totalorder %v2494, 1
        %vm2514 = vcmp.lt.s32.totalorder %v2494, 2
        %vm2515 = vcmp.lt.s32.totalorder %v2494, 3
        %vm2516 = vcmp.lt.s32.totalorder %v2494, 4
        %v2517 = vsel %vm2513, %v2497, %v2500
        %v2518 = vsel %vm2516, %v2506, 2102212464
        %v2519 = vsel %vm2515, %v2503, %v2518
        %v2520 = vsel %vm2514, %v2517, %v2519
        %v2521 = vsel %vm2513, %v2500, %v2503
        %v2522 = vsel %vm2516, %v2509, 920167782
        %v2523 = vsel %vm2515, %v2506, %v2522
        %v2524 = vsel %vm2514, %v2521, %v2523
        %v2525 = vsel %vm2513, %v2503, %v2506
        %v2526 = vsel %vm2516, %v2512, 1326507024
        %v2527 = vsel %vm2515, %v2509, %v2526
        %v2528 = vsel %vm2514, %v2525, %v2527
        %v2529 = vshll.u32 %v2489, 8
        %v2530 = vmul.u32.u64.compose %v2529, %v2528
        %v2531 = vextract.low.u32 %v2530
        %v2532 = vextract.high.u32 %v2530
        %v2533 = vmul.u32.u64.compose %v2529, %v2524
        %v2534 = vextract.low.u32 %v2533
        %v2535 = vextract.high.u32 %v2533
        %v2536 = vmul.u32 %v2529, %v2520
        %v2537 = vadd.s32 %v2532, %v2534
        %vm2538 = vc.u32 %v2532, %v2534
        %v2539 = vadd.s32 %v2535, 1
        %v2540 = vsel %vm2538, %v2539, %v2535
        %v2541 = vadd.s32 %v2536, %v2540
        %v2542 = vadd.s32 %v2541, 536870912
        %v2543 = vshrl.u32 %v2542, 30
        %v2544 = vshll.u32 %v2543, 30
        %v2545 = vsub.s32 %v2541, %v2544
        %vm2546 = vcmp.lt.s32.totalorder %v2545, 0
        %v2547 = vsub.s32 0, %v2545
        %v2548 = vsel %vm2546, %v2547, %v2545
        %v2549 = vclz %v2548
        %v2550 = vsub.s32 %v2549, 2
        %vm2551 = vcmp.gt.s32.totalorder 0, %v2550
        %v2552 = vsel %vm2551, 0, %v2550
        %v2553 = vsub.s32 32, %v2552
        %v2554 = vshll.u32 %v2545, %v2552
        %v2555 = vshrl.u32 %v2537, %v2553
        %v2556 = vor.u32 %v2554, %v2555
        %v2557 = vsub.s32 4294967266, %v2552
        %v2558 = vadd.s32 %v2557, 127
        %v2559 = vshll.u32 %v2558, 23
        %v2560 = vor.u32 4788187, %v2559
        %v2561 = vand.u32 2147483647, %v2560
        %v2563 = vcvt.s32.f32 %v2556
        %v2564 = vmul.f32 %v2563, %v2561
        %v2565 = vxor.u32 %v2564, 2147483648
        %v2566 = vsel %vm2483, %v2565, %v2564
        %v2567 = vsub.s32 4, %v2543
        %v2568 = vsel %vm2483, %v2567, %v2543
        %v2569 = vsel %vm2482, %v912, %v2566
        %v2570 = vsel %vm2482, 0, %v2568
        %v2571 = vcosq.f32.pop %v2569
        %v2572 = vsinq.f32.pop %v2569
        %vm2573 = vweird.f32 %v912
        %v2574 = vand.u32 %v2570, 3
        %vm2575 = vcmp.lt.s32.totalorder %v2574, 2
        %vm2576 = vcmp.eq.s32.totalorder %v2574, 0
        %v2577 = vxor.u32 %v2572, 2147483648
        %v2578 = vsel %vm2576, %v2571, %v2577
        %vm2579 = vcmp.eq.s32.totalorder %v2574, 2
        %v2580 = vxor.u32 %v2571, 2147483648
        %v2581 = vsel %vm2579, %v2580, %v2572
        %v2582 = vsel %vm2575, %v2578, %v2581
        %v2583 = vsel %vm2573, nan, %v2582
        %v2584 = vand.u32 2147483647, %v913
        %vm2585 = vcmp.le.f32.partialorder %v2584, 0.7853982
        %vm2586 = vcmp.lt.s32.totalorder %v913, 0
        %v2587 = vand.u32 %v913, 2139095040
        %v2588 = vshrl.u32 %v2587, 23
        %v2589 = vsub.s32 %v2588, 127
        %v2590 = vand.u32 2147483647, %v913
        %v2591 = vand.u32 %v2590, 8388607
        %v2592 = vor.u32 %v2591, 8388608
        %v2593 = vsub.s32 0, %v2592
        %v2594 = vadd.s32 %v2589, 1
        %vm2595 = vcmp.gt.s32.totalorder %v2594, 0
        %v2596 = vsel %vm2595, %v2594, 0
        %v2597 = vshrl.u32 %v2596, 5
        %v2598 = vand.u32 %v2596, 31
        %v2599 = vsub.s32 32, %v2598
        %v2600 = vshrl.u32 683565275, %v2599
        %v2601 = vshll.u32 683565275, %v2598
        %v2602 = vshrl.u32 2475754826, %v2599
        %v2603 = vor.u32 %v2601, %v2602
        %v2604 = vshll.u32 2475754826, %v2598
        %v2605 = vshrl.u32 2131351028, %v2599
        %v2606 = vor.u32 %v2604, %v2605
        %v2607 = vshll.u32 2131351028, %v2598
        %v2608 = vshrl.u32 2102212464, %v2599
        %v2609 = vor.u32 %v2607, %v2608
        %v2610 = vshll.u32 2102212464, %v2598
        %v2611 = vshrl.u32 920167782, %v2599
        %v2612 = vor.u32 %v2610, %v2611
        %v2613 = vshll.u32 920167782, %v2598
        %v2614 = vshrl.u32 1326507024, %v2599
        %v2615 = vor.u32 %v2613, %v2614
        %vm2616 = vcmp.lt.s32.totalorder %v2597, 1
        %vm2617 = vcmp.lt.s32.totalorder %v2597, 2
        %vm2618 = vcmp.lt.s32.totalorder %v2597, 3
        %vm2619 = vcmp.lt.s32.totalorder %v2597, 4
        %v2620 = vsel %vm2616, %v2600, %v2603
        %v2621 = vsel %vm2619, %v2609, 2102212464
        %v2622 = vsel %vm2618, %v2606, %v2621
        %v2623 = vsel %vm2617, %v2620, %v2622
        %v2624 = vsel %vm2616, %v2603, %v2606
        %v2625 = vsel %vm2619, %v2612, 920167782
        %v2626 = vsel %vm2618, %v2609, %v2625
        %v2627 = vsel %vm2617, %v2624, %v2626
        %v2628 = vsel %vm2616, %v2606, %v2609
        %v2629 = vsel %vm2619, %v2615, 1326507024
        %v2630 = vsel %vm2618, %v2612, %v2629
        %v2631 = vsel %vm2617, %v2628, %v2630
        %v2632 = vshll.u32 %v2592, 8
        %v2633 = vmul.u32.u64.compose %v2632, %v2631
        %v2634 = vextract.low.u32 %v2633
        %v2635 = vextract.high.u32 %v2633
        %v2636 = vmul.u32.u64.compose %v2632, %v2627
        %v2637 = vextract.low.u32 %v2636
        %v2638 = vextract.high.u32 %v2636
        %v2639 = vmul.u32 %v2632, %v2623
        %v2640 = vadd.s32 %v2635, %v2637
        %vm2641 = vc.u32 %v2635, %v2637
        %v2642 = vadd.s32 %v2638, 1
        %v2643 = vsel %vm2641, %v2642, %v2638
        %v2644 = vadd.s32 %v2639, %v2643
        %v2645 = vadd.s32 %v2644, 536870912
        %v2646 = vshrl.u32 %v2645, 30
        %v2647 = vshll.u32 %v2646, 30
        %v2648 = vsub.s32 %v2644, %v2647
        %vm2649 = vcmp.lt.s32.totalorder %v2648, 0
        %v2650 = vsub.s32 0, %v2648
        %v2651 = vsel %vm2649, %v2650, %v2648
        %v2652 = vclz %v2651
        %v2653 = vsub.s32 %v2652, 2
        %vm2654 = vcmp.gt.s32.totalorder 0, %v2653
        %v2655 = vsel %vm2654, 0, %v2653
        %v2656 = vsub.s32 32, %v2655
        %v2657 = vshll.u32 %v2648, %v2655
        %v2658 = vshrl.u32 %v2640, %v2656
        %v2659 = vor.u32 %v2657, %v2658
        %v2660 = vsub.s32 4294967266, %v2655
        %v2661 = vadd.s32 %v2660, 127
        %v2662 = vshll.u32 %v2661, 23
        %v2663 = vor.u32 4788187, %v2662
        %v2664 = vand.u32 2147483647, %v2663
        %v2666 = vcvt.s32.f32 %v2659
        %v2667 = vmul.f32 %v2666, %v2664
        %v2668 = vxor.u32 %v2667, 2147483648
        %v2669 = vsel %vm2586, %v2668, %v2667
        %v2670 = vsub.s32 4, %v2646
        %v2671 = vsel %vm2586, %v2670, %v2646
        %v2672 = vsel %vm2585, %v913, %v2669
        %v2673 = vsel %vm2585, 0, %v2671
        %v2674 = vcosq.f32.pop %v2672
        %v2675 = vsinq.f32.pop %v2672
        %vm2676 = vweird.f32 %v913
        %v2677 = vand.u32 %v2673, 3
        %vm2678 = vcmp.lt.s32.totalorder %v2677, 2
        %vm2679 = vcmp.eq.s32.totalorder %v2677, 0
        %v2680 = vxor.u32 %v2675, 2147483648
        %v2681 = vsel %vm2679, %v2674, %v2680
        %vm2682 = vcmp.eq.s32.totalorder %v2677, 2
        %v2683 = vxor.u32 %v2674, 2147483648
        %v2684 = vsel %vm2682, %v2683, %v2675
        %v2685 = vsel %vm2678, %v2681, %v2684
        %v2686 = vsel %vm2676, nan, %v2685
        %v2687 = vand.u32 2147483647, %v914
        %vm2688 = vcmp.le.f32.partialorder %v2687, 0.7853982
        %vm2689 = vcmp.lt.s32.totalorder %v914, 0
        %v2690 = vand.u32 %v914, 2139095040
        %v2691 = vshrl.u32 %v2690, 23
        %v2692 = vsub.s32 %v2691, 127
        %v2693 = vand.u32 2147483647, %v914
        %v2694 = vand.u32 %v2693, 8388607
        %v2695 = vor.u32 %v2694, 8388608
        %v2696 = vsub.s32 0, %v2695
        %v2697 = vadd.s32 %v2692, 1
        %vm2698 = vcmp.gt.s32.totalorder %v2697, 0
        %v2699 = vsel %vm2698, %v2697, 0
        %v2700 = vshrl.u32 %v2699, 5
        %v2701 = vand.u32 %v2699, 31
        %v2702 = vsub.s32 32, %v2701
        %v2703 = vshrl.u32 683565275, %v2702
        %v2704 = vshll.u32 683565275, %v2701
        %v2705 = vshrl.u32 2475754826, %v2702
        %v2706 = vor.u32 %v2704, %v2705
        %v2707 = vshll.u32 2475754826, %v2701
        %v2708 = vshrl.u32 2131351028, %v2702
        %v2709 = vor.u32 %v2707, %v2708
        %v2710 = vshll.u32 2131351028, %v2701
        %v2711 = vshrl.u32 2102212464, %v2702
        %v2712 = vor.u32 %v2710, %v2711
        %v2713 = vshll.u32 2102212464, %v2701
        %v2714 = vshrl.u32 920167782, %v2702
        %v2715 = vor.u32 %v2713, %v2714
        %v2716 = vshll.u32 920167782, %v2701
        %v2717 = vshrl.u32 1326507024, %v2702
        %v2718 = vor.u32 %v2716, %v2717
        %vm2719 = vcmp.lt.s32.totalorder %v2700, 1
        %vm2720 = vcmp.lt.s32.totalorder %v2700, 2
        %vm2721 = vcmp.lt.s32.totalorder %v2700, 3
        %vm2722 = vcmp.lt.s32.totalorder %v2700, 4
        %v2723 = vsel %vm2719, %v2703, %v2706
        %v2724 = vsel %vm2722, %v2712, 2102212464
        %v2725 = vsel %vm2721, %v2709, %v2724
        %v2726 = vsel %vm2720, %v2723, %v2725
        %v2727 = vsel %vm2719, %v2706, %v2709
        %v2728 = vsel %vm2722, %v2715, 920167782
        %v2729 = vsel %vm2721, %v2712, %v2728
        %v2730 = vsel %vm2720, %v2727, %v2729
        %v2731 = vsel %vm2719, %v2709, %v2712
        %v2732 = vsel %vm2722, %v2718, 1326507024
        %v2733 = vsel %vm2721, %v2715, %v2732
        %v2734 = vsel %vm2720, %v2731, %v2733
        %v2735 = vshll.u32 %v2695, 8
        %v2736 = vmul.u32.u64.compose %v2735, %v2734
        %v2737 = vextract.low.u32 %v2736
        %v2738 = vextract.high.u32 %v2736
        %v2739 = vmul.u32.u64.compose %v2735, %v2730
        %v2740 = vextract.low.u32 %v2739
        %v2741 = vextract.high.u32 %v2739
        %v2742 = vmul.u32 %v2735, %v2726
        %v2743 = vadd.s32 %v2738, %v2740
        %vm2744 = vc.u32 %v2738, %v2740
        %v2745 = vadd.s32 %v2741, 1
        %v2746 = vsel %vm2744, %v2745, %v2741
        %v2747 = vadd.s32 %v2742, %v2746
        %v2748 = vadd.s32 %v2747, 536870912
        %v2749 = vshrl.u32 %v2748, 30
        %v2750 = vshll.u32 %v2749, 30
        %v2751 = vsub.s32 %v2747, %v2750
        %vm2752 = vcmp.lt.s32.totalorder %v2751, 0
        %v2753 = vsub.s32 0, %v2751
        %v2754 = vsel %vm2752, %v2753, %v2751
        %v2755 = vclz %v2754
        %v2756 = vsub.s32 %v2755, 2
        %vm2757 = vcmp.gt.s32.totalorder 0, %v2756
        %v2758 = vsel %vm2757, 0, %v2756
        %v2759 = vsub.s32 32, %v2758
        %v2760 = vshll.u32 %v2751, %v2758
        %v2761 = vshrl.u32 %v2743, %v2759
        %v2762 = vor.u32 %v2760, %v2761
        %v2763 = vsub.s32 4294967266, %v2758
        %v2764 = vadd.s32 %v2763, 127
        %v2765 = vshll.u32 %v2764, 23
        %v2766 = vor.u32 4788187, %v2765
        %v2767 = vand.u32 2147483647, %v2766
        %v2769 = vcvt.s32.f32 %v2762
        %v2770 = vmul.f32 %v2769, %v2767
        %v2771 = vxor.u32 %v2770, 2147483648
        %v2772 = vsel %vm2689, %v2771, %v2770
        %v2773 = vsub.s32 4, %v2749
        %v2774 = vsel %vm2689, %v2773, %v2749
        %v2775 = vsel %vm2688, %v914, %v2772
        %v2776 = vsel %vm2688, 0, %v2774
        %v2777 = vcosq.f32.pop %v2775
        %v2778 = vsinq.f32.pop %v2775
        %vm2779 = vweird.f32 %v914
        %v2780 = vand.u32 %v2776, 3
        %vm2781 = vcmp.lt.s32.totalorder %v2780, 2
        %vm2782 = vcmp.eq.s32.totalorder %v2780, 0
        %v2783 = vxor.u32 %v2778, 2147483648
        %v2784 = vsel %vm2782, %v2777, %v2783
        %vm2785 = vcmp.eq.s32.totalorder %v2780, 2
        %v2786 = vxor.u32 %v2777, 2147483648
        %v2787 = vsel %vm2785, %v2786, %v2778
        %v2788 = vsel %vm2781, %v2784, %v2787
        %v2789 = vsel %vm2779, nan, %v2788
        %v2790 = vand.u32 2147483647, %v915
        %vm2791 = vcmp.le.f32.partialorder %v2790, 0.7853982
        %vm2792 = vcmp.lt.s32.totalorder %v915, 0
        %v2793 = vand.u32 %v915, 2139095040
        %v2794 = vshrl.u32 %v2793, 23
        %v2795 = vsub.s32 %v2794, 127
        %v2796 = vand.u32 2147483647, %v915
        %v2797 = vand.u32 %v2796, 8388607
        %v2798 = vor.u32 %v2797, 8388608
        %v2799 = vsub.s32 0, %v2798
        %v2800 = vadd.s32 %v2795, 1
        %vm2801 = vcmp.gt.s32.totalorder %v2800, 0
        %v2802 = vsel %vm2801, %v2800, 0
        %v2803 = vshrl.u32 %v2802, 5
        %v2804 = vand.u32 %v2802, 31
        %v2805 = vsub.s32 32, %v2804
        %v2806 = vshrl.u32 683565275, %v2805
        %v2807 = vshll.u32 683565275, %v2804
        %v2808 = vshrl.u32 2475754826, %v2805
        %v2809 = vor.u32 %v2807, %v2808
        %v2810 = vshll.u32 2475754826, %v2804
        %v2811 = vshrl.u32 2131351028, %v2805
        %v2812 = vor.u32 %v2810, %v2811
        %v2813 = vshll.u32 2131351028, %v2804
        %v2814 = vshrl.u32 2102212464, %v2805
        %v2815 = vor.u32 %v2813, %v2814
        %v2816 = vshll.u32 2102212464, %v2804
        %v2817 = vshrl.u32 920167782, %v2805
        %v2818 = vor.u32 %v2816, %v2817
        %v2819 = vshll.u32 920167782, %v2804
        %v2820 = vshrl.u32 1326507024, %v2805
        %v2821 = vor.u32 %v2819, %v2820
        %vm2822 = vcmp.lt.s32.totalorder %v2803, 1
        %vm2823 = vcmp.lt.s32.totalorder %v2803, 2
        %vm2824 = vcmp.lt.s32.totalorder %v2803, 3
        %vm2825 = vcmp.lt.s32.totalorder %v2803, 4
        %v2826 = vsel %vm2822, %v2806, %v2809
        %v2827 = vsel %vm2825, %v2815, 2102212464
        %v2828 = vsel %vm2824, %v2812, %v2827
        %v2829 = vsel %vm2823, %v2826, %v2828
        %v2830 = vsel %vm2822, %v2809, %v2812
        %v2831 = vsel %vm2825, %v2818, 920167782
        %v2832 = vsel %vm2824, %v2815, %v2831
        %v2833 = vsel %vm2823, %v2830, %v2832
        %v2834 = vsel %vm2822, %v2812, %v2815
        %v2835 = vsel %vm2825, %v2821, 1326507024
        %v2836 = vsel %vm2824, %v2818, %v2835
        %v2837 = vsel %vm2823, %v2834, %v2836
        %v2838 = vshll.u32 %v2798, 8
        %v2839 = vmul.u32.u64.compose %v2838, %v2837
        %v2840 = vextract.low.u32 %v2839
        %v2841 = vextract.high.u32 %v2839
        %v2842 = vmul.u32.u64.compose %v2838, %v2833
        %v2843 = vextract.low.u32 %v2842
        %v2844 = vextract.high.u32 %v2842
        %v2845 = vmul.u32 %v2838, %v2829
        %v2846 = vadd.s32 %v2841, %v2843
        %vm2847 = vc.u32 %v2841, %v2843
        %v2848 = vadd.s32 %v2844, 1
        %v2849 = vsel %vm2847, %v2848, %v2844
        %v2850 = vadd.s32 %v2845, %v2849
        %v2851 = vadd.s32 %v2850, 536870912
        %v2852 = vshrl.u32 %v2851, 30
        %v2853 = vshll.u32 %v2852, 30
        %v2854 = vsub.s32 %v2850, %v2853
        %vm2855 = vcmp.lt.s32.totalorder %v2854, 0
        %v2856 = vsub.s32 0, %v2854
        %v2857 = vsel %vm2855, %v2856, %v2854
        %v2858 = vclz %v2857
        %v2859 = vsub.s32 %v2858, 2
        %vm2860 = vcmp.gt.s32.totalorder 0, %v2859
        %v2861 = vsel %vm2860, 0, %v2859
        %v2862 = vsub.s32 32, %v2861
        %v2863 = vshll.u32 %v2854, %v2861
        %v2864 = vshrl.u32 %v2846, %v2862
        %v2865 = vor.u32 %v2863, %v2864
        %v2866 = vsub.s32 4294967266, %v2861
        %v2867 = vadd.s32 %v2866, 127
        %v2868 = vshll.u32 %v2867, 23
        %v2869 = vor.u32 4788187, %v2868
        %v2870 = vand.u32 2147483647, %v2869
        %v2872 = vcvt.s32.f32 %v2865
        %v2873 = vmul.f32 %v2872, %v2870
        %v2874 = vxor.u32 %v2873, 2147483648
        %v2875 = vsel %vm2792, %v2874, %v2873
        %v2876 = vsub.s32 4, %v2852
        %v2877 = vsel %vm2792, %v2876, %v2852
        %v2878 = vsel %vm2791, %v915, %v2875
        %v2879 = vsel %vm2791, 0, %v2877
        %v2880 = vcosq.f32.pop %v2878
        %v2881 = vsinq.f32.pop %v2878
        %vm2882 = vweird.f32 %v915
        %v2883 = vand.u32 %v2879, 3
        %vm2884 = vcmp.lt.s32.totalorder %v2883, 2
        %vm2885 = vcmp.eq.s32.totalorder %v2883, 0
        %v2886 = vxor.u32 %v2881, 2147483648
        %v2887 = vsel %vm2885, %v2880, %v2886
        %vm2888 = vcmp.eq.s32.totalorder %v2883, 2
        %v2889 = vxor.u32 %v2880, 2147483648
        %v2890 = vsel %vm2888, %v2889, %v2881
        %v2891 = vsel %vm2884, %v2887, %v2890
        %v2892 = vsel %vm2882, nan, %v2891
        %v2893 = vand.u32 2147483647, %v916
        %vm2894 = vcmp.le.f32.partialorder %v2893, 0.7853982
        %vm2895 = vcmp.lt.s32.totalorder %v916, 0
        %v2896 = vand.u32 %v916, 2139095040
        %v2897 = vshrl.u32 %v2896, 23
        %v2898 = vsub.s32 %v2897, 127
        %v2899 = vand.u32 2147483647, %v916
        %v2900 = vand.u32 %v2899, 8388607
        %v2901 = vor.u32 %v2900, 8388608
        %v2902 = vsub.s32 0, %v2901
        %v2903 = vadd.s32 %v2898, 1
        %vm2904 = vcmp.gt.s32.totalorder %v2903, 0
        %v2905 = vsel %vm2904, %v2903, 0
        %v2906 = vshrl.u32 %v2905, 5
        %v2907 = vand.u32 %v2905, 31
        %v2908 = vsub.s32 32, %v2907
        %v2909 = vshrl.u32 683565275, %v2908
        %v2910 = vshll.u32 683565275, %v2907
        %v2911 = vshrl.u32 2475754826, %v2908
        %v2912 = vor.u32 %v2910, %v2911
        %v2913 = vshll.u32 2475754826, %v2907
        %v2914 = vshrl.u32 2131351028, %v2908
        %v2915 = vor.u32 %v2913, %v2914
        %v2916 = vshll.u32 2131351028, %v2907
        %v2917 = vshrl.u32 2102212464, %v2908
        %v2918 = vor.u32 %v2916, %v2917
        %v2919 = vshll.u32 2102212464, %v2907
        %v2920 = vshrl.u32 920167782, %v2908
        %v2921 = vor.u32 %v2919, %v2920
        %v2922 = vshll.u32 920167782, %v2907
        %v2923 = vshrl.u32 1326507024, %v2908
        %v2924 = vor.u32 %v2922, %v2923
        %vm2925 = vcmp.lt.s32.totalorder %v2906, 1
        %vm2926 = vcmp.lt.s32.totalorder %v2906, 2
        %vm2927 = vcmp.lt.s32.totalorder %v2906, 3
        %vm2928 = vcmp.lt.s32.totalorder %v2906, 4
        %v2929 = vsel %vm2925, %v2909, %v2912
        %v2930 = vsel %vm2928, %v2918, 2102212464
        %v2931 = vsel %vm2927, %v2915, %v2930
        %v2932 = vsel %vm2926, %v2929, %v2931
        %v2933 = vsel %vm2925, %v2912, %v2915
        %v2934 = vsel %vm2928, %v2921, 920167782
        %v2935 = vsel %vm2927, %v2918, %v2934
        %v2936 = vsel %vm2926, %v2933, %v2935
        %v2937 = vsel %vm2925, %v2915, %v2918
        %v2938 = vsel %vm2928, %v2924, 1326507024
        %v2939 = vsel %vm2927, %v2921, %v2938
        %v2940 = vsel %vm2926, %v2937, %v2939
        %v2941 = vshll.u32 %v2901, 8
        %v2942 = vmul.u32.u64.compose %v2941, %v2940
        %v2943 = vextract.low.u32 %v2942
        %v2944 = vextract.high.u32 %v2942
        %v2945 = vmul.u32.u64.compose %v2941, %v2936
        %v2946 = vextract.low.u32 %v2945
        %v2947 = vextract.high.u32 %v2945
        %v2948 = vmul.u32 %v2941, %v2932
        %v2949 = vadd.s32 %v2944, %v2946
        %vm2950 = vc.u32 %v2944, %v2946
        %v2951 = vadd.s32 %v2947, 1
        %v2952 = vsel %vm2950, %v2951, %v2947
        %v2953 = vadd.s32 %v2948, %v2952
        %v2954 = vadd.s32 %v2953, 536870912
        %v2955 = vshrl.u32 %v2954, 30
        %v2956 = vshll.u32 %v2955, 30
        %v2957 = vsub.s32 %v2953, %v2956
        %vm2958 = vcmp.lt.s32.totalorder %v2957, 0
        %v2959 = vsub.s32 0, %v2957
        %v2960 = vsel %vm2958, %v2959, %v2957
        %v2961 = vclz %v2960
        %v2962 = vsub.s32 %v2961, 2
        %vm2963 = vcmp.gt.s32.totalorder 0, %v2962
        %v2964 = vsel %vm2963, 0, %v2962
        %v2965 = vsub.s32 32, %v2964
        %v2966 = vshll.u32 %v2957, %v2964
        %v2967 = vshrl.u32 %v2949, %v2965
        %v2968 = vor.u32 %v2966, %v2967
        %v2969 = vsub.s32 4294967266, %v2964
        %v2970 = vadd.s32 %v2969, 127
        %v2971 = vshll.u32 %v2970, 23
        %v2972 = vor.u32 4788187, %v2971
        %v2973 = vand.u32 2147483647, %v2972
        %v2975 = vcvt.s32.f32 %v2968
        %v2976 = vmul.f32 %v2975, %v2973
        %v2977 = vxor.u32 %v2976, 2147483648
        %v2978 = vsel %vm2895, %v2977, %v2976
        %v2979 = vsub.s32 4, %v2955
        %v2980 = vsel %vm2895, %v2979, %v2955
        %v2981 = vsel %vm2894, %v916, %v2978
        %v2982 = vsel %vm2894, 0, %v2980
        %v2983 = vcosq.f32.pop %v2981
        %v2984 = vsinq.f32.pop %v2981
        %vm2985 = vweird.f32 %v916
        %v2986 = vand.u32 %v2982, 3
        %vm2987 = vcmp.lt.s32.totalorder %v2986, 2
        %vm2988 = vcmp.eq.s32.totalorder %v2986, 0
        %v2989 = vxor.u32 %v2984, 2147483648
        %v2990 = vsel %vm2988, %v2983, %v2989
        %vm2991 = vcmp.eq.s32.totalorder %v2986, 2
        %v2992 = vxor.u32 %v2983, 2147483648
        %v2993 = vsel %vm2991, %v2992, %v2984
        %v2994 = vsel %vm2987, %v2990, %v2993
        %v2995 = vsel %vm2985, nan, %v2994
        %v2996 = vand.u32 2147483647, %v917
        %vm2997 = vcmp.le.f32.partialorder %v2996, 0.7853982
        %vm2998 = vcmp.lt.s32.totalorder %v917, 0
        %v2999 = vand.u32 %v917, 2139095040
        %v3000 = vshrl.u32 %v2999, 23
        %v3001 = vsub.s32 %v3000, 127
        %v3002 = vand.u32 2147483647, %v917
        %v3003 = vand.u32 %v3002, 8388607
        %v3004 = vor.u32 %v3003, 8388608
        %v3005 = vsub.s32 0, %v3004
        %v3006 = vadd.s32 %v3001, 1
        %vm3007 = vcmp.gt.s32.totalorder %v3006, 0
        %v3008 = vsel %vm3007, %v3006, 0
        %v3009 = vshrl.u32 %v3008, 5
        %v3010 = vand.u32 %v3008, 31
        %v3011 = vsub.s32 32, %v3010
        %v3012 = vshrl.u32 683565275, %v3011
        %v3013 = vshll.u32 683565275, %v3010
        %v3014 = vshrl.u32 2475754826, %v3011
        %v3015 = vor.u32 %v3013, %v3014
        %v3016 = vshll.u32 2475754826, %v3010
        %v3017 = vshrl.u32 2131351028, %v3011
        %v3018 = vor.u32 %v3016, %v3017
        %v3019 = vshll.u32 2131351028, %v3010
        %v3020 = vshrl.u32 2102212464, %v3011
        %v3021 = vor.u32 %v3019, %v3020
        %v3022 = vshll.u32 2102212464, %v3010
        %v3023 = vshrl.u32 920167782, %v3011
        %v3024 = vor.u32 %v3022, %v3023
        %v3025 = vshll.u32 920167782, %v3010
        %v3026 = vshrl.u32 1326507024, %v3011
        %v3027 = vor.u32 %v3025, %v3026
        %vm3028 = vcmp.lt.s32.totalorder %v3009, 1
        %vm3029 = vcmp.lt.s32.totalorder %v3009, 2
        %vm3030 = vcmp.lt.s32.totalorder %v3009, 3
        %vm3031 = vcmp.lt.s32.totalorder %v3009, 4
        %v3032 = vsel %vm3028, %v3012, %v3015
        %v3033 = vsel %vm3031, %v3021, 2102212464
        %v3034 = vsel %vm3030, %v3018, %v3033
        %v3035 = vsel %vm3029, %v3032, %v3034
        %v3036 = vsel %vm3028, %v3015, %v3018
        %v3037 = vsel %vm3031, %v3024, 920167782
        %v3038 = vsel %vm3030, %v3021, %v3037
        %v3039 = vsel %vm3029, %v3036, %v3038
        %v3040 = vsel %vm3028, %v3018, %v3021
        %v3041 = vsel %vm3031, %v3027, 1326507024
        %v3042 = vsel %vm3030, %v3024, %v3041
        %v3043 = vsel %vm3029, %v3040, %v3042
        %v3044 = vshll.u32 %v3004, 8
        %v3045 = vmul.u32.u64.compose %v3044, %v3043
        %v3046 = vextract.low.u32 %v3045
        %v3047 = vextract.high.u32 %v3045
        %v3048 = vmul.u32.u64.compose %v3044, %v3039
        %v3049 = vextract.low.u32 %v3048
        %v3050 = vextract.high.u32 %v3048
        %v3051 = vmul.u32 %v3044, %v3035
        %v3052 = vadd.s32 %v3047, %v3049
        %vm3053 = vc.u32 %v3047, %v3049
        %v3054 = vadd.s32 %v3050, 1
        %v3055 = vsel %vm3053, %v3054, %v3050
        %v3056 = vadd.s32 %v3051, %v3055
        %v3057 = vadd.s32 %v3056, 536870912
        %v3058 = vshrl.u32 %v3057, 30
        %v3059 = vshll.u32 %v3058, 30
        %v3060 = vsub.s32 %v3056, %v3059
        %vm3061 = vcmp.lt.s32.totalorder %v3060, 0
        %v3062 = vsub.s32 0, %v3060
        %v3063 = vsel %vm3061, %v3062, %v3060
        %v3064 = vclz %v3063
        %v3065 = vsub.s32 %v3064, 2
        %vm3066 = vcmp.gt.s32.totalorder 0, %v3065
        %v3067 = vsel %vm3066, 0, %v3065
        %v3068 = vsub.s32 32, %v3067
        %v3069 = vshll.u32 %v3060, %v3067
        %v3070 = vshrl.u32 %v3052, %v3068
        %v3071 = vor.u32 %v3069, %v3070
        %v3072 = vsub.s32 4294967266, %v3067
        %v3073 = vadd.s32 %v3072, 127
        %v3074 = vshll.u32 %v3073, 23
        %v3075 = vor.u32 4788187, %v3074
        %v3076 = vand.u32 2147483647, %v3075
        %v3078 = vcvt.s32.f32 %v3071
        %v3079 = vmul.f32 %v3078, %v3076
        %v3080 = vxor.u32 %v3079, 2147483648
        %v3081 = vsel %vm2998, %v3080, %v3079
        %v3082 = vsub.s32 4, %v3058
        %v3083 = vsel %vm2998, %v3082, %v3058
        %v3084 = vsel %vm2997, %v917, %v3081
        %v3085 = vsel %vm2997, 0, %v3083
        %v3086 = vcosq.f32.pop %v3084
        %v3087 = vsinq.f32.pop %v3084
        %vm3088 = vweird.f32 %v917
        %v3089 = vand.u32 %v3085, 3
        %vm3090 = vcmp.lt.s32.totalorder %v3089, 2
        %vm3091 = vcmp.eq.s32.totalorder %v3089, 0
        %v3092 = vxor.u32 %v3087, 2147483648
        %v3093 = vsel %vm3091, %v3086, %v3092
        %vm3094 = vcmp.eq.s32.totalorder %v3089, 2
        %v3095 = vxor.u32 %v3086, 2147483648
        %v3096 = vsel %vm3094, %v3095, %v3087
        %v3097 = vsel %vm3090, %v3093, %v3096
        %v3098 = vsel %vm3088, nan, %v3097
        %v3099 = vand.u32 2147483647, %v918
        %vm3100 = vcmp.le.f32.partialorder %v3099, 0.7853982
        %vm3101 = vcmp.lt.s32.totalorder %v918, 0
        %v3102 = vand.u32 %v918, 2139095040
        %v3103 = vshrl.u32 %v3102, 23
        %v3104 = vsub.s32 %v3103, 127
        %v3105 = vand.u32 2147483647, %v918
        %v3106 = vand.u32 %v3105, 8388607
        %v3107 = vor.u32 %v3106, 8388608
        %v3108 = vsub.s32 0, %v3107
        %v3109 = vadd.s32 %v3104, 1
        %vm3110 = vcmp.gt.s32.totalorder %v3109, 0
        %v3111 = vsel %vm3110, %v3109, 0
        %v3112 = vshrl.u32 %v3111, 5
        %v3113 = vand.u32 %v3111, 31
        %v3114 = vsub.s32 32, %v3113
        %v3115 = vshrl.u32 683565275, %v3114
        %v3116 = vshll.u32 683565275, %v3113
        %v3117 = vshrl.u32 2475754826, %v3114
        %v3118 = vor.u32 %v3116, %v3117
        %v3119 = vshll.u32 2475754826, %v3113
        %v3120 = vshrl.u32 2131351028, %v3114
        %v3121 = vor.u32 %v3119, %v3120
        %v3122 = vshll.u32 2131351028, %v3113
        %v3123 = vshrl.u32 2102212464, %v3114
        %v3124 = vor.u32 %v3122, %v3123
        %v3125 = vshll.u32 2102212464, %v3113
        %v3126 = vshrl.u32 920167782, %v3114
        %v3127 = vor.u32 %v3125, %v3126
        %v3128 = vshll.u32 920167782, %v3113
        %v3129 = vshrl.u32 1326507024, %v3114
        %v3130 = vor.u32 %v3128, %v3129
        %vm3131 = vcmp.lt.s32.totalorder %v3112, 1
        %vm3132 = vcmp.lt.s32.totalorder %v3112, 2
        %vm3133 = vcmp.lt.s32.totalorder %v3112, 3
        %vm3134 = vcmp.lt.s32.totalorder %v3112, 4
        %v3135 = vsel %vm3131, %v3115, %v3118
        %v3136 = vsel %vm3134, %v3124, 2102212464
        %v3137 = vsel %vm3133, %v3121, %v3136
        %v3138 = vsel %vm3132, %v3135, %v3137
        %v3139 = vsel %vm3131, %v3118, %v3121
        %v3140 = vsel %vm3134, %v3127, 920167782
        %v3141 = vsel %vm3133, %v3124, %v3140
        %v3142 = vsel %vm3132, %v3139, %v3141
        %v3143 = vsel %vm3131, %v3121, %v3124
        %v3144 = vsel %vm3134, %v3130, 1326507024
        %v3145 = vsel %vm3133, %v3127, %v3144
        %v3146 = vsel %vm3132, %v3143, %v3145
        %v3147 = vshll.u32 %v3107, 8
        %v3148 = vmul.u32.u64.compose %v3147, %v3146
        %v3149 = vextract.low.u32 %v3148
        %v3150 = vextract.high.u32 %v3148
        %v3151 = vmul.u32.u64.compose %v3147, %v3142
        %v3152 = vextract.low.u32 %v3151
        %v3153 = vextract.high.u32 %v3151
        %v3154 = vmul.u32 %v3147, %v3138
        %v3155 = vadd.s32 %v3150, %v3152
        %vm3156 = vc.u32 %v3150, %v3152
        %v3157 = vadd.s32 %v3153, 1
        %v3158 = vsel %vm3156, %v3157, %v3153
        %v3159 = vadd.s32 %v3154, %v3158
        %v3160 = vadd.s32 %v3159, 536870912
        %v3161 = vshrl.u32 %v3160, 30
        %v3162 = vshll.u32 %v3161, 30
        %v3163 = vsub.s32 %v3159, %v3162
        %vm3164 = vcmp.lt.s32.totalorder %v3163, 0
        %v3165 = vsub.s32 0, %v3163
        %v3166 = vsel %vm3164, %v3165, %v3163
        %v3167 = vclz %v3166
        %v3168 = vsub.s32 %v3167, 2
        %vm3169 = vcmp.gt.s32.totalorder 0, %v3168
        %v3170 = vsel %vm3169, 0, %v3168
        %v3171 = vsub.s32 32, %v3170
        %v3172 = vshll.u32 %v3163, %v3170
        %v3173 = vshrl.u32 %v3155, %v3171
        %v3174 = vor.u32 %v3172, %v3173
        %v3175 = vsub.s32 4294967266, %v3170
        %v3176 = vadd.s32 %v3175, 127
        %v3177 = vshll.u32 %v3176, 23
        %v3178 = vor.u32 4788187, %v3177
        %v3179 = vand.u32 2147483647, %v3178
        %v3181 = vcvt.s32.f32 %v3174
        %v3182 = vmul.f32 %v3181, %v3179
        %v3183 = vxor.u32 %v3182, 2147483648
        %v3184 = vsel %vm3101, %v3183, %v3182
        %v3185 = vsub.s32 4, %v3161
        %v3186 = vsel %vm3101, %v3185, %v3161
        %v3187 = vsel %vm3100, %v918, %v3184
        %v3188 = vsel %vm3100, 0, %v3186
        %v3189 = vcosq.f32.pop %v3187
        %v3190 = vsinq.f32.pop %v3187
        %vm3191 = vweird.f32 %v918
        %v3192 = vand.u32 %v3188, 3
        %vm3193 = vcmp.lt.s32.totalorder %v3192, 2
        %vm3194 = vcmp.eq.s32.totalorder %v3192, 0
        %v3195 = vxor.u32 %v3190, 2147483648
        %v3196 = vsel %vm3194, %v3189, %v3195
        %vm3197 = vcmp.eq.s32.totalorder %v3192, 2
        %v3198 = vxor.u32 %v3189, 2147483648
        %v3199 = vsel %vm3197, %v3198, %v3190
        %v3200 = vsel %vm3193, %v3196, %v3199
        %v3201 = vsel %vm3191, nan, %v3200
        %v3202 = vand.u32 2147483647, %v919
        %vm3203 = vcmp.le.f32.partialorder %v3202, 0.7853982
        %vm3204 = vcmp.lt.s32.totalorder %v919, 0
        %v3205 = vand.u32 %v919, 2139095040
        %v3206 = vshrl.u32 %v3205, 23
        %v3207 = vsub.s32 %v3206, 127
        %v3208 = vand.u32 2147483647, %v919
        %v3209 = vand.u32 %v3208, 8388607
        %v3210 = vor.u32 %v3209, 8388608
        %v3211 = vsub.s32 0, %v3210
        %v3212 = vadd.s32 %v3207, 1
        %vm3213 = vcmp.gt.s32.totalorder %v3212, 0
        %v3214 = vsel %vm3213, %v3212, 0
        %v3215 = vshrl.u32 %v3214, 5
        %v3216 = vand.u32 %v3214, 31
        %v3217 = vsub.s32 32, %v3216
        %v3218 = vshrl.u32 683565275, %v3217
        %v3219 = vshll.u32 683565275, %v3216
        %v3220 = vshrl.u32 2475754826, %v3217
        %v3221 = vor.u32 %v3219, %v3220
        %v3222 = vshll.u32 2475754826, %v3216
        %v3223 = vshrl.u32 2131351028, %v3217
        %v3224 = vor.u32 %v3222, %v3223
        %v3225 = vshll.u32 2131351028, %v3216
        %v3226 = vshrl.u32 2102212464, %v3217
        %v3227 = vor.u32 %v3225, %v3226
        %v3228 = vshll.u32 2102212464, %v3216
        %v3229 = vshrl.u32 920167782, %v3217
        %v3230 = vor.u32 %v3228, %v3229
        %v3231 = vshll.u32 920167782, %v3216
        %v3232 = vshrl.u32 1326507024, %v3217
        %v3233 = vor.u32 %v3231, %v3232
        %vm3234 = vcmp.lt.s32.totalorder %v3215, 1
        %vm3235 = vcmp.lt.s32.totalorder %v3215, 2
        %vm3236 = vcmp.lt.s32.totalorder %v3215, 3
        %vm3237 = vcmp.lt.s32.totalorder %v3215, 4
        %v3238 = vsel %vm3234, %v3218, %v3221
        %v3239 = vsel %vm3237, %v3227, 2102212464
        %v3240 = vsel %vm3236, %v3224, %v3239
        %v3241 = vsel %vm3235, %v3238, %v3240
        %v3242 = vsel %vm3234, %v3221, %v3224
        %v3243 = vsel %vm3237, %v3230, 920167782
        %v3244 = vsel %vm3236, %v3227, %v3243
        %v3245 = vsel %vm3235, %v3242, %v3244
        %v3246 = vsel %vm3234, %v3224, %v3227
        %v3247 = vsel %vm3237, %v3233, 1326507024
        %v3248 = vsel %vm3236, %v3230, %v3247
        %v3249 = vsel %vm3235, %v3246, %v3248
        %v3250 = vshll.u32 %v3210, 8
        %v3251 = vmul.u32.u64.compose %v3250, %v3249
        %v3252 = vextract.low.u32 %v3251
        %v3253 = vextract.high.u32 %v3251
        %v3254 = vmul.u32.u64.compose %v3250, %v3245
        %v3255 = vextract.low.u32 %v3254
        %v3256 = vextract.high.u32 %v3254
        %v3257 = vmul.u32 %v3250, %v3241
        %v3258 = vadd.s32 %v3253, %v3255
        %vm3259 = vc.u32 %v3253, %v3255
        %v3260 = vadd.s32 %v3256, 1
        %v3261 = vsel %vm3259, %v3260, %v3256
        %v3262 = vadd.s32 %v3257, %v3261
        %v3263 = vadd.s32 %v3262, 536870912
        %v3264 = vshrl.u32 %v3263, 30
        %v3265 = vshll.u32 %v3264, 30
        %v3266 = vsub.s32 %v3262, %v3265
        %vm3267 = vcmp.lt.s32.totalorder %v3266, 0
        %v3268 = vsub.s32 0, %v3266
        %v3269 = vsel %vm3267, %v3268, %v3266
        %v3270 = vclz %v3269
        %v3271 = vsub.s32 %v3270, 2
        %vm3272 = vcmp.gt.s32.totalorder 0, %v3271
        %v3273 = vsel %vm3272, 0, %v3271
        %v3274 = vsub.s32 32, %v3273
        %v3275 = vshll.u32 %v3266, %v3273
        %v3276 = vshrl.u32 %v3258, %v3274
        %v3277 = vor.u32 %v3275, %v3276
        %v3278 = vsub.s32 4294967266, %v3273
        %v3279 = vadd.s32 %v3278, 127
        %v3280 = vshll.u32 %v3279, 23
        %v3281 = vor.u32 4788187, %v3280
        %v3282 = vand.u32 2147483647, %v3281
        %v3284 = vcvt.s32.f32 %v3277
        %v3285 = vmul.f32 %v3284, %v3282
        %v3286 = vxor.u32 %v3285, 2147483648
        %v3287 = vsel %vm3204, %v3286, %v3285
        %v3288 = vsub.s32 4, %v3264
        %v3289 = vsel %vm3204, %v3288, %v3264
        %v3290 = vsel %vm3203, %v919, %v3287
        %v3291 = vsel %vm3203, 0, %v3289
        %v3292 = vcosq.f32.pop %v3290
        %v3293 = vsinq.f32.pop %v3290
        %vm3294 = vweird.f32 %v919
        %v3295 = vand.u32 %v3291, 3
        %vm3296 = vcmp.lt.s32.totalorder %v3295, 2
        %vm3297 = vcmp.eq.s32.totalorder %v3295, 0
        %v3298 = vxor.u32 %v3293, 2147483648
        %v3299 = vsel %vm3297, %v3292, %v3298
        %vm3300 = vcmp.eq.s32.totalorder %v3295, 2
        %v3301 = vxor.u32 %v3292, 2147483648
        %v3302 = vsel %vm3300, %v3301, %v3293
        %v3303 = vsel %vm3296, %v3299, %v3302
        %v3304 = vsel %vm3294, nan, %v3303
        %v3305 = vand.u32 2147483647, %v920
        %vm3306 = vcmp.le.f32.partialorder %v3305, 0.7853982
        %vm3307 = vcmp.lt.s32.totalorder %v920, 0
        %v3308 = vand.u32 %v920, 2139095040
        %v3309 = vshrl.u32 %v3308, 23
        %v3310 = vsub.s32 %v3309, 127
        %v3311 = vand.u32 2147483647, %v920
        %v3312 = vand.u32 %v3311, 8388607
        %v3313 = vor.u32 %v3312, 8388608
        %v3314 = vsub.s32 0, %v3313
        %v3315 = vadd.s32 %v3310, 1
        %vm3316 = vcmp.gt.s32.totalorder %v3315, 0
        %v3317 = vsel %vm3316, %v3315, 0
        %v3318 = vshrl.u32 %v3317, 5
        %v3319 = vand.u32 %v3317, 31
        %v3320 = vsub.s32 32, %v3319
        %v3321 = vshrl.u32 683565275, %v3320
        %v3322 = vshll.u32 683565275, %v3319
        %v3323 = vshrl.u32 2475754826, %v3320
        %v3324 = vor.u32 %v3322, %v3323
        %v3325 = vshll.u32 2475754826, %v3319
        %v3326 = vshrl.u32 2131351028, %v3320
        %v3327 = vor.u32 %v3325, %v3326
        %v3328 = vshll.u32 2131351028, %v3319
        %v3329 = vshrl.u32 2102212464, %v3320
        %v3330 = vor.u32 %v3328, %v3329
        %v3331 = vshll.u32 2102212464, %v3319
        %v3332 = vshrl.u32 920167782, %v3320
        %v3333 = vor.u32 %v3331, %v3332
        %v3334 = vshll.u32 920167782, %v3319
        %v3335 = vshrl.u32 1326507024, %v3320
        %v3336 = vor.u32 %v3334, %v3335
        %vm3337 = vcmp.lt.s32.totalorder %v3318, 1
        %vm3338 = vcmp.lt.s32.totalorder %v3318, 2
        %vm3339 = vcmp.lt.s32.totalorder %v3318, 3
        %vm3340 = vcmp.lt.s32.totalorder %v3318, 4
        %v3341 = vsel %vm3337, %v3321, %v3324
        %v3342 = vsel %vm3340, %v3330, 2102212464
        %v3343 = vsel %vm3339, %v3327, %v3342
        %v3344 = vsel %vm3338, %v3341, %v3343
        %v3345 = vsel %vm3337, %v3324, %v3327
        %v3346 = vsel %vm3340, %v3333, 920167782
        %v3347 = vsel %vm3339, %v3330, %v3346
        %v3348 = vsel %vm3338, %v3345, %v3347
        %v3349 = vsel %vm3337, %v3327, %v3330
        %v3350 = vsel %vm3340, %v3336, 1326507024
        %v3351 = vsel %vm3339, %v3333, %v3350
        %v3352 = vsel %vm3338, %v3349, %v3351
        %v3353 = vshll.u32 %v3313, 8
        %v3354 = vmul.u32.u64.compose %v3353, %v3352
        %v3355 = vextract.low.u32 %v3354
        %v3356 = vextract.high.u32 %v3354
        %v3357 = vmul.u32.u64.compose %v3353, %v3348
        %v3358 = vextract.low.u32 %v3357
        %v3359 = vextract.high.u32 %v3357
        %v3360 = vmul.u32 %v3353, %v3344
        %v3361 = vadd.s32 %v3356, %v3358
        %vm3362 = vc.u32 %v3356, %v3358
        %v3363 = vadd.s32 %v3359, 1
        %v3364 = vsel %vm3362, %v3363, %v3359
        %v3365 = vadd.s32 %v3360, %v3364
        %v3366 = vadd.s32 %v3365, 536870912
        %v3367 = vshrl.u32 %v3366, 30
        %v3368 = vshll.u32 %v3367, 30
        %v3369 = vsub.s32 %v3365, %v3368
        %vm3370 = vcmp.lt.s32.totalorder %v3369, 0
        %v3371 = vsub.s32 0, %v3369
        %v3372 = vsel %vm3370, %v3371, %v3369
        %v3373 = vclz %v3372
        %v3374 = vsub.s32 %v3373, 2
        %vm3375 = vcmp.gt.s32.totalorder 0, %v3374
        %v3376 = vsel %vm3375, 0, %v3374
        %v3377 = vsub.s32 32, %v3376
        %v3378 = vshll.u32 %v3369, %v3376
        %v3379 = vshrl.u32 %v3361, %v3377
        %v3380 = vor.u32 %v3378, %v3379
        %v3381 = vsub.s32 4294967266, %v3376
        %v3382 = vadd.s32 %v3381, 127
        %v3383 = vshll.u32 %v3382, 23
        %v3384 = vor.u32 4788187, %v3383
        %v3385 = vand.u32 2147483647, %v3384
        %v3387 = vcvt.s32.f32 %v3380
        %v3388 = vmul.f32 %v3387, %v3385
        %v3389 = vxor.u32 %v3388, 2147483648
        %v3390 = vsel %vm3307, %v3389, %v3388
        %v3391 = vsub.s32 4, %v3367
        %v3392 = vsel %vm3307, %v3391, %v3367
        %v3393 = vsel %vm3306, %v920, %v3390
        %v3394 = vsel %vm3306, 0, %v3392
        %v3395 = vcosq.f32.pop %v3393
        %v3396 = vsinq.f32.pop %v3393
        %vm3397 = vweird.f32 %v920
        %v3398 = vand.u32 %v3394, 3
        %vm3399 = vcmp.lt.s32.totalorder %v3398, 2
        %vm3400 = vcmp.eq.s32.totalorder %v3398, 0
        %v3401 = vxor.u32 %v3396, 2147483648
        %v3402 = vsel %vm3400, %v3395, %v3401
        %vm3403 = vcmp.eq.s32.totalorder %v3398, 2
        %v3404 = vxor.u32 %v3395, 2147483648
        %v3405 = vsel %vm3403, %v3404, %v3396
        %v3406 = vsel %vm3399, %v3402, %v3405
        %v3407 = vsel %vm3397, nan, %v3406
        %v3408 = vand.u32 2147483647, %v921
        %vm3409 = vcmp.le.f32.partialorder %v3408, 0.7853982
        %vm3410 = vcmp.lt.s32.totalorder %v921, 0
        %v3411 = vand.u32 %v921, 2139095040
        %v3412 = vshrl.u32 %v3411, 23
        %v3413 = vsub.s32 %v3412, 127
        %v3414 = vand.u32 2147483647, %v921
        %v3415 = vand.u32 %v3414, 8388607
        %v3416 = vor.u32 %v3415, 8388608
        %v3417 = vsub.s32 0, %v3416
        %v3418 = vadd.s32 %v3413, 1
        %vm3419 = vcmp.gt.s32.totalorder %v3418, 0
        %v3420 = vsel %vm3419, %v3418, 0
        %v3421 = vshrl.u32 %v3420, 5
        %v3422 = vand.u32 %v3420, 31
        %v3423 = vsub.s32 32, %v3422
        %v3424 = vshrl.u32 683565275, %v3423
        %v3425 = vshll.u32 683565275, %v3422
        %v3426 = vshrl.u32 2475754826, %v3423
        %v3427 = vor.u32 %v3425, %v3426
        %v3428 = vshll.u32 2475754826, %v3422
        %v3429 = vshrl.u32 2131351028, %v3423
        %v3430 = vor.u32 %v3428, %v3429
        %v3431 = vshll.u32 2131351028, %v3422
        %v3432 = vshrl.u32 2102212464, %v3423
        %v3433 = vor.u32 %v3431, %v3432
        %v3434 = vshll.u32 2102212464, %v3422
        %v3435 = vshrl.u32 920167782, %v3423
        %v3436 = vor.u32 %v3434, %v3435
        %v3437 = vshll.u32 920167782, %v3422
        %v3438 = vshrl.u32 1326507024, %v3423
        %v3439 = vor.u32 %v3437, %v3438
        %vm3440 = vcmp.lt.s32.totalorder %v3421, 1
        %vm3441 = vcmp.lt.s32.totalorder %v3421, 2
        %vm3442 = vcmp.lt.s32.totalorder %v3421, 3
        %vm3443 = vcmp.lt.s32.totalorder %v3421, 4
        %v3444 = vsel %vm3440, %v3424, %v3427
        %v3445 = vsel %vm3443, %v3433, 2102212464
        %v3446 = vsel %vm3442, %v3430, %v3445
        %v3447 = vsel %vm3441, %v3444, %v3446
        %v3448 = vsel %vm3440, %v3427, %v3430
        %v3449 = vsel %vm3443, %v3436, 920167782
        %v3450 = vsel %vm3442, %v3433, %v3449
        %v3451 = vsel %vm3441, %v3448, %v3450
        %v3452 = vsel %vm3440, %v3430, %v3433
        %v3453 = vsel %vm3443, %v3439, 1326507024
        %v3454 = vsel %vm3442, %v3436, %v3453
        %v3455 = vsel %vm3441, %v3452, %v3454
        %v3456 = vshll.u32 %v3416, 8
        %v3457 = vmul.u32.u64.compose %v3456, %v3455
        %v3458 = vextract.low.u32 %v3457
        %v3459 = vextract.high.u32 %v3457
        %v3460 = vmul.u32.u64.compose %v3456, %v3451
        %v3461 = vextract.low.u32 %v3460
        %v3462 = vextract.high.u32 %v3460
        %v3463 = vmul.u32 %v3456, %v3447
        %v3464 = vadd.s32 %v3459, %v3461
        %vm3465 = vc.u32 %v3459, %v3461
        %v3466 = vadd.s32 %v3462, 1
        %v3467 = vsel %vm3465, %v3466, %v3462
        %v3468 = vadd.s32 %v3463, %v3467
        %v3469 = vadd.s32 %v3468, 536870912
        %v3470 = vshrl.u32 %v3469, 30
        %v3471 = vshll.u32 %v3470, 30
        %v3472 = vsub.s32 %v3468, %v3471
        %vm3473 = vcmp.lt.s32.totalorder %v3472, 0
        %v3474 = vsub.s32 0, %v3472
        %v3475 = vsel %vm3473, %v3474, %v3472
        %v3476 = vclz %v3475
        %v3477 = vsub.s32 %v3476, 2
        %vm3478 = vcmp.gt.s32.totalorder 0, %v3477
        %v3479 = vsel %vm3478, 0, %v3477
        %v3480 = vsub.s32 32, %v3479
        %v3481 = vshll.u32 %v3472, %v3479
        %v3482 = vshrl.u32 %v3464, %v3480
        %v3483 = vor.u32 %v3481, %v3482
        %v3484 = vsub.s32 4294967266, %v3479
        %v3485 = vadd.s32 %v3484, 127
        %v3486 = vshll.u32 %v3485, 23
        %v3487 = vor.u32 4788187, %v3486
        %v3488 = vand.u32 2147483647, %v3487
        %v3490 = vcvt.s32.f32 %v3483
        %v3491 = vmul.f32 %v3490, %v3488
        %v3492 = vxor.u32 %v3491, 2147483648
        %v3493 = vsel %vm3410, %v3492, %v3491
        %v3494 = vsub.s32 4, %v3470
        %v3495 = vsel %vm3410, %v3494, %v3470
        %v3496 = vsel %vm3409, %v921, %v3493
        %v3497 = vsel %vm3409, 0, %v3495
        %v3498 = vcosq.f32.pop %v3496
        %v3499 = vsinq.f32.pop %v3496
        %vm3500 = vweird.f32 %v921
        %v3501 = vand.u32 %v3497, 3
        %vm3502 = vcmp.lt.s32.totalorder %v3501, 2
        %vm3503 = vcmp.eq.s32.totalorder %v3501, 0
        %v3504 = vxor.u32 %v3499, 2147483648
        %v3505 = vsel %vm3503, %v3498, %v3504
        %vm3506 = vcmp.eq.s32.totalorder %v3501, 2
        %v3507 = vxor.u32 %v3498, 2147483648
        %v3508 = vsel %vm3506, %v3507, %v3499
        %v3509 = vsel %vm3502, %v3505, %v3508
        %v3510 = vsel %vm3500, nan, %v3509
        %v3511 = vand.u32 2147483647, %v922
        %vm3512 = vcmp.le.f32.partialorder %v3511, 0.7853982
        %vm3513 = vcmp.lt.s32.totalorder %v922, 0
        %v3514 = vand.u32 %v922, 2139095040
        %v3515 = vshrl.u32 %v3514, 23
        %v3516 = vsub.s32 %v3515, 127
        %v3517 = vand.u32 2147483647, %v922
        %v3518 = vand.u32 %v3517, 8388607
        %v3519 = vor.u32 %v3518, 8388608
        %v3520 = vsub.s32 0, %v3519
        %v3521 = vadd.s32 %v3516, 1
        %vm3522 = vcmp.gt.s32.totalorder %v3521, 0
        %v3523 = vsel %vm3522, %v3521, 0
        %v3524 = vshrl.u32 %v3523, 5
        %v3525 = vand.u32 %v3523, 31
        %v3526 = vsub.s32 32, %v3525
        %v3527 = vshrl.u32 683565275, %v3526
        %v3528 = vshll.u32 683565275, %v3525
        %v3529 = vshrl.u32 2475754826, %v3526
        %v3530 = vor.u32 %v3528, %v3529
        %v3531 = vshll.u32 2475754826, %v3525
        %v3532 = vshrl.u32 2131351028, %v3526
        %v3533 = vor.u32 %v3531, %v3532
        %v3534 = vshll.u32 2131351028, %v3525
        %v3535 = vshrl.u32 2102212464, %v3526
        %v3536 = vor.u32 %v3534, %v3535
        %v3537 = vshll.u32 2102212464, %v3525
        %v3538 = vshrl.u32 920167782, %v3526
        %v3539 = vor.u32 %v3537, %v3538
        %v3540 = vshll.u32 920167782, %v3525
        %v3541 = vshrl.u32 1326507024, %v3526
        %v3542 = vor.u32 %v3540, %v3541
        %vm3543 = vcmp.lt.s32.totalorder %v3524, 1
        %vm3544 = vcmp.lt.s32.totalorder %v3524, 2
        %vm3545 = vcmp.lt.s32.totalorder %v3524, 3
        %vm3546 = vcmp.lt.s32.totalorder %v3524, 4
        %v3547 = vsel %vm3543, %v3527, %v3530
        %v3548 = vsel %vm3546, %v3536, 2102212464
        %v3549 = vsel %vm3545, %v3533, %v3548
        %v3550 = vsel %vm3544, %v3547, %v3549
        %v3551 = vsel %vm3543, %v3530, %v3533
        %v3552 = vsel %vm3546, %v3539, 920167782
        %v3553 = vsel %vm3545, %v3536, %v3552
        %v3554 = vsel %vm3544, %v3551, %v3553
        %v3555 = vsel %vm3543, %v3533, %v3536
        %v3556 = vsel %vm3546, %v3542, 1326507024
        %v3557 = vsel %vm3545, %v3539, %v3556
        %v3558 = vsel %vm3544, %v3555, %v3557
        %v3559 = vshll.u32 %v3519, 8
        %v3560 = vmul.u32.u64.compose %v3559, %v3558
        %v3561 = vextract.low.u32 %v3560
        %v3562 = vextract.high.u32 %v3560
        %v3563 = vmul.u32.u64.compose %v3559, %v3554
        %v3564 = vextract.low.u32 %v3563
        %v3565 = vextract.high.u32 %v3563
        %v3566 = vmul.u32 %v3559, %v3550
        %v3567 = vadd.s32 %v3562, %v3564
        %vm3568 = vc.u32 %v3562, %v3564
        %v3569 = vadd.s32 %v3565, 1
        %v3570 = vsel %vm3568, %v3569, %v3565
        %v3571 = vadd.s32 %v3566, %v3570
        %v3572 = vadd.s32 %v3571, 536870912
        %v3573 = vshrl.u32 %v3572, 30
        %v3574 = vshll.u32 %v3573, 30
        %v3575 = vsub.s32 %v3571, %v3574
        %vm3576 = vcmp.lt.s32.totalorder %v3575, 0
        %v3577 = vsub.s32 0, %v3575
        %v3578 = vsel %vm3576, %v3577, %v3575
        %v3579 = vclz %v3578
        %v3580 = vsub.s32 %v3579, 2
        %vm3581 = vcmp.gt.s32.totalorder 0, %v3580
        %v3582 = vsel %vm3581, 0, %v3580
        %v3583 = vsub.s32 32, %v3582
        %v3584 = vshll.u32 %v3575, %v3582
        %v3585 = vshrl.u32 %v3567, %v3583
        %v3586 = vor.u32 %v3584, %v3585
        %v3587 = vsub.s32 4294967266, %v3582
        %v3588 = vadd.s32 %v3587, 127
        %v3589 = vshll.u32 %v3588, 23
        %v3590 = vor.u32 4788187, %v3589
        %v3591 = vand.u32 2147483647, %v3590
        %v3593 = vcvt.s32.f32 %v3586
        %v3594 = vmul.f32 %v3593, %v3591
        %v3595 = vxor.u32 %v3594, 2147483648
        %v3596 = vsel %vm3513, %v3595, %v3594
        %v3597 = vsub.s32 4, %v3573
        %v3598 = vsel %vm3513, %v3597, %v3573
        %v3599 = vsel %vm3512, %v922, %v3596
        %v3600 = vsel %vm3512, 0, %v3598
        %v3601 = vcosq.f32.pop %v3599
        %v3602 = vsinq.f32.pop %v3599
        %vm3603 = vweird.f32 %v922
        %v3604 = vand.u32 %v3600, 3
        %vm3605 = vcmp.lt.s32.totalorder %v3604, 2
        %vm3606 = vcmp.eq.s32.totalorder %v3604, 0
        %v3607 = vxor.u32 %v3602, 2147483648
        %v3608 = vsel %vm3606, %v3601, %v3607
        %vm3609 = vcmp.eq.s32.totalorder %v3604, 2
        %v3610 = vxor.u32 %v3601, 2147483648
        %v3611 = vsel %vm3609, %v3610, %v3602
        %v3612 = vsel %vm3605, %v3608, %v3611
        %v3613 = vsel %vm3603, nan, %v3612
        %v3614 = vld [vmem:[#allocation2 + $0x50] sm:$0x7]
        %3615 = vset.pattern.permute.xlu0 32
        %3616 = vperm.xlu0 %3615, %v202
        %v3617 = vpop.permute.xlu0 %3616
        %3619 = vset.pattern.permute.xlu0 32
        %3620 = vperm.xlu0 %3619, %v203
        %v3621 = vpop.permute.xlu0 %3620
        %3623 = vset.pattern.permute.xlu0 32
        %3624 = vperm.xlu0 %3623, %v204
        %v3625 = vpop.permute.xlu0 %3624
        %3627 = vset.pattern.permute.xlu0 32
        %3628 = vperm.xlu0 %3627, %v205
        %v3629 = vpop.permute.xlu0 %3628
        %3631 = vset.pattern.permute.xlu0 32
        %3632 = vperm.xlu0 %3631, %v206
        %v3633 = vpop.permute.xlu0 %3632
        %3635 = vset.pattern.permute.xlu0 32
        %3636 = vperm.xlu0 %3635, %v207
        %v3637 = vpop.permute.xlu0 %3636
        %3639 = vset.pattern.permute.xlu0 32
        %3640 = vperm.xlu0 %3639, %v208
        %v3641 = vpop.permute.xlu0 %3640
        %3643 = vset.pattern.permute.xlu0 32
        %3644 = vperm.xlu0 %3643, %v209
        %v3645 = vpop.permute.xlu0 %3644
        %3647 = vset.pattern.permute.xlu0 32
        %3648 = vperm.xlu0 %3647, %v210
        %v3649 = vpop.permute.xlu0 %3648
        %3651 = vset.pattern.permute.xlu0 32
        %3652 = vperm.xlu0 %3651, %v211
        %v3653 = vpop.permute.xlu0 %3652
        %3655 = vset.pattern.permute.xlu0 32
        %3656 = vperm.xlu0 %3655, %v212
        %v3657 = vpop.permute.xlu0 %3656
        %3659 = vset.pattern.permute.xlu0 32
        %3660 = vperm.xlu0 %3659, %v213
        %v3661 = vpop.permute.xlu0 %3660
        %3663 = vset.pattern.permute.xlu0 32
        %3664 = vperm.xlu0 %3663, %v214
        %v3665 = vpop.permute.xlu0 %3664
        %v3667 = vlaneseq
        %v3668 = vshrl.u32 %v3667, 7
        %v3669 = vsub.s32 0, %v3668
        %v3670 = vrot.slane %v3614, %v3669
        %v3671 = vmul.f32 %v3617, %v3670
        %v3672 = vmul.f32 %v3621, %v3670
        %v3673 = vmul.f32 %v3625, %v3670
        %v3674 = vmul.f32 %v3629, %v3670
        %v3675 = vmul.f32 %v3633, %v3670
        %v3676 = vmul.f32 %v3637, %v3670
        %v3677 = vmul.f32 %v3641, %v3670
        %v3678 = vmul.f32 %v3645, %v3670
        %v3679 = vmul.f32 %v3649, %v3670
        %v3680 = vmul.f32 %v3653, %v3670
        %v3681 = vmul.f32 %v3657, %v3670
        %v3682 = vmul.f32 %v3661, %v3670
        %v3683 = vmul.f32 %v3665, %v3670
        %3685 = vset.pattern.permute.xlu0 32
        %3686 = vperm.xlu0 %3685, %v1026
        %v3687 = vpop.permute.xlu0 %3686
        %3690 = vset.pattern.permute.xlu0 32
        %3691 = vperm.xlu0 %3690, %v1130
        %v3692 = vpop.permute.xlu0 %3691
        %3695 = vset.pattern.permute.xlu0 32
        %3696 = vperm.xlu0 %3695, %v1234
        %v3697 = vpop.permute.xlu0 %3696
        %3700 = vset.pattern.permute.xlu0 32
        %3701 = vperm.xlu0 %3700, %v1338
        %v3702 = vpop.permute.xlu0 %3701
        %3705 = vset.pattern.permute.xlu0 32
        %3706 = vperm.xlu0 %3705, %v1442
        %v3707 = vpop.permute.xlu0 %3706
        %3710 = vset.pattern.permute.xlu0 32
        %3711 = vperm.xlu0 %3710, %v1546
        %v3712 = vpop.permute.xlu0 %3711
        %3715 = vset.pattern.permute.xlu0 32
        %3716 = vperm.xlu0 %3715, %v1650
        %v3717 = vpop.permute.xlu0 %3716
        %3720 = vset.pattern.permute.xlu0 32
        %3721 = vperm.xlu0 %3720, %v1754
        %v3722 = vpop.permute.xlu0 %3721
        %3725 = vset.pattern.permute.xlu0 32
        %3726 = vperm.xlu0 %3725, %v1858
        %v3727 = vpop.permute.xlu0 %3726
        %3730 = vset.pattern.permute.xlu0 32
        %3731 = vperm.xlu0 %3730, %v1962
        %v3732 = vpop.permute.xlu0 %3731
        %3735 = vset.pattern.permute.xlu0 32
        %3736 = vperm.xlu0 %3735, %v2066
        %v3737 = vpop.permute.xlu0 %3736
        %3740 = vset.pattern.permute.xlu0 32
        %3741 = vperm.xlu0 %3740, %v2170
        %v3742 = vpop.permute.xlu0 %3741
        %3745 = vset.pattern.permute.xlu0 32
        %3746 = vperm.xlu0 %3745, %v2274
        %v3747 = vpop.permute.xlu0 %3746
        %v3749 = vlaneseq
        %v3750 = vshrl.u32 %v3749, 7
        %v3751 = vsub.s32 1, %v3750
        %v3752 = vrot.slane %v3614, %v3751
        %v3753 = vmul.f32 %v3687, %v3752
        %v3754 = vmul.f32 %v3692, %v3752
        %v3755 = vmul.f32 %v3697, %v3752
        %v3756 = vmul.f32 %v3702, %v3752
        %v3757 = vmul.f32 %v3707, %v3752
        %v3758 = vmul.f32 %v3712, %v3752
        %v3759 = vmul.f32 %v3717, %v3752
        %v3760 = vmul.f32 %v3722, %v3752
        %v3761 = vmul.f32 %v3727, %v3752
        %v3762 = vmul.f32 %v3732, %v3752
        %v3763 = vmul.f32 %v3737, %v3752
        %v3764 = vmul.f32 %v3742, %v3752
        %v3765 = vmul.f32 %v3747, %v3752
        %v3766 = vadd.f32 %v3671, %v3753
        %v3767 = vadd.f32 %v3672, %v3754
        %v3768 = vadd.f32 %v3673, %v3755
        %v3769 = vadd.f32 %v3674, %v3756
        %v3770 = vadd.f32 %v3675, %v3757
        %v3771 = vadd.f32 %v3676, %v3758
        %v3772 = vadd.f32 %v3677, %v3759
        %v3773 = vadd.f32 %v3678, %v3760
        %v3774 = vadd.f32 %v3679, %v3761
        %v3775 = vadd.f32 %v3680, %v3762
        %v3776 = vadd.f32 %v3681, %v3763
        %v3777 = vadd.f32 %v3682, %v3764
        %v3778 = vadd.f32 %v3683, %v3765
        %3780 = vset.pattern.permute.xlu0 32
        %3781 = vperm.xlu0 %3780, %v2377
        %v3782 = vpop.permute.xlu0 %3781
        %3785 = vset.pattern.permute.xlu0 32
        %3786 = vperm.xlu0 %3785, %v2480
        %v3787 = vpop.permute.xlu0 %3786
        %3790 = vset.pattern.permute.xlu0 32
        %3791 = vperm.xlu0 %3790, %v2583
        %v3792 = vpop.permute.xlu0 %3791
        %3795 = vset.pattern.permute.xlu0 32
        %3796 = vperm.xlu0 %3795, %v2686
        %v3797 = vpop.permute.xlu0 %3796
        %3800 = vset.pattern.permute.xlu0 32
        %3801 = vperm.xlu0 %3800, %v2789
        %v3802 = vpop.permute.xlu0 %3801
        %3805 = vset.pattern.permute.xlu0 32
        %3806 = vperm.xlu0 %3805, %v2892
        %v3807 = vpop.permute.xlu0 %3806
        %3810 = vset.pattern.permute.xlu0 32
        %3811 = vperm.xlu0 %3810, %v2995
        %v3812 = vpop.permute.xlu0 %3811
        %3815 = vset.pattern.permute.xlu0 32
        %3816 = vperm.xlu0 %3815, %v3098
        %v3817 = vpop.permute.xlu0 %3816
        %3820 = vset.pattern.permute.xlu0 32
        %3821 = vperm.xlu0 %3820, %v3201
        %v3822 = vpop.permute.xlu0 %3821
        %3825 = vset.pattern.permute.xlu0 32
        %3826 = vperm.xlu0 %3825, %v3304
        %v3827 = vpop.permute.xlu0 %3826
        %3830 = vset.pattern.permute.xlu0 32
        %3831 = vperm.xlu0 %3830, %v3407
        %v3832 = vpop.permute.xlu0 %3831
        %3835 = vset.pattern.permute.xlu0 32
        %3836 = vperm.xlu0 %3835, %v3510
        %v3837 = vpop.permute.xlu0 %3836
        %3840 = vset.pattern.permute.xlu0 32
        %3841 = vperm.xlu0 %3840, %v3613
        %v3842 = vpop.permute.xlu0 %3841
        %v3844 = vlaneseq
        %v3845 = vshrl.u32 %v3844, 7
        %v3846 = vsub.s32 2, %v3845
        %v3847 = vrot.slane %v3614, %v3846
        %v3848 = vmul.f32 %v3782, %v3847
        %v3849 = vmul.f32 %v3787, %v3847
        %v3850 = vmul.f32 %v3792, %v3847
        %v3851 = vmul.f32 %v3797, %v3847
        %v3852 = vmul.f32 %v3802, %v3847
        %v3853 = vmul.f32 %v3807, %v3847
        %v3854 = vmul.f32 %v3812, %v3847
        %v3855 = vmul.f32 %v3817, %v3847
        %v3856 = vmul.f32 %v3822, %v3847
        %v3857 = vmul.f32 %v3827, %v3847
        %v3858 = vmul.f32 %v3832, %v3847
        %v3859 = vmul.f32 %v3837, %v3847
        %v3860 = vmul.f32 %v3842, %v3847
        %v3861 = vadd.f32 %v3766, %v3848
        %v3862 = vadd.f32 %v3767, %v3849
        %v3863 = vadd.f32 %v3768, %v3850
        %v3864 = vadd.f32 %v3769, %v3851
        %v3865 = vadd.f32 %v3770, %v3852
        %v3866 = vadd.f32 %v3771, %v3853
        %v3867 = vadd.f32 %v3772, %v3854
        %v3868 = vadd.f32 %v3773, %v3855
        %v3869 = vadd.f32 %v3774, %v3856
        %v3870 = vadd.f32 %v3775, %v3857
        %v3871 = vadd.f32 %v3776, %v3858
        %v3872 = vadd.f32 %v3777, %v3859
        %v3873 = vadd.f32 %v3778, %v3860
        %v3874 = vld [vmem:[#allocation2 + $0x58] ss:$0 sm:$0xff]
        %v3875 = vadd.f32 %v3861, %v3874
        %v3876 = vadd.f32 %v3862, %v3874
        %v3877 = vadd.f32 %v3863, %v3874
        %v3878 = vadd.f32 %v3864, %v3874
        %v3879 = vadd.f32 %v3865, %v3874
        %v3880 = vadd.f32 %v3866, %v3874
        %v3881 = vadd.f32 %v3867, %v3874
        %v3882 = vadd.f32 %v3868, %v3874
        %v3883 = vadd.f32 %v3869, %v3874
        %v3884 = vadd.f32 %v3870, %v3874
        %v3885 = vadd.f32 %v3871, %v3874
        %v3886 = vadd.f32 %v3872, %v3874
        %v3887 = vadd.f32 %v3873, %v3874
        %v3888 = vmax.f32 %v3875, 0.0
        %v3889 = vmax.f32 %v3876, 0.0
        %v3890 = vmax.f32 %v3877, 0.0
        %v3891 = vmax.f32 %v3878, 0.0
        %v3892 = vmax.f32 %v3879, 0.0
        %v3893 = vmax.f32 %v3880, 0.0
        %v3894 = vmax.f32 %v3881, 0.0
        %v3895 = vmax.f32 %v3882, 0.0
        %v3896 = vmax.f32 %v3883, 0.0
        %v3897 = vmax.f32 %v3884, 0.0
        %v3898 = vmax.f32 %v3885, 0.0
        %v3899 = vmax.f32 %v3886, 0.0
        %v3900 = vmax.f32 %v3887, 0.0
        %v3901 = vld [vmem:[#allocation2 + $0x60] sm:$0xff]
        %v3902 = vld [vmem:[#allocation2 + $0xd0] sm:$0xff]
        %v3903 = vld [vmem:[#allocation2 + $0x140] sm:$0xff]
        %v3904 = vld [vmem:[#allocation2 + $0x1b0] sm:$0xff]
        %v3905 = vld [vmem:[#allocation2 + $0x220] sm:$0xff]
        %v3906 = vld [vmem:[#allocation2 + $0x290] sm:$0xff]
        %v3907 = vld [vmem:[#allocation2 + $0x300] sm:$0xff]
        %v3908 = vld [vmem:[#allocation2 + $0x370] sm:$0xff]
        %v3909 = vld [vmem:[#allocation2 + $0x3e0] sm:$0xff]
        %v3910 = vld [vmem:[#allocation2 + $0x450] sm:$0xff]
        %v3911 = vld [vmem:[#allocation2 + $0x4c0] sm:$0xff]
        %v3912 = vld [vmem:[#allocation2 + $0x530] sm:$0xff]
        %v3913 = vld [vmem:[#allocation2 + $0x5a0] sm:$0xff]
        %v3914 = vld [vmem:[#allocation2 + $0x610] sm:$0xff]
        %v3915 = vld [vmem:[#allocation2 + $0x680] sm:$0xff]
        %v3916 = vld [vmem:[#allocation2 + $0x6f0] sm:$0xff]
        %v3917 = vld [vmem:[#allocation2 + $0x68] ss:$0 sm:$0xff]
        %3918 = vmatprep.subr.mxu0 0.0
        %3919 = vmatpush1.msra.mxu0 %v3901
        %3920 = vmatprep.subr.mxu0 0.0
        %3921 = vmatpush1.msra.mxu0 %v3902
        %3922 = vmatprep.subr.mxu0 0.0
        %3923 = vmatpush1.msra.mxu0 %v3903
        %3924 = vmatprep.subr.mxu0 0.0
        %3925 = vmatpush1.msra.mxu0 %v3904
        %3926 = vmatprep.subr.mxu0 0.0
        %3927 = vmatpush1.msra.mxu0 %v3905
        %3928 = vmatprep.subr.mxu0 0.0
        %3929 = vmatpush1.msra.mxu0 %v3906
        %3930 = vmatprep.subr.mxu0 0.0
        %3931 = vmatpush1.msra.mxu0 %v3907
        %3932 = vmatprep.subr.mxu0 0.0
        %3933 = vmatpush1.msra.mxu0 %v3908
        %3934 = vmatprep.subr.mxu0 0.0
        %3935 = vmatpush1.msra.mxu0 %v3909
        %3936 = vmatprep.subr.mxu0 0.0
        %3937 = vmatpush1.msra.mxu0 %v3910
        %3938 = vmatprep.subr.mxu0 0.0
        %3939 = vmatpush1.msra.mxu0 %v3911
        %3940 = vmatprep.subr.mxu0 0.0
        %3941 = vmatpush1.msra.mxu0 %v3912
        %3942 = vmatprep.subr.mxu0 0.0
        %3943 = vmatpush1.msra.mxu0 %v3913
        %3944 = vmatprep.subr.mxu0 0.0
        %3945 = vmatpush1.msra.mxu0 %v3914
        %3946 = vmatprep.subr.mxu0 0.0
        %3947 = vmatpush1.msra.mxu0 %v3915
        %3948 = vmatprep.subr.mxu0 0.0
        %3949 = vmatpush1.msra.mxu0 %v3916
        %3950 = vmatprep.subr.mxu0 0.0
        %3951 = vmatpush1.msra.mxu0 0.0
        %3952 = vmatprep.subr.mxu0 0.0
        %3953 = vmatpush1.msra.mxu0 0.0
        %3954 = vmatprep.subr.mxu0 0.0
        %3955 = vmatpush1.msra.mxu0 0.0
        %3956 = vmatprep.subr.mxu0 0.0
        %3957 = vmatpush1.msra.mxu0 0.0
        %3958 = vmatprep.subr.mxu0 0.0
        %3959 = vmatpush1.msra.mxu0 0.0
        %3960 = vmatprep.subr.mxu0 0.0
        %3961 = vmatpush1.msra.mxu0 0.0
        %3962 = vmatprep.subr.mxu0 0.0
        %3963 = vmatpush1.msra.mxu0 0.0
        %3964 = vmatprep.subr.mxu0 0.0
        %3965 = vmatpush1.msra.mxu0 0.0
        %3966 = vmatprep.subr.mxu0 0.0
        %3967 = vmatpush1.msra.mxu0 0.0
        %3968 = vmatprep.subr.mxu0 0.0
        %3969 = vmatpush1.msra.mxu0 0.0
        %3970 = vmatprep.subr.mxu0 0.0
        %3971 = vmatpush1.msra.mxu0 0.0
        %3972 = vmatprep.subr.mxu0 0.0
        %3973 = vmatpush1.msra.mxu0 0.0
        %3974 = vmatprep.subr.mxu0 0.0
        %3975 = vmatpush1.msra.mxu0 0.0
        %3976 = vmatprep.subr.mxu0 0.0
        %3977 = vmatpush1.msra.mxu0 0.0
        %3978 = vmatprep.subr.mxu0 0.0
        %3979 = vmatpush1.msra.mxu0 0.0
        %3980 = vmatprep.subr.mxu0 0.0
        %3981 = vmatpush1.msra.mxu0 0.0
        %3982 = vmatprep.mubr.f32.mxu0 0.0
        %3983 = vmatmul.mubr.f32.gmra.mrb[0].mxu0 %v3888
        %v3984 = vpop.f32.mrb[0].mxu0
        %v3985 = vadd.f32 %v3917, %v3984
        %v3986 = vpop.f32.mrb[0].mxu0
        %3987 = vmatprep.mubr.f32.mxu0 0.0
        %3988 = vmatmul.mubr.f32.gmra.mrb[0].mxu0 %v3889
        %v3989 = vpop.f32.mrb[0].mxu0
        %v3990 = vadd.f32 %v3917, %v3989
        %v3991 = vpop.f32.mrb[0].mxu0
        %3992 = vmatprep.mubr.f32.mxu0 0.0
        %3993 = vmatmul.mubr.f32.gmra.mrb[0].mxu0 %v3890
        %v3994 = vpop.f32.mrb[0].mxu0
        %v3995 = vadd.f32 %v3917, %v3994
        %v3996 = vpop.f32.mrb[0].mxu0
        %3997 = vmatprep.mubr.f32.mxu0 0.0
        %3998 = vmatmul.mubr.f32.gmra.mrb[0].mxu0 %v3891
        %v3999 = vpop.f32.mrb[0].mxu0
        %v4000 = vadd.f32 %v3917, %v3999
        %v4001 = vpop.f32.mrb[0].mxu0
        %4002 = vmatprep.mubr.f32.mxu0 0.0
        %4003 = vmatmul.mubr.f32.gmra.mrb[0].mxu0 %v3892
        %v4004 = vpop.f32.mrb[0].mxu0
        %v4005 = vadd.f32 %v3917, %v4004
        %v4006 = vpop.f32.mrb[0].mxu0
        %4007 = vmatprep.mubr.f32.mxu0 0.0
        %4008 = vmatmul.mubr.f32.gmra.mrb[0].mxu0 %v3893
        %v4009 = vpop.f32.mrb[0].mxu0
        %v4010 = vadd.f32 %v3917, %v4009
        %v4011 = vpop.f32.mrb[0].mxu0
        %4012 = vmatprep.mubr.f32.mxu0 0.0
        %4013 = vmatmul.mubr.f32.gmra.mrb[0].mxu0 %v3894
        %v4014 = vpop.f32.mrb[0].mxu0
        %v4015 = vadd.f32 %v3917, %v4014
        %v4016 = vpop.f32.mrb[0].mxu0
        %4017 = vmatprep.mubr.f32.mxu0 0.0
        %4018 = vmatmul.mubr.f32.gmra.mrb[0].mxu0 %v3895
        %v4019 = vpop.f32.mrb[0].mxu0
        %v4020 = vadd.f32 %v3917, %v4019
        %v4021 = vpop.f32.mrb[0].mxu0
        %4022 = vmatprep.mubr.f32.mxu0 0.0
        %4023 = vmatmul.mubr.f32.gmra.mrb[0].mxu0 %v3896
        %v4024 = vpop.f32.mrb[0].mxu0
        %v4025 = vadd.f32 %v3917, %v4024
        %v4026 = vpop.f32.mrb[0].mxu0
        %4027 = vmatprep.mubr.f32.mxu0 0.0
        %4028 = vmatmul.mubr.f32.gmra.mrb[0].mxu0 %v3897
        %v4029 = vpop.f32.mrb[0].mxu0
        %v4030 = vadd.f32 %v3917, %v4029
        %v4031 = vpop.f32.mrb[0].mxu0
        %4032 = vmatprep.mubr.f32.mxu0 0.0
        %4033 = vmatmul.mubr.f32.gmra.mrb[0].mxu0 %v3898
        %v4034 = vpop.f32.mrb[0].mxu0
        %v4035 = vadd.f32 %v3917, %v4034
        %v4036 = vpop.f32.mrb[0].mxu0
        %4037 = vmatprep.mubr.f32.mxu0 0.0
        %4038 = vmatmul.mubr.f32.gmra.mrb[0].mxu0 %v3899
        %v4039 = vpop.f32.mrb[0].mxu0
        %v4040 = vadd.f32 %v3917, %v4039
        %v4041 = vpop.f32.mrb[0].mxu0
        %4042 = vmatprep.mubr.f32.mxu0 0.0
        %4043 = vmatmul.mubr.f32.gmra.mrb[0].mxu0 %v3900
        %v4044 = vpop.f32.mrb[0].mxu0
        %v4045 = vadd.f32 %v3917, %v4044
        %v4046 = vpop.f32.mrb[0].mxu0
        %4047 = vdwg.mxu0
        %v4048 = vld [vmem:[#allocation5] sm:$0xff]
        %v4049 = vld [vmem:[#allocation5 + $0x8] sm:$0xff]
        %v4050 = vld [vmem:[#allocation5 + $0x10] sm:$0xff]
        %v4051 = vld [vmem:[#allocation5 + $0x18] sm:$0xff]
        %v4052 = vld [vmem:[#allocation5 + $0x20] sm:$0xff]
        %v4053 = vld [vmem:[#allocation5 + $0x28] sm:$0xff]
        %v4054 = vld [vmem:[#allocation5 + $0x30] sm:$0xff]
        %v4055 = vld [vmem:[#allocation5 + $0x38] sm:$0xff]
        %v4056 = vld [vmem:[#allocation5 + $0x40] sm:$0xff]
        %v4057 = vld [vmem:[#allocation5 + $0x48] sm:$0xff]
        %v4058 = vld [vmem:[#allocation5 + $0x50] sm:$0xff]
        %v4059 = vld [vmem:[#allocation5 + $0x58] sm:$0xff]
        %v4060 = vld [vmem:[#allocation5 + $0x60] sm:$0xff]
        %v4061 = vld [vmem:[#allocation5 + $0x68] sm:$0xff]
        %v4062 = vld [vmem:[#allocation5 + $0x70] sm:$0xff]
        %v4063 = vld [vmem:[#allocation5 + $0x78] sm:$0xff]
        %v4064 = vld [vmem:[#allocation5 + $0x80] sm:$0xff]
        %v4065 = vld [vmem:[#allocation5 + $0x88] sm:$0xff]
        %v4066 = vld [vmem:[#allocation5 + $0x90] sm:$0xff]
        %v4067 = vld [vmem:[#allocation5 + $0x98] sm:$0xff]
        %v4068 = vld [vmem:[#allocation5 + $0xa0] sm:$0xff]
        %v4069 = vld [vmem:[#allocation5 + $0xa8] sm:$0xff]
        %v4070 = vld [vmem:[#allocation5 + $0xb0] sm:$0xff]
        %v4071 = vld [vmem:[#allocation5 + $0xb8] sm:$0xff]
        %v4072 = vld [vmem:[#allocation5 + $0xc0] sm:$0xff]
        %v4073 = vld [vmem:[#allocation5 + $0xc8] sm:$0xff]
        %v4074 = vld [vmem:[#allocation5 + $0xd0] sm:$0xff]
        %v4075 = vld [vmem:[#allocation5 + $0xd8] sm:$0xff]
        %v4076 = vld [vmem:[#allocation5 + $0xe0] sm:$0xff]
        %v4077 = vld [vmem:[#allocation5 + $0xe8] sm:$0xff]
        %v4078 = vld [vmem:[#allocation5 + $0xf0] sm:$0xff]
        %v4079 = vld [vmem:[#allocation5 + $0xf8] sm:$0xff]
        %v4080 = vld [vmem:[#allocation5 + $0x100] sm:$0xff]
        %v4081 = vld [vmem:[#allocation5 + $0x108] sm:$0xff]
        %v4082 = vld [vmem:[#allocation5 + $0x110] sm:$0xff]
        %v4083 = vld [vmem:[#allocation5 + $0x118] sm:$0xff]
        %v4084 = vld [vmem:[#allocation5 + $0x120] sm:$0xff]
        %v4085 = vld [vmem:[#allocation5 + $0x128] sm:$0xff]
        %v4086 = vld [vmem:[#allocation5 + $0x130] sm:$0xff]
        %v4087 = vld [vmem:[#allocation5 + $0x138] sm:$0xff]
        %v4088 = vld [vmem:[#allocation5 + $0x140] sm:$0xff]
        %v4089 = vld [vmem:[#allocation5 + $0x148] sm:$0xff]
        %v4090 = vld [vmem:[#allocation5 + $0x150] sm:$0xff]
        %v4091 = vld [vmem:[#allocation5 + $0x158] sm:$0xff]
        %v4092 = vld [vmem:[#allocation5 + $0x160] sm:$0xff]
        %v4093 = vld [vmem:[#allocation5 + $0x168] sm:$0xff]
        %v4094 = vld [vmem:[#allocation5 + $0x170] sm:$0xff]
        %v4095 = vld [vmem:[#allocation5 + $0x178] sm:$0xff]
        %v4096 = vld [vmem:[#allocation5 + $0x180] sm:$0xff]
        %v4097 = vld [vmem:[#allocation5 + $0x188] sm:$0xff]
        %v4098 = vld [vmem:[#allocation5 + $0x190] sm:$0xff]
        %v4099 = vld [vmem:[#allocation5 + $0x198] sm:$0xff]
        %v4100 = vld [vmem:[#allocation5 + $0x1a0] sm:$0xff]
        %v4101 = vld [vmem:[#allocation5 + $0x1a8] sm:$0xff]
        %v4102 = vld [vmem:[#allocation5 + $0x1b0] sm:$0xff]
        %v4103 = vld [vmem:[#allocation5 + $0x1b8] sm:$0xff]
        %v4104 = vld [vmem:[#allocation5 + $0x1c0] sm:$0xff]
        %v4105 = vld [vmem:[#allocation5 + $0x1c8] sm:$0xff]
        %v4106 = vld [vmem:[#allocation5 + $0x1d0] sm:$0xff]
        %v4107 = vld [vmem:[#allocation5 + $0x1d8] sm:$0xff]
        %v4108 = vld [vmem:[#allocation5 + $0x1e0] sm:$0xff]
        %v4109 = vld [vmem:[#allocation5 + $0x1e8] sm:$0xff]
        %v4110 = vld [vmem:[#allocation5 + $0x1f0] sm:$0xff]
        %v4111 = vld [vmem:[#allocation5 + $0x1f8] sm:$0xff]
        %v4112 = vld [vmem:[#allocation5 + $0x200] sm:$0xff]
        %v4113 = vld [vmem:[#allocation5 + $0x208] sm:$0xff]
        %v4114 = vld [vmem:[#allocation5 + $0x210] sm:$0xff]
        %v4115 = vld [vmem:[#allocation5 + $0x218] sm:$0xff]
        %v4116 = vld [vmem:[#allocation5 + $0x220] sm:$0xff]
        %v4117 = vld [vmem:[#allocation5 + $0x228] sm:$0xff]
        %v4118 = vld [vmem:[#allocation5 + $0x230] sm:$0xff]
        %v4119 = vld [vmem:[#allocation5 + $0x238] sm:$0xff]
        %v4120 = vld [vmem:[#allocation5 + $0x240] sm:$0xff]
        %v4121 = vld [vmem:[#allocation5 + $0x248] sm:$0xff]
        %v4122 = vld [vmem:[#allocation5 + $0x250] sm:$0xff]
        %v4123 = vld [vmem:[#allocation5 + $0x258] sm:$0xff]
        %v4124 = vld [vmem:[#allocation5 + $0x260] sm:$0xff]
        %v4125 = vld [vmem:[#allocation5 + $0x268] sm:$0xff]
        %v4126 = vld [vmem:[#allocation5 + $0x270] sm:$0xff]
        %v4127 = vld [vmem:[#allocation5 + $0x278] sm:$0xff]
        %v4128 = vld [vmem:[#allocation5 + $0x280] sm:$0xff]
        %v4129 = vld [vmem:[#allocation5 + $0x288] sm:$0xff]
        %v4130 = vld [vmem:[#allocation5 + $0x290] sm:$0xff]
        %v4131 = vld [vmem:[#allocation5 + $0x298] sm:$0xff]
        %v4132 = vld [vmem:[#allocation5 + $0x2a0] sm:$0xff]
        %v4133 = vld [vmem:[#allocation5 + $0x2a8] sm:$0xff]
        %v4134 = vld [vmem:[#allocation5 + $0x2b0] sm:$0xff]
        %v4135 = vld [vmem:[#allocation5 + $0x2b8] sm:$0xff]
        %v4136 = vld [vmem:[#allocation5 + $0x2c0] sm:$0xff]
        %v4137 = vld [vmem:[#allocation5 + $0x2c8] sm:$0xff]
        %v4138 = vld [vmem:[#allocation5 + $0x2d0] sm:$0xff]
        %v4139 = vld [vmem:[#allocation5 + $0x2d8] sm:$0xff]
        %v4140 = vld [vmem:[#allocation5 + $0x2e0] sm:$0xff]
        %v4141 = vld [vmem:[#allocation5 + $0x2e8] sm:$0xff]
        %v4142 = vld [vmem:[#allocation5 + $0x2f0] sm:$0xff]
        %v4143 = vld [vmem:[#allocation5 + $0x2f8] sm:$0xff]
        %v4144 = vld [vmem:[#allocation5 + $0x300] sm:$0xff]
        %v4145 = vld [vmem:[#allocation5 + $0x308] sm:$0xff]
        %v4146 = vld [vmem:[#allocation5 + $0x310] sm:$0xff]
        %v4147 = vld [vmem:[#allocation5 + $0x318] sm:$0xff]
        %v4148 = vld [vmem:[#allocation5 + $0x320] sm:$0xff]
        %v4149 = vld [vmem:[#allocation5 + $0x328] sm:$0xff]
        %v4150 = vld [vmem:[#allocation5 + $0x330] sm:$0xff]
        %v4151 = vld [vmem:[#allocation5 + $0x338] sm:$0xff]
        %v4152 = vld [vmem:[#allocation5 + $0x340] sm:$0xff]
        %v4153 = vld [vmem:[#allocation5 + $0x348] sm:$0xff]
        %v4154 = vld [vmem:[#allocation5 + $0x350] sm:$0xff]
        %v4155 = vld [vmem:[#allocation5 + $0x358] sm:$0xff]
        %v4156 = vld [vmem:[#allocation5 + $0x360] sm:$0xff]
        %v4157 = vld [vmem:[#allocation5 + $0x368] sm:$0xff]
        %v4158 = vld [vmem:[#allocation5 + $0x370] sm:$0xff]
        %v4159 = vld [vmem:[#allocation5 + $0x378] sm:$0xff]
        %v4160 = vld [vmem:[#allocation5 + $0x380] sm:$0xff]
        %v4161 = vld [vmem:[#allocation5 + $0x388] sm:$0xff]
        %v4162 = vld [vmem:[#allocation5 + $0x390] sm:$0xff]
        %v4163 = vld [vmem:[#allocation5 + $0x398] sm:$0xff]
        %v4164 = vld [vmem:[#allocation5 + $0x3a0] sm:$0xff]
        %v4165 = vld [vmem:[#allocation5 + $0x3a8] sm:$0xff]
        %v4166 = vld [vmem:[#allocation5 + $0x3b0] sm:$0xff]
        %v4167 = vld [vmem:[#allocation5 + $0x3b8] sm:$0xff]
        %v4168 = vld [vmem:[#allocation5 + $0x3c0] sm:$0xff]
        %v4169 = vld [vmem:[#allocation5 + $0x3c8] sm:$0xff]
        %v4170 = vld [vmem:[#allocation5 + $0x3d0] sm:$0xff]
        %v4171 = vld [vmem:[#allocation5 + $0x3d8] sm:$0xff]
        %v4172 = vld [vmem:[#allocation5 + $0x3e0] sm:$0xff]
        %v4173 = vld [vmem:[#allocation5 + $0x3e8] sm:$0xff]
        %v4174 = vld [vmem:[#allocation5 + $0x3f0] sm:$0xff]
        %v4175 = vld [vmem:[#allocation5 + $0x3f8] sm:$0xff]
        %v4176 = vld [vmem:[#allocation5 + $0x400] sm:$0xff]
        %v4177 = vld [vmem:[#allocation5 + $0x408] sm:$0xff]
        %v4178 = vld [vmem:[#allocation5 + $0x410] sm:$0xff]
        %v4179 = vld [vmem:[#allocation5 + $0x418] sm:$0xff]
        %v4180 = vld [vmem:[#allocation5 + $0x420] sm:$0xff]
        %v4181 = vld [vmem:[#allocation5 + $0x428] sm:$0xff]
        %v4182 = vld [vmem:[#allocation5 + $0x430] sm:$0xff]
        %v4183 = vld [vmem:[#allocation5 + $0x438] sm:$0xff]
        %v4184 = vld [vmem:[#allocation5 + $0x440] sm:$0xff]
        %v4185 = vld [vmem:[#allocation5 + $0x448] sm:$0xff]
        %v4186 = vld [vmem:[#allocation5 + $0x450] sm:$0xff]
        %v4187 = vld [vmem:[#allocation5 + $0x458] sm:$0xff]
        %v4188 = vld [vmem:[#allocation5 + $0x460] sm:$0xff]
        %v4189 = vld [vmem:[#allocation5 + $0x468] sm:$0xff]
        %v4190 = vld [vmem:[#allocation5 + $0x470] sm:$0xff]
        %v4191 = vld [vmem:[#allocation5 + $0x478] sm:$0xff]
        %v4192 = vld [vmem:[#allocation5 + $0x480] sm:$0xff]
        %v4193 = vld [vmem:[#allocation5 + $0x488] sm:$0xff]
        %v4194 = vld [vmem:[#allocation5 + $0x490] sm:$0xff]
        %v4195 = vld [vmem:[#allocation5 + $0x498] sm:$0xff]
        %v4196 = vld [vmem:[#allocation5 + $0x4a0] sm:$0xff]
        %v4197 = vld [vmem:[#allocation5 + $0x4a8] sm:$0xff]
        %v4198 = vld [vmem:[#allocation5 + $0x4b0] sm:$0xff]
        %v4199 = vld [vmem:[#allocation5 + $0x4b8] sm:$0xff]
        %v4200 = vld [vmem:[#allocation5 + $0x4c0] sm:$0xff]
        %v4201 = vld [vmem:[#allocation5 + $0x4c8] sm:$0xff]
        %v4202 = vld [vmem:[#allocation5 + $0x4d0] sm:$0xff]
        %v4203 = vld [vmem:[#allocation5 + $0x4d8] sm:$0xff]
        %v4204 = vld [vmem:[#allocation5 + $0x4e0] sm:$0xff]
        %v4205 = vld [vmem:[#allocation5 + $0x4e8] sm:$0xff]
        %v4206 = vld [vmem:[#allocation5 + $0x4f0] sm:$0xff]
        %v4207 = vld [vmem:[#allocation5 + $0x4f8] sm:$0xff]
        %v4208 = vld [vmem:[#allocation5 + $0x500] sm:$0xff]
        %v4209 = vld [vmem:[#allocation5 + $0x508] sm:$0xff]
        %v4210 = vld [vmem:[#allocation5 + $0x510] sm:$0xff]
        %v4211 = vld [vmem:[#allocation5 + $0x518] sm:$0xff]
        %v4212 = vld [vmem:[#allocation5 + $0x520] sm:$0xff]
        %v4213 = vld [vmem:[#allocation5 + $0x528] sm:$0xff]
        %v4214 = vld [vmem:[#allocation5 + $0x530] sm:$0xff]
        %v4215 = vld [vmem:[#allocation5 + $0x538] sm:$0xff]
        %v4216 = vld [vmem:[#allocation5 + $0x540] sm:$0xff]
        %v4217 = vld [vmem:[#allocation5 + $0x548] sm:$0xff]
        %v4218 = vld [vmem:[#allocation5 + $0x550] sm:$0xff]
        %v4219 = vld [vmem:[#allocation5 + $0x558] sm:$0xff]
        %v4220 = vld [vmem:[#allocation5 + $0x560] sm:$0xff]
        %v4221 = vld [vmem:[#allocation5 + $0x568] sm:$0xff]
        %v4222 = vld [vmem:[#allocation5 + $0x570] sm:$0xff]
        %v4223 = vld [vmem:[#allocation5 + $0x578] sm:$0xff]
        %v4224 = vld [vmem:[#allocation5 + $0x580] sm:$0xff]
        %v4225 = vld [vmem:[#allocation5 + $0x588] sm:$0xff]
        %v4226 = vld [vmem:[#allocation5 + $0x590] sm:$0xff]
        %v4227 = vld [vmem:[#allocation5 + $0x598] sm:$0xff]
        %v4228 = vld [vmem:[#allocation5 + $0x5a0] sm:$0xff]
        %v4229 = vld [vmem:[#allocation5 + $0x5a8] sm:$0xff]
        %v4230 = vld [vmem:[#allocation5 + $0x5b0] sm:$0xff]
        %v4231 = vld [vmem:[#allocation5 + $0x5b8] sm:$0xff]
        %v4232 = vld [vmem:[#allocation5 + $0x5c0] sm:$0xff]
        %v4233 = vld [vmem:[#allocation5 + $0x5c8] sm:$0xff]
        %v4234 = vld [vmem:[#allocation5 + $0x5d0] sm:$0xff]
        %v4235 = vld [vmem:[#allocation5 + $0x5d8] sm:$0xff]
        %v4236 = vld [vmem:[#allocation5 + $0x5e0] sm:$0xff]
        %v4237 = vld [vmem:[#allocation5 + $0x5e8] sm:$0xff]
        %v4238 = vld [vmem:[#allocation5 + $0x5f0] sm:$0xff]
        %v4239 = vld [vmem:[#allocation5 + $0x5f8] sm:$0xff]
        %v4240 = vld [vmem:[#allocation5 + $0x600] sm:$0xff]
        %v4241 = vld [vmem:[#allocation5 + $0x608] sm:$0xff]
        %v4242 = vld [vmem:[#allocation5 + $0x610] sm:$0xff]
        %v4243 = vld [vmem:[#allocation5 + $0x618] sm:$0xff]
        %v4244 = vld [vmem:[#allocation5 + $0x620] sm:$0xff]
        %v4245 = vld [vmem:[#allocation5 + $0x628] sm:$0xff]
        %v4246 = vld [vmem:[#allocation5 + $0x630] sm:$0xff]
        %v4247 = vld [vmem:[#allocation5 + $0x638] sm:$0xff]
        %v4248 = vld [vmem:[#allocation5 + $0x640] sm:$0xff]
        %v4249 = vld [vmem:[#allocation5 + $0x648] sm:$0xff]
        %v4250 = vld [vmem:[#allocation5 + $0x650] sm:$0xff]
        %v4251 = vld [vmem:[#allocation5 + $0x658] sm:$0xff]
        %v4252 = vld [vmem:[#allocation5 + $0x660] sm:$0xff]
        %v4253 = vld [vmem:[#allocation5 + $0x668] sm:$0xff]
        %v4254 = vld [vmem:[#allocation5 + $0x670] sm:$0xff]
        %v4255 = vld [vmem:[#allocation5 + $0x678] sm:$0xff]
        %v4256 = vld [vmem:[#allocation5 + $0x680] sm:$0xff]
        %v4257 = vld [vmem:[#allocation5 + $0x688] sm:$0xff]
        %v4258 = vld [vmem:[#allocation5 + $0x690] sm:$0xff]
        %v4259 = vld [vmem:[#allocation5 + $0x698] sm:$0xff]
        %v4260 = vld [vmem:[#allocation5 + $0x6a0] sm:$0xff]
        %v4261 = vld [vmem:[#allocation5 + $0x6a8] sm:$0xff]
        %v4262 = vld [vmem:[#allocation5 + $0x6b0] sm:$0xff]
        %v4263 = vld [vmem:[#allocation5 + $0x6b8] sm:$0xff]
        %v4264 = vld [vmem:[#allocation5 + $0x6c0] sm:$0xff]
        %v4265 = vld [vmem:[#allocation5 + $0x6c8] sm:$0xff]
        %v4266 = vld [vmem:[#allocation5 + $0x6d0] sm:$0xff]
        %v4267 = vld [vmem:[#allocation5 + $0x6d8] sm:$0xff]
        %v4268 = vld [vmem:[#allocation5 + $0x6e0] sm:$0xff]
        %v4269 = vld [vmem:[#allocation5 + $0x6e8] sm:$0xff]
        %v4270 = vld [vmem:[#allocation5 + $0x6f0] sm:$0xff]
        %v4271 = vld [vmem:[#allocation5 + $0x6f8] sm:$0xff]
        %v4272 = vld [vmem:[#allocation5 + $0x700] sm:$0xff]
        %v4273 = vld [vmem:[#allocation5 + $0x708] sm:$0xff]
        %v4274 = vld [vmem:[#allocation5 + $0x710] sm:$0xff]
        %v4275 = vld [vmem:[#allocation5 + $0x718] sm:$0xff]
        %v4276 = vld [vmem:[#allocation5 + $0x720] sm:$0xff]
        %v4277 = vld [vmem:[#allocation5 + $0x728] sm:$0xff]
        %v4278 = vld [vmem:[#allocation5 + $0x730] sm:$0xff]
        %v4279 = vld [vmem:[#allocation5 + $0x738] sm:$0xff]
        %v4280 = vld [vmem:[#allocation5 + $0x740] sm:$0xff]
        %v4281 = vld [vmem:[#allocation5 + $0x748] sm:$0xff]
        %v4282 = vld [vmem:[#allocation5 + $0x750] sm:$0xff]
        %v4283 = vld [vmem:[#allocation5 + $0x758] sm:$0xff]
        %v4284 = vld [vmem:[#allocation5 + $0x760] sm:$0xff]
        %v4285 = vld [vmem:[#allocation5 + $0x768] sm:$0xff]
        %v4286 = vld [vmem:[#allocation5 + $0x770] sm:$0xff]
        %v4287 = vld [vmem:[#allocation5 + $0x778] sm:$0xff]
        %4288 = vmatprep.subr.mxu0 %v4049
        %4289 = vmatpush1.msra.mxu0 %v4048
        %4290 = vmatprep.subr.mxu0 %v4064
        %4291 = vmatpush1.msra.mxu0 %v4063
        %4292 = vmatprep.subr.mxu0 %v4079
        %4293 = vmatpush1.msra.mxu0 %v4078
        %4294 = vmatprep.subr.mxu0 %v4094
        %4295 = vmatpush1.msra.mxu0 %v4093
        %4296 = vmatprep.subr.mxu0 %v4109
        %4297 = vmatpush1.msra.mxu0 %v4108
        %4298 = vmatprep.subr.mxu0 %v4124
        %4299 = vmatpush1.msra.mxu0 %v4123
        %4300 = vmatprep.subr.mxu0 %v4139
        %4301 = vmatpush1.msra.mxu0 %v4138
        %4302 = vmatprep.subr.mxu0 %v4154
        %4303 = vmatpush1.msra.mxu0 %v4153
        %4304 = vmatprep.subr.mxu0 %v4169
        %4305 = vmatpush1.msra.mxu0 %v4168
        %4306 = vmatprep.subr.mxu0 %v4184
        %4307 = vmatpush1.msra.mxu0 %v4183
        %4308 = vmatprep.subr.mxu0 %v4199
        %4309 = vmatpush1.msra.mxu0 %v4198
        %4310 = vmatprep.subr.mxu0 %v4214
        %4311 = vmatpush1.msra.mxu0 %v4213
        %4312 = vmatprep.subr.mxu0 %v4229
        %4313 = vmatpush1.msra.mxu0 %v4228
        %4314 = vmatprep.subr.mxu0 %v4244
        %4315 = vmatpush1.msra.mxu0 %v4243
        %4316 = vmatprep.subr.mxu0 %v4259
        %4317 = vmatpush1.msra.mxu0 %v4258
        %4318 = vmatprep.subr.mxu0 %v4274
        %4319 = vmatpush1.msra.mxu0 %v4273
        %4320 = vmatprep.subr.mxu0 0.0
        %4321 = vmatpush1.msra.mxu0 0.0
        %4322 = vmatprep.subr.mxu0 0.0
        %4323 = vmatpush1.msra.mxu0 0.0
        %4324 = vmatprep.subr.mxu0 0.0
        %4325 = vmatpush1.msra.mxu0 0.0
        %4326 = vmatprep.subr.mxu0 0.0
        %4327 = vmatpush1.msra.mxu0 0.0
        %4328 = vmatprep.subr.mxu0 0.0
        %4329 = vmatpush1.msra.mxu0 0.0
        %4330 = vmatprep.subr.mxu0 0.0
        %4331 = vmatpush1.msra.mxu0 0.0
        %4332 = vmatprep.subr.mxu0 0.0
        %4333 = vmatpush1.msra.mxu0 0.0
        %4334 = vmatprep.subr.mxu0 0.0
        %4335 = vmatpush1.msra.mxu0 0.0
        %4336 = vmatprep.subr.mxu0 0.0
        %4337 = vmatpush1.msra.mxu0 0.0
        %4338 = vmatprep.subr.mxu0 0.0
        %4339 = vmatpush1.msra.mxu0 0.0
        %4340 = vmatprep.subr.mxu0 0.0
        %4341 = vmatpush1.msra.mxu0 0.0
        %4342 = vmatprep.subr.mxu0 0.0
        %4343 = vmatpush1.msra.mxu0 0.0
        %4344 = vmatprep.subr.mxu0 0.0
        %4345 = vmatpush1.msra.mxu0 0.0
        %4346 = vmatprep.subr.mxu0 0.0
        %4347 = vmatpush1.msra.mxu0 0.0
        %4348 = vmatprep.subr.mxu0 0.0
        %4349 = vmatpush1.msra.mxu0 0.0
        %4350 = vmatprep.subr.mxu0 0.0
        %4351 = vmatpush1.msra.mxu0 0.0
        %4352 = vmatprep.mubr.f32.mxu0 0.0
        %4353 = vmatmul.mubr.f32.gmra.mrb[0].mxu0 %v555
        %v4354 = vpop.f32.mrb[0].mxu0
        %v4355 = vadd.f32 0.0, %v4354
        %v4356 = vpop.f32.mrb[0].mxu0
        %v4357 = vadd.f32 0.0, %v4356
        %4358 = vmatprep.mubr.f32.mxu0 0.0
        %4359 = vmatmul.mubr.f32.gmra.mrb[0].mxu0 %v556
        %v4360 = vpop.f32.mrb[0].mxu0
        %v4361 = vadd.f32 0.0, %v4360
        %v4362 = vpop.f32.mrb[0].mxu0
        %v4363 = vadd.f32 0.0, %v4362
        %4364 = vmatprep.mubr.f32.mxu0 0.0
        %4365 = vmatmul.mubr.f32.gmra.mrb[0].mxu0 %v557
        %v4366 = vpop.f32.mrb[0].mxu0
        %v4367 = vadd.f32 0.0, %v4366
        %v4368 = vpop.f32.mrb[0].mxu0
        %v4369 = vadd.f32 0.0, %v4368
        %4370 = vmatprep.mubr.f32.mxu0 0.0
        %4371 = vmatmul.mubr.f32.gmra.mrb[0].mxu0 %v558
        %v4372 = vpop.f32.mrb[0].mxu0
        %v4373 = vadd.f32 0.0, %v4372
        %v4374 = vpop.f32.mrb[0].mxu0
        %v4375 = vadd.f32 0.0, %v4374
        %4376 = vmatprep.mubr.f32.mxu0 0.0
        %4377 = vmatmul.mubr.f32.gmra.mrb[0].mxu0 %v559
        %v4378 = vpop.f32.mrb[0].mxu0
        %v4379 = vadd.f32 0.0, %v4378
        %v4380 = vpop.f32.mrb[0].mxu0
        %v4381 = vadd.f32 0.0, %v4380
        %4382 = vmatprep.mubr.f32.mxu0 0.0
        %4383 = vmatmul.mubr.f32.gmra.mrb[0].mxu0 %v560
        %v4384 = vpop.f32.mrb[0].mxu0
        %v4385 = vadd.f32 0.0, %v4384
        %v4386 = vpop.f32.mrb[0].mxu0
        %v4387 = vadd.f32 0.0, %v4386
        %4388 = vmatprep.mubr.f32.mxu0 0.0
        %4389 = vmatmul.mubr.f32.gmra.mrb[0].mxu0 %v561
        %v4390 = vpop.f32.mrb[0].mxu0
        %v4391 = vadd.f32 0.0, %v4390
        %v4392 = vpop.f32.mrb[0].mxu0
        %v4393 = vadd.f32 0.0, %v4392
        %4394 = vmatprep.mubr.f32.mxu0 0.0
        %4395 = vmatmul.mubr.f32.gmra.mrb[0].mxu0 %v562
        %v4396 = vpop.f32.mrb[0].mxu0
        %v4397 = vadd.f32 0.0, %v4396
        %v4398 = vpop.f32.mrb[0].mxu0
        %v4399 = vadd.f32 0.0, %v4398
        %4400 = vmatprep.mubr.f32.mxu0 0.0
        %4401 = vmatmul.mubr.f32.gmra.mrb[0].mxu0 %v563
        %v4402 = vpop.f32.mrb[0].mxu0
        %v4403 = vadd.f32 0.0, %v4402
        %v4404 = vpop.f32.mrb[0].mxu0
        %v4405 = vadd.f32 0.0, %v4404
        %4406 = vmatprep.mubr.f32.mxu0 0.0
        %4407 = vmatmul.mubr.f32.gmra.mrb[0].mxu0 %v564
        %v4408 = vpop.f32.mrb[0].mxu0
        %v4409 = vadd.f32 0.0, %v4408
        %v4410 = vpop.f32.mrb[0].mxu0
        %v4411 = vadd.f32 0.0, %v4410
        %4412 = vmatprep.mubr.f32.mxu0 0.0
        %4413 = vmatmul.mubr.f32.gmra.mrb[0].mxu0 %v565
        %v4414 = vpop.f32.mrb[0].mxu0
        %v4415 = vadd.f32 0.0, %v4414
        %v4416 = vpop.f32.mrb[0].mxu0
        %v4417 = vadd.f32 0.0, %v4416
        %4418 = vmatprep.mubr.f32.mxu0 0.0
        %4419 = vmatmul.mubr.f32.gmra.mrb[0].mxu0 %v566
        %v4420 = vpop.f32.mrb[0].mxu0
        %v4421 = vadd.f32 0.0, %v4420
        %v4422 = vpop.f32.mrb[0].mxu0
        %v4423 = vadd.f32 0.0, %v4422
        %4424 = vmatprep.mubr.f32.mxu0 0.0
        %4425 = vmatmul.mubr.f32.gmra.mrb[0].mxu0 %v567
        %v4426 = vpop.f32.mrb[0].mxu0
        %v4427 = vadd.f32 0.0, %v4426
        %v4428 = vpop.f32.mrb[0].mxu0
        %v4429 = vadd.f32 0.0, %v4428
        %4430 = vdwg.mxu0
        %4431 = vmatprep.subr.mxu0 %v4051
        %4432 = vmatpush1.msra.mxu0 %v4050
        %4433 = vmatprep.subr.mxu0 %v4066
        %4434 = vmatpush1.msra.mxu0 %v4065
        %4435 = vmatprep.subr.mxu0 %v4081
        %4436 = vmatpush1.msra.mxu0 %v4080
        %4437 = vmatprep.subr.mxu0 %v4096
        %4438 = vmatpush1.msra.mxu0 %v4095
        %4439 = vmatprep.subr.mxu0 %v4111
        %4440 = vmatpush1.msra.mxu0 %v4110
        %4441 = vmatprep.subr.mxu0 %v4126
        %4442 = vmatpush1.msra.mxu0 %v4125
        %4443 = vmatprep.subr.mxu0 %v4141
        %4444 = vmatpush1.msra.mxu0 %v4140
        %4445 = vmatprep.subr.mxu0 %v4156
        %4446 = vmatpush1.msra.mxu0 %v4155
        %4447 = vmatprep.subr.mxu0 %v4171
        %4448 = vmatpush1.msra.mxu0 %v4170
        %4449 = vmatprep.subr.mxu0 %v4186
        %4450 = vmatpush1.msra.mxu0 %v4185
        %4451 = vmatprep.subr.mxu0 %v4201
        %4452 = vmatpush1.msra.mxu0 %v4200
        %4453 = vmatprep.subr.mxu0 %v4216
        %4454 = vmatpush1.msra.mxu0 %v4215
        %4455 = vmatprep.subr.mxu0 %v4231
        %4456 = vmatpush1.msra.mxu0 %v4230
        %4457 = vmatprep.subr.mxu0 %v4246
        %4458 = vmatpush1.msra.mxu0 %v4245
        %4459 = vmatprep.subr.mxu0 %v4261
        %4460 = vmatpush1.msra.mxu0 %v4260
        %4461 = vmatprep.subr.mxu0 %v4276
        %4462 = vmatpush1.msra.mxu0 %v4275
        %4463 = vmatprep.subr.mxu0 0.0
        %4464 = vmatpush1.msra.mxu0 0.0
        %4465 = vmatprep.subr.mxu0 0.0
        %4466 = vmatpush1.msra.mxu0 0.0
        %4467 = vmatprep.subr.mxu0 0.0
        %4468 = vmatpush1.msra.mxu0 0.0
        %4469 = vmatprep.subr.mxu0 0.0
        %4470 = vmatpush1.msra.mxu0 0.0
        %4471 = vmatprep.subr.mxu0 0.0
        %4472 = vmatpush1.msra.mxu0 0.0
        %4473 = vmatprep.subr.mxu0 0.0
        %4474 = vmatpush1.msra.mxu0 0.0
        %4475 = vmatprep.subr.mxu0 0.0
        %4476 = vmatpush1.msra.mxu0 0.0
        %4477 = vmatprep.subr.mxu0 0.0
        %4478 = vmatpush1.msra.mxu0 0.0
        %4479 = vmatprep.subr.mxu0 0.0
        %4480 = vmatpush1.msra.mxu0 0.0
        %4481 = vmatprep.subr.mxu0 0.0
        %4482 = vmatpush1.msra.mxu0 0.0
        %4483 = vmatprep.subr.mxu0 0.0
        %4484 = vmatpush1.msra.mxu0 0.0
        %4485 = vmatprep.subr.mxu0 0.0
        %4486 = vmatpush1.msra.mxu0 0.0
        %4487 = vmatprep.subr.mxu0 0.0
        %4488 = vmatpush1.msra.mxu0 0.0
        %4489 = vmatprep.subr.mxu0 0.0
        %4490 = vmatpush1.msra.mxu0 0.0
        %4491 = vmatprep.subr.mxu0 0.0
        %4492 = vmatpush1.msra.mxu0 0.0
        %4493 = vmatprep.subr.mxu0 0.0
        %4494 = vmatpush1.msra.mxu0 0.0
        %4495 = vmatprep.mubr.f32.mxu0 0.0
        %4496 = vmatmul.mubr.f32.gmra.mrb[0].mxu0 %v555
        %v4497 = vpop.f32.mrb[0].mxu0
        %v4498 = vadd.f32 0.0, %v4497
        %v4499 = vpop.f32.mrb[0].mxu0
        %v4500 = vadd.f32 0.0, %v4499
        %4501 = vmatprep.mubr.f32.mxu0 0.0
        %4502 = vmatmul.mubr.f32.gmra.mrb[0].mxu0 %v556
        %v4503 = vpop.f32.mrb[0].mxu0
        %v4504 = vadd.f32 0.0, %v4503
        %v4505 = vpop.f32.mrb[0].mxu0
        %v4506 = vadd.f32 0.0, %v4505
        %4507 = vmatprep.mubr.f32.mxu0 0.0
        %4508 = vmatmul.mubr.f32.gmra.mrb[0].mxu0 %v557
        %v4509 = vpop.f32.mrb[0].mxu0
        %v4510 = vadd.f32 0.0, %v4509
        %v4511 = vpop.f32.mrb[0].mxu0
        %v4512 = vadd.f32 0.0, %v4511
        %4513 = vmatprep.mubr.f32.mxu0 0.0
        %4514 = vmatmul.mubr.f32.gmra.mrb[0].mxu0 %v558
        %v4515 = vpop.f32.mrb[0].mxu0
        %v4516 = vadd.f32 0.0, %v4515
        %v4517 = vpop.f32.mrb[0].mxu0
        %v4518 = vadd.f32 0.0, %v4517
        %4519 = vmatprep.mubr.f32.mxu0 0.0
        %4520 = vmatmul.mubr.f32.gmra.mrb[0].mxu0 %v559
        %v4521 = vpop.f32.mrb[0].mxu0
        %v4522 = vadd.f32 0.0, %v4521
        %v4523 = vpop.f32.mrb[0].mxu0
        %v4524 = vadd.f32 0.0, %v4523
        %4525 = vmatprep.mubr.f32.mxu0 0.0
        %4526 = vmatmul.mubr.f32.gmra.mrb[0].mxu0 %v560
        %v4527 = vpop.f32.mrb[0].mxu0
        %v4528 = vadd.f32 0.0, %v4527
        %v4529 = vpop.f32.mrb[0].mxu0
        %v4530 = vadd.f32 0.0, %v4529
        %4531 = vmatprep.mubr.f32.mxu0 0.0
        %4532 = vmatmul.mubr.f32.gmra.mrb[0].mxu0 %v561
        %v4533 = vpop.f32.mrb[0].mxu0
        %v4534 = vadd.f32 0.0, %v4533
        %v4535 = vpop.f32.mrb[0].mxu0
        %v4536 = vadd.f32 0.0, %v4535
        %4537 = vmatprep.mubr.f32.mxu0 0.0
        %4538 = vmatmul.mubr.f32.gmra.mrb[0].mxu0 %v562
        %v4539 = vpop.f32.mrb[0].mxu0
        %v4540 = vadd.f32 0.0, %v4539
        %v4541 = vpop.f32.mrb[0].mxu0
        %v4542 = vadd.f32 0.0, %v4541
        %4543 = vmatprep.mubr.f32.mxu0 0.0
        %4544 = vmatmul.mubr.f32.gmra.mrb[0].mxu0 %v563
        %v4545 = vpop.f32.mrb[0].mxu0
        %v4546 = vadd.f32 0.0, %v4545
        %v4547 = vpop.f32.mrb[0].mxu0
        %v4548 = vadd.f32 0.0, %v4547
        %4549 = vmatprep.mubr.f32.mxu0 0.0
        %4550 = vmatmul.mubr.f32.gmra.mrb[0].mxu0 %v564
        %v4551 = vpop.f32.mrb[0].mxu0
        %v4552 = vadd.f32 0.0, %v4551
        %v4553 = vpop.f32.mrb[0].mxu0
        %v4554 = vadd.f32 0.0, %v4553
        %4555 = vmatprep.mubr.f32.mxu0 0.0
        %4556 = vmatmul.mubr.f32.gmra.mrb[0].mxu0 %v565
        %v4557 = vpop.f32.mrb[0].mxu0
        %v4558 = vadd.f32 0.0, %v4557
        %v4559 = vpop.f32.mrb[0].mxu0
        %v4560 = vadd.f32 0.0, %v4559
        %4561 = vmatprep.mubr.f32.mxu0 0.0
        %4562 = vmatmul.mubr.f32.gmra.mrb[0].mxu0 %v566
        %v4563 = vpop.f32.mrb[0].mxu0
        %v4564 = vadd.f32 0.0, %v4563
        %v4565 = vpop.f32.mrb[0].mxu0
        %v4566 = vadd.f32 0.0, %v4565
        %4567 = vmatprep.mubr.f32.mxu0 0.0
        %4568 = vmatmul.mubr.f32.gmra.mrb[0].mxu0 %v567
        %v4569 = vpop.f32.mrb[0].mxu0
        %v4570 = vadd.f32 0.0, %v4569
        %v4571 = vpop.f32.mrb[0].mxu0
        %v4572 = vadd.f32 0.0, %v4571
        %4573 = vdwg.mxu0
        %4574 = vmatprep.subr.mxu0 %v4053
        %4575 = vmatpush1.msra.mxu0 %v4052
        %4576 = vmatprep.subr.mxu0 %v4068
        %4577 = vmatpush1.msra.mxu0 %v4067
        %4578 = vmatprep.subr.mxu0 %v4083
        %4579 = vmatpush1.msra.mxu0 %v4082
        %4580 = vmatprep.subr.mxu0 %v4098
        %4581 = vmatpush1.msra.mxu0 %v4097
        %4582 = vmatprep.subr.mxu0 %v4113
        %4583 = vmatpush1.msra.mxu0 %v4112
        %4584 = vmatprep.subr.mxu0 %v4128
        %4585 = vmatpush1.msra.mxu0 %v4127
        %4586 = vmatprep.subr.mxu0 %v4143
        %4587 = vmatpush1.msra.mxu0 %v4142
        %4588 = vmatprep.subr.mxu0 %v4158
        %4589 = vmatpush1.msra.mxu0 %v4157
        %4590 = vmatprep.subr.mxu0 %v4173
        %4591 = vmatpush1.msra.mxu0 %v4172
        %4592 = vmatprep.subr.mxu0 %v4188
        %4593 = vmatpush1.msra.mxu0 %v4187
        %4594 = vmatprep.subr.mxu0 %v4203
        %4595 = vmatpush1.msra.mxu0 %v4202
        %4596 = vmatprep.subr.mxu0 %v4218
        %4597 = vmatpush1.msra.mxu0 %v4217
        %4598 = vmatprep.subr.mxu0 %v4233
        %4599 = vmatpush1.msra.mxu0 %v4232
        %4600 = vmatprep.subr.mxu0 %v4248
        %4601 = vmatpush1.msra.mxu0 %v4247
        %4602 = vmatprep.subr.mxu0 %v4263
        %4603 = vmatpush1.msra.mxu0 %v4262
        %4604 = vmatprep.subr.mxu0 %v4278
        %4605 = vmatpush1.msra.mxu0 %v4277
        %4606 = vmatprep.subr.mxu0 0.0
        %4607 = vmatpush1.msra.mxu0 0.0
        %4608 = vmatprep.subr.mxu0 0.0
        %4609 = vmatpush1.msra.mxu0 0.0
        %4610 = vmatprep.subr.mxu0 0.0
        %4611 = vmatpush1.msra.mxu0 0.0
        %4612 = vmatprep.subr.mxu0 0.0
        %4613 = vmatpush1.msra.mxu0 0.0
        %4614 = vmatprep.subr.mxu0 0.0
        %4615 = vmatpush1.msra.mxu0 0.0
        %4616 = vmatprep.subr.mxu0 0.0
        %4617 = vmatpush1.msra.mxu0 0.0
        %4618 = vmatprep.subr.mxu0 0.0
        %4619 = vmatpush1.msra.mxu0 0.0
        %4620 = vmatprep.subr.mxu0 0.0
        %4621 = vmatpush1.msra.mxu0 0.0
        %4622 = vmatprep.subr.mxu0 0.0
        %4623 = vmatpush1.msra.mxu0 0.0
        %4624 = vmatprep.subr.mxu0 0.0
        %4625 = vmatpush1.msra.mxu0 0.0
        %4626 = vmatprep.subr.mxu0 0.0
        %4627 = vmatpush1.msra.mxu0 0.0
        %4628 = vmatprep.subr.mxu0 0.0
        %4629 = vmatpush1.msra.mxu0 0.0
        %4630 = vmatprep.subr.mxu0 0.0
        %4631 = vmatpush1.msra.mxu0 0.0
        %4632 = vmatprep.subr.mxu0 0.0
        %4633 = vmatpush1.msra.mxu0 0.0
        %4634 = vmatprep.subr.mxu0 0.0
        %4635 = vmatpush1.msra.mxu0 0.0
        %4636 = vmatprep.subr.mxu0 0.0
        %4637 = vmatpush1.msra.mxu0 0.0
        %4638 = vmatprep.mubr.f32.mxu0 0.0
        %4639 = vmatmul.mubr.f32.gmra.mrb[0].mxu0 %v555
        %v4640 = vpop.f32.mrb[0].mxu0
        %v4641 = vadd.f32 0.0, %v4640
        %v4642 = vpop.f32.mrb[0].mxu0
        %v4643 = vadd.f32 0.0, %v4642
        %4644 = vmatprep.mubr.f32.mxu0 0.0
        %4645 = vmatmul.mubr.f32.gmra.mrb[0].mxu0 %v556
        %v4646 = vpop.f32.mrb[0].mxu0
        %v4647 = vadd.f32 0.0, %v4646
        %v4648 = vpop.f32.mrb[0].mxu0
        %v4649 = vadd.f32 0.0, %v4648
        %4650 = vmatprep.mubr.f32.mxu0 0.0
        %4651 = vmatmul.mubr.f32.gmra.mrb[0].mxu0 %v557
        %v4652 = vpop.f32.mrb[0].mxu0
        %v4653 = vadd.f32 0.0, %v4652
        %v4654 = vpop.f32.mrb[0].mxu0
        %v4655 = vadd.f32 0.0, %v4654
        %4656 = vmatprep.mubr.f32.mxu0 0.0
        %4657 = vmatmul.mubr.f32.gmra.mrb[0].mxu0 %v558
        %v4658 = vpop.f32.mrb[0].mxu0
        %v4659 = vadd.f32 0.0, %v4658
        %v4660 = vpop.f32.mrb[0].mxu0
        %v4661 = vadd.f32 0.0, %v4660
        %4662 = vmatprep.mubr.f32.mxu0 0.0
        %4663 = vmatmul.mubr.f32.gmra.mrb[0].mxu0 %v559
        %v4664 = vpop.f32.mrb[0].mxu0
        %v4665 = vadd.f32 0.0, %v4664
        %v4666 = vpop.f32.mrb[0].mxu0
        %v4667 = vadd.f32 0.0, %v4666
        %4668 = vmatprep.mubr.f32.mxu0 0.0
        %4669 = vmatmul.mubr.f32.gmra.mrb[0].mxu0 %v560
        %v4670 = vpop.f32.mrb[0].mxu0
        %v4671 = vadd.f32 0.0, %v4670
        %v4672 = vpop.f32.mrb[0].mxu0
        %v4673 = vadd.f32 0.0, %v4672
        %4674 = vmatprep.mubr.f32.mxu0 0.0
        %4675 = vmatmul.mubr.f32.gmra.mrb[0].mxu0 %v561
        %v4676 = vpop.f32.mrb[0].mxu0
        %v4677 = vadd.f32 0.0, %v4676
        %v4678 = vpop.f32.mrb[0].mxu0
        %v4679 = vadd.f32 0.0, %v4678
        %4680 = vmatprep.mubr.f32.mxu0 0.0
        %4681 = vmatmul.mubr.f32.gmra.mrb[0].mxu0 %v562
        %v4682 = vpop.f32.mrb[0].mxu0
        %v4683 = vadd.f32 0.0, %v4682
        %v4684 = vpop.f32.mrb[0].mxu0
        %v4685 = vadd.f32 0.0, %v4684
        %4686 = vmatprep.mubr.f32.mxu0 0.0
        %4687 = vmatmul.mubr.f32.gmra.mrb[0].mxu0 %v563
        %v4688 = vpop.f32.mrb[0].mxu0
        %v4689 = vadd.f32 0.0, %v4688
        %v4690 = vpop.f32.mrb[0].mxu0
        %v4691 = vadd.f32 0.0, %v4690
        %4692 = vmatprep.mubr.f32.mxu0 0.0
        %4693 = vmatmul.mubr.f32.gmra.mrb[0].mxu0 %v564
        %v4694 = vpop.f32.mrb[0].mxu0
        %v4695 = vadd.f32 0.0, %v4694
        %v4696 = vpop.f32.mrb[0].mxu0
        %v4697 = vadd.f32 0.0, %v4696
        %4698 = vmatprep.mubr.f32.mxu0 0.0
        %4699 = vmatmul.mubr.f32.gmra.mrb[0].mxu0 %v565
        %v4700 = vpop.f32.mrb[0].mxu0
        %v4701 = vadd.f32 0.0, %v4700
        %v4702 = vpop.f32.mrb[0].mxu0
        %v4703 = vadd.f32 0.0, %v4702
        %4704 = vmatprep.mubr.f32.mxu0 0.0
        %4705 = vmatmul.mubr.f32.gmra.mrb[0].mxu0 %v566
        %v4706 = vpop.f32.mrb[0].mxu0
        %v4707 = vadd.f32 0.0, %v4706
        %v4708 = vpop.f32.mrb[0].mxu0
        %v4709 = vadd.f32 0.0, %v4708
        %4710 = vmatprep.mubr.f32.mxu0 0.0
        %4711 = vmatmul.mubr.f32.gmra.mrb[0].mxu0 %v567
        %v4712 = vpop.f32.mrb[0].mxu0
        %v4713 = vadd.f32 0.0, %v4712
        %v4714 = vpop.f32.mrb[0].mxu0
        %v4715 = vadd.f32 0.0, %v4714
        %4716 = vdwg.mxu0
        %4717 = vmatprep.subr.mxu0 %v4055
        %4718 = vmatpush1.msra.mxu0 %v4054
        %4719 = vmatprep.subr.mxu0 %v4070
        %4720 = vmatpush1.msra.mxu0 %v4069
        %4721 = vmatprep.subr.mxu0 %v4085
        %4722 = vmatpush1.msra.mxu0 %v4084
        %4723 = vmatprep.subr.mxu0 %v4100
        %4724 = vmatpush1.msra.mxu0 %v4099
        %4725 = vmatprep.subr.mxu0 %v4115
        %4726 = vmatpush1.msra.mxu0 %v4114
        %4727 = vmatprep.subr.mxu0 %v4130
        %4728 = vmatpush1.msra.mxu0 %v4129
        %4729 = vmatprep.subr.mxu0 %v4145
        %4730 = vmatpush1.msra.mxu0 %v4144
        %4731 = vmatprep.subr.mxu0 %v4160
        %4732 = vmatpush1.msra.mxu0 %v4159
        %4733 = vmatprep.subr.mxu0 %v4175
        %4734 = vmatpush1.msra.mxu0 %v4174
        %4735 = vmatprep.subr.mxu0 %v4190
        %4736 = vmatpush1.msra.mxu0 %v4189
        %4737 = vmatprep.subr.mxu0 %v4205
        %4738 = vmatpush1.msra.mxu0 %v4204
        %4739 = vmatprep.subr.mxu0 %v4220
        %4740 = vmatpush1.msra.mxu0 %v4219
        %4741 = vmatprep.subr.mxu0 %v4235
        %4742 = vmatpush1.msra.mxu0 %v4234
        %4743 = vmatprep.subr.mxu0 %v4250
        %4744 = vmatpush1.msra.mxu0 %v4249
        %4745 = vmatprep.subr.mxu0 %v4265
        %4746 = vmatpush1.msra.mxu0 %v4264
        %4747 = vmatprep.subr.mxu0 %v4280
        %4748 = vmatpush1.msra.mxu0 %v4279
        %4749 = vmatprep.subr.mxu0 0.0
        %4750 = vmatpush1.msra.mxu0 0.0
        %4751 = vmatprep.subr.mxu0 0.0
        %4752 = vmatpush1.msra.mxu0 0.0
        %4753 = vmatprep.subr.mxu0 0.0
        %4754 = vmatpush1.msra.mxu0 0.0
        %4755 = vmatprep.subr.mxu0 0.0
        %4756 = vmatpush1.msra.mxu0 0.0
        %4757 = vmatprep.subr.mxu0 0.0
        %4758 = vmatpush1.msra.mxu0 0.0
        %4759 = vmatprep.subr.mxu0 0.0
        %4760 = vmatpush1.msra.mxu0 0.0
        %4761 = vmatprep.subr.mxu0 0.0
        %4762 = vmatpush1.msra.mxu0 0.0
        %4763 = vmatprep.subr.mxu0 0.0
        %4764 = vmatpush1.msra.mxu0 0.0
        %4765 = vmatprep.subr.mxu0 0.0
        %4766 = vmatpush1.msra.mxu0 0.0
        %4767 = vmatprep.subr.mxu0 0.0
        %4768 = vmatpush1.msra.mxu0 0.0
        %4769 = vmatprep.subr.mxu0 0.0
        %4770 = vmatpush1.msra.mxu0 0.0
        %4771 = vmatprep.subr.mxu0 0.0
        %4772 = vmatpush1.msra.mxu0 0.0
        %4773 = vmatprep.subr.mxu0 0.0
        %4774 = vmatpush1.msra.mxu0 0.0
        %4775 = vmatprep.subr.mxu0 0.0
        %4776 = vmatpush1.msra.mxu0 0.0
        %4777 = vmatprep.subr.mxu0 0.0
        %4778 = vmatpush1.msra.mxu0 0.0
        %4779 = vmatprep.subr.mxu0 0.0
        %4780 = vmatpush1.msra.mxu0 0.0
        %4781 = vmatprep.mubr.f32.mxu0 0.0
        %4782 = vmatmul.mubr.f32.gmra.mrb[0].mxu0 %v555
        %v4783 = vpop.f32.mrb[0].mxu0
        %v4784 = vadd.f32 0.0, %v4783
        %v4785 = vpop.f32.mrb[0].mxu0
        %v4786 = vadd.f32 0.0, %v4785
        %4787 = vmatprep.mubr.f32.mxu0 0.0
        %4788 = vmatmul.mubr.f32.gmra.mrb[0].mxu0 %v556
        %v4789 = vpop.f32.mrb[0].mxu0
        %v4790 = vadd.f32 0.0, %v4789
        %v4791 = vpop.f32.mrb[0].mxu0
        %v4792 = vadd.f32 0.0, %v4791
        %4793 = vmatprep.mubr.f32.mxu0 0.0
        %4794 = vmatmul.mubr.f32.gmra.mrb[0].mxu0 %v557
        %v4795 = vpop.f32.mrb[0].mxu0
        %v4796 = vadd.f32 0.0, %v4795
        %v4797 = vpop.f32.mrb[0].mxu0
        %v4798 = vadd.f32 0.0, %v4797
        %4799 = vmatprep.mubr.f32.mxu0 0.0
        %4800 = vmatmul.mubr.f32.gmra.mrb[0].mxu0 %v558
        %v4801 = vpop.f32.mrb[0].mxu0
        %v4802 = vadd.f32 0.0, %v4801
        %v4803 = vpop.f32.mrb[0].mxu0
        %v4804 = vadd.f32 0.0, %v4803
        %4805 = vmatprep.mubr.f32.mxu0 0.0
        %4806 = vmatmul.mubr.f32.gmra.mrb[0].mxu0 %v559
        %v4807 = vpop.f32.mrb[0].mxu0
        %v4808 = vadd.f32 0.0, %v4807
        %v4809 = vpop.f32.mrb[0].mxu0
        %v4810 = vadd.f32 0.0, %v4809
        %4811 = vmatprep.mubr.f32.mxu0 0.0
        %4812 = vmatmul.mubr.f32.gmra.mrb[0].mxu0 %v560
        %v4813 = vpop.f32.mrb[0].mxu0
        %v4814 = vadd.f32 0.0, %v4813
        %v4815 = vpop.f32.mrb[0].mxu0
        %v4816 = vadd.f32 0.0, %v4815
        %4817 = vmatprep.mubr.f32.mxu0 0.0
        %4818 = vmatmul.mubr.f32.gmra.mrb[0].mxu0 %v561
        %v4819 = vpop.f32.mrb[0].mxu0
        %v4820 = vadd.f32 0.0, %v4819
        %v4821 = vpop.f32.mrb[0].mxu0
        %v4822 = vadd.f32 0.0, %v4821
        %4823 = vmatprep.mubr.f32.mxu0 0.0
        %4824 = vmatmul.mubr.f32.gmra.mrb[0].mxu0 %v562
        %v4825 = vpop.f32.mrb[0].mxu0
        %v4826 = vadd.f32 0.0, %v4825
        %v4827 = vpop.f32.mrb[0].mxu0
        %v4828 = vadd.f32 0.0, %v4827
        %4829 = vmatprep.mubr.f32.mxu0 0.0
        %4830 = vmatmul.mubr.f32.gmra.mrb[0].mxu0 %v563
        %v4831 = vpop.f32.mrb[0].mxu0
        %v4832 = vadd.f32 0.0, %v4831
        %v4833 = vpop.f32.mrb[0].mxu0
        %v4834 = vadd.f32 0.0, %v4833
        %4835 = vmatprep.mubr.f32.mxu0 0.0
        %4836 = vmatmul.mubr.f32.gmra.mrb[0].mxu0 %v564
        %v4837 = vpop.f32.mrb[0].mxu0
        %v4838 = vadd.f32 0.0, %v4837
        %v4839 = vpop.f32.mrb[0].mxu0
        %v4840 = vadd.f32 0.0, %v4839
        %4841 = vmatprep.mubr.f32.mxu0 0.0
        %4842 = vmatmul.mubr.f32.gmra.mrb[0].mxu0 %v565
        %v4843 = vpop.f32.mrb[0].mxu0
        %v4844 = vadd.f32 0.0, %v4843
        %v4845 = vpop.f32.mrb[0].mxu0
        %v4846 = vadd.f32 0.0, %v4845
        %4847 = vmatprep.mubr.f32.mxu0 0.0
        %4848 = vmatmul.mubr.f32.gmra.mrb[0].mxu0 %v566
        %v4849 = vpop.f32.mrb[0].mxu0
        %v4850 = vadd.f32 0.0, %v4849
        %v4851 = vpop.f32.mrb[0].mxu0
        %v4852 = vadd.f32 0.0, %v4851
        %4853 = vmatprep.mubr.f32.mxu0 0.0
        %4854 = vmatmul.mubr.f32.gmra.mrb[0].mxu0 %v567
        %v4855 = vpop.f32.mrb[0].mxu0
        %v4856 = vadd.f32 0.0, %v4855
        %v4857 = vpop.f32.mrb[0].mxu0
        %v4858 = vadd.f32 0.0, %v4857
        %4859 = vdwg.mxu0
        %4860 = vmatprep.subr.mxu0 %v4057
        %4861 = vmatpush1.msra.mxu0 %v4056
        %4862 = vmatprep.subr.mxu0 %v4072
        %4863 = vmatpush1.msra.mxu0 %v4071
        %4864 = vmatprep.subr.mxu0 %v4087
        %4865 = vmatpush1.msra.mxu0 %v4086
        %4866 = vmatprep.subr.mxu0 %v4102
        %4867 = vmatpush1.msra.mxu0 %v4101
        %4868 = vmatprep.subr.mxu0 %v4117
        %4869 = vmatpush1.msra.mxu0 %v4116
        %4870 = vmatprep.subr.mxu0 %v4132
        %4871 = vmatpush1.msra.mxu0 %v4131
        %4872 = vmatprep.subr.mxu0 %v4147
        %4873 = vmatpush1.msra.mxu0 %v4146
        %4874 = vmatprep.subr.mxu0 %v4162
        %4875 = vmatpush1.msra.mxu0 %v4161
        %4876 = vmatprep.subr.mxu0 %v4177
        %4877 = vmatpush1.msra.mxu0 %v4176
        %4878 = vmatprep.subr.mxu0 %v4192
        %4879 = vmatpush1.msra.mxu0 %v4191
        %4880 = vmatprep.subr.mxu0 %v4207
        %4881 = vmatpush1.msra.mxu0 %v4206
        %4882 = vmatprep.subr.mxu0 %v4222
        %4883 = vmatpush1.msra.mxu0 %v4221
        %4884 = vmatprep.subr.mxu0 %v4237
        %4885 = vmatpush1.msra.mxu0 %v4236
        %4886 = vmatprep.subr.mxu0 %v4252
        %4887 = vmatpush1.msra.mxu0 %v4251
        %4888 = vmatprep.subr.mxu0 %v4267
        %4889 = vmatpush1.msra.mxu0 %v4266
        %4890 = vmatprep.subr.mxu0 %v4282
        %4891 = vmatpush1.msra.mxu0 %v4281
        %4892 = vmatprep.subr.mxu0 0.0
        %4893 = vmatpush1.msra.mxu0 0.0
        %4894 = vmatprep.subr.mxu0 0.0
        %4895 = vmatpush1.msra.mxu0 0.0
        %4896 = vmatprep.subr.mxu0 0.0
        %4897 = vmatpush1.msra.mxu0 0.0
        %4898 = vmatprep.subr.mxu0 0.0
        %4899 = vmatpush1.msra.mxu0 0.0
        %4900 = vmatprep.subr.mxu0 0.0
        %4901 = vmatpush1.msra.mxu0 0.0
        %4902 = vmatprep.subr.mxu0 0.0
        %4903 = vmatpush1.msra.mxu0 0.0
        %4904 = vmatprep.subr.mxu0 0.0
        %4905 = vmatpush1.msra.mxu0 0.0
        %4906 = vmatprep.subr.mxu0 0.0
        %4907 = vmatpush1.msra.mxu0 0.0
        %4908 = vmatprep.subr.mxu0 0.0
        %4909 = vmatpush1.msra.mxu0 0.0
        %4910 = vmatprep.subr.mxu0 0.0
        %4911 = vmatpush1.msra.mxu0 0.0
        %4912 = vmatprep.subr.mxu0 0.0
        %4913 = vmatpush1.msra.mxu0 0.0
        %4914 = vmatprep.subr.mxu0 0.0
        %4915 = vmatpush1.msra.mxu0 0.0
        %4916 = vmatprep.subr.mxu0 0.0
        %4917 = vmatpush1.msra.mxu0 0.0
        %4918 = vmatprep.subr.mxu0 0.0
        %4919 = vmatpush1.msra.mxu0 0.0
        %4920 = vmatprep.subr.mxu0 0.0
        %4921 = vmatpush1.msra.mxu0 0.0
        %4922 = vmatprep.subr.mxu0 0.0
        %4923 = vmatpush1.msra.mxu0 0.0
        %4924 = vmatprep.mubr.f32.mxu0 0.0
        %4925 = vmatmul.mubr.f32.gmra.mrb[0].mxu0 %v555
        %v4926 = vpop.f32.mrb[0].mxu0
        %v4927 = vadd.f32 0.0, %v4926
        %v4928 = vpop.f32.mrb[0].mxu0
        %v4929 = vadd.f32 0.0, %v4928
        %4930 = vmatprep.mubr.f32.mxu0 0.0
        %4931 = vmatmul.mubr.f32.gmra.mrb[0].mxu0 %v556
        %v4932 = vpop.f32.mrb[0].mxu0
        %v4933 = vadd.f32 0.0, %v4932
        %v4934 = vpop.f32.mrb[0].mxu0
        %v4935 = vadd.f32 0.0, %v4934
        %4936 = vmatprep.mubr.f32.mxu0 0.0
        %4937 = vmatmul.mubr.f32.gmra.mrb[0].mxu0 %v557
        %v4938 = vpop.f32.mrb[0].mxu0
        %v4939 = vadd.f32 0.0, %v4938
        %v4940 = vpop.f32.mrb[0].mxu0
        %v4941 = vadd.f32 0.0, %v4940
        %4942 = vmatprep.mubr.f32.mxu0 0.0
        %4943 = vmatmul.mubr.f32.gmra.mrb[0].mxu0 %v558
        %v4944 = vpop.f32.mrb[0].mxu0
        %v4945 = vadd.f32 0.0, %v4944
        %v4946 = vpop.f32.mrb[0].mxu0
        %v4947 = vadd.f32 0.0, %v4946
        %4948 = vmatprep.mubr.f32.mxu0 0.0
        %4949 = vmatmul.mubr.f32.gmra.mrb[0].mxu0 %v559
        %v4950 = vpop.f32.mrb[0].mxu0
        %v4951 = vadd.f32 0.0, %v4950
        %v4952 = vpop.f32.mrb[0].mxu0
        %v4953 = vadd.f32 0.0, %v4952
        %4954 = vmatprep.mubr.f32.mxu0 0.0
        %4955 = vmatmul.mubr.f32.gmra.mrb[0].mxu0 %v560
        %v4956 = vpop.f32.mrb[0].mxu0
        %v4957 = vadd.f32 0.0, %v4956
        %v4958 = vpop.f32.mrb[0].mxu0
        %v4959 = vadd.f32 0.0, %v4958
        %4960 = vmatprep.mubr.f32.mxu0 0.0
        %4961 = vmatmul.mubr.f32.gmra.mrb[0].mxu0 %v561
        %v4962 = vpop.f32.mrb[0].mxu0
        %v4963 = vadd.f32 0.0, %v4962
        %v4964 = vpop.f32.mrb[0].mxu0
        %v4965 = vadd.f32 0.0, %v4964
        %4966 = vmatprep.mubr.f32.mxu0 0.0
        %4967 = vmatmul.mubr.f32.gmra.mrb[0].mxu0 %v562
        %v4968 = vpop.f32.mrb[0].mxu0
        %v4969 = vadd.f32 0.0, %v4968
        %v4970 = vpop.f32.mrb[0].mxu0
        %v4971 = vadd.f32 0.0, %v4970
        %4972 = vmatprep.mubr.f32.mxu0 0.0
        %4973 = vmatmul.mubr.f32.gmra.mrb[0].mxu0 %v563
        %v4974 = vpop.f32.mrb[0].mxu0
        %v4975 = vadd.f32 0.0, %v4974
        %v4976 = vpop.f32.mrb[0].mxu0
        %v4977 = vadd.f32 0.0, %v4976
        %4978 = vmatprep.mubr.f32.mxu0 0.0
        %4979 = vmatmul.mubr.f32.gmra.mrb[0].mxu0 %v564
        %v4980 = vpop.f32.mrb[0].mxu0
        %v4981 = vadd.f32 0.0, %v4980
        %v4982 = vpop.f32.mrb[0].mxu0
        %v4983 = vadd.f32 0.0, %v4982
        %4984 = vmatprep.mubr.f32.mxu0 0.0
        %4985 = vmatmul.mubr.f32.gmra.mrb[0].mxu0 %v565
        %v4986 = vpop.f32.mrb[0].mxu0
        %v4987 = vadd.f32 0.0, %v4986
        %v4988 = vpop.f32.mrb[0].mxu0
        %v4989 = vadd.f32 0.0, %v4988
        %4990 = vmatprep.mubr.f32.mxu0 0.0
        %4991 = vmatmul.mubr.f32.gmra.mrb[0].mxu0 %v566
        %v4992 = vpop.f32.mrb[0].mxu0
        %v4993 = vadd.f32 0.0, %v4992
        %v4994 = vpop.f32.mrb[0].mxu0
        %v4995 = vadd.f32 0.0, %v4994
        %4996 = vmatprep.mubr.f32.mxu0 0.0
        %4997 = vmatmul.mubr.f32.gmra.mrb[0].mxu0 %v567
        %v4998 = vpop.f32.mrb[0].mxu0
        %v4999 = vadd.f32 0.0, %v4998
        %v5000 = vpop.f32.mrb[0].mxu0
        %v5001 = vadd.f32 0.0, %v5000
        %5002 = vdwg.mxu0
        %5003 = vmatprep.subr.mxu0 %v4059
        %5004 = vmatpush1.msra.mxu0 %v4058
        %5005 = vmatprep.subr.mxu0 %v4074
        %5006 = vmatpush1.msra.mxu0 %v4073
        %5007 = vmatprep.subr.mxu0 %v4089
        %5008 = vmatpush1.msra.mxu0 %v4088
        %5009 = vmatprep.subr.mxu0 %v4104
        %5010 = vmatpush1.msra.mxu0 %v4103
        %5011 = vmatprep.subr.mxu0 %v4119
        %5012 = vmatpush1.msra.mxu0 %v4118
        %5013 = vmatprep.subr.mxu0 %v4134
        %5014 = vmatpush1.msra.mxu0 %v4133
        %5015 = vmatprep.subr.mxu0 %v4149
        %5016 = vmatpush1.msra.mxu0 %v4148
        %5017 = vmatprep.subr.mxu0 %v4164
        %5018 = vmatpush1.msra.mxu0 %v4163
        %5019 = vmatprep.subr.mxu0 %v4179
        %5020 = vmatpush1.msra.mxu0 %v4178
        %5021 = vmatprep.subr.mxu0 %v4194
        %5022 = vmatpush1.msra.mxu0 %v4193
        %5023 = vmatprep.subr.mxu0 %v4209
        %5024 = vmatpush1.msra.mxu0 %v4208
        %5025 = vmatprep.subr.mxu0 %v4224
        %5026 = vmatpush1.msra.mxu0 %v4223
        %5027 = vmatprep.subr.mxu0 %v4239
        %5028 = vmatpush1.msra.mxu0 %v4238
        %5029 = vmatprep.subr.mxu0 %v4254
        %5030 = vmatpush1.msra.mxu0 %v4253
        %5031 = vmatprep.subr.mxu0 %v4269
        %5032 = vmatpush1.msra.mxu0 %v4268
        %5033 = vmatprep.subr.mxu0 %v4284
        %5034 = vmatpush1.msra.mxu0 %v4283
        %5035 = vmatprep.subr.mxu0 0.0
        %5036 = vmatpush1.msra.mxu0 0.0
        %5037 = vmatprep.subr.mxu0 0.0
        %5038 = vmatpush1.msra.mxu0 0.0
        %5039 = vmatprep.subr.mxu0 0.0
        %5040 = vmatpush1.msra.mxu0 0.0
        %5041 = vmatprep.subr.mxu0 0.0
        %5042 = vmatpush1.msra.mxu0 0.0
        %5043 = vmatprep.subr.mxu0 0.0
        %5044 = vmatpush1.msra.mxu0 0.0
        %5045 = vmatprep.subr.mxu0 0.0
        %5046 = vmatpush1.msra.mxu0 0.0
        %5047 = vmatprep.subr.mxu0 0.0
        %5048 = vmatpush1.msra.mxu0 0.0
        %5049 = vmatprep.subr.mxu0 0.0
        %5050 = vmatpush1.msra.mxu0 0.0
        %5051 = vmatprep.subr.mxu0 0.0
        %5052 = vmatpush1.msra.mxu0 0.0
        %5053 = vmatprep.subr.mxu0 0.0
        %5054 = vmatpush1.msra.mxu0 0.0
        %5055 = vmatprep.subr.mxu0 0.0
        %5056 = vmatpush1.msra.mxu0 0.0
        %5057 = vmatprep.subr.mxu0 0.0
        %5058 = vmatpush1.msra.mxu0 0.0
        %5059 = vmatprep.subr.mxu0 0.0
        %5060 = vmatpush1.msra.mxu0 0.0
        %5061 = vmatprep.subr.mxu0 0.0
        %5062 = vmatpush1.msra.mxu0 0.0
        %5063 = vmatprep.subr.mxu0 0.0
        %5064 = vmatpush1.msra.mxu0 0.0
        %5065 = vmatprep.subr.mxu0 0.0
        %5066 = vmatpush1.msra.mxu0 0.0
        %5067 = vmatprep.mubr.f32.mxu0 0.0
        %5068 = vmatmul.mubr.f32.gmra.mrb[0].mxu0 %v555
        %v5069 = vpop.f32.mrb[0].mxu0
        %v5070 = vadd.f32 0.0, %v5069
        %v5071 = vpop.f32.mrb[0].mxu0
        %v5072 = vadd.f32 0.0, %v5071
        %5073 = vmatprep.mubr.f32.mxu0 0.0
        %5074 = vmatmul.mubr.f32.gmra.mrb[0].mxu0 %v556
        %v5075 = vpop.f32.mrb[0].mxu0
        %v5076 = vadd.f32 0.0, %v5075
        %v5077 = vpop.f32.mrb[0].mxu0
        %v5078 = vadd.f32 0.0, %v5077
        %5079 = vmatprep.mubr.f32.mxu0 0.0
        %5080 = vmatmul.mubr.f32.gmra.mrb[0].mxu0 %v557
        %v5081 = vpop.f32.mrb[0].mxu0
        %v5082 = vadd.f32 0.0, %v5081
        %v5083 = vpop.f32.mrb[0].mxu0
        %v5084 = vadd.f32 0.0, %v5083
        %5085 = vmatprep.mubr.f32.mxu0 0.0
        %5086 = vmatmul.mubr.f32.gmra.mrb[0].mxu0 %v558
        %v5087 = vpop.f32.mrb[0].mxu0
        %v5088 = vadd.f32 0.0, %v5087
        %v5089 = vpop.f32.mrb[0].mxu0
        %v5090 = vadd.f32 0.0, %v5089
        %5091 = vmatprep.mubr.f32.mxu0 0.0
        %5092 = vmatmul.mubr.f32.gmra.mrb[0].mxu0 %v559
        %v5093 = vpop.f32.mrb[0].mxu0
        %v5094 = vadd.f32 0.0, %v5093
        %v5095 = vpop.f32.mrb[0].mxu0
        %v5096 = vadd.f32 0.0, %v5095
        %5097 = vmatprep.mubr.f32.mxu0 0.0
        %5098 = vmatmul.mubr.f32.gmra.mrb[0].mxu0 %v560
        %v5099 = vpop.f32.mrb[0].mxu0
        %v5100 = vadd.f32 0.0, %v5099
        %v5101 = vpop.f32.mrb[0].mxu0
        %v5102 = vadd.f32 0.0, %v5101
        %5103 = vmatprep.mubr.f32.mxu0 0.0
        %5104 = vmatmul.mubr.f32.gmra.mrb[0].mxu0 %v561
        %v5105 = vpop.f32.mrb[0].mxu0
        %v5106 = vadd.f32 0.0, %v5105
        %v5107 = vpop.f32.mrb[0].mxu0
        %v5108 = vadd.f32 0.0, %v5107
        %5109 = vmatprep.mubr.f32.mxu0 0.0
        %5110 = vmatmul.mubr.f32.gmra.mrb[0].mxu0 %v562
        %v5111 = vpop.f32.mrb[0].mxu0
        %v5112 = vadd.f32 0.0, %v5111
        %v5113 = vpop.f32.mrb[0].mxu0
        %v5114 = vadd.f32 0.0, %v5113
        %5115 = vmatprep.mubr.f32.mxu0 0.0
        %5116 = vmatmul.mubr.f32.gmra.mrb[0].mxu0 %v563
        %v5117 = vpop.f32.mrb[0].mxu0
        %v5118 = vadd.f32 0.0, %v5117
        %v5119 = vpop.f32.mrb[0].mxu0
        %v5120 = vadd.f32 0.0, %v5119
        %5121 = vmatprep.mubr.f32.mxu0 0.0
        %5122 = vmatmul.mubr.f32.gmra.mrb[0].mxu0 %v564
        %v5123 = vpop.f32.mrb[0].mxu0
        %v5124 = vadd.f32 0.0, %v5123
        %v5125 = vpop.f32.mrb[0].mxu0
        %v5126 = vadd.f32 0.0, %v5125
        %5127 = vmatprep.mubr.f32.mxu0 0.0
        %5128 = vmatmul.mubr.f32.gmra.mrb[0].mxu0 %v565
        %v5129 = vpop.f32.mrb[0].mxu0
        %v5130 = vadd.f32 0.0, %v5129
        %v5131 = vpop.f32.mrb[0].mxu0
        %v5132 = vadd.f32 0.0, %v5131
        %5133 = vmatprep.mubr.f32.mxu0 0.0
        %5134 = vmatmul.mubr.f32.gmra.mrb[0].mxu0 %v566
        %v5135 = vpop.f32.mrb[0].mxu0
        %v5136 = vadd.f32 0.0, %v5135
        %v5137 = vpop.f32.mrb[0].mxu0
        %v5138 = vadd.f32 0.0, %v5137
        %5139 = vmatprep.mubr.f32.mxu0 0.0
        %5140 = vmatmul.mubr.f32.gmra.mrb[0].mxu0 %v567
        %v5141 = vpop.f32.mrb[0].mxu0
        %v5142 = vadd.f32 0.0, %v5141
        %v5143 = vpop.f32.mrb[0].mxu0
        %v5144 = vadd.f32 0.0, %v5143
        %5145 = vdwg.mxu0
        %5146 = vmatprep.subr.mxu0 %v4061
        %5147 = vmatpush1.msra.mxu0 %v4060
        %5148 = vmatprep.subr.mxu0 %v4076
        %5149 = vmatpush1.msra.mxu0 %v4075
        %5150 = vmatprep.subr.mxu0 %v4091
        %5151 = vmatpush1.msra.mxu0 %v4090
        %5152 = vmatprep.subr.mxu0 %v4106
        %5153 = vmatpush1.msra.mxu0 %v4105
        %5154 = vmatprep.subr.mxu0 %v4121
        %5155 = vmatpush1.msra.mxu0 %v4120
        %5156 = vmatprep.subr.mxu0 %v4136
        %5157 = vmatpush1.msra.mxu0 %v4135
        %5158 = vmatprep.subr.mxu0 %v4151
        %5159 = vmatpush1.msra.mxu0 %v4150
        %5160 = vmatprep.subr.mxu0 %v4166
        %5161 = vmatpush1.msra.mxu0 %v4165
        %5162 = vmatprep.subr.mxu0 %v4181
        %5163 = vmatpush1.msra.mxu0 %v4180
        %5164 = vmatprep.subr.mxu0 %v4196
        %5165 = vmatpush1.msra.mxu0 %v4195
        %5166 = vmatprep.subr.mxu0 %v4211
        %5167 = vmatpush1.msra.mxu0 %v4210
        %5168 = vmatprep.subr.mxu0 %v4226
        %5169 = vmatpush1.msra.mxu0 %v4225
        %5170 = vmatprep.subr.mxu0 %v4241
        %5171 = vmatpush1.msra.mxu0 %v4240
        %5172 = vmatprep.subr.mxu0 %v4256
        %5173 = vmatpush1.msra.mxu0 %v4255
        %5174 = vmatprep.subr.mxu0 %v4271
        %5175 = vmatpush1.msra.mxu0 %v4270
        %5176 = vmatprep.subr.mxu0 %v4286
        %5177 = vmatpush1.msra.mxu0 %v4285
        %5178 = vmatprep.subr.mxu0 0.0
        %5179 = vmatpush1.msra.mxu0 0.0
        %5180 = vmatprep.subr.mxu0 0.0
        %5181 = vmatpush1.msra.mxu0 0.0
        %5182 = vmatprep.subr.mxu0 0.0
        %5183 = vmatpush1.msra.mxu0 0.0
        %5184 = vmatprep.subr.mxu0 0.0
        %5185 = vmatpush1.msra.mxu0 0.0
        %5186 = vmatprep.subr.mxu0 0.0
        %5187 = vmatpush1.msra.mxu0 0.0
        %5188 = vmatprep.subr.mxu0 0.0
        %5189 = vmatpush1.msra.mxu0 0.0
        %5190 = vmatprep.subr.mxu0 0.0
        %5191 = vmatpush1.msra.mxu0 0.0
        %5192 = vmatprep.subr.mxu0 0.0
        %5193 = vmatpush1.msra.mxu0 0.0
        %5194 = vmatprep.subr.mxu0 0.0
        %5195 = vmatpush1.msra.mxu0 0.0
        %5196 = vmatprep.subr.mxu0 0.0
        %5197 = vmatpush1.msra.mxu0 0.0
        %5198 = vmatprep.subr.mxu0 0.0
        %5199 = vmatpush1.msra.mxu0 0.0
        %5200 = vmatprep.subr.mxu0 0.0
        %5201 = vmatpush1.msra.mxu0 0.0
        %5202 = vmatprep.subr.mxu0 0.0
        %5203 = vmatpush1.msra.mxu0 0.0
        %5204 = vmatprep.subr.mxu0 0.0
        %5205 = vmatpush1.msra.mxu0 0.0
        %5206 = vmatprep.subr.mxu0 0.0
        %5207 = vmatpush1.msra.mxu0 0.0
        %5208 = vmatprep.subr.mxu0 0.0
        %5209 = vmatpush1.msra.mxu0 0.0
        %5210 = vmatprep.mubr.f32.mxu0 0.0
        %5211 = vmatmul.mubr.f32.gmra.mrb[0].mxu0 %v555
        %v5212 = vpop.f32.mrb[0].mxu0
        %v5213 = vadd.f32 0.0, %v5212
        %v5214 = vpop.f32.mrb[0].mxu0
        %v5215 = vadd.f32 0.0, %v5214
        %5216 = vmatprep.mubr.f32.mxu0 0.0
        %5217 = vmatmul.mubr.f32.gmra.mrb[0].mxu0 %v556
        %v5218 = vpop.f32.mrb[0].mxu0
        %v5219 = vadd.f32 0.0, %v5218
        %v5220 = vpop.f32.mrb[0].mxu0
        %v5221 = vadd.f32 0.0, %v5220
        %5222 = vmatprep.mubr.f32.mxu0 0.0
        %5223 = vmatmul.mubr.f32.gmra.mrb[0].mxu0 %v557
        %v5224 = vpop.f32.mrb[0].mxu0
        %v5225 = vadd.f32 0.0, %v5224
        %v5226 = vpop.f32.mrb[0].mxu0
        %v5227 = vadd.f32 0.0, %v5226
        %5228 = vmatprep.mubr.f32.mxu0 0.0
        %5229 = vmatmul.mubr.f32.gmra.mrb[0].mxu0 %v558
        %v5230 = vpop.f32.mrb[0].mxu0
        %v5231 = vadd.f32 0.0, %v5230
        %v5232 = vpop.f32.mrb[0].mxu0
        %v5233 = vadd.f32 0.0, %v5232
        %5234 = vmatprep.mubr.f32.mxu0 0.0
        %5235 = vmatmul.mubr.f32.gmra.mrb[0].mxu0 %v559
        %v5236 = vpop.f32.mrb[0].mxu0
        %v5237 = vadd.f32 0.0, %v5236
        %v5238 = vpop.f32.mrb[0].mxu0
        %v5239 = vadd.f32 0.0, %v5238
        %5240 = vmatprep.mubr.f32.mxu0 0.0
        %5241 = vmatmul.mubr.f32.gmra.mrb[0].mxu0 %v560
        %v5242 = vpop.f32.mrb[0].mxu0
        %v5243 = vadd.f32 0.0, %v5242
        %v5244 = vpop.f32.mrb[0].mxu0
        %v5245 = vadd.f32 0.0, %v5244
        %5246 = vmatprep.mubr.f32.mxu0 0.0
        %5247 = vmatmul.mubr.f32.gmra.mrb[0].mxu0 %v561
        %v5248 = vpop.f32.mrb[0].mxu0
        %v5249 = vadd.f32 0.0, %v5248
        %v5250 = vpop.f32.mrb[0].mxu0
        %v5251 = vadd.f32 0.0, %v5250
        %5252 = vmatprep.mubr.f32.mxu0 0.0
        %5253 = vmatmul.mubr.f32.gmra.mrb[0].mxu0 %v562
        %v5254 = vpop.f32.mrb[0].mxu0
        %v5255 = vadd.f32 0.0, %v5254
        %v5256 = vpop.f32.mrb[0].mxu0
        %v5257 = vadd.f32 0.0, %v5256
        %5258 = vmatprep.mubr.f32.mxu0 0.0
        %5259 = vmatmul.mubr.f32.gmra.mrb[0].mxu0 %v563
        %v5260 = vpop.f32.mrb[0].mxu0
        %v5261 = vadd.f32 0.0, %v5260
        %v5262 = vpop.f32.mrb[0].mxu0
        %v5263 = vadd.f32 0.0, %v5262
        %5264 = vmatprep.mubr.f32.mxu0 0.0
        %5265 = vmatmul.mubr.f32.gmra.mrb[0].mxu0 %v564
        %v5266 = vpop.f32.mrb[0].mxu0
        %v5267 = vadd.f32 0.0, %v5266
        %v5268 = vpop.f32.mrb[0].mxu0
        %v5269 = vadd.f32 0.0, %v5268
        %5270 = vmatprep.mubr.f32.mxu0 0.0
        %5271 = vmatmul.mubr.f32.gmra.mrb[0].mxu0 %v565
        %v5272 = vpop.f32.mrb[0].mxu0
        %v5273 = vadd.f32 0.0, %v5272
        %v5274 = vpop.f32.mrb[0].mxu0
        %v5275 = vadd.f32 0.0, %v5274
        %5276 = vmatprep.mubr.f32.mxu0 0.0
        %5277 = vmatmul.mubr.f32.gmra.mrb[0].mxu0 %v566
        %v5278 = vpop.f32.mrb[0].mxu0
        %v5279 = vadd.f32 0.0, %v5278
        %v5280 = vpop.f32.mrb[0].mxu0
        %v5281 = vadd.f32 0.0, %v5280
        %5282 = vmatprep.mubr.f32.mxu0 0.0
        %5283 = vmatmul.mubr.f32.gmra.mrb[0].mxu0 %v567
        %v5284 = vpop.f32.mrb[0].mxu0
        %v5285 = vadd.f32 0.0, %v5284
        %v5286 = vpop.f32.mrb[0].mxu0
        %v5287 = vadd.f32 0.0, %v5286
        %5288 = vdwg.mxu0
        %5289 = vmatprep.subr.mxu0 0.0
        %5290 = vmatpush1.msra.mxu0 %v4062
        %5291 = vmatprep.subr.mxu0 0.0
        %5292 = vmatpush1.msra.mxu0 %v4077
        %5293 = vmatprep.subr.mxu0 0.0
        %5294 = vmatpush1.msra.mxu0 %v4092
        %5295 = vmatprep.subr.mxu0 0.0
        %5296 = vmatpush1.msra.mxu0 %v4107
        %5297 = vmatprep.subr.mxu0 0.0
        %5298 = vmatpush1.msra.mxu0 %v4122
        %5299 = vmatprep.subr.mxu0 0.0
        %5300 = vmatpush1.msra.mxu0 %v4137
        %5301 = vmatprep.subr.mxu0 0.0
        %5302 = vmatpush1.msra.mxu0 %v4152
        %5303 = vmatprep.subr.mxu0 0.0
        %5304 = vmatpush1.msra.mxu0 %v4167
        %5305 = vmatprep.subr.mxu0 0.0
        %5306 = vmatpush1.msra.mxu0 %v4182
        %5307 = vmatprep.subr.mxu0 0.0
        %5308 = vmatpush1.msra.mxu0 %v4197
        %5309 = vmatprep.subr.mxu0 0.0
        %5310 = vmatpush1.msra.mxu0 %v4212
        %5311 = vmatprep.subr.mxu0 0.0
        %5312 = vmatpush1.msra.mxu0 %v4227
        %5313 = vmatprep.subr.mxu0 0.0
        %5314 = vmatpush1.msra.mxu0 %v4242
        %5315 = vmatprep.subr.mxu0 0.0
        %5316 = vmatpush1.msra.mxu0 %v4257
        %5317 = vmatprep.subr.mxu0 0.0
        %5318 = vmatpush1.msra.mxu0 %v4272
        %5319 = vmatprep.subr.mxu0 0.0
        %5320 = vmatpush1.msra.mxu0 %v4287
        %5321 = vmatprep.subr.mxu0 0.0
        %5322 = vmatpush1.msra.mxu0 0.0
        %5323 = vmatprep.subr.mxu0 0.0
        %5324 = vmatpush1.msra.mxu0 0.0
        %5325 = vmatprep.subr.mxu0 0.0
        %5326 = vmatpush1.msra.mxu0 0.0
        %5327 = vmatprep.subr.mxu0 0.0
        %5328 = vmatpush1.msra.mxu0 0.0
        %5329 = vmatprep.subr.mxu0 0.0
        %5330 = vmatpush1.msra.mxu0 0.0
        %5331 = vmatprep.subr.mxu0 0.0
        %5332 = vmatpush1.msra.mxu0 0.0
        %5333 = vmatprep.subr.mxu0 0.0
        %5334 = vmatpush1.msra.mxu0 0.0
        %5335 = vmatprep.subr.mxu0 0.0
        %5336 = vmatpush1.msra.mxu0 0.0
        %5337 = vmatprep.subr.mxu0 0.0
        %5338 = vmatpush1.msra.mxu0 0.0
        %5339 = vmatprep.subr.mxu0 0.0
        %5340 = vmatpush1.msra.mxu0 0.0
        %5341 = vmatprep.subr.mxu0 0.0
        %5342 = vmatpush1.msra.mxu0 0.0
        %5343 = vmatprep.subr.mxu0 0.0
        %5344 = vmatpush1.msra.mxu0 0.0
        %5345 = vmatprep.subr.mxu0 0.0
        %5346 = vmatpush1.msra.mxu0 0.0
        %5347 = vmatprep.subr.mxu0 0.0
        %5348 = vmatpush1.msra.mxu0 0.0
        %5349 = vmatprep.subr.mxu0 0.0
        %5350 = vmatpush1.msra.mxu0 0.0
        %5351 = vmatprep.subr.mxu0 0.0
        %5352 = vmatpush1.msra.mxu0 0.0
        %5353 = vmatprep.mubr.f32.mxu0 0.0
        %5354 = vmatmul.mubr.f32.gmra.mrb[0].mxu0 %v555
        %v5355 = vpop.f32.mrb[0].mxu0
        %v5356 = vadd.f32 0.0, %v5355
        %v5357 = vpop.f32.mrb[0].mxu0
        %5358 = vmatprep.mubr.f32.mxu0 0.0
        %5359 = vmatmul.mubr.f32.gmra.mrb[0].mxu0 %v556
        %v5360 = vpop.f32.mrb[0].mxu0
        %v5361 = vadd.f32 0.0, %v5360
        %v5362 = vpop.f32.mrb[0].mxu0
        %5363 = vmatprep.mubr.f32.mxu0 0.0
        %5364 = vmatmul.mubr.f32.gmra.mrb[0].mxu0 %v557
        %v5365 = vpop.f32.mrb[0].mxu0
        %v5366 = vadd.f32 0.0, %v5365
        %v5367 = vpop.f32.mrb[0].mxu0
        %5368 = vmatprep.mubr.f32.mxu0 0.0
        %5369 = vmatmul.mubr.f32.gmra.mrb[0].mxu0 %v558
        %v5370 = vpop.f32.mrb[0].mxu0
        %v5371 = vadd.f32 0.0, %v5370
        %v5372 = vpop.f32.mrb[0].mxu0
        %5373 = vmatprep.mubr.f32.mxu0 0.0
        %5374 = vmatmul.mubr.f32.gmra.mrb[0].mxu0 %v559
        %v5375 = vpop.f32.mrb[0].mxu0
        %v5376 = vadd.f32 0.0, %v5375
        %v5377 = vpop.f32.mrb[0].mxu0
        %5378 = vmatprep.mubr.f32.mxu0 0.0
        %5379 = vmatmul.mubr.f32.gmra.mrb[0].mxu0 %v560
        %v5380 = vpop.f32.mrb[0].mxu0
        %v5381 = vadd.f32 0.0, %v5380
        %v5382 = vpop.f32.mrb[0].mxu0
        %5383 = vmatprep.mubr.f32.mxu0 0.0
        %5384 = vmatmul.mubr.f32.gmra.mrb[0].mxu0 %v561
        %v5385 = vpop.f32.mrb[0].mxu0
        %v5386 = vadd.f32 0.0, %v5385
        %v5387 = vpop.f32.mrb[0].mxu0
        %5388 = vmatprep.mubr.f32.mxu0 0.0
        %5389 = vmatmul.mubr.f32.gmra.mrb[0].mxu0 %v562
        %v5390 = vpop.f32.mrb[0].mxu0
        %v5391 = vadd.f32 0.0, %v5390
        %v5392 = vpop.f32.mrb[0].mxu0
        %5393 = vmatprep.mubr.f32.mxu0 0.0
        %5394 = vmatmul.mubr.f32.gmra.mrb[0].mxu0 %v563
        %v5395 = vpop.f32.mrb[0].mxu0
        %v5396 = vadd.f32 0.0, %v5395
        %v5397 = vpop.f32.mrb[0].mxu0
        %5398 = vmatprep.mubr.f32.mxu0 0.0
        %5399 = vmatmul.mubr.f32.gmra.mrb[0].mxu0 %v564
        %v5400 = vpop.f32.mrb[0].mxu0
        %v5401 = vadd.f32 0.0, %v5400
        %v5402 = vpop.f32.mrb[0].mxu0
        %5403 = vmatprep.mubr.f32.mxu0 0.0
        %5404 = vmatmul.mubr.f32.gmra.mrb[0].mxu0 %v565
        %v5405 = vpop.f32.mrb[0].mxu0
        %v5406 = vadd.f32 0.0, %v5405
        %v5407 = vpop.f32.mrb[0].mxu0
        %5408 = vmatprep.mubr.f32.mxu0 0.0
        %5409 = vmatmul.mubr.f32.gmra.mrb[0].mxu0 %v566
        %v5410 = vpop.f32.mrb[0].mxu0
        %v5411 = vadd.f32 0.0, %v5410
        %v5412 = vpop.f32.mrb[0].mxu0
        %5413 = vmatprep.mubr.f32.mxu0 0.0
        %5414 = vmatmul.mubr.f32.gmra.mrb[0].mxu0 %v567
        %v5415 = vpop.f32.mrb[0].mxu0
        %v5416 = vadd.f32 0.0, %v5415
        %v5417 = vpop.f32.mrb[0].mxu0
        %5418 = vdwg.mxu0
        %v5419 = vld [vmem:[#allocation2 + $0x20] sm:$0x1f]
        %5421 = vset.pattern.permute.xlu0 0
        %5422 = vperm.xlu0 %5421, %v897
        %v5423 = vpop.permute.xlu0 %5422
        %5426 = vset.pattern.permute.xlu0 0
        %5427 = vperm.xlu0 %5426, %v898
        %v5428 = vpop.permute.xlu0 %5427
        %5431 = vset.pattern.permute.xlu0 0
        %5432 = vperm.xlu0 %5431, %v899
        %v5433 = vpop.permute.xlu0 %5432
        %5436 = vset.pattern.permute.xlu0 0
        %5437 = vperm.xlu0 %5436, %v900
        %v5438 = vpop.permute.xlu0 %5437
        %5441 = vset.pattern.permute.xlu0 0
        %5442 = vperm.xlu0 %5441, %v901
        %v5443 = vpop.permute.xlu0 %5442
        %5446 = vset.pattern.permute.xlu0 0
        %5447 = vperm.xlu0 %5446, %v902
        %v5448 = vpop.permute.xlu0 %5447
        %5451 = vset.pattern.permute.xlu0 0
        %5452 = vperm.xlu0 %5451, %v903
        %v5453 = vpop.permute.xlu0 %5452
        %5456 = vset.pattern.permute.xlu0 0
        %5457 = vperm.xlu0 %5456, %v904
        %v5458 = vpop.permute.xlu0 %5457
        %5461 = vset.pattern.permute.xlu0 0
        %5462 = vperm.xlu0 %5461, %v905
        %v5463 = vpop.permute.xlu0 %5462
        %5466 = vset.pattern.permute.xlu0 0
        %5467 = vperm.xlu0 %5466, %v906
        %v5468 = vpop.permute.xlu0 %5467
        %5471 = vset.pattern.permute.xlu0 0
        %5472 = vperm.xlu0 %5471, %v907
        %v5473 = vpop.permute.xlu0 %5472
        %5476 = vset.pattern.permute.xlu0 0
        %5477 = vperm.xlu0 %5476, %v908
        %v5478 = vpop.permute.xlu0 %5477
        %5481 = vset.pattern.permute.xlu0 0
        %5482 = vperm.xlu0 %5481, %v909
        %v5483 = vpop.permute.xlu0 %5482
        %v5485 = vmul.f32 %v4355, %v5423
        %v5486 = vmul.f32 %v4361, %v5428
        %v5487 = vmul.f32 %v4367, %v5433
        %v5488 = vmul.f32 %v4373, %v5438
        %v5489 = vmul.f32 %v4379, %v5443
        %v5490 = vmul.f32 %v4385, %v5448
        %v5491 = vmul.f32 %v4391, %v5453
        %v5492 = vmul.f32 %v4397, %v5458
        %v5493 = vmul.f32 %v4403, %v5463
        %v5494 = vmul.f32 %v4409, %v5468
        %v5495 = vmul.f32 %v4415, %v5473
        %v5496 = vmul.f32 %v4421, %v5478
        %v5497 = vmul.f32 %v4427, %v5483
        %5498 = vset.pattern.permute.xlu0 1
        %5499 = vperm.xlu0 %5498, %v897
        %v5500 = vpop.permute.xlu0 %5499
        %5502 = vset.pattern.permute.xlu0 1
        %5503 = vperm.xlu0 %5502, %v898
        %v5504 = vpop.permute.xlu0 %5503
        %5506 = vset.pattern.permute.xlu0 1
        %5507 = vperm.xlu0 %5506, %v899
        %v5508 = vpop.permute.xlu0 %5507
        %5510 = vset.pattern.permute.xlu0 1
        %5511 = vperm.xlu0 %5510, %v900
        %v5512 = vpop.permute.xlu0 %5511
        %5514 = vset.pattern.permute.xlu0 1
        %5515 = vperm.xlu0 %5514, %v901
        %v5516 = vpop.permute.xlu0 %5515
        %5518 = vset.pattern.permute.xlu0 1
        %5519 = vperm.xlu0 %5518, %v902
        %v5520 = vpop.permute.xlu0 %5519
        %5522 = vset.pattern.permute.xlu0 1
        %5523 = vperm.xlu0 %5522, %v903
        %v5524 = vpop.permute.xlu0 %5523
        %5526 = vset.pattern.permute.xlu0 1
        %5527 = vperm.xlu0 %5526, %v904
        %v5528 = vpop.permute.xlu0 %5527
        %5530 = vset.pattern.permute.xlu0 1
        %5531 = vperm.xlu0 %5530, %v905
        %v5532 = vpop.permute.xlu0 %5531
        %5534 = vset.pattern.permute.xlu0 1
        %5535 = vperm.xlu0 %5534, %v906
        %v5536 = vpop.permute.xlu0 %5535
        %5538 = vset.pattern.permute.xlu0 1
        %5539 = vperm.xlu0 %5538, %v907
        %v5540 = vpop.permute.xlu0 %5539
        %5542 = vset.pattern.permute.xlu0 1
        %5543 = vperm.xlu0 %5542, %v908
        %v5544 = vpop.permute.xlu0 %5543
        %5546 = vset.pattern.permute.xlu0 1
        %5547 = vperm.xlu0 %5546, %v909
        %v5548 = vpop.permute.xlu0 %5547
        %v5550 = vmul.f32 %v4357, %v5500
        %v5551 = vmul.f32 %v4363, %v5504
        %v5552 = vmul.f32 %v4369, %v5508
        %v5553 = vmul.f32 %v4375, %v5512
        %v5554 = vmul.f32 %v4381, %v5516
        %v5555 = vmul.f32 %v4387, %v5520
        %v5556 = vmul.f32 %v4393, %v5524
        %v5557 = vmul.f32 %v4399, %v5528
        %v5558 = vmul.f32 %v4405, %v5532
        %v5559 = vmul.f32 %v4411, %v5536
        %v5560 = vmul.f32 %v4417, %v5540
        %v5561 = vmul.f32 %v4423, %v5544
        %v5562 = vmul.f32 %v4429, %v5548
        %5563 = vset.pattern.permute.xlu0 2
        %5564 = vperm.xlu0 %5563, %v897
        %v5565 = vpop.permute.xlu0 %5564
        %5567 = vset.pattern.permute.xlu0 2
        %5568 = vperm.xlu0 %5567, %v898
        %v5569 = vpop.permute.xlu0 %5568
        %5571 = vset.pattern.permute.xlu0 2
        %5572 = vperm.xlu0 %5571, %v899
        %v5573 = vpop.permute.xlu0 %5572
        %5575 = vset.pattern.permute.xlu0 2
        %5576 = vperm.xlu0 %5575, %v900
        %v5577 = vpop.permute.xlu0 %5576
        %5579 = vset.pattern.permute.xlu0 2
        %5580 = vperm.xlu0 %5579, %v901
        %v5581 = vpop.permute.xlu0 %5580
        %5583 = vset.pattern.permute.xlu0 2
        %5584 = vperm.xlu0 %5583, %v902
        %v5585 = vpop.permute.xlu0 %5584
        %5587 = vset.pattern.permute.xlu0 2
        %5588 = vperm.xlu0 %5587, %v903
        %v5589 = vpop.permute.xlu0 %5588
        %5591 = vset.pattern.permute.xlu0 2
        %5592 = vperm.xlu0 %5591, %v904
        %v5593 = vpop.permute.xlu0 %5592
        %5595 = vset.pattern.permute.xlu0 2
        %5596 = vperm.xlu0 %5595, %v905
        %v5597 = vpop.permute.xlu0 %5596
        %5599 = vset.pattern.permute.xlu0 2
        %5600 = vperm.xlu0 %5599, %v906
        %v5601 = vpop.permute.xlu0 %5600
        %5603 = vset.pattern.permute.xlu0 2
        %5604 = vperm.xlu0 %5603, %v907
        %v5605 = vpop.permute.xlu0 %5604
        %5607 = vset.pattern.permute.xlu0 2
        %5608 = vperm.xlu0 %5607, %v908
        %v5609 = vpop.permute.xlu0 %5608
        %5611 = vset.pattern.permute.xlu0 2
        %5612 = vperm.xlu0 %5611, %v909
        %v5613 = vpop.permute.xlu0 %5612
        %v5615 = vmul.f32 %v4498, %v5565
        %v5616 = vmul.f32 %v4504, %v5569
        %v5617 = vmul.f32 %v4510, %v5573
        %v5618 = vmul.f32 %v4516, %v5577
        %v5619 = vmul.f32 %v4522, %v5581
        %v5620 = vmul.f32 %v4528, %v5585
        %v5621 = vmul.f32 %v4534, %v5589
        %v5622 = vmul.f32 %v4540, %v5593
        %v5623 = vmul.f32 %v4546, %v5597
        %v5624 = vmul.f32 %v4552, %v5601
        %v5625 = vmul.f32 %v4558, %v5605
        %v5626 = vmul.f32 %v4564, %v5609
        %v5627 = vmul.f32 %v4570, %v5613
        %5628 = vset.pattern.permute.xlu0 3
        %5629 = vperm.xlu0 %5628, %v897
        %v5630 = vpop.permute.xlu0 %5629
        %5632 = vset.pattern.permute.xlu0 3
        %5633 = vperm.xlu0 %5632, %v898
        %v5634 = vpop.permute.xlu0 %5633
        %5636 = vset.pattern.permute.xlu0 3
        %5637 = vperm.xlu0 %5636, %v899
        %v5638 = vpop.permute.xlu0 %5637
        %5640 = vset.pattern.permute.xlu0 3
        %5641 = vperm.xlu0 %5640, %v900
        %v5642 = vpop.permute.xlu0 %5641
        %5644 = vset.pattern.permute.xlu0 3
        %5645 = vperm.xlu0 %5644, %v901
        %v5646 = vpop.permute.xlu0 %5645
        %5648 = vset.pattern.permute.xlu0 3
        %5649 = vperm.xlu0 %5648, %v902
        %v5650 = vpop.permute.xlu0 %5649
        %5652 = vset.pattern.permute.xlu0 3
        %5653 = vperm.xlu0 %5652, %v903
        %v5654 = vpop.permute.xlu0 %5653
        %5656 = vset.pattern.permute.xlu0 3
        %5657 = vperm.xlu0 %5656, %v904
        %v5658 = vpop.permute.xlu0 %5657
        %5660 = vset.pattern.permute.xlu0 3
        %5661 = vperm.xlu0 %5660, %v905
        %v5662 = vpop.permute.xlu0 %5661
        %5664 = vset.pattern.permute.xlu0 3
        %5665 = vperm.xlu0 %5664, %v906
        %v5666 = vpop.permute.xlu0 %5665
        %5668 = vset.pattern.permute.xlu0 3
        %5669 = vperm.xlu0 %5668, %v907
        %v5670 = vpop.permute.xlu0 %5669
        %5672 = vset.pattern.permute.xlu0 3
        %5673 = vperm.xlu0 %5672, %v908
        %v5674 = vpop.permute.xlu0 %5673
        %5676 = vset.pattern.permute.xlu0 3
        %5677 = vperm.xlu0 %5676, %v909
        %v5678 = vpop.permute.xlu0 %5677
        %v5680 = vmul.f32 %v4500, %v5630
        %v5681 = vmul.f32 %v4506, %v5634
        %v5682 = vmul.f32 %v4512, %v5638
        %v5683 = vmul.f32 %v4518, %v5642
        %v5684 = vmul.f32 %v4524, %v5646
        %v5685 = vmul.f32 %v4530, %v5650
        %v5686 = vmul.f32 %v4536, %v5654
        %v5687 = vmul.f32 %v4542, %v5658
        %v5688 = vmul.f32 %v4548, %v5662
        %v5689 = vmul.f32 %v4554, %v5666
        %v5690 = vmul.f32 %v4560, %v5670
        %v5691 = vmul.f32 %v4566, %v5674
        %v5692 = vmul.f32 %v4572, %v5678
        %5693 = vset.pattern.permute.xlu0 4
        %5694 = vperm.xlu0 %5693, %v897
        %v5695 = vpop.permute.xlu0 %5694
        %5697 = vset.pattern.permute.xlu0 4
        %5698 = vperm.xlu0 %5697, %v898
        %v5699 = vpop.permute.xlu0 %5698
        %5701 = vset.pattern.permute.xlu0 4
        %5702 = vperm.xlu0 %5701, %v899
        %v5703 = vpop.permute.xlu0 %5702
        %5705 = vset.pattern.permute.xlu0 4
        %5706 = vperm.xlu0 %5705, %v900
        %v5707 = vpop.permute.xlu0 %5706
        %5709 = vset.pattern.permute.xlu0 4
        %5710 = vperm.xlu0 %5709, %v901
        %v5711 = vpop.permute.xlu0 %5710
        %5713 = vset.pattern.permute.xlu0 4
        %5714 = vperm.xlu0 %5713, %v902
        %v5715 = vpop.permute.xlu0 %5714
        %5717 = vset.pattern.permute.xlu0 4
        %5718 = vperm.xlu0 %5717, %v903
        %v5719 = vpop.permute.xlu0 %5718
        %5721 = vset.pattern.permute.xlu0 4
        %5722 = vperm.xlu0 %5721, %v904
        %v5723 = vpop.permute.xlu0 %5722
        %5725 = vset.pattern.permute.xlu0 4
        %5726 = vperm.xlu0 %5725, %v905
        %v5727 = vpop.permute.xlu0 %5726
        %5729 = vset.pattern.permute.xlu0 4
        %5730 = vperm.xlu0 %5729, %v906
        %v5731 = vpop.permute.xlu0 %5730
        %5733 = vset.pattern.permute.xlu0 4
        %5734 = vperm.xlu0 %5733, %v907
        %v5735 = vpop.permute.xlu0 %5734
        %5737 = vset.pattern.permute.xlu0 4
        %5738 = vperm.xlu0 %5737, %v908
        %v5739 = vpop.permute.xlu0 %5738
        %5741 = vset.pattern.permute.xlu0 4
        %5742 = vperm.xlu0 %5741, %v909
        %v5743 = vpop.permute.xlu0 %5742
        %v5745 = vmul.f32 %v4641, %v5695
        %v5746 = vmul.f32 %v4647, %v5699
        %v5747 = vmul.f32 %v4653, %v5703
        %v5748 = vmul.f32 %v4659, %v5707
        %v5749 = vmul.f32 %v4665, %v5711
        %v5750 = vmul.f32 %v4671, %v5715
        %v5751 = vmul.f32 %v4677, %v5719
        %v5752 = vmul.f32 %v4683, %v5723
        %v5753 = vmul.f32 %v4689, %v5727
        %v5754 = vmul.f32 %v4695, %v5731
        %v5755 = vmul.f32 %v4701, %v5735
        %v5756 = vmul.f32 %v4707, %v5739
        %v5757 = vmul.f32 %v4713, %v5743
        %vm5758 = vcmask 39936
        %v5759 = vsel %vm5758, %v897, 0
        %v5761 = vsel %vm5758, %v898, 0
        %v5763 = vsel %vm5758, %v899, 0
        %v5765 = vsel %vm5758, %v900, 0
        %v5767 = vsel %vm5758, %v901, 0
        %v5769 = vsel %vm5758, %v902, 0
        %v5771 = vsel %vm5758, %v903, 0
        %v5773 = vsel %vm5758, %v904, 0
        %v5775 = vsel %vm5758, %v905, 0
        %v5777 = vsel %vm5758, %v906, 0
        %v5779 = vsel %vm5758, %v907, 0
        %v5781 = vsel %vm5758, %v908, 0
        %v5783 = vsel %vm5758, %v909, 0
        %vm5785 = vcmask 1044480
        %v5787 = vsel %vm5785, %v5419, 0
        %5789 = vmatprep.subr.mxu0 0.0
        %5790 = vmatpush1.msra.mxu0 %v5787
        %5791 = vmatprep.subr.mxu0 0.0
        %5792 = vmatpush1.msra.mxu0 0.0
        %5793 = vmatprep.subr.mxu0 0.0
        %5794 = vmatpush1.msra.mxu0 0.0
        %5795 = vmatprep.subr.mxu0 0.0
        %5796 = vmatpush1.msra.mxu0 0.0
        %5797 = vmatprep.subr.mxu0 0.0
        %5798 = vmatpush1.msra.mxu0 0.0
        %5799 = vmatprep.subr.mxu0 0.0
        %5800 = vmatpush1.msra.mxu0 0.0
        %5801 = vmatprep.subr.mxu0 0.0
        %5802 = vmatpush1.msra.mxu0 0.0
        %5803 = vmatprep.subr.mxu0 0.0
        %5804 = vmatpush1.msra.mxu0 0.0
        %5805 = vmatprep.subr.mxu0 0.0
        %5806 = vmatpush1.msra.mxu0 0.0
        %5807 = vmatprep.subr.mxu0 0.0
        %5808 = vmatpush1.msra.mxu0 0.0
        %5809 = vmatprep.subr.mxu0 0.0
        %5810 = vmatpush1.msra.mxu0 0.0
        %5811 = vmatprep.subr.mxu0 0.0
        %5812 = vmatpush1.msra.mxu0 0.0
        %5813 = vmatprep.subr.mxu0 0.0
        %5814 = vmatpush1.msra.mxu0 0.0
        %5815 = vmatprep.subr.mxu0 0.0
        %5816 = vmatpush1.msra.mxu0 0.0
        %5817 = vmatprep.subr.mxu0 0.0
        %5818 = vmatpush1.msra.mxu0 0.0
        %5819 = vmatprep.subr.mxu0 0.0
        %5820 = vmatpush1.msra.mxu0 0.0
        %5821 = vmatprep.subr.mxu0 0.0
        %5822 = vmatpush1.msra.mxu0 0.0
        %5823 = vmatprep.subr.mxu0 0.0
        %5824 = vmatpush1.msra.mxu0 0.0
        %5825 = vmatprep.subr.mxu0 0.0
        %5826 = vmatpush1.msra.mxu0 0.0
        %5827 = vmatprep.subr.mxu0 0.0
        %5828 = vmatpush1.msra.mxu0 0.0
        %5829 = vmatprep.subr.mxu0 0.0
        %5830 = vmatpush1.msra.mxu0 0.0
        %5831 = vmatprep.subr.mxu0 0.0
        %5832 = vmatpush1.msra.mxu0 0.0
        %5833 = vmatprep.subr.mxu0 0.0
        %5834 = vmatpush1.msra.mxu0 0.0
        %5835 = vmatprep.subr.mxu0 0.0
        %5836 = vmatpush1.msra.mxu0 0.0
        %5837 = vmatprep.subr.mxu0 0.0
        %5838 = vmatpush1.msra.mxu0 0.0
        %5839 = vmatprep.subr.mxu0 0.0
        %5840 = vmatpush1.msra.mxu0 0.0
        %5841 = vmatprep.subr.mxu0 0.0
        %5842 = vmatpush1.msra.mxu0 0.0
        %5843 = vmatprep.subr.mxu0 0.0
        %5844 = vmatpush1.msra.mxu0 0.0
        %5845 = vmatprep.subr.mxu0 0.0
        %5846 = vmatpush1.msra.mxu0 0.0
        %5847 = vmatprep.subr.mxu0 0.0
        %5848 = vmatpush1.msra.mxu0 0.0
        %5849 = vmatprep.subr.mxu0 0.0
        %5850 = vmatpush1.msra.mxu0 0.0
        %5851 = vmatprep.subr.mxu0 0.0
        %5852 = vmatpush1.msra.mxu0 0.0
        %5853 = vmatprep.mubr.f32.mxu0 0.0
        %5854 = vmatmul.mubr.f32.gmra.mrb[0].mxu0 %v5759
        %v5855 = vpop.f32.mrb[0].mxu0
        %v5856 = vadd.f32 %v5485, %v5855
        %v5857 = vpop.f32.mrb[0].mxu0
        %5858 = vmatprep.mubr.f32.mxu0 0.0
        %5859 = vmatmul.mubr.f32.gmra.mrb[0].mxu0 %v5761
        %v5860 = vpop.f32.mrb[0].mxu0
        %v5861 = vadd.f32 %v5486, %v5860
        %v5862 = vpop.f32.mrb[0].mxu0
        %5863 = vmatprep.mubr.f32.mxu0 0.0
        %5864 = vmatmul.mubr.f32.gmra.mrb[0].mxu0 %v5763
        %v5865 = vpop.f32.mrb[0].mxu0
        %v5866 = vadd.f32 %v5487, %v5865
        %v5867 = vpop.f32.mrb[0].mxu0
        %5868 = vmatprep.mubr.f32.mxu0 0.0
        %5869 = vmatmul.mubr.f32.gmra.mrb[0].mxu0 %v5765
        %v5870 = vpop.f32.mrb[0].mxu0
        %v5871 = vadd.f32 %v5488, %v5870
        %v5872 = vpop.f32.mrb[0].mxu0
        %5873 = vmatprep.mubr.f32.mxu0 0.0
        %5874 = vmatmul.mubr.f32.gmra.mrb[0].mxu0 %v5767
        %v5875 = vpop.f32.mrb[0].mxu0
        %v5876 = vadd.f32 %v5489, %v5875
        %v5877 = vpop.f32.mrb[0].mxu0
        %5878 = vmatprep.mubr.f32.mxu0 0.0
        %5879 = vmatmul.mubr.f32.gmra.mrb[0].mxu0 %v5769
        %v5880 = vpop.f32.mrb[0].mxu0
        %v5881 = vadd.f32 %v5490, %v5880
        %v5882 = vpop.f32.mrb[0].mxu0
        %5883 = vmatprep.mubr.f32.mxu0 0.0
        %5884 = vmatmul.mubr.f32.gmra.mrb[0].mxu0 %v5771
        %v5885 = vpop.f32.mrb[0].mxu0
        %v5886 = vadd.f32 %v5491, %v5885
        %v5887 = vpop.f32.mrb[0].mxu0
        %5888 = vmatprep.mubr.f32.mxu0 0.0
        %5889 = vmatmul.mubr.f32.gmra.mrb[0].mxu0 %v5773
        %v5890 = vpop.f32.mrb[0].mxu0
        %v5891 = vadd.f32 %v5492, %v5890
        %v5892 = vpop.f32.mrb[0].mxu0
        %5893 = vmatprep.mubr.f32.mxu0 0.0
        %5894 = vmatmul.mubr.f32.gmra.mrb[0].mxu0 %v5775
        %v5895 = vpop.f32.mrb[0].mxu0
        %v5896 = vadd.f32 %v5493, %v5895
        %v5897 = vpop.f32.mrb[0].mxu0
        %5898 = vmatprep.mubr.f32.mxu0 0.0
        %5899 = vmatmul.mubr.f32.gmra.mrb[0].mxu0 %v5777
        %v5900 = vpop.f32.mrb[0].mxu0
        %v5901 = vadd.f32 %v5494, %v5900
        %v5902 = vpop.f32.mrb[0].mxu0
        %5903 = vmatprep.mubr.f32.mxu0 0.0
        %5904 = vmatmul.mubr.f32.gmra.mrb[0].mxu0 %v5779
        %v5905 = vpop.f32.mrb[0].mxu0
        %v5906 = vadd.f32 %v5495, %v5905
        %v5907 = vpop.f32.mrb[0].mxu0
        %5908 = vmatprep.mubr.f32.mxu0 0.0
        %5909 = vmatmul.mubr.f32.gmra.mrb[0].mxu0 %v5781
        %v5910 = vpop.f32.mrb[0].mxu0
        %v5911 = vadd.f32 %v5496, %v5910
        %v5912 = vpop.f32.mrb[0].mxu0
        %5913 = vmatprep.mubr.f32.mxu0 0.0
        %5914 = vmatmul.mubr.f32.gmra.mrb[0].mxu0 %v5783
        %v5915 = vpop.f32.mrb[0].mxu0
        %v5916 = vadd.f32 %v5497, %v5915
        %v5917 = vpop.f32.mrb[0].mxu0
        %5918 = vdwg.mxu0
        %v5919 = vadd.f32 %v5550, %v5615
        %v5920 = vadd.f32 %v5551, %v5616
        %v5921 = vadd.f32 %v5552, %v5617
        %v5922 = vadd.f32 %v5553, %v5618
        %v5923 = vadd.f32 %v5554, %v5619
        %v5924 = vadd.f32 %v5555, %v5620
        %v5925 = vadd.f32 %v5556, %v5621
        %v5926 = vadd.f32 %v5557, %v5622
        %v5927 = vadd.f32 %v5558, %v5623
        %v5928 = vadd.f32 %v5559, %v5624
        %v5929 = vadd.f32 %v5560, %v5625
        %v5930 = vadd.f32 %v5561, %v5626
        %v5931 = vadd.f32 %v5562, %v5627
        %v5932 = vadd.f32 %v5680, %v5745
        %v5933 = vadd.f32 %v5681, %v5746
        %v5934 = vadd.f32 %v5682, %v5747
        %v5935 = vadd.f32 %v5683, %v5748
        %v5936 = vadd.f32 %v5684, %v5749
        %v5937 = vadd.f32 %v5685, %v5750
        %v5938 = vadd.f32 %v5686, %v5751
        %v5939 = vadd.f32 %v5687, %v5752
        %v5940 = vadd.f32 %v5688, %v5753
        %v5941 = vadd.f32 %v5689, %v5754
        %v5942 = vadd.f32 %v5690, %v5755
        %v5943 = vadd.f32 %v5691, %v5756
        %v5944 = vadd.f32 %v5692, %v5757
        %v5945 = vadd.f32 %v5856, %v5919
        %v5946 = vadd.f32 %v5861, %v5920
        %v5947 = vadd.f32 %v5866, %v5921
        %v5948 = vadd.f32 %v5871, %v5922
        %v5949 = vadd.f32 %v5876, %v5923
        %v5950 = vadd.f32 %v5881, %v5924
        %v5951 = vadd.f32 %v5886, %v5925
        %v5952 = vadd.f32 %v5891, %v5926
        %v5953 = vadd.f32 %v5896, %v5927
        %v5954 = vadd.f32 %v5901, %v5928
        %v5955 = vadd.f32 %v5906, %v5929
        %v5956 = vadd.f32 %v5911, %v5930
        %v5957 = vadd.f32 %v5916, %v5931
        %v5958 = vadd.f32 %v5945, %v5932
        %v5959 = vadd.f32 %v5946, %v5933
        %v5960 = vadd.f32 %v5947, %v5934
        %v5961 = vadd.f32 %v5948, %v5935
        %v5962 = vadd.f32 %v5949, %v5936
        %v5963 = vadd.f32 %v5950, %v5937
        %v5964 = vadd.f32 %v5951, %v5938
        %v5965 = vadd.f32 %v5952, %v5939
        %v5966 = vadd.f32 %v5953, %v5940
        %v5967 = vadd.f32 %v5954, %v5941
        %v5968 = vadd.f32 %v5955, %v5942
        %v5969 = vadd.f32 %v5956, %v5943
        %v5970 = vadd.f32 %v5957, %v5944
        %v5971 = vmax.f32 %v5958, 0.0
        %v5972 = vmax.f32 %v5959, 0.0
        %v5973 = vmax.f32 %v5960, 0.0
        %v5974 = vmax.f32 %v5961, 0.0
        %v5975 = vmax.f32 %v5962, 0.0
        %v5976 = vmax.f32 %v5963, 0.0
        %v5977 = vmax.f32 %v5964, 0.0
        %v5978 = vmax.f32 %v5965, 0.0
        %v5979 = vmax.f32 %v5966, 0.0
        %v5980 = vmax.f32 %v5967, 0.0
        %v5981 = vmax.f32 %v5968, 0.0
        %v5982 = vmax.f32 %v5969, 0.0
        %v5983 = vmax.f32 %v5970, 0.0
        %v5984 = vld [vmem:[#allocation2 + $0x28] sm:$0xff]
        %v5985 = vld [vmem:[#allocation2 + $0x98] sm:$0x3]
        %5987 = vset.pattern.permute.xlu0 0
        %5988 = vperm.xlu0 %5987, %v3985
        %v5989 = vpop.permute.xlu0 %5988
        %5992 = vset.pattern.permute.xlu0 0
        %5993 = vperm.xlu0 %5992, %v3990
        %v5994 = vpop.permute.xlu0 %5993
        %5997 = vset.pattern.permute.xlu0 0
        %5998 = vperm.xlu0 %5997, %v3995
        %v5999 = vpop.permute.xlu0 %5998
        %6002 = vset.pattern.permute.xlu0 0
        %6003 = vperm.xlu0 %6002, %v4000
        %v6004 = vpop.permute.xlu0 %6003
        %6007 = vset.pattern.permute.xlu0 0
        %6008 = vperm.xlu0 %6007, %v4005
        %v6009 = vpop.permute.xlu0 %6008
        %6012 = vset.pattern.permute.xlu0 0
        %6013 = vperm.xlu0 %6012, %v4010
        %v6014 = vpop.permute.xlu0 %6013
        %6017 = vset.pattern.permute.xlu0 0
        %6018 = vperm.xlu0 %6017, %v4015
        %v6019 = vpop.permute.xlu0 %6018
        %6022 = vset.pattern.permute.xlu0 0
        %6023 = vperm.xlu0 %6022, %v4020
        %v6024 = vpop.permute.xlu0 %6023
        %6027 = vset.pattern.permute.xlu0 0
        %6028 = vperm.xlu0 %6027, %v4025
        %v6029 = vpop.permute.xlu0 %6028
        %6032 = vset.pattern.permute.xlu0 0
        %6033 = vperm.xlu0 %6032, %v4030
        %v6034 = vpop.permute.xlu0 %6033
        %6037 = vset.pattern.permute.xlu0 0
        %6038 = vperm.xlu0 %6037, %v4035
        %v6039 = vpop.permute.xlu0 %6038
        %6042 = vset.pattern.permute.xlu0 0
        %6043 = vperm.xlu0 %6042, %v4040
        %v6044 = vpop.permute.xlu0 %6043
        %6047 = vset.pattern.permute.xlu0 0
        %6048 = vperm.xlu0 %6047, %v4045
        %v6049 = vpop.permute.xlu0 %6048
        %v6051 = vmul.f32 %v4643, %v5989
        %v6052 = vmul.f32 %v4649, %v5994
        %v6053 = vmul.f32 %v4655, %v5999
        %v6054 = vmul.f32 %v4661, %v6004
        %v6055 = vmul.f32 %v4667, %v6009
        %v6056 = vmul.f32 %v4673, %v6014
        %v6057 = vmul.f32 %v4679, %v6019
        %v6058 = vmul.f32 %v4685, %v6024
        %v6059 = vmul.f32 %v4691, %v6029
        %v6060 = vmul.f32 %v4697, %v6034
        %v6061 = vmul.f32 %v4703, %v6039
        %v6062 = vmul.f32 %v4709, %v6044
        %v6063 = vmul.f32 %v4715, %v6049
        %6064 = vset.pattern.permute.xlu0 1
        %6065 = vperm.xlu0 %6064, %v3985
        %v6066 = vpop.permute.xlu0 %6065
        %6068 = vset.pattern.permute.xlu0 1
        %6069 = vperm.xlu0 %6068, %v3990
        %v6070 = vpop.permute.xlu0 %6069
        %6072 = vset.pattern.permute.xlu0 1
        %6073 = vperm.xlu0 %6072, %v3995
        %v6074 = vpop.permute.xlu0 %6073
        %6076 = vset.pattern.permute.xlu0 1
        %6077 = vperm.xlu0 %6076, %v4000
        %v6078 = vpop.permute.xlu0 %6077
        %6080 = vset.pattern.permute.xlu0 1
        %6081 = vperm.xlu0 %6080, %v4005
        %v6082 = vpop.permute.xlu0 %6081
        %6084 = vset.pattern.permute.xlu0 1
        %6085 = vperm.xlu0 %6084, %v4010
        %v6086 = vpop.permute.xlu0 %6085
        %6088 = vset.pattern.permute.xlu0 1
        %6089 = vperm.xlu0 %6088, %v4015
        %v6090 = vpop.permute.xlu0 %6089
        %6092 = vset.pattern.permute.xlu0 1
        %6093 = vperm.xlu0 %6092, %v4020
        %v6094 = vpop.permute.xlu0 %6093
        %6096 = vset.pattern.permute.xlu0 1
        %6097 = vperm.xlu0 %6096, %v4025
        %v6098 = vpop.permute.xlu0 %6097
        %6100 = vset.pattern.permute.xlu0 1
        %6101 = vperm.xlu0 %6100, %v4030
        %v6102 = vpop.permute.xlu0 %6101
        %6104 = vset.pattern.permute.xlu0 1
        %6105 = vperm.xlu0 %6104, %v4035
        %v6106 = vpop.permute.xlu0 %6105
        %6108 = vset.pattern.permute.xlu0 1
        %6109 = vperm.xlu0 %6108, %v4040
        %v6110 = vpop.permute.xlu0 %6109
        %6112 = vset.pattern.permute.xlu0 1
        %6113 = vperm.xlu0 %6112, %v4045
        %v6114 = vpop.permute.xlu0 %6113
        %v6116 = vmul.f32 %v4784, %v6066
        %v6117 = vmul.f32 %v4790, %v6070
        %v6118 = vmul.f32 %v4796, %v6074
        %v6119 = vmul.f32 %v4802, %v6078
        %v6120 = vmul.f32 %v4808, %v6082
        %v6121 = vmul.f32 %v4814, %v6086
        %v6122 = vmul.f32 %v4820, %v6090
        %v6123 = vmul.f32 %v4826, %v6094
        %v6124 = vmul.f32 %v4832, %v6098
        %v6125 = vmul.f32 %v4838, %v6102
        %v6126 = vmul.f32 %v4844, %v6106
        %v6127 = vmul.f32 %v4850, %v6110
        %v6128 = vmul.f32 %v4856, %v6114
        %6129 = vset.pattern.permute.xlu0 2
        %6130 = vperm.xlu0 %6129, %v3985
        %v6131 = vpop.permute.xlu0 %6130
        %6133 = vset.pattern.permute.xlu0 2
        %6134 = vperm.xlu0 %6133, %v3990
        %v6135 = vpop.permute.xlu0 %6134
        %6137 = vset.pattern.permute.xlu0 2
        %6138 = vperm.xlu0 %6137, %v3995
        %v6139 = vpop.permute.xlu0 %6138
        %6141 = vset.pattern.permute.xlu0 2
        %6142 = vperm.xlu0 %6141, %v4000
        %v6143 = vpop.permute.xlu0 %6142
        %6145 = vset.pattern.permute.xlu0 2
        %6146 = vperm.xlu0 %6145, %v4005
        %v6147 = vpop.permute.xlu0 %6146
        %6149 = vset.pattern.permute.xlu0 2
        %6150 = vperm.xlu0 %6149, %v4010
        %v6151 = vpop.permute.xlu0 %6150
        %6153 = vset.pattern.permute.xlu0 2
        %6154 = vperm.xlu0 %6153, %v4015
        %v6155 = vpop.permute.xlu0 %6154
        %6157 = vset.pattern.permute.xlu0 2
        %6158 = vperm.xlu0 %6157, %v4020
        %v6159 = vpop.permute.xlu0 %6158
        %6161 = vset.pattern.permute.xlu0 2
        %6162 = vperm.xlu0 %6161, %v4025
        %v6163 = vpop.permute.xlu0 %6162
        %6165 = vset.pattern.permute.xlu0 2
        %6166 = vperm.xlu0 %6165, %v4030
        %v6167 = vpop.permute.xlu0 %6166
        %6169 = vset.pattern.permute.xlu0 2
        %6170 = vperm.xlu0 %6169, %v4035
        %v6171 = vpop.permute.xlu0 %6170
        %6173 = vset.pattern.permute.xlu0 2
        %6174 = vperm.xlu0 %6173, %v4040
        %v6175 = vpop.permute.xlu0 %6174
        %6177 = vset.pattern.permute.xlu0 2
        %6178 = vperm.xlu0 %6177, %v4045
        %v6179 = vpop.permute.xlu0 %6178
        %v6181 = vmul.f32 %v4786, %v6131
        %v6182 = vmul.f32 %v4792, %v6135
        %v6183 = vmul.f32 %v4798, %v6139
        %v6184 = vmul.f32 %v4804, %v6143
        %v6185 = vmul.f32 %v4810, %v6147
        %v6186 = vmul.f32 %v4816, %v6151
        %v6187 = vmul.f32 %v4822, %v6155
        %v6188 = vmul.f32 %v4828, %v6159
        %v6189 = vmul.f32 %v4834, %v6163
        %v6190 = vmul.f32 %v4840, %v6167
        %v6191 = vmul.f32 %v4846, %v6171
        %v6192 = vmul.f32 %v4852, %v6175
        %v6193 = vmul.f32 %v4858, %v6179
        %6194 = vset.pattern.permute.xlu0 3
        %6195 = vperm.xlu0 %6194, %v3985
        %v6196 = vpop.permute.xlu0 %6195
        %6198 = vset.pattern.permute.xlu0 3
        %6199 = vperm.xlu0 %6198, %v3990
        %v6200 = vpop.permute.xlu0 %6199
        %6202 = vset.pattern.permute.xlu0 3
        %6203 = vperm.xlu0 %6202, %v3995
        %v6204 = vpop.permute.xlu0 %6203
        %6206 = vset.pattern.permute.xlu0 3
        %6207 = vperm.xlu0 %6206, %v4000
        %v6208 = vpop.permute.xlu0 %6207
        %6210 = vset.pattern.permute.xlu0 3
        %6211 = vperm.xlu0 %6210, %v4005
        %v6212 = vpop.permute.xlu0 %6211
        %6214 = vset.pattern.permute.xlu0 3
        %6215 = vperm.xlu0 %6214, %v4010
        %v6216 = vpop.permute.xlu0 %6215
        %6218 = vset.pattern.permute.xlu0 3
        %6219 = vperm.xlu0 %6218, %v4015
        %v6220 = vpop.permute.xlu0 %6219
        %6222 = vset.pattern.permute.xlu0 3
        %6223 = vperm.xlu0 %6222, %v4020
        %v6224 = vpop.permute.xlu0 %6223
        %6226 = vset.pattern.permute.xlu0 3
        %6227 = vperm.xlu0 %6226, %v4025
        %v6228 = vpop.permute.xlu0 %6227
        %6230 = vset.pattern.permute.xlu0 3
        %6231 = vperm.xlu0 %6230, %v4030
        %v6232 = vpop.permute.xlu0 %6231
        %6234 = vset.pattern.permute.xlu0 3
        %6235 = vperm.xlu0 %6234, %v4035
        %v6236 = vpop.permute.xlu0 %6235
        %6238 = vset.pattern.permute.xlu0 3
        %6239 = vperm.xlu0 %6238, %v4040
        %v6240 = vpop.permute.xlu0 %6239
        %6242 = vset.pattern.permute.xlu0 3
        %6243 = vperm.xlu0 %6242, %v4045
        %v6244 = vpop.permute.xlu0 %6243
        %v6246 = vmul.f32 %v4927, %v6196
        %v6247 = vmul.f32 %v4933, %v6200
        %v6248 = vmul.f32 %v4939, %v6204
        %v6249 = vmul.f32 %v4945, %v6208
        %v6250 = vmul.f32 %v4951, %v6212
        %v6251 = vmul.f32 %v4957, %v6216
        %v6252 = vmul.f32 %v4963, %v6220
        %v6253 = vmul.f32 %v4969, %v6224
        %v6254 = vmul.f32 %v4975, %v6228
        %v6255 = vmul.f32 %v4981, %v6232
        %v6256 = vmul.f32 %v4987, %v6236
        %v6257 = vmul.f32 %v4993, %v6240
        %v6258 = vmul.f32 %v4999, %v6244
        %6259 = vset.pattern.permute.xlu0 4
        %6260 = vperm.xlu0 %6259, %v3985
        %v6261 = vpop.permute.xlu0 %6260
        %6263 = vset.pattern.permute.xlu0 4
        %6264 = vperm.xlu0 %6263, %v3990
        %v6265 = vpop.permute.xlu0 %6264
        %6267 = vset.pattern.permute.xlu0 4
        %6268 = vperm.xlu0 %6267, %v3995
        %v6269 = vpop.permute.xlu0 %6268
        %6271 = vset.pattern.permute.xlu0 4
        %6272 = vperm.xlu0 %6271, %v4000
        %v6273 = vpop.permute.xlu0 %6272
        %6275 = vset.pattern.permute.xlu0 4
        %6276 = vperm.xlu0 %6275, %v4005
        %v6277 = vpop.permute.xlu0 %6276
        %6279 = vset.pattern.permute.xlu0 4
        %6280 = vperm.xlu0 %6279, %v4010
        %v6281 = vpop.permute.xlu0 %6280
        %6283 = vset.pattern.permute.xlu0 4
        %6284 = vperm.xlu0 %6283, %v4015
        %v6285 = vpop.permute.xlu0 %6284
        %6287 = vset.pattern.permute.xlu0 4
        %6288 = vperm.xlu0 %6287, %v4020
        %v6289 = vpop.permute.xlu0 %6288
        %6291 = vset.pattern.permute.xlu0 4
        %6292 = vperm.xlu0 %6291, %v4025
        %v6293 = vpop.permute.xlu0 %6292
        %6295 = vset.pattern.permute.xlu0 4
        %6296 = vperm.xlu0 %6295, %v4030
        %v6297 = vpop.permute.xlu0 %6296
        %6299 = vset.pattern.permute.xlu0 4
        %6300 = vperm.xlu0 %6299, %v4035
        %v6301 = vpop.permute.xlu0 %6300
        %6303 = vset.pattern.permute.xlu0 4
        %6304 = vperm.xlu0 %6303, %v4040
        %v6305 = vpop.permute.xlu0 %6304
        %6307 = vset.pattern.permute.xlu0 4
        %6308 = vperm.xlu0 %6307, %v4045
        %v6309 = vpop.permute.xlu0 %6308
        %v6311 = vmul.f32 %v4929, %v6261
        %v6312 = vmul.f32 %v4935, %v6265
        %v6313 = vmul.f32 %v4941, %v6269
        %v6314 = vmul.f32 %v4947, %v6273
        %v6315 = vmul.f32 %v4953, %v6277
        %v6316 = vmul.f32 %v4959, %v6281
        %v6317 = vmul.f32 %v4965, %v6285
        %v6318 = vmul.f32 %v4971, %v6289
        %v6319 = vmul.f32 %v4977, %v6293
        %v6320 = vmul.f32 %v4983, %v6297
        %v6321 = vmul.f32 %v4989, %v6301
        %v6322 = vmul.f32 %v4995, %v6305
        %v6323 = vmul.f32 %v5001, %v6309
        %6324 = vset.pattern.permute.xlu0 5
        %6325 = vperm.xlu0 %6324, %v3985
        %v6326 = vpop.permute.xlu0 %6325
        %6328 = vset.pattern.permute.xlu0 5
        %6329 = vperm.xlu0 %6328, %v3990
        %v6330 = vpop.permute.xlu0 %6329
        %6332 = vset.pattern.permute.xlu0 5
        %6333 = vperm.xlu0 %6332, %v3995
        %v6334 = vpop.permute.xlu0 %6333
        %6336 = vset.pattern.permute.xlu0 5
        %6337 = vperm.xlu0 %6336, %v4000
        %v6338 = vpop.permute.xlu0 %6337
        %6340 = vset.pattern.permute.xlu0 5
        %6341 = vperm.xlu0 %6340, %v4005
        %v6342 = vpop.permute.xlu0 %6341
        %6344 = vset.pattern.permute.xlu0 5
        %6345 = vperm.xlu0 %6344, %v4010
        %v6346 = vpop.permute.xlu0 %6345
        %6348 = vset.pattern.permute.xlu0 5
        %6349 = vperm.xlu0 %6348, %v4015
        %v6350 = vpop.permute.xlu0 %6349
        %6352 = vset.pattern.permute.xlu0 5
        %6353 = vperm.xlu0 %6352, %v4020
        %v6354 = vpop.permute.xlu0 %6353
        %6356 = vset.pattern.permute.xlu0 5
        %6357 = vperm.xlu0 %6356, %v4025
        %v6358 = vpop.permute.xlu0 %6357
        %6360 = vset.pattern.permute.xlu0 5
        %6361 = vperm.xlu0 %6360, %v4030
        %v6362 = vpop.permute.xlu0 %6361
        %6364 = vset.pattern.permute.xlu0 5
        %6365 = vperm.xlu0 %6364, %v4035
        %v6366 = vpop.permute.xlu0 %6365
        %6368 = vset.pattern.permute.xlu0 5
        %6369 = vperm.xlu0 %6368, %v4040
        %v6370 = vpop.permute.xlu0 %6369
        %6372 = vset.pattern.permute.xlu0 5
        %6373 = vperm.xlu0 %6372, %v4045
        %v6374 = vpop.permute.xlu0 %6373
        %v6376 = vmul.f32 %v5070, %v6326
        %v6377 = vmul.f32 %v5076, %v6330
        %v6378 = vmul.f32 %v5082, %v6334
        %v6379 = vmul.f32 %v5088, %v6338
        %v6380 = vmul.f32 %v5094, %v6342
        %v6381 = vmul.f32 %v5100, %v6346
        %v6382 = vmul.f32 %v5106, %v6350
        %v6383 = vmul.f32 %v5112, %v6354
        %v6384 = vmul.f32 %v5118, %v6358
        %v6385 = vmul.f32 %v5124, %v6362
        %v6386 = vmul.f32 %v5130, %v6366
        %v6387 = vmul.f32 %v5136, %v6370
        %v6388 = vmul.f32 %v5142, %v6374
        %6389 = vset.pattern.permute.xlu0 6
        %6390 = vperm.xlu0 %6389, %v3985
        %v6391 = vpop.permute.xlu0 %6390
        %6393 = vset.pattern.permute.xlu0 6
        %6394 = vperm.xlu0 %6393, %v3990
        %v6395 = vpop.permute.xlu0 %6394
        %6397 = vset.pattern.permute.xlu0 6
        %6398 = vperm.xlu0 %6397, %v3995
        %v6399 = vpop.permute.xlu0 %6398
        %6401 = vset.pattern.permute.xlu0 6
        %6402 = vperm.xlu0 %6401, %v4000
        %v6403 = vpop.permute.xlu0 %6402
        %6405 = vset.pattern.permute.xlu0 6
        %6406 = vperm.xlu0 %6405, %v4005
        %v6407 = vpop.permute.xlu0 %6406
        %6409 = vset.pattern.permute.xlu0 6
        %6410 = vperm.xlu0 %6409, %v4010
        %v6411 = vpop.permute.xlu0 %6410
        %6413 = vset.pattern.permute.xlu0 6
        %6414 = vperm.xlu0 %6413, %v4015
        %v6415 = vpop.permute.xlu0 %6414
        %6417 = vset.pattern.permute.xlu0 6
        %6418 = vperm.xlu0 %6417, %v4020
        %v6419 = vpop.permute.xlu0 %6418
        %6421 = vset.pattern.permute.xlu0 6
        %6422 = vperm.xlu0 %6421, %v4025
        %v6423 = vpop.permute.xlu0 %6422
        %6425 = vset.pattern.permute.xlu0 6
        %6426 = vperm.xlu0 %6425, %v4030
        %v6427 = vpop.permute.xlu0 %6426
        %6429 = vset.pattern.permute.xlu0 6
        %6430 = vperm.xlu0 %6429, %v4035
        %v6431 = vpop.permute.xlu0 %6430
        %6433 = vset.pattern.permute.xlu0 6
        %6434 = vperm.xlu0 %6433, %v4040
        %v6435 = vpop.permute.xlu0 %6434
        %6437 = vset.pattern.permute.xlu0 6
        %6438 = vperm.xlu0 %6437, %v4045
        %v6439 = vpop.permute.xlu0 %6438
        %v6441 = vmul.f32 %v5072, %v6391
        %v6442 = vmul.f32 %v5078, %v6395
        %v6443 = vmul.f32 %v5084, %v6399
        %v6444 = vmul.f32 %v5090, %v6403
        %v6445 = vmul.f32 %v5096, %v6407
        %v6446 = vmul.f32 %v5102, %v6411
        %v6447 = vmul.f32 %v5108, %v6415
        %v6448 = vmul.f32 %v5114, %v6419
        %v6449 = vmul.f32 %v5120, %v6423
        %v6450 = vmul.f32 %v5126, %v6427
        %v6451 = vmul.f32 %v5132, %v6431
        %v6452 = vmul.f32 %v5138, %v6435
        %v6453 = vmul.f32 %v5144, %v6439
        %6454 = vset.pattern.permute.xlu0 7
        %6455 = vperm.xlu0 %6454, %v3985
        %v6456 = vpop.permute.xlu0 %6455
        %6458 = vset.pattern.permute.xlu0 7
        %6459 = vperm.xlu0 %6458, %v3990
        %v6460 = vpop.permute.xlu0 %6459
        %6462 = vset.pattern.permute.xlu0 7
        %6463 = vperm.xlu0 %6462, %v3995
        %v6464 = vpop.permute.xlu0 %6463
        %6466 = vset.pattern.permute.xlu0 7
        %6467 = vperm.xlu0 %6466, %v4000
        %v6468 = vpop.permute.xlu0 %6467
        %6470 = vset.pattern.permute.xlu0 7
        %6471 = vperm.xlu0 %6470, %v4005
        %v6472 = vpop.permute.xlu0 %6471
        %6474 = vset.pattern.permute.xlu0 7
        %6475 = vperm.xlu0 %6474, %v4010
        %v6476 = vpop.permute.xlu0 %6475
        %6478 = vset.pattern.permute.xlu0 7
        %6479 = vperm.xlu0 %6478, %v4015
        %v6480 = vpop.permute.xlu0 %6479
        %6482 = vset.pattern.permute.xlu0 7
        %6483 = vperm.xlu0 %6482, %v4020
        %v6484 = vpop.permute.xlu0 %6483
        %6486 = vset.pattern.permute.xlu0 7
        %6487 = vperm.xlu0 %6486, %v4025
        %v6488 = vpop.permute.xlu0 %6487
        %6490 = vset.pattern.permute.xlu0 7
        %6491 = vperm.xlu0 %6490, %v4030
        %v6492 = vpop.permute.xlu0 %6491
        %6494 = vset.pattern.permute.xlu0 7
        %6495 = vperm.xlu0 %6494, %v4035
        %v6496 = vpop.permute.xlu0 %6495
        %6498 = vset.pattern.permute.xlu0 7
        %6499 = vperm.xlu0 %6498, %v4040
        %v6500 = vpop.permute.xlu0 %6499
        %6502 = vset.pattern.permute.xlu0 7
        %6503 = vperm.xlu0 %6502, %v4045
        %v6504 = vpop.permute.xlu0 %6503
        %v6506 = vmul.f32 %v5213, %v6456
        %v6507 = vmul.f32 %v5219, %v6460
        %v6508 = vmul.f32 %v5225, %v6464
        %v6509 = vmul.f32 %v5231, %v6468
        %v6510 = vmul.f32 %v5237, %v6472
        %v6511 = vmul.f32 %v5243, %v6476
        %v6512 = vmul.f32 %v5249, %v6480
        %v6513 = vmul.f32 %v5255, %v6484
        %v6514 = vmul.f32 %v5261, %v6488
        %v6515 = vmul.f32 %v5267, %v6492
        %v6516 = vmul.f32 %v5273, %v6496
        %v6517 = vmul.f32 %v5279, %v6500
        %v6518 = vmul.f32 %v5285, %v6504
        %6519 = vset.pattern.permute.xlu0 8
        %6520 = vperm.xlu0 %6519, %v3985
        %v6521 = vpop.permute.xlu0 %6520
        %6523 = vset.pattern.permute.xlu0 8
        %6524 = vperm.xlu0 %6523, %v3990
        %v6525 = vpop.permute.xlu0 %6524
        %6527 = vset.pattern.permute.xlu0 8
        %6528 = vperm.xlu0 %6527, %v3995
        %v6529 = vpop.permute.xlu0 %6528
        %6531 = vset.pattern.permute.xlu0 8
        %6532 = vperm.xlu0 %6531, %v4000
        %v6533 = vpop.permute.xlu0 %6532
        %6535 = vset.pattern.permute.xlu0 8
        %6536 = vperm.xlu0 %6535, %v4005
        %v6537 = vpop.permute.xlu0 %6536
        %6539 = vset.pattern.permute.xlu0 8
        %6540 = vperm.xlu0 %6539, %v4010
        %v6541 = vpop.permute.xlu0 %6540
        %6543 = vset.pattern.permute.xlu0 8
        %6544 = vperm.xlu0 %6543, %v4015
        %v6545 = vpop.permute.xlu0 %6544
        %6547 = vset.pattern.permute.xlu0 8
        %6548 = vperm.xlu0 %6547, %v4020
        %v6549 = vpop.permute.xlu0 %6548
        %6551 = vset.pattern.permute.xlu0 8
        %6552 = vperm.xlu0 %6551, %v4025
        %v6553 = vpop.permute.xlu0 %6552
        %6555 = vset.pattern.permute.xlu0 8
        %6556 = vperm.xlu0 %6555, %v4030
        %v6557 = vpop.permute.xlu0 %6556
        %6559 = vset.pattern.permute.xlu0 8
        %6560 = vperm.xlu0 %6559, %v4035
        %v6561 = vpop.permute.xlu0 %6560
        %6563 = vset.pattern.permute.xlu0 8
        %6564 = vperm.xlu0 %6563, %v4040
        %v6565 = vpop.permute.xlu0 %6564
        %6567 = vset.pattern.permute.xlu0 8
        %6568 = vperm.xlu0 %6567, %v4045
        %v6569 = vpop.permute.xlu0 %6568
        %v6571 = vmul.f32 %v5215, %v6521
        %v6572 = vmul.f32 %v5221, %v6525
        %v6573 = vmul.f32 %v5227, %v6529
        %v6574 = vmul.f32 %v5233, %v6533
        %v6575 = vmul.f32 %v5239, %v6537
        %v6576 = vmul.f32 %v5245, %v6541
        %v6577 = vmul.f32 %v5251, %v6545
        %v6578 = vmul.f32 %v5257, %v6549
        %v6579 = vmul.f32 %v5263, %v6553
        %v6580 = vmul.f32 %v5269, %v6557
        %v6581 = vmul.f32 %v5275, %v6561
        %v6582 = vmul.f32 %v5281, %v6565
        %v6583 = vmul.f32 %v5287, %v6569
        %6584 = vset.pattern.permute.xlu0 9
        %6585 = vperm.xlu0 %6584, %v3985
        %v6586 = vpop.permute.xlu0 %6585
        %6588 = vset.pattern.permute.xlu0 9
        %6589 = vperm.xlu0 %6588, %v3990
        %v6590 = vpop.permute.xlu0 %6589
        %6592 = vset.pattern.permute.xlu0 9
        %6593 = vperm.xlu0 %6592, %v3995
        %v6594 = vpop.permute.xlu0 %6593
        %6596 = vset.pattern.permute.xlu0 9
        %6597 = vperm.xlu0 %6596, %v4000
        %v6598 = vpop.permute.xlu0 %6597
        %6600 = vset.pattern.permute.xlu0 9
        %6601 = vperm.xlu0 %6600, %v4005
        %v6602 = vpop.permute.xlu0 %6601
        %6604 = vset.pattern.permute.xlu0 9
        %6605 = vperm.xlu0 %6604, %v4010
        %v6606 = vpop.permute.xlu0 %6605
        %6608 = vset.pattern.permute.xlu0 9
        %6609 = vperm.xlu0 %6608, %v4015
        %v6610 = vpop.permute.xlu0 %6609
        %6612 = vset.pattern.permute.xlu0 9
        %6613 = vperm.xlu0 %6612, %v4020
        %v6614 = vpop.permute.xlu0 %6613
        %6616 = vset.pattern.permute.xlu0 9
        %6617 = vperm.xlu0 %6616, %v4025
        %v6618 = vpop.permute.xlu0 %6617
        %6620 = vset.pattern.permute.xlu0 9
        %6621 = vperm.xlu0 %6620, %v4030
        %v6622 = vpop.permute.xlu0 %6621
        %6624 = vset.pattern.permute.xlu0 9
        %6625 = vperm.xlu0 %6624, %v4035
        %v6626 = vpop.permute.xlu0 %6625
        %6628 = vset.pattern.permute.xlu0 9
        %6629 = vperm.xlu0 %6628, %v4040
        %v6630 = vpop.permute.xlu0 %6629
        %6632 = vset.pattern.permute.xlu0 9
        %6633 = vperm.xlu0 %6632, %v4045
        %v6634 = vpop.permute.xlu0 %6633
        %v6636 = vmul.f32 %v5356, %v6586
        %v6637 = vmul.f32 %v5361, %v6590
        %v6638 = vmul.f32 %v5366, %v6594
        %v6639 = vmul.f32 %v5371, %v6598
        %v6640 = vmul.f32 %v5376, %v6602
        %v6641 = vmul.f32 %v5381, %v6606
        %v6642 = vmul.f32 %v5386, %v6610
        %v6643 = vmul.f32 %v5391, %v6614
        %v6644 = vmul.f32 %v5396, %v6618
        %v6645 = vmul.f32 %v5401, %v6622
        %v6646 = vmul.f32 %v5406, %v6626
        %v6647 = vmul.f32 %v5411, %v6630
        %v6648 = vmul.f32 %v5416, %v6634
        %vm6649 = vcmask 80896
        %v6650 = vsel %vm6649, %v3985, 0
        %v6652 = vsel %vm6649, %v3990, 0
        %v6654 = vsel %vm6649, %v3995, 0
        %v6656 = vsel %vm6649, %v4000, 0
        %v6658 = vsel %vm6649, %v4005, 0
        %v6660 = vsel %vm6649, %v4010, 0
        %v6662 = vsel %vm6649, %v4015, 0
        %v6664 = vsel %vm6649, %v4020, 0
        %v6666 = vsel %vm6649, %v4025, 0
        %v6668 = vsel %vm6649, %v4030, 0
        %v6670 = vsel %vm6649, %v4035, 0
        %v6672 = vsel %vm6649, %v4040, 0
        %v6674 = vsel %vm6649, %v4045, 0
        %vm6676 = vcmask 1041408
        %v6678 = vsel %vm6676, %v5985, 0
        %6680 = vmatprep.subr.mxu0 0.0
        %6681 = vmatpush1.msra.mxu0 %v5984
        %6682 = vmatprep.subr.mxu0 0.0
        %6683 = vmatpush1.msra.mxu0 %v6678
        %6684 = vmatprep.subr.mxu0 0.0
        %6685 = vmatpush1.msra.mxu0 0.0
        %6686 = vmatprep.subr.mxu0 0.0
        %6687 = vmatpush1.msra.mxu0 0.0
        %6688 = vmatprep.subr.mxu0 0.0
        %6689 = vmatpush1.msra.mxu0 0.0
        %6690 = vmatprep.subr.mxu0 0.0
        %6691 = vmatpush1.msra.mxu0 0.0
        %6692 = vmatprep.subr.mxu0 0.0
        %6693 = vmatpush1.msra.mxu0 0.0
        %6694 = vmatprep.subr.mxu0 0.0
        %6695 = vmatpush1.msra.mxu0 0.0
        %6696 = vmatprep.subr.mxu0 0.0
        %6697 = vmatpush1.msra.mxu0 0.0
        %6698 = vmatprep.subr.mxu0 0.0
        %6699 = vmatpush1.msra.mxu0 0.0
        %6700 = vmatprep.subr.mxu0 0.0
        %6701 = vmatpush1.msra.mxu0 0.0
        %6702 = vmatprep.subr.mxu0 0.0
        %6703 = vmatpush1.msra.mxu0 0.0
        %6704 = vmatprep.subr.mxu0 0.0
        %6705 = vmatpush1.msra.mxu0 0.0
        %6706 = vmatprep.subr.mxu0 0.0
        %6707 = vmatpush1.msra.mxu0 0.0
        %6708 = vmatprep.subr.mxu0 0.0
        %6709 = vmatpush1.msra.mxu0 0.0
        %6710 = vmatprep.subr.mxu0 0.0
        %6711 = vmatpush1.msra.mxu0 0.0
        %6712 = vmatprep.subr.mxu0 0.0
        %6713 = vmatpush1.msra.mxu0 0.0
        %6714 = vmatprep.subr.mxu0 0.0
        %6715 = vmatpush1.msra.mxu0 0.0
        %6716 = vmatprep.subr.mxu0 0.0
        %6717 = vmatpush1.msra.mxu0 0.0
        %6718 = vmatprep.subr.mxu0 0.0
        %6719 = vmatpush1.msra.mxu0 0.0
        %6720 = vmatprep.subr.mxu0 0.0
        %6721 = vmatpush1.msra.mxu0 0.0
        %6722 = vmatprep.subr.mxu0 0.0
        %6723 = vmatpush1.msra.mxu0 0.0
        %6724 = vmatprep.subr.mxu0 0.0
        %6725 = vmatpush1.msra.mxu0 0.0
        %6726 = vmatprep.subr.mxu0 0.0
        %6727 = vmatpush1.msra.mxu0 0.0
        %6728 = vmatprep.subr.mxu0 0.0
        %6729 = vmatpush1.msra.mxu0 0.0
        %6730 = vmatprep.subr.mxu0 0.0
        %6731 = vmatpush1.msra.mxu0 0.0
        %6732 = vmatprep.subr.mxu0 0.0
        %6733 = vmatpush1.msra.mxu0 0.0
        %6734 = vmatprep.subr.mxu0 0.0
        %6735 = vmatpush1.msra.mxu0 0.0
        %6736 = vmatprep.subr.mxu0 0.0
        %6737 = vmatpush1.msra.mxu0 0.0
        %6738 = vmatprep.subr.mxu0 0.0
        %6739 = vmatpush1.msra.mxu0 0.0
        %6740 = vmatprep.subr.mxu0 0.0
        %6741 = vmatpush1.msra.mxu0 0.0
        %6742 = vmatprep.subr.mxu0 0.0
        %6743 = vmatpush1.msra.mxu0 0.0
        %6744 = vmatprep.mubr.f32.mxu0 0.0
        %6745 = vmatmul.mubr.f32.gmra.mrb[0].mxu0 %v6650
        %v6746 = vpop.f32.mrb[0].mxu0
        %v6747 = vadd.f32 %v6051, %v6746
        %v6748 = vpop.f32.mrb[0].mxu0
        %6749 = vmatprep.mubr.f32.mxu0 0.0
        %6750 = vmatmul.mubr.f32.gmra.mrb[0].mxu0 %v6652
        %v6751 = vpop.f32.mrb[0].mxu0
        %v6752 = vadd.f32 %v6052, %v6751
        %v6753 = vpop.f32.mrb[0].mxu0
        %6754 = vmatprep.mubr.f32.mxu0 0.0
        %6755 = vmatmul.mubr.f32.gmra.mrb[0].mxu0 %v6654
        %v6756 = vpop.f32.mrb[0].mxu0
        %v6757 = vadd.f32 %v6053, %v6756
        %v6758 = vpop.f32.mrb[0].mxu0
        %6759 = vmatprep.mubr.f32.mxu0 0.0
        %6760 = vmatmul.mubr.f32.gmra.mrb[0].mxu0 %v6656
        %v6761 = vpop.f32.mrb[0].mxu0
        %v6762 = vadd.f32 %v6054, %v6761
        %v6763 = vpop.f32.mrb[0].mxu0
        %6764 = vmatprep.mubr.f32.mxu0 0.0
        %6765 = vmatmul.mubr.f32.gmra.mrb[0].mxu0 %v6658
        %v6766 = vpop.f32.mrb[0].mxu0
        %v6767 = vadd.f32 %v6055, %v6766
        %v6768 = vpop.f32.mrb[0].mxu0
        %6769 = vmatprep.mubr.f32.mxu0 0.0
        %6770 = vmatmul.mubr.f32.gmra.mrb[0].mxu0 %v6660
        %v6771 = vpop.f32.mrb[0].mxu0
        %v6772 = vadd.f32 %v6056, %v6771
        %v6773 = vpop.f32.mrb[0].mxu0
        %6774 = vmatprep.mubr.f32.mxu0 0.0
        %6775 = vmatmul.mubr.f32.gmra.mrb[0].mxu0 %v6662
        %v6776 = vpop.f32.mrb[0].mxu0
        %v6777 = vadd.f32 %v6057, %v6776
        %v6778 = vpop.f32.mrb[0].mxu0
        %6779 = vmatprep.mubr.f32.mxu0 0.0
        %6780 = vmatmul.mubr.f32.gmra.mrb[0].mxu0 %v6664
        %v6781 = vpop.f32.mrb[0].mxu0
        %v6782 = vadd.f32 %v6058, %v6781
        %v6783 = vpop.f32.mrb[0].mxu0
        %6784 = vmatprep.mubr.f32.mxu0 0.0
        %6785 = vmatmul.mubr.f32.gmra.mrb[0].mxu0 %v6666
        %v6786 = vpop.f32.mrb[0].mxu0
        %v6787 = vadd.f32 %v6059, %v6786
        %v6788 = vpop.f32.mrb[0].mxu0
        %6789 = vmatprep.mubr.f32.mxu0 0.0
        %6790 = vmatmul.mubr.f32.gmra.mrb[0].mxu0 %v6668
        %v6791 = vpop.f32.mrb[0].mxu0
        %v6792 = vadd.f32 %v6060, %v6791
        %v6793 = vpop.f32.mrb[0].mxu0
        %6794 = vmatprep.mubr.f32.mxu0 0.0
        %6795 = vmatmul.mubr.f32.gmra.mrb[0].mxu0 %v6670
        %v6796 = vpop.f32.mrb[0].mxu0
        %v6797 = vadd.f32 %v6061, %v6796
        %v6798 = vpop.f32.mrb[0].mxu0
        %6799 = vmatprep.mubr.f32.mxu0 0.0
        %6800 = vmatmul.mubr.f32.gmra.mrb[0].mxu0 %v6672
        %v6801 = vpop.f32.mrb[0].mxu0
        %v6802 = vadd.f32 %v6062, %v6801
        %v6803 = vpop.f32.mrb[0].mxu0
        %6804 = vmatprep.mubr.f32.mxu0 0.0
        %6805 = vmatmul.mubr.f32.gmra.mrb[0].mxu0 %v6674
        %v6806 = vpop.f32.mrb[0].mxu0
        %v6807 = vadd.f32 %v6063, %v6806
        %v6808 = vpop.f32.mrb[0].mxu0
        %6809 = vdwg.mxu0
        %v6810 = vadd.f32 %v6116, %v6181
        %v6811 = vadd.f32 %v6117, %v6182
        %v6812 = vadd.f32 %v6118, %v6183
        %v6813 = vadd.f32 %v6119, %v6184
        %v6814 = vadd.f32 %v6120, %v6185
        %v6815 = vadd.f32 %v6121, %v6186
        %v6816 = vadd.f32 %v6122, %v6187
        %v6817 = vadd.f32 %v6123, %v6188
        %v6818 = vadd.f32 %v6124, %v6189
        %v6819 = vadd.f32 %v6125, %v6190
        %v6820 = vadd.f32 %v6126, %v6191
        %v6821 = vadd.f32 %v6127, %v6192
        %v6822 = vadd.f32 %v6128, %v6193
        %v6823 = vadd.f32 %v6246, %v6311
        %v6824 = vadd.f32 %v6247, %v6312
        %v6825 = vadd.f32 %v6248, %v6313
        %v6826 = vadd.f32 %v6249, %v6314
        %v6827 = vadd.f32 %v6250, %v6315
        %v6828 = vadd.f32 %v6251, %v6316
        %v6829 = vadd.f32 %v6252, %v6317
        %v6830 = vadd.f32 %v6253, %v6318
        %v6831 = vadd.f32 %v6254, %v6319
        %v6832 = vadd.f32 %v6255, %v6320
        %v6833 = vadd.f32 %v6256, %v6321
        %v6834 = vadd.f32 %v6257, %v6322
        %v6835 = vadd.f32 %v6258, %v6323
        %v6836 = vadd.f32 %v6376, %v6441
        %v6837 = vadd.f32 %v6377, %v6442
        %v6838 = vadd.f32 %v6378, %v6443
        %v6839 = vadd.f32 %v6379, %v6444
        %v6840 = vadd.f32 %v6380, %v6445
        %v6841 = vadd.f32 %v6381, %v6446
        %v6842 = vadd.f32 %v6382, %v6447
        %v6843 = vadd.f32 %v6383, %v6448
        %v6844 = vadd.f32 %v6384, %v6449
        %v6845 = vadd.f32 %v6385, %v6450
        %v6846 = vadd.f32 %v6386, %v6451
        %v6847 = vadd.f32 %v6387, %v6452
        %v6848 = vadd.f32 %v6388, %v6453
        %v6849 = vadd.f32 %v6506, %v6571
        %v6850 = vadd.f32 %v6507, %v6572
        %v6851 = vadd.f32 %v6508, %v6573
        %v6852 = vadd.f32 %v6509, %v6574
        %v6853 = vadd.f32 %v6510, %v6575
        %v6854 = vadd.f32 %v6511, %v6576
        %v6855 = vadd.f32 %v6512, %v6577
        %v6856 = vadd.f32 %v6513, %v6578
        %v6857 = vadd.f32 %v6514, %v6579
        %v6858 = vadd.f32 %v6515, %v6580
        %v6859 = vadd.f32 %v6516, %v6581
        %v6860 = vadd.f32 %v6517, %v6582
        %v6861 = vadd.f32 %v6518, %v6583
        %v6862 = vadd.f32 %v6747, %v6810
        %v6863 = vadd.f32 %v6752, %v6811
        %v6864 = vadd.f32 %v6757, %v6812
        %v6865 = vadd.f32 %v6762, %v6813
        %v6866 = vadd.f32 %v6767, %v6814
        %v6867 = vadd.f32 %v6772, %v6815
        %v6868 = vadd.f32 %v6777, %v6816
        %v6869 = vadd.f32 %v6782, %v6817
        %v6870 = vadd.f32 %v6787, %v6818
        %v6871 = vadd.f32 %v6792, %v6819
        %v6872 = vadd.f32 %v6797, %v6820
        %v6873 = vadd.f32 %v6802, %v6821
        %v6874 = vadd.f32 %v6807, %v6822
        %v6875 = vadd.f32 %v6823, %v6836
        %v6876 = vadd.f32 %v6824, %v6837
        %v6877 = vadd.f32 %v6825, %v6838
        %v6878 = vadd.f32 %v6826, %v6839
        %v6879 = vadd.f32 %v6827, %v6840
        %v6880 = vadd.f32 %v6828, %v6841
        %v6881 = vadd.f32 %v6829, %v6842
        %v6882 = vadd.f32 %v6830, %v6843
        %v6883 = vadd.f32 %v6831, %v6844
        %v6884 = vadd.f32 %v6832, %v6845
        %v6885 = vadd.f32 %v6833, %v6846
        %v6886 = vadd.f32 %v6834, %v6847
        %v6887 = vadd.f32 %v6835, %v6848
        %v6888 = vadd.f32 %v6849, %v6636
        %v6889 = vadd.f32 %v6850, %v6637
        %v6890 = vadd.f32 %v6851, %v6638
        %v6891 = vadd.f32 %v6852, %v6639
        %v6892 = vadd.f32 %v6853, %v6640
        %v6893 = vadd.f32 %v6854, %v6641
        %v6894 = vadd.f32 %v6855, %v6642
        %v6895 = vadd.f32 %v6856, %v6643
        %v6896 = vadd.f32 %v6857, %v6644
        %v6897 = vadd.f32 %v6858, %v6645
        %v6898 = vadd.f32 %v6859, %v6646
        %v6899 = vadd.f32 %v6860, %v6647
        %v6900 = vadd.f32 %v6861, %v6648
        %v6901 = vadd.f32 %v6862, %v6875
        %v6902 = vadd.f32 %v6863, %v6876
        %v6903 = vadd.f32 %v6864, %v6877
        %v6904 = vadd.f32 %v6865, %v6878
        %v6905 = vadd.f32 %v6866, %v6879
        %v6906 = vadd.f32 %v6867, %v6880
        %v6907 = vadd.f32 %v6868, %v6881
        %v6908 = vadd.f32 %v6869, %v6882
        %v6909 = vadd.f32 %v6870, %v6883
        %v6910 = vadd.f32 %v6871, %v6884
        %v6911 = vadd.f32 %v6872, %v6885
        %v6912 = vadd.f32 %v6873, %v6886
        %v6913 = vadd.f32 %v6874, %v6887
        %v6914 = vadd.f32 %v6901, %v6888
        %v6915 = vadd.f32 %v6902, %v6889
        %v6916 = vadd.f32 %v6903, %v6890
        %v6917 = vadd.f32 %v6904, %v6891
        %v6918 = vadd.f32 %v6905, %v6892
        %v6919 = vadd.f32 %v6906, %v6893
        %v6920 = vadd.f32 %v6907, %v6894
        %v6921 = vadd.f32 %v6908, %v6895
        %v6922 = vadd.f32 %v6909, %v6896
        %v6923 = vadd.f32 %v6910, %v6897
        %v6924 = vadd.f32 %v6911, %v6898
        %v6925 = vadd.f32 %v6912, %v6899
        %v6926 = vadd.f32 %v6913, %v6900
        %v6927 = vmax.f32 %v6914, 0.0
        %v6928 = vmax.f32 %v6915, 0.0
        %v6929 = vmax.f32 %v6916, 0.0
        %v6930 = vmax.f32 %v6917, 0.0
        %v6931 = vmax.f32 %v6918, 0.0
        %v6932 = vmax.f32 %v6919, 0.0
        %v6933 = vmax.f32 %v6920, 0.0
        %v6934 = vmax.f32 %v6921, 0.0
        %v6935 = vmax.f32 %v6922, 0.0
        %v6936 = vmax.f32 %v6923, 0.0
        %v6937 = vmax.f32 %v6924, 0.0
        %v6938 = vmax.f32 %v6925, 0.0
        %v6939 = vmax.f32 %v6926, 0.0
        %v6940 = vld [vmem:[#allocation2 + $0x30] sm:$0xff]
        %v6941 = vld [vmem:[#allocation2 + $0xa0] sm:$0xff]
        %v6942 = vld [vmem:[#allocation2 + $0x110] sm:$0xff]
        %v6943 = vld [vmem:[#allocation2 + $0x180] sm:$0xff]
        %v6944 = vld [vmem:[#allocation2 + $0x1f0] sm:$0xff]
        %v6945 = vld [vmem:[#allocation2 + $0x260] sm:$0xff]
        %v6946 = vld [vmem:[#allocation2 + $0x2d0] sm:$0xff]
        %v6947 = vld [vmem:[#allocation2 + $0x340] sm:$0xff]
        %v6948 = vld [vmem:[#allocation2 + $0x3b0] sm:$0xff]
        %v6949 = vld [vmem:[#allocation2 + $0x420] sm:$0xff]
        %v6950 = vld [vmem:[#allocation2 + $0x490] sm:$0xff]
        %v6951 = vld [vmem:[#allocation2 + $0x500] sm:$0xff]
        %v6952 = vld [vmem:[#allocation2 + $0x570] sm:$0xff]
        %v6953 = vld [vmem:[#allocation2 + $0x5e0] sm:$0xff]
        %v6954 = vld [vmem:[#allocation2 + $0x650] sm:$0xff]
        %v6955 = vld [vmem:[#allocation2 + $0x6c0] sm:$0xff]
        %v6956 = vld [vmem:[#allocation2 + $0x38] ss:$0 sm:$0xff]
        %6957 = vmatprep.subr.mxu0 0.0
        %6958 = vmatpush1.msra.mxu0 %v6940
        %6959 = vmatprep.subr.mxu0 0.0
        %6960 = vmatpush1.msra.mxu0 %v6941
        %6961 = vmatprep.subr.mxu0 0.0
        %6962 = vmatpush1.msra.mxu0 %v6942
        %6963 = vmatprep.subr.mxu0 0.0
        %6964 = vmatpush1.msra.mxu0 %v6943
        %6965 = vmatprep.subr.mxu0 0.0
        %6966 = vmatpush1.msra.mxu0 %v6944
        %6967 = vmatprep.subr.mxu0 0.0
        %6968 = vmatpush1.msra.mxu0 %v6945
        %6969 = vmatprep.subr.mxu0 0.0
        %6970 = vmatpush1.msra.mxu0 %v6946
        %6971 = vmatprep.subr.mxu0 0.0
        %6972 = vmatpush1.msra.mxu0 %v6947
        %6973 = vmatprep.subr.mxu0 0.0
        %6974 = vmatpush1.msra.mxu0 %v6948
        %6975 = vmatprep.subr.mxu0 0.0
        %6976 = vmatpush1.msra.mxu0 %v6949
        %6977 = vmatprep.subr.mxu0 0.0
        %6978 = vmatpush1.msra.mxu0 %v6950
        %6979 = vmatprep.subr.mxu0 0.0
        %6980 = vmatpush1.msra.mxu0 %v6951
        %6981 = vmatprep.subr.mxu0 0.0
        %6982 = vmatpush1.msra.mxu0 %v6952
        %6983 = vmatprep.subr.mxu0 0.0
        %6984 = vmatpush1.msra.mxu0 %v6953
        %6985 = vmatprep.subr.mxu0 0.0
        %6986 = vmatpush1.msra.mxu0 %v6954
        %6987 = vmatprep.subr.mxu0 0.0
        %6988 = vmatpush1.msra.mxu0 %v6955
        %6989 = vmatprep.subr.mxu0 0.0
        %6990 = vmatpush1.msra.mxu0 0.0
        %6991 = vmatprep.subr.mxu0 0.0
        %6992 = vmatpush1.msra.mxu0 0.0
        %6993 = vmatprep.subr.mxu0 0.0
        %6994 = vmatpush1.msra.mxu0 0.0
        %6995 = vmatprep.subr.mxu0 0.0
        %6996 = vmatpush1.msra.mxu0 0.0
        %6997 = vmatprep.subr.mxu0 0.0
        %6998 = vmatpush1.msra.mxu0 0.0
        %6999 = vmatprep.subr.mxu0 0.0
        %7000 = vmatpush1.msra.mxu0 0.0
        %7001 = vmatprep.subr.mxu0 0.0
        %7002 = vmatpush1.msra.mxu0 0.0
        %7003 = vmatprep.subr.mxu0 0.0
        %7004 = vmatpush1.msra.mxu0 0.0
        %7005 = vmatprep.subr.mxu0 0.0
        %7006 = vmatpush1.msra.mxu0 0.0
        %7007 = vmatprep.subr.mxu0 0.0
        %7008 = vmatpush1.msra.mxu0 0.0
        %7009 = vmatprep.subr.mxu0 0.0
        %7010 = vmatpush1.msra.mxu0 0.0
        %7011 = vmatprep.subr.mxu0 0.0
        %7012 = vmatpush1.msra.mxu0 0.0
        %7013 = vmatprep.subr.mxu0 0.0
        %7014 = vmatpush1.msra.mxu0 0.0
        %7015 = vmatprep.subr.mxu0 0.0
        %7016 = vmatpush1.msra.mxu0 0.0
        %7017 = vmatprep.subr.mxu0 0.0
        %7018 = vmatpush1.msra.mxu0 0.0
        %7019 = vmatprep.subr.mxu0 0.0
        %7020 = vmatpush1.msra.mxu0 0.0
        %7021 = vmatprep.mubr.f32.mxu0 0.0
        %7022 = vmatmul.mubr.f32.gmra.mrb[0].mxu0 %v5971
        %v7023 = vpop.f32.mrb[0].mxu0
        %v7024 = vadd.f32 %v6956, %v7023
        %v7025 = vpop.f32.mrb[0].mxu0
        %7026 = vmatprep.mubr.f32.mxu0 0.0
        %7027 = vmatmul.mubr.f32.gmra.mrb[0].mxu0 %v5972
        %v7028 = vpop.f32.mrb[0].mxu0
        %v7029 = vadd.f32 %v6956, %v7028
        %v7030 = vpop.f32.mrb[0].mxu0
        %7031 = vmatprep.mubr.f32.mxu0 0.0
        %7032 = vmatmul.mubr.f32.gmra.mrb[0].mxu0 %v5973
        %v7033 = vpop.f32.mrb[0].mxu0
        %v7034 = vadd.f32 %v6956, %v7033
        %v7035 = vpop.f32.mrb[0].mxu0
        %7036 = vmatprep.mubr.f32.mxu0 0.0
        %7037 = vmatmul.mubr.f32.gmra.mrb[0].mxu0 %v5974
        %v7038 = vpop.f32.mrb[0].mxu0
        %v7039 = vadd.f32 %v6956, %v7038
        %v7040 = vpop.f32.mrb[0].mxu0
        %7041 = vmatprep.mubr.f32.mxu0 0.0
        %7042 = vmatmul.mubr.f32.gmra.mrb[0].mxu0 %v5975
        %v7043 = vpop.f32.mrb[0].mxu0
        %v7044 = vadd.f32 %v6956, %v7043
        %v7045 = vpop.f32.mrb[0].mxu0
        %7046 = vmatprep.mubr.f32.mxu0 0.0
        %7047 = vmatmul.mubr.f32.gmra.mrb[0].mxu0 %v5976
        %v7048 = vpop.f32.mrb[0].mxu0
        %v7049 = vadd.f32 %v6956, %v7048
        %v7050 = vpop.f32.mrb[0].mxu0
        %7051 = vmatprep.mubr.f32.mxu0 0.0
        %7052 = vmatmul.mubr.f32.gmra.mrb[0].mxu0 %v5977
        %v7053 = vpop.f32.mrb[0].mxu0
        %v7054 = vadd.f32 %v6956, %v7053
        %v7055 = vpop.f32.mrb[0].mxu0
        %7056 = vmatprep.mubr.f32.mxu0 0.0
        %7057 = vmatmul.mubr.f32.gmra.mrb[0].mxu0 %v5978
        %v7058 = vpop.f32.mrb[0].mxu0
        %v7059 = vadd.f32 %v6956, %v7058
        %v7060 = vpop.f32.mrb[0].mxu0
        %7061 = vmatprep.mubr.f32.mxu0 0.0
        %7062 = vmatmul.mubr.f32.gmra.mrb[0].mxu0 %v5979
        %v7063 = vpop.f32.mrb[0].mxu0
        %v7064 = vadd.f32 %v6956, %v7063
        %v7065 = vpop.f32.mrb[0].mxu0
        %7066 = vmatprep.mubr.f32.mxu0 0.0
        %7067 = vmatmul.mubr.f32.gmra.mrb[0].mxu0 %v5980
        %v7068 = vpop.f32.mrb[0].mxu0
        %v7069 = vadd.f32 %v6956, %v7068
        %v7070 = vpop.f32.mrb[0].mxu0
        %7071 = vmatprep.mubr.f32.mxu0 0.0
        %7072 = vmatmul.mubr.f32.gmra.mrb[0].mxu0 %v5981
        %v7073 = vpop.f32.mrb[0].mxu0
        %v7074 = vadd.f32 %v6956, %v7073
        %v7075 = vpop.f32.mrb[0].mxu0
        %7076 = vmatprep.mubr.f32.mxu0 0.0
        %7077 = vmatmul.mubr.f32.gmra.mrb[0].mxu0 %v5982
        %v7078 = vpop.f32.mrb[0].mxu0
        %v7079 = vadd.f32 %v6956, %v7078
        %v7080 = vpop.f32.mrb[0].mxu0
        %7081 = vmatprep.mubr.f32.mxu0 0.0
        %7082 = vmatmul.mubr.f32.gmra.mrb[0].mxu0 %v5983
        %v7083 = vpop.f32.mrb[0].mxu0
        %v7084 = vadd.f32 %v6956, %v7083
        %v7085 = vpop.f32.mrb[0].mxu0
        %7086 = vdwg.mxu0
        %v7087 = vmul.f32 %v897, %v7024
        %v7088 = vmul.f32 %v898, %v7029
        %v7089 = vmul.f32 %v899, %v7034
        %v7090 = vmul.f32 %v900, %v7039
        %v7091 = vmul.f32 %v901, %v7044
        %v7092 = vmul.f32 %v902, %v7049
        %v7093 = vmul.f32 %v903, %v7054
        %v7094 = vmul.f32 %v904, %v7059
        %v7095 = vmul.f32 %v905, %v7064
        %v7096 = vmul.f32 %v906, %v7069
        %v7097 = vmul.f32 %v907, %v7074
        %v7098 = vmul.f32 %v908, %v7079
        %v7099 = vmul.f32 %v909, %v7084
        %v7100 = vsel %vm5758, %v7087, 0.0
        %7101 = vadd.xlane.f32.xlu0 %v7100
        %v7102 = vpop.xlane.xlu0 %7101
        %v7103 = vsel %vm5758, %v7088, 0.0
        %7104 = vadd.xlane.f32.xlu0 %v7103
        %v7105 = vpop.xlane.xlu0 %7104
        %v7106 = vsel %vm5758, %v7089, 0.0
        %7107 = vadd.xlane.f32.xlu0 %v7106
        %v7108 = vpop.xlane.xlu0 %7107
        %v7109 = vsel %vm5758, %v7090, 0.0
        %7110 = vadd.xlane.f32.xlu0 %v7109
        %v7111 = vpop.xlane.xlu0 %7110
        %v7112 = vsel %vm5758, %v7091, 0.0
        %7113 = vadd.xlane.f32.xlu0 %v7112
        %v7114 = vpop.xlane.xlu0 %7113
        %v7115 = vsel %vm5758, %v7092, 0.0
        %7116 = vadd.xlane.f32.xlu0 %v7115
        %v7117 = vpop.xlane.xlu0 %7116
        %v7118 = vsel %vm5758, %v7093, 0.0
        %7119 = vadd.xlane.f32.xlu0 %v7118
        %v7120 = vpop.xlane.xlu0 %7119
        %v7121 = vsel %vm5758, %v7094, 0.0
        %7122 = vadd.xlane.f32.xlu0 %v7121
        %v7123 = vpop.xlane.xlu0 %7122
        %v7124 = vsel %vm5758, %v7095, 0.0
        %7125 = vadd.xlane.f32.xlu0 %v7124
        %v7126 = vpop.xlane.xlu0 %7125
        %v7127 = vsel %vm5758, %v7096, 0.0
        %7128 = vadd.xlane.f32.xlu0 %v7127
        %v7129 = vpop.xlane.xlu0 %7128
        %v7130 = vsel %vm5758, %v7097, 0.0
        %7131 = vadd.xlane.f32.xlu0 %v7130
        %v7132 = vpop.xlane.xlu0 %7131
        %v7133 = vsel %vm5758, %v7098, 0.0
        %7134 = vadd.xlane.f32.xlu0 %v7133
        %v7135 = vpop.xlane.xlu0 %7134
        %v7136 = vsel %vm5758, %v7099, 0.0
        %7137 = vadd.xlane.f32.xlu0 %v7136
        %v7138 = vpop.xlane.xlu0 %7137
        %v7139 = vld [vmem:[#allocation2 + $0x40] sm:$0xff]
        %v7140 = vld [vmem:[#allocation2 + $0xb0] sm:$0xff]
        %v7141 = vld [vmem:[#allocation2 + $0x120] sm:$0xff]
        %v7142 = vld [vmem:[#allocation2 + $0x190] sm:$0xff]
        %v7143 = vld [vmem:[#allocation2 + $0x200] sm:$0xff]
        %v7144 = vld [vmem:[#allocation2 + $0x270] sm:$0xff]
        %v7145 = vld [vmem:[#allocation2 + $0x2e0] sm:$0xff]
        %v7146 = vld [vmem:[#allocation2 + $0x350] sm:$0xff]
        %v7147 = vld [vmem:[#allocation2 + $0x3c0] sm:$0xff]
        %v7148 = vld [vmem:[#allocation2 + $0x430] sm:$0xff]
        %v7149 = vld [vmem:[#allocation2 + $0x4a0] sm:$0xff]
        %v7150 = vld [vmem:[#allocation2 + $0x510] sm:$0xff]
        %v7151 = vld [vmem:[#allocation2 + $0x580] sm:$0xff]
        %v7152 = vld [vmem:[#allocation2 + $0x5f0] sm:$0xff]
        %v7153 = vld [vmem:[#allocation2 + $0x660] sm:$0xff]
        %v7154 = vld [vmem:[#allocation2 + $0x6d0] sm:$0xff]
        %v7155 = vld [vmem:[#allocation2 + $0x48] ss:$0 sm:$0xff]
        %7156 = vmatprep.subr.mxu0 0.0
        %7157 = vmatpush1.msra.mxu0 %v7139
        %7158 = vmatprep.subr.mxu0 0.0
        %7159 = vmatpush1.msra.mxu0 %v7140
        %7160 = vmatprep.subr.mxu0 0.0
        %7161 = vmatpush1.msra.mxu0 %v7141
        %7162 = vmatprep.subr.mxu0 0.0
        %7163 = vmatpush1.msra.mxu0 %v7142
        %7164 = vmatprep.subr.mxu0 0.0
        %7165 = vmatpush1.msra.mxu0 %v7143
        %7166 = vmatprep.subr.mxu0 0.0
        %7167 = vmatpush1.msra.mxu0 %v7144
        %7168 = vmatprep.subr.mxu0 0.0
        %7169 = vmatpush1.msra.mxu0 %v7145
        %7170 = vmatprep.subr.mxu0 0.0
        %7171 = vmatpush1.msra.mxu0 %v7146
        %7172 = vmatprep.subr.mxu0 0.0
        %7173 = vmatpush1.msra.mxu0 %v7147
        %7174 = vmatprep.subr.mxu0 0.0
        %7175 = vmatpush1.msra.mxu0 %v7148
        %7176 = vmatprep.subr.mxu0 0.0
        %7177 = vmatpush1.msra.mxu0 %v7149
        %7178 = vmatprep.subr.mxu0 0.0
        %7179 = vmatpush1.msra.mxu0 %v7150
        %7180 = vmatprep.subr.mxu0 0.0
        %7181 = vmatpush1.msra.mxu0 %v7151
        %7182 = vmatprep.subr.mxu0 0.0
        %7183 = vmatpush1.msra.mxu0 %v7152
        %7184 = vmatprep.subr.mxu0 0.0
        %7185 = vmatpush1.msra.mxu0 %v7153
        %7186 = vmatprep.subr.mxu0 0.0
        %7187 = vmatpush1.msra.mxu0 %v7154
        %7188 = vmatprep.subr.mxu0 0.0
        %7189 = vmatpush1.msra.mxu0 0.0
        %7190 = vmatprep.subr.mxu0 0.0
        %7191 = vmatpush1.msra.mxu0 0.0
        %7192 = vmatprep.subr.mxu0 0.0
        %7193 = vmatpush1.msra.mxu0 0.0
        %7194 = vmatprep.subr.mxu0 0.0
        %7195 = vmatpush1.msra.mxu0 0.0
        %7196 = vmatprep.subr.mxu0 0.0
        %7197 = vmatpush1.msra.mxu0 0.0
        %7198 = vmatprep.subr.mxu0 0.0
        %7199 = vmatpush1.msra.mxu0 0.0
        %7200 = vmatprep.subr.mxu0 0.0
        %7201 = vmatpush1.msra.mxu0 0.0
        %7202 = vmatprep.subr.mxu0 0.0
        %7203 = vmatpush1.msra.mxu0 0.0
        %7204 = vmatprep.subr.mxu0 0.0
        %7205 = vmatpush1.msra.mxu0 0.0
        %7206 = vmatprep.subr.mxu0 0.0
        %7207 = vmatpush1.msra.mxu0 0.0
        %7208 = vmatprep.subr.mxu0 0.0
        %7209 = vmatpush1.msra.mxu0 0.0
        %7210 = vmatprep.subr.mxu0 0.0
        %7211 = vmatpush1.msra.mxu0 0.0
        %7212 = vmatprep.subr.mxu0 0.0
        %7213 = vmatpush1.msra.mxu0 0.0
        %7214 = vmatprep.subr.mxu0 0.0
        %7215 = vmatpush1.msra.mxu0 0.0
        %7216 = vmatprep.subr.mxu0 0.0
        %7217 = vmatpush1.msra.mxu0 0.0
        %7218 = vmatprep.subr.mxu0 0.0
        %7219 = vmatpush1.msra.mxu0 0.0
        %7220 = vmatprep.mubr.f32.mxu0 0.0
        %7221 = vmatmul.mubr.f32.gmra.mrb[0].mxu0 %v6927
        %v7222 = vpop.f32.mrb[0].mxu0
        %v7223 = vadd.f32 %v7155, %v7222
        %v7224 = vpop.f32.mrb[0].mxu0
        %7225 = vmatprep.mubr.f32.mxu0 0.0
        %7226 = vmatmul.mubr.f32.gmra.mrb[0].mxu0 %v6928
        %v7227 = vpop.f32.mrb[0].mxu0
        %v7228 = vadd.f32 %v7155, %v7227
        %v7229 = vpop.f32.mrb[0].mxu0
        %7230 = vmatprep.mubr.f32.mxu0 0.0
        %7231 = vmatmul.mubr.f32.gmra.mrb[0].mxu0 %v6929
        %v7232 = vpop.f32.mrb[0].mxu0
        %v7233 = vadd.f32 %v7155, %v7232
        %v7234 = vpop.f32.mrb[0].mxu0
        %7235 = vmatprep.mubr.f32.mxu0 0.0
        %7236 = vmatmul.mubr.f32.gmra.mrb[0].mxu0 %v6930
        %v7237 = vpop.f32.mrb[0].mxu0
        %v7238 = vadd.f32 %v7155, %v7237
        %v7239 = vpop.f32.mrb[0].mxu0
        %7240 = vmatprep.mubr.f32.mxu0 0.0
        %7241 = vmatmul.mubr.f32.gmra.mrb[0].mxu0 %v6931
        %v7242 = vpop.f32.mrb[0].mxu0
        %v7243 = vadd.f32 %v7155, %v7242
        %v7244 = vpop.f32.mrb[0].mxu0
        %7245 = vmatprep.mubr.f32.mxu0 0.0
        %7246 = vmatmul.mubr.f32.gmra.mrb[0].mxu0 %v6932
        %v7247 = vpop.f32.mrb[0].mxu0
        %v7248 = vadd.f32 %v7155, %v7247
        %v7249 = vpop.f32.mrb[0].mxu0
        %7250 = vmatprep.mubr.f32.mxu0 0.0
        %7251 = vmatmul.mubr.f32.gmra.mrb[0].mxu0 %v6933
        %v7252 = vpop.f32.mrb[0].mxu0
        %v7253 = vadd.f32 %v7155, %v7252
        %v7254 = vpop.f32.mrb[0].mxu0
        %7255 = vmatprep.mubr.f32.mxu0 0.0
        %7256 = vmatmul.mubr.f32.gmra.mrb[0].mxu0 %v6934
        %v7257 = vpop.f32.mrb[0].mxu0
        %v7258 = vadd.f32 %v7155, %v7257
        %v7259 = vpop.f32.mrb[0].mxu0
        %7260 = vmatprep.mubr.f32.mxu0 0.0
        %7261 = vmatmul.mubr.f32.gmra.mrb[0].mxu0 %v6935
        %v7262 = vpop.f32.mrb[0].mxu0
        %v7263 = vadd.f32 %v7155, %v7262
        %v7264 = vpop.f32.mrb[0].mxu0
        %7265 = vmatprep.mubr.f32.mxu0 0.0
        %7266 = vmatmul.mubr.f32.gmra.mrb[0].mxu0 %v6936
        %v7267 = vpop.f32.mrb[0].mxu0
        %v7268 = vadd.f32 %v7155, %v7267
        %v7269 = vpop.f32.mrb[0].mxu0
        %7270 = vmatprep.mubr.f32.mxu0 0.0
        %7271 = vmatmul.mubr.f32.gmra.mrb[0].mxu0 %v6937
        %v7272 = vpop.f32.mrb[0].mxu0
        %v7273 = vadd.f32 %v7155, %v7272
        %v7274 = vpop.f32.mrb[0].mxu0
        %7275 = vmatprep.mubr.f32.mxu0 0.0
        %7276 = vmatmul.mubr.f32.gmra.mrb[0].mxu0 %v6938
        %v7277 = vpop.f32.mrb[0].mxu0
        %v7278 = vadd.f32 %v7155, %v7277
        %v7279 = vpop.f32.mrb[0].mxu0
        %7280 = vmatprep.mubr.f32.mxu0 0.0
        %7281 = vmatmul.mubr.f32.gmra.mrb[0].mxu0 %v6939
        %v7282 = vpop.f32.mrb[0].mxu0
        %v7283 = vadd.f32 %v7155, %v7282
        %v7284 = vpop.f32.mrb[0].mxu0
        %7285 = vdwg.mxu0
        %7299 = vrot.lane.b32.xlu0 %v7223, 10
        %v7300 = vpop.permute.xlu0 %7299
        %7301 = vrot.lane.b32.xlu0 %v7228, 10
        %v7302 = vpop.permute.xlu0 %7301
        %7303 = vrot.lane.b32.xlu0 %v7233, 10
        %v7304 = vpop.permute.xlu0 %7303
        %7305 = vrot.lane.b32.xlu0 %v7238, 10
        %v7306 = vpop.permute.xlu0 %7305
        %7307 = vrot.lane.b32.xlu0 %v7243, 10
        %v7308 = vpop.permute.xlu0 %7307
        %7309 = vrot.lane.b32.xlu0 %v7248, 10
        %v7310 = vpop.permute.xlu0 %7309
        %7311 = vrot.lane.b32.xlu0 %v7253, 10
        %v7312 = vpop.permute.xlu0 %7311
        %7313 = vrot.lane.b32.xlu0 %v7258, 10
        %v7314 = vpop.permute.xlu0 %7313
        %7315 = vrot.lane.b32.xlu0 %v7263, 10
        %v7316 = vpop.permute.xlu0 %7315
        %7317 = vrot.lane.b32.xlu0 %v7268, 10
        %v7318 = vpop.permute.xlu0 %7317
        %7319 = vrot.lane.b32.xlu0 %v7273, 10
        %v7320 = vpop.permute.xlu0 %7319
        %7321 = vrot.lane.b32.xlu0 %v7278, 10
        %v7322 = vpop.permute.xlu0 %7321
        %7323 = vrot.lane.b32.xlu0 %v7283, 10
        %v7324 = vpop.permute.xlu0 %7323
        %v7338 = vmul.f32 %v3985, %v7300
        %v7339 = vmul.f32 %v3990, %v7302
        %v7340 = vmul.f32 %v3995, %v7304
        %v7341 = vmul.f32 %v4000, %v7306
        %v7342 = vmul.f32 %v4005, %v7308
        %v7343 = vmul.f32 %v4010, %v7310
        %v7344 = vmul.f32 %v4015, %v7312
        %v7345 = vmul.f32 %v4020, %v7314
        %v7346 = vmul.f32 %v4025, %v7316
        %v7347 = vmul.f32 %v4030, %v7318
        %v7348 = vmul.f32 %v4035, %v7320
        %v7349 = vmul.f32 %v4040, %v7322
        %v7350 = vmul.f32 %v4045, %v7324
        %7364 = vrot.lane.b32.xlu0 %v7338, 118
        %v7365 = vpop.permute.xlu0 %7364
        %7366 = vrot.lane.b32.xlu0 %v7339, 118
        %v7367 = vpop.permute.xlu0 %7366
        %7368 = vrot.lane.b32.xlu0 %v7340, 118
        %v7369 = vpop.permute.xlu0 %7368
        %7370 = vrot.lane.b32.xlu0 %v7341, 118
        %v7371 = vpop.permute.xlu0 %7370
        %7372 = vrot.lane.b32.xlu0 %v7342, 118
        %v7373 = vpop.permute.xlu0 %7372
        %7374 = vrot.lane.b32.xlu0 %v7343, 118
        %v7375 = vpop.permute.xlu0 %7374
        %7376 = vrot.lane.b32.xlu0 %v7344, 118
        %v7377 = vpop.permute.xlu0 %7376
        %7378 = vrot.lane.b32.xlu0 %v7345, 118
        %v7379 = vpop.permute.xlu0 %7378
        %7380 = vrot.lane.b32.xlu0 %v7346, 118
        %v7381 = vpop.permute.xlu0 %7380
        %7382 = vrot.lane.b32.xlu0 %v7347, 118
        %v7383 = vpop.permute.xlu0 %7382
        %7384 = vrot.lane.b32.xlu0 %v7348, 118
        %v7385 = vpop.permute.xlu0 %7384
        %7386 = vrot.lane.b32.xlu0 %v7349, 118
        %v7387 = vpop.permute.xlu0 %7386
        %7388 = vrot.lane.b32.xlu0 %v7350, 118
        %v7389 = vpop.permute.xlu0 %7388
        %v7403 = vsel %vm6649, %v7365, 0.0
        %7404 = vadd.xlane.f32.xlu0 %v7403
        %v7405 = vpop.xlane.xlu0 %7404
        %v7406 = vsel %vm6649, %v7367, 0.0
        %7407 = vadd.xlane.f32.xlu0 %v7406
        %v7408 = vpop.xlane.xlu0 %7407
        %v7409 = vsel %vm6649, %v7369, 0.0
        %7410 = vadd.xlane.f32.xlu0 %v7409
        %v7411 = vpop.xlane.xlu0 %7410
        %v7412 = vsel %vm6649, %v7371, 0.0
        %7413 = vadd.xlane.f32.xlu0 %v7412
        %v7414 = vpop.xlane.xlu0 %7413
        %v7415 = vsel %vm6649, %v7373, 0.0
        %7416 = vadd.xlane.f32.xlu0 %v7415
        %v7417 = vpop.xlane.xlu0 %7416
        %v7418 = vsel %vm6649, %v7375, 0.0
        %7419 = vadd.xlane.f32.xlu0 %v7418
        %v7420 = vpop.xlane.xlu0 %7419
        %v7421 = vsel %vm6649, %v7377, 0.0
        %7422 = vadd.xlane.f32.xlu0 %v7421
        %v7423 = vpop.xlane.xlu0 %7422
        %v7424 = vsel %vm6649, %v7379, 0.0
        %7425 = vadd.xlane.f32.xlu0 %v7424
        %v7426 = vpop.xlane.xlu0 %7425
        %v7427 = vsel %vm6649, %v7381, 0.0
        %7428 = vadd.xlane.f32.xlu0 %v7427
        %v7429 = vpop.xlane.xlu0 %7428
        %v7430 = vsel %vm6649, %v7383, 0.0
        %7431 = vadd.xlane.f32.xlu0 %v7430
        %v7432 = vpop.xlane.xlu0 %7431
        %v7433 = vsel %vm6649, %v7385, 0.0
        %7434 = vadd.xlane.f32.xlu0 %v7433
        %v7435 = vpop.xlane.xlu0 %7434
        %v7436 = vsel %vm6649, %v7387, 0.0
        %7437 = vadd.xlane.f32.xlu0 %v7436
        %v7438 = vpop.xlane.xlu0 %7437
        %v7439 = vsel %vm6649, %v7389, 0.0
        %7440 = vadd.xlane.f32.xlu0 %v7439
        %v7441 = vpop.xlane.xlu0 %7440
        %v7442 = vsub.f32 0.0, %v7405
        %v7443 = vsub.f32 0.0, %v7408
        %v7444 = vsub.f32 0.0, %v7411
        %v7445 = vsub.f32 0.0, %v7414
        %v7446 = vsub.f32 0.0, %v7417
        %v7447 = vsub.f32 0.0, %v7420
        %v7448 = vsub.f32 0.0, %v7423
        %v7449 = vsub.f32 0.0, %v7426
        %v7450 = vsub.f32 0.0, %v7429
        %v7451 = vsub.f32 0.0, %v7432
        %v7452 = vsub.f32 0.0, %v7435
        %v7453 = vsub.f32 0.0, %v7438
        %v7454 = vsub.f32 0.0, %v7441
        %v7455 = vmul.f32 %v7442, 1.442695
        %v7456 = vpow.pop %v7455
        %v7457 = vmul.f32 %v7443, 1.442695
        %v7458 = vpow.pop %v7457
        %v7459 = vmul.f32 %v7444, 1.442695
        %v7460 = vpow.pop %v7459
        %v7461 = vmul.f32 %v7445, 1.442695
        %v7462 = vpow.pop %v7461
        %v7463 = vmul.f32 %v7446, 1.442695
        %v7464 = vpow.pop %v7463
        %v7465 = vmul.f32 %v7447, 1.442695
        %v7466 = vpow.pop %v7465
        %v7467 = vmul.f32 %v7448, 1.442695
        %v7468 = vpow.pop %v7467
        %v7469 = vmul.f32 %v7449, 1.442695
        %v7470 = vpow.pop %v7469
        %v7471 = vmul.f32 %v7450, 1.442695
        %v7472 = vpow.pop %v7471
        %v7473 = vmul.f32 %v7451, 1.442695
        %v7474 = vpow.pop %v7473
        %v7475 = vmul.f32 %v7452, 1.442695
        %v7476 = vpow.pop %v7475
        %v7477 = vmul.f32 %v7453, 1.442695
        %v7478 = vpow.pop %v7477
        %v7479 = vmul.f32 %v7454, 1.442695
        %v7480 = vpow.pop %v7479
        %v7481 = vadd.f32 %v7456, 1.0
        %v7482 = vadd.f32 %v7458, 1.0
        %v7483 = vadd.f32 %v7460, 1.0
        %v7484 = vadd.f32 %v7462, 1.0
        %v7485 = vadd.f32 %v7464, 1.0
        %v7486 = vadd.f32 %v7466, 1.0
        %v7487 = vadd.f32 %v7468, 1.0
        %v7488 = vadd.f32 %v7470, 1.0
        %v7489 = vadd.f32 %v7472, 1.0
        %v7490 = vadd.f32 %v7474, 1.0
        %v7491 = vadd.f32 %v7476, 1.0
        %v7492 = vadd.f32 %v7478, 1.0
        %v7493 = vadd.f32 %v7480, 1.0
        %v7494 = vrcp.pop %v7481
        %v7495 = vmul.f32 2.0, %v7494
        %v7496 = vrcp.pop %v7482
        %v7497 = vmul.f32 2.0, %v7496
        %v7498 = vrcp.pop %v7483
        %v7499 = vmul.f32 2.0, %v7498
        %v7500 = vrcp.pop %v7484
        %v7501 = vmul.f32 2.0, %v7500
        %v7502 = vrcp.pop %v7485
        %v7503 = vmul.f32 2.0, %v7502
        %v7504 = vrcp.pop %v7486
        %v7505 = vmul.f32 2.0, %v7504
        %v7506 = vrcp.pop %v7487
        %v7507 = vmul.f32 2.0, %v7506
        %v7508 = vrcp.pop %v7488
        %v7509 = vmul.f32 2.0, %v7508
        %v7510 = vrcp.pop %v7489
        %v7511 = vmul.f32 2.0, %v7510
        %v7512 = vrcp.pop %v7490
        %v7513 = vmul.f32 2.0, %v7512
        %v7514 = vrcp.pop %v7491
        %v7515 = vmul.f32 2.0, %v7514
        %v7516 = vrcp.pop %v7492
        %v7517 = vmul.f32 2.0, %v7516
        %v7518 = vrcp.pop %v7493
        %v7519 = vmul.f32 2.0, %v7518
        %v7520 = vmul.f32 %v7495, 1.442695
        %v7521 = vpow.pop %v7520
        %v7522 = vmul.f32 %v7497, 1.442695
        %v7523 = vpow.pop %v7522
        %v7524 = vmul.f32 %v7499, 1.442695
        %v7525 = vpow.pop %v7524
        %v7526 = vmul.f32 %v7501, 1.442695
        %v7527 = vpow.pop %v7526
        %v7528 = vmul.f32 %v7503, 1.442695
        %v7529 = vpow.pop %v7528
        %v7530 = vmul.f32 %v7505, 1.442695
        %v7531 = vpow.pop %v7530
        %v7532 = vmul.f32 %v7507, 1.442695
        %v7533 = vpow.pop %v7532
        %v7534 = vmul.f32 %v7509, 1.442695
        %v7535 = vpow.pop %v7534
        %v7536 = vmul.f32 %v7511, 1.442695
        %v7537 = vpow.pop %v7536
        %v7538 = vmul.f32 %v7513, 1.442695
        %v7539 = vpow.pop %v7538
        %v7540 = vmul.f32 %v7515, 1.442695
        %v7541 = vpow.pop %v7540
        %v7542 = vmul.f32 %v7517, 1.442695
        %v7543 = vpow.pop %v7542
        %v7544 = vmul.f32 %v7519, 1.442695
        %v7545 = vpow.pop %v7544
        %vm7546 = vcmask 408576
        %7547 = vst.msk [vmem:[%s194] sm:$0xff] %vm7546, %v555
        %7548 = vst.msk [vmem:[%s194 + $0x8] sm:$0xff] %vm7546, %v556
        %7549 = vst.msk [vmem:[%s194 + $0x10] sm:$0xff] %vm7546, %v557
        %7550 = vst.msk [vmem:[%s194 + $0x18] sm:$0xff] %vm7546, %v558
        %7551 = vst.msk [vmem:[%s194 + $0x20] sm:$0xff] %vm7546, %v559
        %7552 = vst.msk [vmem:[%s194 + $0x28] sm:$0xff] %vm7546, %v560
        %7553 = vst.msk [vmem:[%s194 + $0x30] sm:$0xff] %vm7546, %v561
        %7554 = vst.msk [vmem:[%s194 + $0x38] sm:$0xff] %vm7546, %v562
        %7555 = vst.msk [vmem:[%s194 + $0x40] sm:$0xff] %vm7546, %v563
        %7556 = vst.msk [vmem:[%s194 + $0x48] sm:$0xff] %vm7546, %v564
        %7557 = vst.msk [vmem:[%s194 + $0x50] sm:$0xff] %vm7546, %v565
        %7558 = vst.msk [vmem:[%s194 + $0x58] sm:$0xff] %vm7546, %v566
        %7559 = vst.msk [vmem:[%s194 + $0x60] sm:$0xff] %vm7546, %v567
        %vm7560 = vcmask 417168
        %7561 = vst.msk [vmem:[%s194] sm:$0xff] %vm7560, %v7102
        %7562 = vst.msk [vmem:[%s194 + $0x8] sm:$0xff] %vm7560, %v7105
        %7563 = vst.msk [vmem:[%s194 + $0x10] sm:$0xff] %vm7560, %v7108
        %7564 = vst.msk [vmem:[%s194 + $0x18] sm:$0xff] %vm7560, %v7111
        %7565 = vst.msk [vmem:[%s194 + $0x20] sm:$0xff] %vm7560, %v7114
        %7566 = vst.msk [vmem:[%s194 + $0x28] sm:$0xff] %vm7560, %v7117
        %7567 = vst.msk [vmem:[%s194 + $0x30] sm:$0xff] %vm7560, %v7120
        %7568 = vst.msk [vmem:[%s194 + $0x38] sm:$0xff] %vm7560, %v7123
        %7569 = vst.msk [vmem:[%s194 + $0x40] sm:$0xff] %vm7560, %v7126
        %7570 = vst.msk [vmem:[%s194 + $0x48] sm:$0xff] %vm7560, %v7129
        %7571 = vst.msk [vmem:[%s194 + $0x50] sm:$0xff] %vm7560, %v7132
        %7572 = vst.msk [vmem:[%s194 + $0x58] sm:$0xff] %vm7560, %v7135
        %7573 = vst.msk [vmem:[%s194 + $0x60] sm:$0xff] %vm7560, %v7138
        %vm7574 = vcmask 425368
        %7575 = vst.msk [vmem:[%s194] sm:$0xff] %vm7574, %v7521
        %7576 = vst.msk [vmem:[%s194 + $0x8] sm:$0xff] %vm7574, %v7523
        %7577 = vst.msk [vmem:[%s194 + $0x10] sm:$0xff] %vm7574, %v7525
        %7578 = vst.msk [vmem:[%s194 + $0x18] sm:$0xff] %vm7574, %v7527
        %7579 = vst.msk [vmem:[%s194 + $0x20] sm:$0xff] %vm7574, %v7529
        %7580 = vst.msk [vmem:[%s194 + $0x28] sm:$0xff] %vm7574, %v7531
        %7581 = vst.msk [vmem:[%s194 + $0x30] sm:$0xff] %vm7574, %v7533
        %7582 = vst.msk [vmem:[%s194 + $0x38] sm:$0xff] %vm7574, %v7535
        %7583 = vst.msk [vmem:[%s194 + $0x40] sm:$0xff] %vm7574, %v7537
        %7584 = vst.msk [vmem:[%s194 + $0x48] sm:$0xff] %vm7574, %v7539
        %7585 = vst.msk [vmem:[%s194 + $0x50] sm:$0xff] %vm7574, %v7541
        %7586 = vst.msk [vmem:[%s194 + $0x58] sm:$0xff] %vm7574, %v7543
        %7587 = vst.msk [vmem:[%s194 + $0x60] sm:$0xff] %vm7574, %v7545
        %s7588 = sand.u32 %s95, 1
        %s7589 = scalar_lea.sflag [#allocation4], %s7588
        %s7590 = sand.u32 %s95, 1
        %s7591 = smul.addr %s7590, 104
        %s7592 = scalar_lea.vmem [#allocation7], %s7591
        // Predicated region
        $region41: #{tpu_custom_call.1} parent=31 // pred_check
          %p7593 = pneg %p105
        $region42: #{tpu_custom_call.1} parent=31 // pred_check_branch
          %7595 = sbr.rel (%p7593) target = $region44
        $region43: #{tpu_custom_call.1} parent=31 // pred_region
          %s7596 = smul.u32 13, %s19
          %s7598 = ssub.s32 1664, 1664
          %7599 = vsyncadd %s7589, %s7598
          %s7600 = smul.addr %s7596, 128
          %s7601 = scalar_lea.hbm %s3, %s7600
          %s7602 = sshll.u32 %s7592, 4
          %s7603 = int_to_ptr.vmem [resolvable:$true] %s7602
          %7608 = dma.vmem_to_hbm [thread:$0]  %s7603, 1664, %s7601, %s7589, 128, 128, 8
        $region44: #{tpu_custom_call.1} parent=31 // pred_fallthru
          _
      $region32: #{tpu_custom_call.1} parent=5 // pred_fallthru
        _
      %p7609 = scmp.le.s32.totalorder 2, %s14
      // Predicated region
      $region45: #{tpu_custom_call.1} parent=5 // pred_check
        %p7610 = pneg %p7609
      $region46: #{tpu_custom_call.1} parent=5 // pred_check_branch
        %7612 = sbr.rel (%p7610) target = $region48
      $region47: #{tpu_custom_call.1} parent=5 // pred_region
        %s7613 = ssub.s32 %s14, 2
        // Predicated region
        $region49: #{tpu_custom_call.1} parent=47 // pred_check
          %p7614 = pneg %p111
        $region50: #{tpu_custom_call.1} parent=47 // pred_check_branch
          %7616 = sbr.rel (%p7614) target = $region52
        $region51: #{tpu_custom_call.1} parent=47 // pred_region
          %s7617 = sand.u32 %s96, 1
          %s7618 = scalar_lea.sflag [#allocation4], %s7617
          %s7619 = sand.u32 %s96, 1
          %s7620 = smul.addr %s7619, 104
          %s7621 = scalar_lea.vmem [#allocation7], %s7620
          %7622 = dma.done %s7618, 1664
        $region52: #{tpu_custom_call.1} parent=47 // pred_fallthru
          _
      $region48: #{tpu_custom_call.1} parent=5 // pred_fallthru
        _
    $region6: #{tpu_custom_call.1} parent=1 // loop_footer
      %s18 = sadd.s32 1, %s14
    $region7: #{tpu_custom_call.1} parent=1 // loop_footer_branch
      %13 = sbr.rel target = $region3
    $region8: #{tpu_custom_call.1} parent=1 // loop_exit
      _
    %7623 = vsyncpa [#allocation3], 1
    %s7624 = scalar_lea.sflag [#allocation3], 1
    %7625 = vsyncpa %s7624, 1
    %7626 = vsyncpa [#allocation6], 1
    %7627 = vsyncpa [#allocation4], 1
    %s7628 = scalar_lea.sflag [#allocation4], 1
    %7629 = vsyncpa %s7628, 1

</llo_original>
